<compile_context>
chip_gen: v7x
topology: tpu7x:2x2x1
jax: 0.10.0
libtpu: 0.0.40
codegen_flags: <defaults>
</compile_context>

<pallas_src>
import functools

import jax
import jax.numpy as jnp
from jax.experimental import pallas as pl
from jax.experimental.pallas import tpu as pltpu


def _upsample_conv_kernel(x_ref, w_ref, b_ref, o_ref, xpad_ref, *,
                          ksize, stride, upsample, pad, h_out, w_out):
    """One grid step = one image.

    x_ref:    (1, H, W, C_in)            original (pre-upsample) image, NHWC
    w_ref:    (KH*KW, C_out, C_in)       per-tap weight matrices
    b_ref:    (C_out, 1)                 bias
    o_ref:    (1, C_out, H_out*W_out)    lane-dense, channel-major-flat output
    xpad_ref: (H_pad, W_pad, C_in)       VMEM scratch: upsampled + zero-padded
    """
    x = x_ref[0]                                   # (H, W, C_in)
    h_in, w_in, c_in = x.shape
    c_out = o_ref.shape[1]
    hw = h_out * w_out

    # ---- fused nearest-neighbour upsample (stays in VMEM, never hits HBM) ----
    # Only non-lane dims are regrouped; the lane dim (C_in) is untouched, so
    # these broadcasts/reshapes are cheap sublane copies.
    u = upsample
    if u > 1:
        x = jnp.broadcast_to(x[:, :, None, :], (h_in, w_in, u, c_in))
        x = x.reshape(h_in, w_in * u, c_in)                      # W-upsample
        x = jnp.broadcast_to(x[:, None, :, :], (h_in, u, w_in * u, c_in))
        x = x.reshape(h_in * u, w_in * u, c_in)                  # H-upsample
    h_up, w_up = h_in * u, w_in * u

    # ---- fused zero padding into the VMEM scratch -----------------------------
    if pad > 0:
        xpad_ref[...] = jnp.zeros_like(xpad_ref)
        xpad_ref[pad:pad + h_up, pad:pad + w_up, :] = x
    else:
        xpad_ref[...] = x
    xpad = xpad_ref[...]                           # (H_pad, W_pad, C_in)

    # ---- conv as KH*KW per-tap MXU matmuls accumulated in f32 -----------------
    # acc is (C_out, HW): tiny (a few vregs for realistic C_out), lane-dense.
    acc = jnp.zeros((c_out, hw), dtype=jnp.float32)
    for kh in range(ksize):
        for kw in range(ksize):
            tap = xpad[kh:kh + stride * h_out:stride,
                       kw:kw + stride * w_out:stride, :]         # (H_out, W_out, C_in)
            tap2 = tap.reshape(hw, c_in)                         # (HW, C_in)
            w_tap = w_ref[kh * ksize + kw]                       # (C_out, C_in)
            # Contract over C_in (lane dim of both operands) -> (C_out, HW).
            acc = acc + jax.lax.dot_general(
                w_tap, tap2,
                dimension_numbers=(((1,), (1,)), ((), ())),
                preferred_element_type=jnp.float32)

    acc = acc + b_ref[...]                         # (C_out, 1) broadcast over lanes
    o_ref[0] = acc.astype(o_ref.dtype)


def upsample_conv_layer(x_nchw, weight_oihw, bias, *,
                        kernel_size, stride, upsample=None):
    """Forward pass of UpsampleConvLayer.

    x_nchw:      (N, C_in, H, W)          float32
    weight_oihw: (C_out, C_in, KH, KW)    float32 (PyTorch Conv2d layout)
    bias:        (C_out,)                 float32
    Returns (N, C_out, H_out, W_out).
    """
    n, c_in, h, w = x_nchw.shape
    c_out = weight_oihw.shape[0]
    u = int(upsample) if upsample else 1
    pad = kernel_size // 2
    h_up, w_up = h * u, w * u
    h_padded, w_padded = h_up + 2 * pad, w_up + 2 * pad
    h_out = (h_padded - kernel_size) // stride + 1
    w_out = (w_padded - kernel_size) // stride + 1

    # Small one-time layout prep.  The transpose touches only the pre-upsample
    # input; the big post-upsample tensor is produced and consumed inside VMEM.
    x_nhwc = jnp.transpose(x_nchw, (0, 2, 3, 1))                 # (N, H, W, C_in)
    # Per-tap weight matrices: (KH*KW, C_out, C_in), tap order (kh, kw).
    w3d = jnp.transpose(weight_oihw, (2, 3, 0, 1)).reshape(
        kernel_size * kernel_size, c_out, c_in)
    b2d = bias.reshape(c_out, 1)

    kernel = functools.partial(
        _upsample_conv_kernel, ksize=kernel_size, stride=stride, upsample=u,
        pad=pad, h_out=h_out, w_out=w_out)

    out_flat = pl.pallas_call(
        kernel,
        out_shape=jax.ShapeDtypeStruct((n, c_out, h_out * w_out), x_nchw.dtype),
        grid_spec=pltpu.PrefetchScalarGridSpec(
            num_scalar_prefetch=0,
            grid=(n,),
            in_specs=[
                pl.BlockSpec((1, h, w, c_in), lambda i: (i, 0, 0, 0)),
                pl.BlockSpec((kernel_size * kernel_size, c_out, c_in),
                             lambda i: (0, 0, 0)),
                pl.BlockSpec((c_out, 1), lambda i: (0, 0)),
            ],
            out_specs=pl.BlockSpec((1, c_out, h_out * w_out),
                                   lambda i: (i, 0, 0)),
            scratch_shapes=[
                pltpu.VMEM((h_padded, w_padded, c_in), jnp.float32),
            ],
        ),
        compiler_params=pltpu.CompilerParams(
            dimension_semantics=("parallel",)),
    )(x_nhwc, w3d, b2d)

    # Metadata-only reshape back to the PyTorch NCHW layout (no HBM pass).
    return out_flat.reshape(n, c_out, h_out, w_out)


if __name__ == "__main__":
    # Module hyperparameters (deterministic, synthetic):
    in_channels, out_channels = 4, 8
    kernel_size, stride, upsample = 3, 1, 2
    batch, spatial = 2, 16         # input (2,4,16,16) -> upsample x2 -> (2,8,32,32)

    key = jax.random.PRNGKey(0)
    kx, kw, kb = jax.random.split(key, 3)
    x = jax.random.normal(kx, (batch, in_channels, spatial, spatial),
                          dtype=jnp.float32)
    # Deterministic Conv2d-style init (uniform in +-1/sqrt(fan_in)).
    fan_in = in_channels * kernel_size * kernel_size
    bound = 1.0 / (fan_in ** 0.5)
    weight = jax.random.uniform(kw, (out_channels, in_channels,
                                     kernel_size, kernel_size),
                                minval=-bound, maxval=bound, dtype=jnp.float32)
    bias = jax.random.uniform(kb, (out_channels,),
                              minval=-bound, maxval=bound, dtype=jnp.float32)

    out = upsample_conv_layer(x, weight, bias,
                              kernel_size=kernel_size, stride=stride,
                              upsample=upsample)
    out = jax.block_until_ready(out)

    # Reference check against XLA's conv (same semantics as nn.Conv2d).
    x_up = jnp.repeat(jnp.repeat(x, upsample, axis=2), upsample, axis=3)
    pad = kernel_size // 2
    ref = jax.lax.conv_general_dilated(
        x_up, weight, window_strides=(stride, stride),
        padding=[(pad, pad), (pad, pad)],
        dimension_numbers=("NCHW", "OIHW", "NCHW"),
    ) + bias[None, :, None, None]

    assert out.shape == ref.shape, (out.shape, ref.shape)
    err = float(jnp.max(jnp.abs(out - ref)))
    assert err < 1e-4, err
    print("KERNEL_OK")
</pallas_src>

<mosaic_0001>
module attributes {stable_mosaic.version = 11 : i64} {
  func.func @_upsample_conv_kernel(%arg0: i32, %arg1: memref<1x16x16x4xf32, #tpu.memory_space<vmem>>, %arg2: memref<9x8x4xf32, #tpu.memory_space<vmem>>, %arg3: memref<8x1xf32, #tpu.memory_space<vmem>>, %arg4: memref<1x8x1024xf32, #tpu.memory_space<vmem>>, %arg5: memref<34x34x4xf32, #tpu.memory_space<vmem>>) attributes {dimension_semantics = [#tpu.dimension_semantics<parallel>], iteration_bounds = array<i64: 2>, scalar_prefetch = 0 : i64, scratch_operands = 1 : i64, tpu.core_type = #tpu.core_type<tc>, window_params = [{transform_indices = @transform_0, window_bounds = array<i64: 1, 16, 16, 4>}, {pipeline_mode = #tpu.pipeline_mode<synchronous>, transform_indices = @transform_1, window_bounds = array<i64: 9, 8, 4>}, {pipeline_mode = #tpu.pipeline_mode<synchronous>, transform_indices = @transform_2, window_bounds = array<i64: 8, 1>}, {transform_indices = @transform_3, window_bounds = array<i64: 1, 8, 1024>}]} {
    %c0 = arith.constant 0 : index
    %c0_0 = arith.constant 0 : index
    %c0_1 = arith.constant 0 : index
    %c0_2 = arith.constant 0 : index
    %0 = vector.load %arg1[%c0, %c0_0, %c0_1, %c0_2] : memref<1x16x16x4xf32, #tpu.memory_space<vmem>>, vector<1x16x16x4xf32>
    %1 = vector.shape_cast %0 : vector<1x16x16x4xf32> to vector<16x16x4xf32>
    %2 = vector.shape_cast %1 : vector<16x16x4xf32> to vector<16x16x1x4xf32>
    %3 = vector.shape_cast %2 : vector<16x16x1x4xf32> to vector<16x16x1x4xf32>
    %4 = vector.broadcast %3 : vector<16x16x1x4xf32> to vector<16x16x2x4xf32>
    %5 = vector.shape_cast %4 : vector<16x16x2x4xf32> to vector<16x32x4xf32>
    %6 = vector.shape_cast %5 : vector<16x32x4xf32> to vector<16x1x32x4xf32>
    %7 = vector.shape_cast %6 : vector<16x1x32x4xf32> to vector<16x1x32x4xf32>
    %8 = vector.broadcast %7 : vector<16x1x32x4xf32> to vector<16x2x32x4xf32>
    %9 = vector.shape_cast %8 : vector<16x2x32x4xf32> to vector<32x32x4xf32>
    %cst = arith.constant 0.000000e+00 : f32
    %10 = vector.broadcast %cst : f32 to vector<34x34x4xf32>
    %c0_3 = arith.constant 0 : index
    %c0_4 = arith.constant 0 : index
    %c0_5 = arith.constant 0 : index
    %11 = vector.load %arg5[%c0_3, %c0_4, %c0_5] : memref<34x34x4xf32, #tpu.memory_space<vmem>>, vector<34x34x4xf32>
    tpu.vector_store %arg5[%c0_3, %c0_4, %c0_5], %10 {strides = array<i32>} : memref<34x34x4xf32, #tpu.memory_space<vmem>>, vector<34x34x4xf32>,
    %c1 = arith.constant 1 : index
    %c1_6 = arith.constant 1 : index
    %c0_7 = arith.constant 0 : index
    %12 = vector.load %arg5[%c1, %c1_6, %c0_7] : memref<34x34x4xf32, #tpu.memory_space<vmem>>, vector<32x32x4xf32>
    tpu.vector_store %arg5[%c1, %c1_6, %c0_7], %9 {strides = array<i32>} : memref<34x34x4xf32, #tpu.memory_space<vmem>>, vector<32x32x4xf32>,
    %c0_8 = arith.constant 0 : index
    %c0_9 = arith.constant 0 : index
    %c0_10 = arith.constant 0 : index
    %13 = vector.load %arg5[%c0_8, %c0_9, %c0_10] : memref<34x34x4xf32, #tpu.memory_space<vmem>>, vector<34x34x4xf32>
    %cst_11 = arith.constant 0.000000e+00 : f32
    %14 = vector.broadcast %cst_11 : f32 to vector<8x1024xf32>
    %15 = vector.extract_strided_slice %13 {offsets = [0, 0, 0], sizes = [32, 32, 4], strides = [1, 1, 1]} : vector<34x34x4xf32> to vector<32x32x4xf32>
    %16 = vector.shape_cast %15 : vector<32x32x4xf32> to vector<1024x4xf32>
    %c0_12 = arith.constant 0 : index
    %c0_13 = arith.constant 0 : index
    %c0_14 = arith.constant 0 : index
    %17 = vector.load %arg2[%c0_12, %c0_13, %c0_14] : memref<9x8x4xf32, #tpu.memory_space<vmem>>, vector<1x8x4xf32>
    %18 = vector.shape_cast %17 : vector<1x8x4xf32> to vector<8x4xf32>
    %cst_15 = arith.constant dense<0.000000e+00> : vector<8x1024xf32>
    %19 = tpu.matmul %18, %16, %cst_15 {dimension_numbers = #tpu.dot_dimension_numbers<[1], [1], [0], [0], [0, 0, 1, 0], [], []>} : vector<8x4xf32>, vector<1024x4xf32>, vector<8x1024xf32> -> vector<8x1024xf32>
    %20 = arith.addf %14, %19 : vector<8x1024xf32>
    %21 = vector.extract_strided_slice %13 {offsets = [0, 1, 0], sizes = [32, 32, 4], strides = [1, 1, 1]} : vector<34x34x4xf32> to vector<32x32x4xf32>
    %22 = vector.shape_cast %21 : vector<32x32x4xf32> to vector<1024x4xf32>
    %c1_16 = arith.constant 1 : index
    %c0_17 = arith.constant 0 : index
    %c0_18 = arith.constant 0 : index
    %23 = vector.load %arg2[%c1_16, %c0_17, %c0_18] : memref<9x8x4xf32, #tpu.memory_space<vmem>>, vector<1x8x4xf32>
    %24 = vector.shape_cast %23 : vector<1x8x4xf32> to vector<8x4xf32>
    %cst_19 = arith.constant dense<0.000000e+00> : vector<8x1024xf32>
    %25 = tpu.matmul %24, %22, %cst_19 {dimension_numbers = #tpu.dot_dimension_numbers<[1], [1], [0], [0], [0, 0, 1, 0], [], []>} : vector<8x4xf32>, vector<1024x4xf32>, vector<8x1024xf32> -> vector<8x1024xf32>
    %26 = arith.addf %20, %25 : vector<8x1024xf32>
    %27 = vector.extract_strided_slice %13 {offsets = [0, 2, 0], sizes = [32, 32, 4], strides = [1, 1, 1]} : vector<34x34x4xf32> to vector<32x32x4xf32>
    %28 = vector.shape_cast %27 : vector<32x32x4xf32> to vector<1024x4xf32>
    %c2 = arith.constant 2 : index
    %c0_20 = arith.constant 0 : index
    %c0_21 = arith.constant 0 : index
    %29 = vector.load %arg2[%c2, %c0_20, %c0_21] : memref<9x8x4xf32, #tpu.memory_space<vmem>>, vector<1x8x4xf32>
    %30 = vector.shape_cast %29 : vector<1x8x4xf32> to vector<8x4xf32>
    %cst_22 = arith.constant dense<0.000000e+00> : vector<8x1024xf32>
    %31 = tpu.matmul %30, %28, %cst_22 {dimension_numbers = #tpu.dot_dimension_numbers<[1], [1], [0], [0], [0, 0, 1, 0], [], []>} : vector<8x4xf32>, vector<1024x4xf32>, vector<8x1024xf32> -> vector<8x1024xf32>
    %32 = arith.addf %26, %31 : vector<8x1024xf32>
    %33 = vector.extract_strided_slice %13 {offsets = [1, 0, 0], sizes = [32, 32, 4], strides = [1, 1, 1]} : vector<34x34x4xf32> to vector<32x32x4xf32>
    %34 = vector.shape_cast %33 : vector<32x32x4xf32> to vector<1024x4xf32>
    %c3 = arith.constant 3 : index
    %c0_23 = arith.constant 0 : index
    %c0_24 = arith.constant 0 : index
    %35 = vector.load %arg2[%c3, %c0_23, %c0_24] : memref<9x8x4xf32, #tpu.memory_space<vmem>>, vector<1x8x4xf32>
    %36 = vector.shape_cast %35 : vector<1x8x4xf32> to vector<8x4xf32>
    %cst_25 = arith.constant dense<0.000000e+00> : vector<8x1024xf32>
    %37 = tpu.matmul %36, %34, %cst_25 {dimension_numbers = #tpu.dot_dimension_numbers<[1], [1], [0], [0], [0, 0, 1, 0], [], []>} : vector<8x4xf32>, vector<1024x4xf32>, vector<8x1024xf32> -> vector<8x1024xf32>
    %38 = arith.addf %32, %37 : vector<8x1024xf32>
    %39 = vector.extract_strided_slice %13 {offsets = [1, 1, 0], sizes = [32, 32, 4], strides = [1, 1, 1]} : vector<34x34x4xf32> to vector<32x32x4xf32>
    %40 = vector.shape_cast %39 : vector<32x32x4xf32> to vector<1024x4xf32>
    %c4 = arith.constant 4 : index
    %c0_26 = arith.constant 0 : index
    %c0_27 = arith.constant 0 : index
    %41 = vector.load %arg2[%c4, %c0_26, %c0_27] : memref<9x8x4xf32, #tpu.memory_space<vmem>>, vector<1x8x4xf32>
    %42 = vector.shape_cast %41 : vector<1x8x4xf32> to vector<8x4xf32>
    %cst_28 = arith.constant dense<0.000000e+00> : vector<8x1024xf32>
    %43 = tpu.matmul %42, %40, %cst_28 {dimension_numbers = #tpu.dot_dimension_numbers<[1], [1], [0], [0], [0, 0, 1, 0], [], []>} : vector<8x4xf32>, vector<1024x4xf32>, vector<8x1024xf32> -> vector<8x1024xf32>
    %44 = arith.addf %38, %43 : vector<8x1024xf32>
    %45 = vector.extract_strided_slice %13 {offsets = [1, 2, 0], sizes = [32, 32, 4], strides = [1, 1, 1]} : vector<34x34x4xf32> to vector<32x32x4xf32>
    %46 = vector.shape_cast %45 : vector<32x32x4xf32> to vector<1024x4xf32>
    %c5 = arith.constant 5 : index
    %c0_29 = arith.constant 0 : index
    %c0_30 = arith.constant 0 : index
    %47 = vector.load %arg2[%c5, %c0_29, %c0_30] : memref<9x8x4xf32, #tpu.memory_space<vmem>>, vector<1x8x4xf32>
    %48 = vector.shape_cast %47 : vector<1x8x4xf32> to vector<8x4xf32>
    %cst_31 = arith.constant dense<0.000000e+00> : vector<8x1024xf32>
    %49 = tpu.matmul %48, %46, %cst_31 {dimension_numbers = #tpu.dot_dimension_numbers<[1], [1], [0], [0], [0, 0, 1, 0], [], []>} : vector<8x4xf32>, vector<1024x4xf32>, vector<8x1024xf32> -> vector<8x1024xf32>
    %50 = arith.addf %44, %49 : vector<8x1024xf32>
    %51 = vector.extract_strided_slice %13 {offsets = [2, 0, 0], sizes = [32, 32, 4], strides = [1, 1, 1]} : vector<34x34x4xf32> to vector<32x32x4xf32>
    %52 = vector.shape_cast %51 : vector<32x32x4xf32> to vector<1024x4xf32>
    %c6 = arith.constant 6 : index
    %c0_32 = arith.constant 0 : index
    %c0_33 = arith.constant 0 : index
    %53 = vector.load %arg2[%c6, %c0_32, %c0_33] : memref<9x8x4xf32, #tpu.memory_space<vmem>>, vector<1x8x4xf32>
    %54 = vector.shape_cast %53 : vector<1x8x4xf32> to vector<8x4xf32>
    %cst_34 = arith.constant dense<0.000000e+00> : vector<8x1024xf32>
    %55 = tpu.matmul %54, %52, %cst_34 {dimension_numbers = #tpu.dot_dimension_numbers<[1], [1], [0], [0], [0, 0, 1, 0], [], []>} : vector<8x4xf32>, vector<1024x4xf32>, vector<8x1024xf32> -> vector<8x1024xf32>
    %56 = arith.addf %50, %55 : vector<8x1024xf32>
    %57 = vector.extract_strided_slice %13 {offsets = [2, 1, 0], sizes = [32, 32, 4], strides = [1, 1, 1]} : vector<34x34x4xf32> to vector<32x32x4xf32>
    %58 = vector.shape_cast %57 : vector<32x32x4xf32> to vector<1024x4xf32>
    %c7 = arith.constant 7 : index
    %c0_35 = arith.constant 0 : index
    %c0_36 = arith.constant 0 : index
    %59 = vector.load %arg2[%c7, %c0_35, %c0_36] : memref<9x8x4xf32, #tpu.memory_space<vmem>>, vector<1x8x4xf32>
    %60 = vector.shape_cast %59 : vector<1x8x4xf32> to vector<8x4xf32>
    %cst_37 = arith.constant dense<0.000000e+00> : vector<8x1024xf32>
    %61 = tpu.matmul %60, %58, %cst_37 {dimension_numbers = #tpu.dot_dimension_numbers<[1], [1], [0], [0], [0, 0, 1, 0], [], []>} : vector<8x4xf32>, vector<1024x4xf32>, vector<8x1024xf32> -> vector<8x1024xf32>
    %62 = arith.addf %56, %61 : vector<8x1024xf32>
    %63 = vector.extract_strided_slice %13 {offsets = [2, 2, 0], sizes = [32, 32, 4], strides = [1, 1, 1]} : vector<34x34x4xf32> to vector<32x32x4xf32>
    %64 = vector.shape_cast %63 : vector<32x32x4xf32> to vector<1024x4xf32>
    %c8 = arith.constant 8 : index
    %c0_38 = arith.constant 0 : index
    %c0_39 = arith.constant 0 : index
    %65 = vector.load %arg2[%c8, %c0_38, %c0_39] : memref<9x8x4xf32, #tpu.memory_space<vmem>>, vector<1x8x4xf32>
    %66 = vector.shape_cast %65 : vector<1x8x4xf32> to vector<8x4xf32>
    %cst_40 = arith.constant dense<0.000000e+00> : vector<8x1024xf32>
    %67 = tpu.matmul %66, %64, %cst_40 {dimension_numbers = #tpu.dot_dimension_numbers<[1], [1], [0], [0], [0, 0, 1, 0], [], []>} : vector<8x4xf32>, vector<1024x4xf32>, vector<8x1024xf32> -> vector<8x1024xf32>
    %68 = arith.addf %62, %67 : vector<8x1024xf32>
    %c0_41 = arith.constant 0 : index
    %c0_42 = arith.constant 0 : index
    %69 = vector.load %arg3[%c0_41, %c0_42] : memref<8x1xf32, #tpu.memory_space<vmem>>, vector<8x1xf32>
    %70 = vector.broadcast %69 : vector<8x1xf32> to vector<8x1024xf32>
    %71 = arith.addf %68, %70 : vector<8x1024xf32>
    %c0_43 = arith.constant 0 : index
    %c0_44 = arith.constant 0 : index
    %c0_45 = arith.constant 0 : index
    %72 = vector.load %arg4[%c0_43, %c0_44, %c0_45] : memref<1x8x1024xf32, #tpu.memory_space<vmem>>, vector<1x8x1024xf32>
    %73 = vector.shape_cast %72 : vector<1x8x1024xf32> to vector<8x1024xf32>
    %74 = vector.shape_cast %71 : vector<8x1024xf32> to vector<1x8x1024xf32>
    tpu.vector_store %arg4[%c0_43, %c0_44, %c0_45], %74 {strides = array<i32>} : memref<1x8x1024xf32, #tpu.memory_space<vmem>>, vector<1x8x1024xf32>,
    return
  }
  func.func @transform_0(%arg0: i32) -> (i32, i32, i32, i32) {
    %c0_i32 = arith.constant 0 : i32
    %c0_i32_0 = arith.constant 0 : i32
    %c0_i32_1 = arith.constant 0 : i32
    %c0_i32_2 = arith.constant 0 : i32
    return %arg0, %c0_i32, %c0_i32_0, %c0_i32_1 : i32, i32, i32, i32
  }
  func.func @transform_1(%arg0: i32) -> (i32, i32, i32) {
    %c0_i32 = arith.constant 0 : i32
    %c0_i32_0 = arith.constant 0 : i32
    %c0_i32_1 = arith.constant 0 : i32
    %c0_i32_2 = arith.constant 0 : i32
    return %c0_i32, %c0_i32_0, %c0_i32_1 : i32, i32, i32
  }
  func.func @transform_2(%arg0: i32) -> (i32, i32) {
    %c0_i32 = arith.constant 0 : i32
    %c0_i32_0 = arith.constant 0 : i32
    %c0_i32_1 = arith.constant 0 : i32
    return %c0_i32, %c0_i32_0 : i32, i32
  }
  func.func @transform_3(%arg0: i32) -> (i32, i32, i32) {
    %c0_i32 = arith.constant 0 : i32
    %c0_i32_0 = arith.constant 0 : i32
    %c0_i32_1 = arith.constant 0 : i32
    return %arg0, %c0_i32, %c0_i32_0 : i32, i32, i32
  }
}

</mosaic_0001>

<llo_original>
// kernel: tpu_custom_call.1
$region0: #{tpu_custom_call.1}
  #allocation0 [shape = 'u32[]', space=smem, size = 0x4, offset = 0x4, fixed_abs, tag = 'smem constant byte address 0x4 - core index']
  #allocation1 [shape = 'u32[144,128]{1,0:T(1,128)}', space=vmem, size = 0x12000, scoped, tag = 'internal scratch']
  #allocation2 [shape = 'f32[34,34,4]{2,1,0:T(8,128)}', space=vmem, size = 0xaa000, scoped, tag = 'scratch operand']
  %s0 = inlined_call_operand.vmem [shape: f32[2,16,16,4], index: 0, kind: input, shape index: {}]
  %s1 = inlined_call_operand.vmem [shape: f32[9,8,4], index: 1, kind: input, shape index: {}]
  %s2 = inlined_call_operand.vmem [shape: f32[8,1], index: 2, kind: input, shape index: {}]
  %s3 = inlined_call_operand.hbm [shape: f32[2,8,1024], index: 3, kind: output, shape index: {}]
  %s4 = sld [smem:[#allocation0]]
  $region45: #{tpu_custom_call.1} parent=0
    _
  %s6 = ssub.s32 1, %s4
  %s7 = scalar_select 0, %s6, %s4
  $region1: #{tpu_custom_call.1} parent=0
    #allocation3 [shape = 'u8[65536]{0}', space=vmem, size = 0x10000, scoped, tag = 'output window, operand 0']
    #allocation4 [shape = 's32[2]{0}', space=sflag, size = 0x8, scoped, tag = 'scoped memory for tpu_custom_call.1']
    %8 = vsyncpa [#allocation4], 0
    %s9 = scalar_lea.sflag [#allocation4], 1
    %10 = vsyncpa %s9, 0
    loop: start=0, step=1, limit=4
    $region2: #{tpu_custom_call.1} parent=1 // loop_pre_header
      _
    $region3: #{tpu_custom_call.1} parent=1 // loop_header
      %s12 = sphi 0, %s16
      %p13 = scmp.ge.s32.totalorder %s12, 4
      %s22 = sphi 0, %s24
      %s25 = sphi 0, %s22
      %s26 = sphi 0, %s25
      %s42 = sphi 0, %s26
      %s46 = sphi 0, %s46
      %s48 = sphi 0, %s46
      %s49 = sphi 0, %s48
      %s63 = sphi 0, %s49
      %s67 = sphi 0, %s67
      %s69 = sphi 0, %s67
      %s70 = sphi 0, %s69
      %s84 = sphi 0, %s70
      %s90 = sphi 0, %s92
      %s93 = sphi 0, %s90
      %s94 = sphi 0, %s93
      %s110 = sphi 0, %s94
    $region4: #{tpu_custom_call.1} parent=1 // loop_header_branch
      %15 = sbr.rel (%p13) target = $region8
    $region5: #{tpu_custom_call.1} parent=1 // loop_body
      %s17 = ssub.s32 %s12, 1
      %s18 = ssub.s32 %s12, 2
      %s19 = sadd.s32 %s12, 1
      %s20 = ssub.s32 %s12, %s19
      %p21 = scmp.eq.s32.totalorder %s20, 0
      %s23 = sadd.s32 %s22, 1
      %s24 = scalar_select %p21, %s22, %s23
      %p27 = pneg %p21
      %p28 = scmp.eq.s32.totalorder %s12, 1
      %p29 = por %p27, %p28
      %p30 = scmp.ne.s32.totalorder %s22, %s25
      %p31 = scmp.eq.s32.totalorder %s12, 0
      %p32 = por %p30, %p31
      %p33 = scmp.ne.s32.totalorder %s22, %s25
      %p34 = scmp.eq.s32.totalorder %s17, 1
      %p35 = por %p33, %p34
      %p36 = scmp.ne.s32.totalorder %s25, %s26
      %p37 = scmp.eq.s32.totalorder %s17, 0
      %p38 = por %p36, %p37
      %p39 = scmp.ne.s32.totalorder %s25, %s26
      %p40 = scmp.eq.s32.totalorder %s18, 1
      %p41 = por %p39, %p40
      %p43 = scmp.ne.s32.totalorder %s26, %s42
      %p44 = scmp.eq.s32.totalorder %s18, 0
      %p45 = por %p43, %p44
      %s47 = sadd.s32 %s46, 1
      %p50 = scmp.eq.s32.totalorder %s12, 1
      %p51 = scmp.ne.s32.totalorder %s46, %s48
      %p52 = scmp.eq.s32.totalorder %s12, 0
      %p53 = por %p51, %p52
      %p54 = scmp.ne.s32.totalorder %s46, %s48
      %p55 = scmp.eq.s32.totalorder %s17, 1
      %p56 = por %p54, %p55
      %p57 = scmp.ne.s32.totalorder %s48, %s49
      %p58 = scmp.eq.s32.totalorder %s17, 0
      %p59 = por %p57, %p58
      %p60 = scmp.ne.s32.totalorder %s48, %s49
      %p61 = scmp.eq.s32.totalorder %s18, 1
      %p62 = por %p60, %p61
      %p64 = scmp.ne.s32.totalorder %s49, %s63
      %p65 = scmp.eq.s32.totalorder %s18, 0
      %p66 = por %p64, %p65
      %s68 = sadd.s32 %s67, 1
      %p71 = scmp.eq.s32.totalorder %s12, 1
      %p72 = scmp.ne.s32.totalorder %s67, %s69
      %p73 = scmp.eq.s32.totalorder %s12, 0
      %p74 = por %p72, %p73
      %p75 = scmp.ne.s32.totalorder %s67, %s69
      %p76 = scmp.eq.s32.totalorder %s17, 1
      %p77 = por %p75, %p76
      %p78 = scmp.ne.s32.totalorder %s69, %s70
      %p79 = scmp.eq.s32.totalorder %s17, 0
      %p80 = por %p78, %p79
      %p81 = scmp.ne.s32.totalorder %s69, %s70
      %p82 = scmp.eq.s32.totalorder %s18, 1
      %p83 = por %p81, %p82
      %p85 = scmp.ne.s32.totalorder %s70, %s84
      %p86 = scmp.eq.s32.totalorder %s18, 0
      %p87 = por %p85, %p86
      %s88 = ssub.s32 %s12, %s19
      %p89 = scmp.eq.s32.totalorder %s88, 0
      %s91 = sadd.s32 %s90, 1
      %s92 = scalar_select %p89, %s90, %s91
      %p95 = pneg %p89
      %p96 = scmp.eq.s32.totalorder %s12, 1
      %p97 = por %p95, %p96
      %p98 = scmp.ne.s32.totalorder %s90, %s93
      %p99 = scmp.eq.s32.totalorder %s12, 0
      %p100 = por %p98, %p99
      %p101 = scmp.ne.s32.totalorder %s90, %s93
      %p102 = scmp.eq.s32.totalorder %s17, 1
      %p103 = por %p101, %p102
      %p104 = scmp.ne.s32.totalorder %s93, %s94
      %p105 = scmp.eq.s32.totalorder %s17, 0
      %p106 = por %p104, %p105
      %p107 = scmp.ne.s32.totalorder %s93, %s94
      %p108 = scmp.eq.s32.totalorder %s18, 1
      %p109 = por %p107, %p108
      %p111 = scmp.ne.s32.totalorder %s94, %s110
      %p112 = scmp.eq.s32.totalorder %s18, 0
      %p113 = por %p111, %p112
      %p114 = scmp.le.s32.totalorder 1, %s12
      %p115 = scmp.lt.s32.totalorder %s12, 3
      %p116 = pnand %p114, %p115
      %p117 = pneg %p116
      // Predicated region
      $region9: #{tpu_custom_call.1} parent=5 // pred_check
        _
      $region10: #{tpu_custom_call.1} parent=5 // pred_check_branch
        %119 = sbr.rel (%p116) target = $region12
      $region11: #{tpu_custom_call.1} parent=5 // pred_region
        %s120 = ssub.s32 %s12, 1
        // Predicated region
        $region13: #{tpu_custom_call.1} parent=11 // pred_check
          %p121 = pneg %p59
        $region14: #{tpu_custom_call.1} parent=11 // pred_check_branch
          %123 = sbr.rel (%p121) target = $region16
        $region15: #{tpu_custom_call.1} parent=11 // pred_region
          _
        $region16: #{tpu_custom_call.1} parent=11 // pred_fallthru
          _
        // Predicated region
        $region17: #{tpu_custom_call.1} parent=11 // pred_check
          %p124 = pneg %p80
        $region18: #{tpu_custom_call.1} parent=11 // pred_check_branch
          %126 = sbr.rel (%p124) target = $region20
        $region19: #{tpu_custom_call.1} parent=11 // pred_region
          _
        $region20: #{tpu_custom_call.1} parent=11 // pred_fallthru
          _
      $region12: #{tpu_custom_call.1} parent=5 // pred_fallthru
        _
      %p127 = scmp.lt.s32.totalorder %s12, 2
      // Predicated region
      $region21: #{tpu_custom_call.1} parent=5 // pred_check
        %p128 = pneg %p127
      $region22: #{tpu_custom_call.1} parent=5 // pred_check_branch
        %130 = sbr.rel (%p128) target = $region24
      $region23: #{tpu_custom_call.1} parent=5 // pred_region
        // Predicated region
        $region25: #{tpu_custom_call.1} parent=23 // pred_check
          %p131 = pneg %p32
        $region26: #{tpu_custom_call.1} parent=23 // pred_check_branch
          %133 = sbr.rel (%p131) target = $region28
        $region27: #{tpu_custom_call.1} parent=23 // pred_region
          %p134 = scmp.lt.s32.totalorder %s12, 1
          %s135 = scalar_select %p134, %s12, 1
          %s136 = smul.addr %s135, 32
          %s137 = smul.addr %s136, 8
          %s138 = scalar_lea.vmem %s0, %s137
        $region28: #{tpu_custom_call.1} parent=23 // pred_fallthru
          _
      $region24: #{tpu_custom_call.1} parent=5 // pred_fallthru
        _
      %p139 = scmp.le.s32.totalorder 1, %s12
      %p140 = scmp.lt.s32.totalorder %s12, 3
      %p141 = pnand %p139, %p140
      %p142 = pneg %p141
      // Predicated region
      $region29: #{tpu_custom_call.1} parent=5 // pred_check
        _
      $region30: #{tpu_custom_call.1} parent=5 // pred_check_branch
        %144 = sbr.rel (%p141) target = $region32
      $region31: #{tpu_custom_call.1} parent=5 // pred_region
        %s145 = ssub.s32 %s12, 1
        %p146 = scmp.lt.s32.totalorder %s17, 1
        %s147 = scalar_select %p146, %s17, 1
        %s148 = smul.addr %s147, 32
        %s149 = smul.addr %s148, 8
        %s150 = scalar_lea.vmem %s0, %s149
        %p151 = pneg %p38
        %p152 = pneg %p35
        %p153 = pneg %p59
        %p154 = pneg %p56
        %p155 = pneg %p80
        %p156 = pneg %p77
        %p157 = pneg %p106
        %p158 = pneg %p103
        %s159 = sand.u32 %s93, 1
        %s160 = scalar_lea.sflag [#allocation4], %s159
        %s161 = sand.u32 %s93, 1
        %s162 = smul.addr %s161, 64
        %s163 = scalar_lea.vmem [#allocation3], %s162
        %p164 = scmp.lt.s32.totalorder %s17, 1
        %s165 = scalar_select %p164, %s17, 1
        %s166 = smul.addr %s165, 32
        %s167 = smul.addr %s166, 8
        %s168 = scalar_lea.vmem %s0, %s167
        %v169 = vld [vmem:[%s168] sm:$0xff]
        %v170 = vld [vmem:[%s168 + $0x8] sm:$0xff]
        %v171 = vld [vmem:[%s168 + $0x10] sm:$0xff]
        %v172 = vld [vmem:[%s168 + $0x18] sm:$0xff]
        %v173 = vld [vmem:[%s168 + $0x20] sm:$0xff]
        %v174 = vld [vmem:[%s168 + $0x28] sm:$0xff]
        %v175 = vld [vmem:[%s168 + $0x30] sm:$0xff]
        %v176 = vld [vmem:[%s168 + $0x38] sm:$0xff]
        %v177 = vld [vmem:[%s168 + $0x40] sm:$0xff]
        %v178 = vld [vmem:[%s168 + $0x48] sm:$0xff]
        %v179 = vld [vmem:[%s168 + $0x50] sm:$0xff]
        %v180 = vld [vmem:[%s168 + $0x58] sm:$0xff]
        %v181 = vld [vmem:[%s168 + $0x60] sm:$0xff]
        %v182 = vld [vmem:[%s168 + $0x68] sm:$0xff]
        %v183 = vld [vmem:[%s168 + $0x70] sm:$0xff]
        %v184 = vld [vmem:[%s168 + $0x78] sm:$0xff]
        %v185 = vld [vmem:[%s168 + $0x80] sm:$0xff]
        %v186 = vld [vmem:[%s168 + $0x88] sm:$0xff]
        %v187 = vld [vmem:[%s168 + $0x90] sm:$0xff]
        %v188 = vld [vmem:[%s168 + $0x98] sm:$0xff]
        %v189 = vld [vmem:[%s168 + $0xa0] sm:$0xff]
        %v190 = vld [vmem:[%s168 + $0xa8] sm:$0xff]
        %v191 = vld [vmem:[%s168 + $0xb0] sm:$0xff]
        %v192 = vld [vmem:[%s168 + $0xb8] sm:$0xff]
        %v193 = vld [vmem:[%s168 + $0xc0] sm:$0xff]
        %v194 = vld [vmem:[%s168 + $0xc8] sm:$0xff]
        %v195 = vld [vmem:[%s168 + $0xd0] sm:$0xff]
        %v196 = vld [vmem:[%s168 + $0xd8] sm:$0xff]
        %v197 = vld [vmem:[%s168 + $0xe0] sm:$0xff]
        %v198 = vld [vmem:[%s168 + $0xe8] sm:$0xff]
        %v199 = vld [vmem:[%s168 + $0xf0] sm:$0xff]
        %v200 = vld [vmem:[%s168 + $0xf8] sm:$0xff]
        %v233 = vcombine.high %v169, %v169
        %v235 = vunpack.c.l.s4 1966171168
        %v236 = vunpack.c.0.s8 %v235
        %v237 = vlaneseq
        %v238 = vshrl.u32 %v237, 7
        %v239 = vsub.s32 %v236, %v238
        %v240 = vrot.slane %v169, %v239
        %v242 = vunpack.c.l.s4 1966171168
        %v243 = vunpack.c.0.s8 %v242
        %v244 = vlaneseq
        %v245 = vshrl.u32 %v244, 7
        %v246 = vsub.s32 %v243, %v245
        %v247 = vrot.slane %v233, %v246
        %v248 = vcombine.high %v240, %v240
        %v249 = vcombine.high %v247, %v247
        %v251 = vunpack.c.l.s4 1966171168
        %v252 = vunpack.c.0.s8 %v251
        %v253 = vlaneseq
        %v254 = vshrl.u32 %v253, 7
        %v255 = vsub.s32 %v252, %v254
        %v256 = vrot.slane %v240, %v255
        %v258 = vunpack.c.l.s4 1966171168
        %v259 = vunpack.c.0.s8 %v258
        %v260 = vlaneseq
        %v261 = vshrl.u32 %v260, 7
        %v262 = vsub.s32 %v259, %v261
        %v263 = vrot.slane %v247, %v262
        %v265 = vunpack.c.l.s4 1966171168
        %v266 = vunpack.c.0.s8 %v265
        %v267 = vlaneseq
        %v268 = vshrl.u32 %v267, 7
        %v269 = vsub.s32 %v266, %v268
        %v270 = vrot.slane %v248, %v269
        %v272 = vunpack.c.l.s4 1966171168
        %v273 = vunpack.c.0.s8 %v272
        %v274 = vlaneseq
        %v275 = vshrl.u32 %v274, 7
        %v276 = vsub.s32 %v273, %v275
        %v277 = vrot.slane %v249, %v276
        %v278 = vcombine.high %v256, %v256
        %v279 = vcombine.high %v263, %v263
        %v280 = vcombine.high %v270, %v270
        %v281 = vcombine.high %v277, %v277
        %v282 = vcombine.high %v170, %v170
        %v284 = vunpack.c.l.s4 1966171168
        %v285 = vunpack.c.0.s8 %v284
        %v286 = vlaneseq
        %v287 = vshrl.u32 %v286, 7
        %v288 = vsub.s32 %v285, %v287
        %v289 = vrot.slane %v170, %v288
        %v291 = vunpack.c.l.s4 1966171168
        %v292 = vunpack.c.0.s8 %v291
        %v293 = vlaneseq
        %v294 = vshrl.u32 %v293, 7
        %v295 = vsub.s32 %v292, %v294
        %v296 = vrot.slane %v282, %v295
        %v297 = vcombine.high %v289, %v289
        %v298 = vcombine.high %v296, %v296
        %v300 = vunpack.c.l.s4 1966171168
        %v301 = vunpack.c.0.s8 %v300
        %v302 = vlaneseq
        %v303 = vshrl.u32 %v302, 7
        %v304 = vsub.s32 %v301, %v303
        %v305 = vrot.slane %v289, %v304
        %v307 = vunpack.c.l.s4 1966171168
        %v308 = vunpack.c.0.s8 %v307
        %v309 = vlaneseq
        %v310 = vshrl.u32 %v309, 7
        %v311 = vsub.s32 %v308, %v310
        %v312 = vrot.slane %v296, %v311
        %v314 = vunpack.c.l.s4 1966171168
        %v315 = vunpack.c.0.s8 %v314
        %v316 = vlaneseq
        %v317 = vshrl.u32 %v316, 7
        %v318 = vsub.s32 %v315, %v317
        %v319 = vrot.slane %v297, %v318
        %v321 = vunpack.c.l.s4 1966171168
        %v322 = vunpack.c.0.s8 %v321
        %v323 = vlaneseq
        %v324 = vshrl.u32 %v323, 7
        %v325 = vsub.s32 %v322, %v324
        %v326 = vrot.slane %v298, %v325
        %v327 = vcombine.high %v305, %v305
        %v328 = vcombine.high %v312, %v312
        %v329 = vcombine.high %v319, %v319
        %v330 = vcombine.high %v326, %v326
        %v331 = vcombine.high %v171, %v171
        %v333 = vunpack.c.l.s4 1966171168
        %v334 = vunpack.c.0.s8 %v333
        %v335 = vlaneseq
        %v336 = vshrl.u32 %v335, 7
        %v337 = vsub.s32 %v334, %v336
        %v338 = vrot.slane %v171, %v337
        %v340 = vunpack.c.l.s4 1966171168
        %v341 = vunpack.c.0.s8 %v340
        %v342 = vlaneseq
        %v343 = vshrl.u32 %v342, 7
        %v344 = vsub.s32 %v341, %v343
        %v345 = vrot.slane %v331, %v344
        %v346 = vcombine.high %v338, %v338
        %v347 = vcombine.high %v345, %v345
        %v349 = vunpack.c.l.s4 1966171168
        %v350 = vunpack.c.0.s8 %v349
        %v351 = vlaneseq
        %v352 = vshrl.u32 %v351, 7
        %v353 = vsub.s32 %v350, %v352
        %v354 = vrot.slane %v338, %v353
        %v356 = vunpack.c.l.s4 1966171168
        %v357 = vunpack.c.0.s8 %v356
        %v358 = vlaneseq
        %v359 = vshrl.u32 %v358, 7
        %v360 = vsub.s32 %v357, %v359
        %v361 = vrot.slane %v345, %v360
        %v363 = vunpack.c.l.s4 1966171168
        %v364 = vunpack.c.0.s8 %v363
        %v365 = vlaneseq
        %v366 = vshrl.u32 %v365, 7
        %v367 = vsub.s32 %v364, %v366
        %v368 = vrot.slane %v346, %v367
        %v370 = vunpack.c.l.s4 1966171168
        %v371 = vunpack.c.0.s8 %v370
        %v372 = vlaneseq
        %v373 = vshrl.u32 %v372, 7
        %v374 = vsub.s32 %v371, %v373
        %v375 = vrot.slane %v347, %v374
        %v376 = vcombine.high %v354, %v354
        %v377 = vcombine.high %v361, %v361
        %v378 = vcombine.high %v368, %v368
        %v379 = vcombine.high %v375, %v375
        %v380 = vcombine.high %v172, %v172
        %v382 = vunpack.c.l.s4 1966171168
        %v383 = vunpack.c.0.s8 %v382
        %v384 = vlaneseq
        %v385 = vshrl.u32 %v384, 7
        %v386 = vsub.s32 %v383, %v385
        %v387 = vrot.slane %v172, %v386
        %v389 = vunpack.c.l.s4 1966171168
        %v390 = vunpack.c.0.s8 %v389
        %v391 = vlaneseq
        %v392 = vshrl.u32 %v391, 7
        %v393 = vsub.s32 %v390, %v392
        %v394 = vrot.slane %v380, %v393
        %v395 = vcombine.high %v387, %v387
        %v396 = vcombine.high %v394, %v394
        %v398 = vunpack.c.l.s4 1966171168
        %v399 = vunpack.c.0.s8 %v398
        %v400 = vlaneseq
        %v401 = vshrl.u32 %v400, 7
        %v402 = vsub.s32 %v399, %v401
        %v403 = vrot.slane %v387, %v402
        %v405 = vunpack.c.l.s4 1966171168
        %v406 = vunpack.c.0.s8 %v405
        %v407 = vlaneseq
        %v408 = vshrl.u32 %v407, 7
        %v409 = vsub.s32 %v406, %v408
        %v410 = vrot.slane %v394, %v409
        %v412 = vunpack.c.l.s4 1966171168
        %v413 = vunpack.c.0.s8 %v412
        %v414 = vlaneseq
        %v415 = vshrl.u32 %v414, 7
        %v416 = vsub.s32 %v413, %v415
        %v417 = vrot.slane %v395, %v416
        %v419 = vunpack.c.l.s4 1966171168
        %v420 = vunpack.c.0.s8 %v419
        %v421 = vlaneseq
        %v422 = vshrl.u32 %v421, 7
        %v423 = vsub.s32 %v420, %v422
        %v424 = vrot.slane %v396, %v423
        %v425 = vcombine.high %v403, %v403
        %v426 = vcombine.high %v410, %v410
        %v427 = vcombine.high %v417, %v417
        %v428 = vcombine.high %v424, %v424
        %v429 = vcombine.high %v173, %v173
        %v431 = vunpack.c.l.s4 1966171168
        %v432 = vunpack.c.0.s8 %v431
        %v433 = vlaneseq
        %v434 = vshrl.u32 %v433, 7
        %v435 = vsub.s32 %v432, %v434
        %v436 = vrot.slane %v173, %v435
        %v438 = vunpack.c.l.s4 1966171168
        %v439 = vunpack.c.0.s8 %v438
        %v440 = vlaneseq
        %v441 = vshrl.u32 %v440, 7
        %v442 = vsub.s32 %v439, %v441
        %v443 = vrot.slane %v429, %v442
        %v444 = vcombine.high %v436, %v436
        %v445 = vcombine.high %v443, %v443
        %v447 = vunpack.c.l.s4 1966171168
        %v448 = vunpack.c.0.s8 %v447
        %v449 = vlaneseq
        %v450 = vshrl.u32 %v449, 7
        %v451 = vsub.s32 %v448, %v450
        %v452 = vrot.slane %v436, %v451
        %v454 = vunpack.c.l.s4 1966171168
        %v455 = vunpack.c.0.s8 %v454
        %v456 = vlaneseq
        %v457 = vshrl.u32 %v456, 7
        %v458 = vsub.s32 %v455, %v457
        %v459 = vrot.slane %v443, %v458
        %v461 = vunpack.c.l.s4 1966171168
        %v462 = vunpack.c.0.s8 %v461
        %v463 = vlaneseq
        %v464 = vshrl.u32 %v463, 7
        %v465 = vsub.s32 %v462, %v464
        %v466 = vrot.slane %v444, %v465
        %v468 = vunpack.c.l.s4 1966171168
        %v469 = vunpack.c.0.s8 %v468
        %v470 = vlaneseq
        %v471 = vshrl.u32 %v470, 7
        %v472 = vsub.s32 %v469, %v471
        %v473 = vrot.slane %v445, %v472
        %v474 = vcombine.high %v452, %v452
        %v475 = vcombine.high %v459, %v459
        %v476 = vcombine.high %v466, %v466
        %v477 = vcombine.high %v473, %v473
        %v478 = vcombine.high %v174, %v174
        %v480 = vunpack.c.l.s4 1966171168
        %v481 = vunpack.c.0.s8 %v480
        %v482 = vlaneseq
        %v483 = vshrl.u32 %v482, 7
        %v484 = vsub.s32 %v481, %v483
        %v485 = vrot.slane %v174, %v484
        %v487 = vunpack.c.l.s4 1966171168
        %v488 = vunpack.c.0.s8 %v487
        %v489 = vlaneseq
        %v490 = vshrl.u32 %v489, 7
        %v491 = vsub.s32 %v488, %v490
        %v492 = vrot.slane %v478, %v491
        %v493 = vcombine.high %v485, %v485
        %v494 = vcombine.high %v492, %v492
        %v496 = vunpack.c.l.s4 1966171168
        %v497 = vunpack.c.0.s8 %v496
        %v498 = vlaneseq
        %v499 = vshrl.u32 %v498, 7
        %v500 = vsub.s32 %v497, %v499
        %v501 = vrot.slane %v485, %v500
        %v503 = vunpack.c.l.s4 1966171168
        %v504 = vunpack.c.0.s8 %v503
        %v505 = vlaneseq
        %v506 = vshrl.u32 %v505, 7
        %v507 = vsub.s32 %v504, %v506
        %v508 = vrot.slane %v492, %v507
        %v510 = vunpack.c.l.s4 1966171168
        %v511 = vunpack.c.0.s8 %v510
        %v512 = vlaneseq
        %v513 = vshrl.u32 %v512, 7
        %v514 = vsub.s32 %v511, %v513
        %v515 = vrot.slane %v493, %v514
        %v517 = vunpack.c.l.s4 1966171168
        %v518 = vunpack.c.0.s8 %v517
        %v519 = vlaneseq
        %v520 = vshrl.u32 %v519, 7
        %v521 = vsub.s32 %v518, %v520
        %v522 = vrot.slane %v494, %v521
        %v523 = vcombine.high %v501, %v501
        %v524 = vcombine.high %v508, %v508
        %v525 = vcombine.high %v515, %v515
        %v526 = vcombine.high %v522, %v522
        %v527 = vcombine.high %v175, %v175
        %v529 = vunpack.c.l.s4 1966171168
        %v530 = vunpack.c.0.s8 %v529
        %v531 = vlaneseq
        %v532 = vshrl.u32 %v531, 7
        %v533 = vsub.s32 %v530, %v532
        %v534 = vrot.slane %v175, %v533
        %v536 = vunpack.c.l.s4 1966171168
        %v537 = vunpack.c.0.s8 %v536
        %v538 = vlaneseq
        %v539 = vshrl.u32 %v538, 7
        %v540 = vsub.s32 %v537, %v539
        %v541 = vrot.slane %v527, %v540
        %v542 = vcombine.high %v534, %v534
        %v543 = vcombine.high %v541, %v541
        %v545 = vunpack.c.l.s4 1966171168
        %v546 = vunpack.c.0.s8 %v545
        %v547 = vlaneseq
        %v548 = vshrl.u32 %v547, 7
        %v549 = vsub.s32 %v546, %v548
        %v550 = vrot.slane %v534, %v549
        %v552 = vunpack.c.l.s4 1966171168
        %v553 = vunpack.c.0.s8 %v552
        %v554 = vlaneseq
        %v555 = vshrl.u32 %v554, 7
        %v556 = vsub.s32 %v553, %v555
        %v557 = vrot.slane %v541, %v556
        %v559 = vunpack.c.l.s4 1966171168
        %v560 = vunpack.c.0.s8 %v559
        %v561 = vlaneseq
        %v562 = vshrl.u32 %v561, 7
        %v563 = vsub.s32 %v560, %v562
        %v564 = vrot.slane %v542, %v563
        %v566 = vunpack.c.l.s4 1966171168
        %v567 = vunpack.c.0.s8 %v566
        %v568 = vlaneseq
        %v569 = vshrl.u32 %v568, 7
        %v570 = vsub.s32 %v567, %v569
        %v571 = vrot.slane %v543, %v570
        %v572 = vcombine.high %v550, %v550
        %v573 = vcombine.high %v557, %v557
        %v574 = vcombine.high %v564, %v564
        %v575 = vcombine.high %v571, %v571
        %v576 = vcombine.high %v176, %v176
        %v578 = vunpack.c.l.s4 1966171168
        %v579 = vunpack.c.0.s8 %v578
        %v580 = vlaneseq
        %v581 = vshrl.u32 %v580, 7
        %v582 = vsub.s32 %v579, %v581
        %v583 = vrot.slane %v176, %v582
        %v585 = vunpack.c.l.s4 1966171168
        %v586 = vunpack.c.0.s8 %v585
        %v587 = vlaneseq
        %v588 = vshrl.u32 %v587, 7
        %v589 = vsub.s32 %v586, %v588
        %v590 = vrot.slane %v576, %v589
        %v591 = vcombine.high %v583, %v583
        %v592 = vcombine.high %v590, %v590
        %v594 = vunpack.c.l.s4 1966171168
        %v595 = vunpack.c.0.s8 %v594
        %v596 = vlaneseq
        %v597 = vshrl.u32 %v596, 7
        %v598 = vsub.s32 %v595, %v597
        %v599 = vrot.slane %v583, %v598
        %v601 = vunpack.c.l.s4 1966171168
        %v602 = vunpack.c.0.s8 %v601
        %v603 = vlaneseq
        %v604 = vshrl.u32 %v603, 7
        %v605 = vsub.s32 %v602, %v604
        %v606 = vrot.slane %v590, %v605
        %v608 = vunpack.c.l.s4 1966171168
        %v609 = vunpack.c.0.s8 %v608
        %v610 = vlaneseq
        %v611 = vshrl.u32 %v610, 7
        %v612 = vsub.s32 %v609, %v611
        %v613 = vrot.slane %v591, %v612
        %v615 = vunpack.c.l.s4 1966171168
        %v616 = vunpack.c.0.s8 %v615
        %v617 = vlaneseq
        %v618 = vshrl.u32 %v617, 7
        %v619 = vsub.s32 %v616, %v618
        %v620 = vrot.slane %v592, %v619
        %v621 = vcombine.high %v599, %v599
        %v622 = vcombine.high %v606, %v606
        %v623 = vcombine.high %v613, %v613
        %v624 = vcombine.high %v620, %v620
        %v625 = vcombine.high %v177, %v177
        %v627 = vunpack.c.l.s4 1966171168
        %v628 = vunpack.c.0.s8 %v627
        %v629 = vlaneseq
        %v630 = vshrl.u32 %v629, 7
        %v631 = vsub.s32 %v628, %v630
        %v632 = vrot.slane %v177, %v631
        %v634 = vunpack.c.l.s4 1966171168
        %v635 = vunpack.c.0.s8 %v634
        %v636 = vlaneseq
        %v637 = vshrl.u32 %v636, 7
        %v638 = vsub.s32 %v635, %v637
        %v639 = vrot.slane %v625, %v638
        %v640 = vcombine.high %v632, %v632
        %v641 = vcombine.high %v639, %v639
        %v643 = vunpack.c.l.s4 1966171168
        %v644 = vunpack.c.0.s8 %v643
        %v645 = vlaneseq
        %v646 = vshrl.u32 %v645, 7
        %v647 = vsub.s32 %v644, %v646
        %v648 = vrot.slane %v632, %v647
        %v650 = vunpack.c.l.s4 1966171168
        %v651 = vunpack.c.0.s8 %v650
        %v652 = vlaneseq
        %v653 = vshrl.u32 %v652, 7
        %v654 = vsub.s32 %v651, %v653
        %v655 = vrot.slane %v639, %v654
        %v657 = vunpack.c.l.s4 1966171168
        %v658 = vunpack.c.0.s8 %v657
        %v659 = vlaneseq
        %v660 = vshrl.u32 %v659, 7
        %v661 = vsub.s32 %v658, %v660
        %v662 = vrot.slane %v640, %v661
        %v664 = vunpack.c.l.s4 1966171168
        %v665 = vunpack.c.0.s8 %v664
        %v666 = vlaneseq
        %v667 = vshrl.u32 %v666, 7
        %v668 = vsub.s32 %v665, %v667
        %v669 = vrot.slane %v641, %v668
        %v670 = vcombine.high %v648, %v648
        %v671 = vcombine.high %v655, %v655
        %v672 = vcombine.high %v662, %v662
        %v673 = vcombine.high %v669, %v669
        %v674 = vcombine.high %v178, %v178
        %v676 = vunpack.c.l.s4 1966171168
        %v677 = vunpack.c.0.s8 %v676
        %v678 = vlaneseq
        %v679 = vshrl.u32 %v678, 7
        %v680 = vsub.s32 %v677, %v679
        %v681 = vrot.slane %v178, %v680
        %v683 = vunpack.c.l.s4 1966171168
        %v684 = vunpack.c.0.s8 %v683
        %v685 = vlaneseq
        %v686 = vshrl.u32 %v685, 7
        %v687 = vsub.s32 %v684, %v686
        %v688 = vrot.slane %v674, %v687
        %v689 = vcombine.high %v681, %v681
        %v690 = vcombine.high %v688, %v688
        %v692 = vunpack.c.l.s4 1966171168
        %v693 = vunpack.c.0.s8 %v692
        %v694 = vlaneseq
        %v695 = vshrl.u32 %v694, 7
        %v696 = vsub.s32 %v693, %v695
        %v697 = vrot.slane %v681, %v696
        %v699 = vunpack.c.l.s4 1966171168
        %v700 = vunpack.c.0.s8 %v699
        %v701 = vlaneseq
        %v702 = vshrl.u32 %v701, 7
        %v703 = vsub.s32 %v700, %v702
        %v704 = vrot.slane %v688, %v703
        %v706 = vunpack.c.l.s4 1966171168
        %v707 = vunpack.c.0.s8 %v706
        %v708 = vlaneseq
        %v709 = vshrl.u32 %v708, 7
        %v710 = vsub.s32 %v707, %v709
        %v711 = vrot.slane %v689, %v710
        %v713 = vunpack.c.l.s4 1966171168
        %v714 = vunpack.c.0.s8 %v713
        %v715 = vlaneseq
        %v716 = vshrl.u32 %v715, 7
        %v717 = vsub.s32 %v714, %v716
        %v718 = vrot.slane %v690, %v717
        %v719 = vcombine.high %v697, %v697
        %v720 = vcombine.high %v704, %v704
        %v721 = vcombine.high %v711, %v711
        %v722 = vcombine.high %v718, %v718
        %v723 = vcombine.high %v179, %v179
        %v725 = vunpack.c.l.s4 1966171168
        %v726 = vunpack.c.0.s8 %v725
        %v727 = vlaneseq
        %v728 = vshrl.u32 %v727, 7
        %v729 = vsub.s32 %v726, %v728
        %v730 = vrot.slane %v179, %v729
        %v732 = vunpack.c.l.s4 1966171168
        %v733 = vunpack.c.0.s8 %v732
        %v734 = vlaneseq
        %v735 = vshrl.u32 %v734, 7
        %v736 = vsub.s32 %v733, %v735
        %v737 = vrot.slane %v723, %v736
        %v738 = vcombine.high %v730, %v730
        %v739 = vcombine.high %v737, %v737
        %v741 = vunpack.c.l.s4 1966171168
        %v742 = vunpack.c.0.s8 %v741
        %v743 = vlaneseq
        %v744 = vshrl.u32 %v743, 7
        %v745 = vsub.s32 %v742, %v744
        %v746 = vrot.slane %v730, %v745
        %v748 = vunpack.c.l.s4 1966171168
        %v749 = vunpack.c.0.s8 %v748
        %v750 = vlaneseq
        %v751 = vshrl.u32 %v750, 7
        %v752 = vsub.s32 %v749, %v751
        %v753 = vrot.slane %v737, %v752
        %v755 = vunpack.c.l.s4 1966171168
        %v756 = vunpack.c.0.s8 %v755
        %v757 = vlaneseq
        %v758 = vshrl.u32 %v757, 7
        %v759 = vsub.s32 %v756, %v758
        %v760 = vrot.slane %v738, %v759
        %v762 = vunpack.c.l.s4 1966171168
        %v763 = vunpack.c.0.s8 %v762
        %v764 = vlaneseq
        %v765 = vshrl.u32 %v764, 7
        %v766 = vsub.s32 %v763, %v765
        %v767 = vrot.slane %v739, %v766
        %v768 = vcombine.high %v746, %v746
        %v769 = vcombine.high %v753, %v753
        %v770 = vcombine.high %v760, %v760
        %v771 = vcombine.high %v767, %v767
        %v772 = vcombine.high %v180, %v180
        %v774 = vunpack.c.l.s4 1966171168
        %v775 = vunpack.c.0.s8 %v774
        %v776 = vlaneseq
        %v777 = vshrl.u32 %v776, 7
        %v778 = vsub.s32 %v775, %v777
        %v779 = vrot.slane %v180, %v778
        %v781 = vunpack.c.l.s4 1966171168
        %v782 = vunpack.c.0.s8 %v781
        %v783 = vlaneseq
        %v784 = vshrl.u32 %v783, 7
        %v785 = vsub.s32 %v782, %v784
        %v786 = vrot.slane %v772, %v785
        %v787 = vcombine.high %v779, %v779
        %v788 = vcombine.high %v786, %v786
        %v790 = vunpack.c.l.s4 1966171168
        %v791 = vunpack.c.0.s8 %v790
        %v792 = vlaneseq
        %v793 = vshrl.u32 %v792, 7
        %v794 = vsub.s32 %v791, %v793
        %v795 = vrot.slane %v779, %v794
        %v797 = vunpack.c.l.s4 1966171168
        %v798 = vunpack.c.0.s8 %v797
        %v799 = vlaneseq
        %v800 = vshrl.u32 %v799, 7
        %v801 = vsub.s32 %v798, %v800
        %v802 = vrot.slane %v786, %v801
        %v804 = vunpack.c.l.s4 1966171168
        %v805 = vunpack.c.0.s8 %v804
        %v806 = vlaneseq
        %v807 = vshrl.u32 %v806, 7
        %v808 = vsub.s32 %v805, %v807
        %v809 = vrot.slane %v787, %v808
        %v811 = vunpack.c.l.s4 1966171168
        %v812 = vunpack.c.0.s8 %v811
        %v813 = vlaneseq
        %v814 = vshrl.u32 %v813, 7
        %v815 = vsub.s32 %v812, %v814
        %v816 = vrot.slane %v788, %v815
        %v817 = vcombine.high %v795, %v795
        %v818 = vcombine.high %v802, %v802
        %v819 = vcombine.high %v809, %v809
        %v820 = vcombine.high %v816, %v816
        %v821 = vcombine.high %v181, %v181
        %v823 = vunpack.c.l.s4 1966171168
        %v824 = vunpack.c.0.s8 %v823
        %v825 = vlaneseq
        %v826 = vshrl.u32 %v825, 7
        %v827 = vsub.s32 %v824, %v826
        %v828 = vrot.slane %v181, %v827
        %v830 = vunpack.c.l.s4 1966171168
        %v831 = vunpack.c.0.s8 %v830
        %v832 = vlaneseq
        %v833 = vshrl.u32 %v832, 7
        %v834 = vsub.s32 %v831, %v833
        %v835 = vrot.slane %v821, %v834
        %v836 = vcombine.high %v828, %v828
        %v837 = vcombine.high %v835, %v835
        %v839 = vunpack.c.l.s4 1966171168
        %v840 = vunpack.c.0.s8 %v839
        %v841 = vlaneseq
        %v842 = vshrl.u32 %v841, 7
        %v843 = vsub.s32 %v840, %v842
        %v844 = vrot.slane %v828, %v843
        %v846 = vunpack.c.l.s4 1966171168
        %v847 = vunpack.c.0.s8 %v846
        %v848 = vlaneseq
        %v849 = vshrl.u32 %v848, 7
        %v850 = vsub.s32 %v847, %v849
        %v851 = vrot.slane %v835, %v850
        %v853 = vunpack.c.l.s4 1966171168
        %v854 = vunpack.c.0.s8 %v853
        %v855 = vlaneseq
        %v856 = vshrl.u32 %v855, 7
        %v857 = vsub.s32 %v854, %v856
        %v858 = vrot.slane %v836, %v857
        %v860 = vunpack.c.l.s4 1966171168
        %v861 = vunpack.c.0.s8 %v860
        %v862 = vlaneseq
        %v863 = vshrl.u32 %v862, 7
        %v864 = vsub.s32 %v861, %v863
        %v865 = vrot.slane %v837, %v864
        %v866 = vcombine.high %v844, %v844
        %v867 = vcombine.high %v851, %v851
        %v868 = vcombine.high %v858, %v858
        %v869 = vcombine.high %v865, %v865
        %v870 = vcombine.high %v182, %v182
        %v872 = vunpack.c.l.s4 1966171168
        %v873 = vunpack.c.0.s8 %v872
        %v874 = vlaneseq
        %v875 = vshrl.u32 %v874, 7
        %v876 = vsub.s32 %v873, %v875
        %v877 = vrot.slane %v182, %v876
        %v879 = vunpack.c.l.s4 1966171168
        %v880 = vunpack.c.0.s8 %v879
        %v881 = vlaneseq
        %v882 = vshrl.u32 %v881, 7
        %v883 = vsub.s32 %v880, %v882
        %v884 = vrot.slane %v870, %v883
        %v885 = vcombine.high %v877, %v877
        %v886 = vcombine.high %v884, %v884
        %v888 = vunpack.c.l.s4 1966171168
        %v889 = vunpack.c.0.s8 %v888
        %v890 = vlaneseq
        %v891 = vshrl.u32 %v890, 7
        %v892 = vsub.s32 %v889, %v891
        %v893 = vrot.slane %v877, %v892
        %v895 = vunpack.c.l.s4 1966171168
        %v896 = vunpack.c.0.s8 %v895
        %v897 = vlaneseq
        %v898 = vshrl.u32 %v897, 7
        %v899 = vsub.s32 %v896, %v898
        %v900 = vrot.slane %v884, %v899
        %v902 = vunpack.c.l.s4 1966171168
        %v903 = vunpack.c.0.s8 %v902
        %v904 = vlaneseq
        %v905 = vshrl.u32 %v904, 7
        %v906 = vsub.s32 %v903, %v905
        %v907 = vrot.slane %v885, %v906
        %v909 = vunpack.c.l.s4 1966171168
        %v910 = vunpack.c.0.s8 %v909
        %v911 = vlaneseq
        %v912 = vshrl.u32 %v911, 7
        %v913 = vsub.s32 %v910, %v912
        %v914 = vrot.slane %v886, %v913
        %v915 = vcombine.high %v893, %v893
        %v916 = vcombine.high %v900, %v900
        %v917 = vcombine.high %v907, %v907
        %v918 = vcombine.high %v914, %v914
        %v919 = vcombine.high %v183, %v183
        %v921 = vunpack.c.l.s4 1966171168
        %v922 = vunpack.c.0.s8 %v921
        %v923 = vlaneseq
        %v924 = vshrl.u32 %v923, 7
        %v925 = vsub.s32 %v922, %v924
        %v926 = vrot.slane %v183, %v925
        %v928 = vunpack.c.l.s4 1966171168
        %v929 = vunpack.c.0.s8 %v928
        %v930 = vlaneseq
        %v931 = vshrl.u32 %v930, 7
        %v932 = vsub.s32 %v929, %v931
        %v933 = vrot.slane %v919, %v932
        %v934 = vcombine.high %v926, %v926
        %v935 = vcombine.high %v933, %v933
        %v937 = vunpack.c.l.s4 1966171168
        %v938 = vunpack.c.0.s8 %v937
        %v939 = vlaneseq
        %v940 = vshrl.u32 %v939, 7
        %v941 = vsub.s32 %v938, %v940
        %v942 = vrot.slane %v926, %v941
        %v944 = vunpack.c.l.s4 1966171168
        %v945 = vunpack.c.0.s8 %v944
        %v946 = vlaneseq
        %v947 = vshrl.u32 %v946, 7
        %v948 = vsub.s32 %v945, %v947
        %v949 = vrot.slane %v933, %v948
        %v951 = vunpack.c.l.s4 1966171168
        %v952 = vunpack.c.0.s8 %v951
        %v953 = vlaneseq
        %v954 = vshrl.u32 %v953, 7
        %v955 = vsub.s32 %v952, %v954
        %v956 = vrot.slane %v934, %v955
        %v958 = vunpack.c.l.s4 1966171168
        %v959 = vunpack.c.0.s8 %v958
        %v960 = vlaneseq
        %v961 = vshrl.u32 %v960, 7
        %v962 = vsub.s32 %v959, %v961
        %v963 = vrot.slane %v935, %v962
        %v964 = vcombine.high %v942, %v942
        %v965 = vcombine.high %v949, %v949
        %v966 = vcombine.high %v956, %v956
        %v967 = vcombine.high %v963, %v963
        %v968 = vcombine.high %v184, %v184
        %v970 = vunpack.c.l.s4 1966171168
        %v971 = vunpack.c.0.s8 %v970
        %v972 = vlaneseq
        %v973 = vshrl.u32 %v972, 7
        %v974 = vsub.s32 %v971, %v973
        %v975 = vrot.slane %v184, %v974
        %v977 = vunpack.c.l.s4 1966171168
        %v978 = vunpack.c.0.s8 %v977
        %v979 = vlaneseq
        %v980 = vshrl.u32 %v979, 7
        %v981 = vsub.s32 %v978, %v980
        %v982 = vrot.slane %v968, %v981
        %v983 = vcombine.high %v975, %v975
        %v984 = vcombine.high %v982, %v982
        %v986 = vunpack.c.l.s4 1966171168
        %v987 = vunpack.c.0.s8 %v986
        %v988 = vlaneseq
        %v989 = vshrl.u32 %v988, 7
        %v990 = vsub.s32 %v987, %v989
        %v991 = vrot.slane %v975, %v990
        %v993 = vunpack.c.l.s4 1966171168
        %v994 = vunpack.c.0.s8 %v993
        %v995 = vlaneseq
        %v996 = vshrl.u32 %v995, 7
        %v997 = vsub.s32 %v994, %v996
        %v998 = vrot.slane %v982, %v997
        %v1000 = vunpack.c.l.s4 1966171168
        %v1001 = vunpack.c.0.s8 %v1000
        %v1002 = vlaneseq
        %v1003 = vshrl.u32 %v1002, 7
        %v1004 = vsub.s32 %v1001, %v1003
        %v1005 = vrot.slane %v983, %v1004
        %v1007 = vunpack.c.l.s4 1966171168
        %v1008 = vunpack.c.0.s8 %v1007
        %v1009 = vlaneseq
        %v1010 = vshrl.u32 %v1009, 7
        %v1011 = vsub.s32 %v1008, %v1010
        %v1012 = vrot.slane %v984, %v1011
        %v1013 = vcombine.high %v991, %v991
        %v1014 = vcombine.high %v998, %v998
        %v1015 = vcombine.high %v1005, %v1005
        %v1016 = vcombine.high %v1012, %v1012
        %v1017 = vcombine.high %v185, %v185
        %v1019 = vunpack.c.l.s4 1966171168
        %v1020 = vunpack.c.0.s8 %v1019
        %v1021 = vlaneseq
        %v1022 = vshrl.u32 %v1021, 7
        %v1023 = vsub.s32 %v1020, %v1022
        %v1024 = vrot.slane %v185, %v1023
        %v1026 = vunpack.c.l.s4 1966171168
        %v1027 = vunpack.c.0.s8 %v1026
        %v1028 = vlaneseq
        %v1029 = vshrl.u32 %v1028, 7
        %v1030 = vsub.s32 %v1027, %v1029
        %v1031 = vrot.slane %v1017, %v1030
        %v1032 = vcombine.high %v1024, %v1024
        %v1033 = vcombine.high %v1031, %v1031
        %v1035 = vunpack.c.l.s4 1966171168
        %v1036 = vunpack.c.0.s8 %v1035
        %v1037 = vlaneseq
        %v1038 = vshrl.u32 %v1037, 7
        %v1039 = vsub.s32 %v1036, %v1038
        %v1040 = vrot.slane %v1024, %v1039
        %v1042 = vunpack.c.l.s4 1966171168
        %v1043 = vunpack.c.0.s8 %v1042
        %v1044 = vlaneseq
        %v1045 = vshrl.u32 %v1044, 7
        %v1046 = vsub.s32 %v1043, %v1045
        %v1047 = vrot.slane %v1031, %v1046
        %v1049 = vunpack.c.l.s4 1966171168
        %v1050 = vunpack.c.0.s8 %v1049
        %v1051 = vlaneseq
        %v1052 = vshrl.u32 %v1051, 7
        %v1053 = vsub.s32 %v1050, %v1052
        %v1054 = vrot.slane %v1032, %v1053
        %v1056 = vunpack.c.l.s4 1966171168
        %v1057 = vunpack.c.0.s8 %v1056
        %v1058 = vlaneseq
        %v1059 = vshrl.u32 %v1058, 7
        %v1060 = vsub.s32 %v1057, %v1059
        %v1061 = vrot.slane %v1033, %v1060
        %v1062 = vcombine.high %v1040, %v1040
        %v1063 = vcombine.high %v1047, %v1047
        %v1064 = vcombine.high %v1054, %v1054
        %v1065 = vcombine.high %v1061, %v1061
        %v1066 = vcombine.high %v186, %v186
        %v1068 = vunpack.c.l.s4 1966171168
        %v1069 = vunpack.c.0.s8 %v1068
        %v1070 = vlaneseq
        %v1071 = vshrl.u32 %v1070, 7
        %v1072 = vsub.s32 %v1069, %v1071
        %v1073 = vrot.slane %v186, %v1072
        %v1075 = vunpack.c.l.s4 1966171168
        %v1076 = vunpack.c.0.s8 %v1075
        %v1077 = vlaneseq
        %v1078 = vshrl.u32 %v1077, 7
        %v1079 = vsub.s32 %v1076, %v1078
        %v1080 = vrot.slane %v1066, %v1079
        %v1081 = vcombine.high %v1073, %v1073
        %v1082 = vcombine.high %v1080, %v1080
        %v1084 = vunpack.c.l.s4 1966171168
        %v1085 = vunpack.c.0.s8 %v1084
        %v1086 = vlaneseq
        %v1087 = vshrl.u32 %v1086, 7
        %v1088 = vsub.s32 %v1085, %v1087
        %v1089 = vrot.slane %v1073, %v1088
        %v1091 = vunpack.c.l.s4 1966171168
        %v1092 = vunpack.c.0.s8 %v1091
        %v1093 = vlaneseq
        %v1094 = vshrl.u32 %v1093, 7
        %v1095 = vsub.s32 %v1092, %v1094
        %v1096 = vrot.slane %v1080, %v1095
        %v1098 = vunpack.c.l.s4 1966171168
        %v1099 = vunpack.c.0.s8 %v1098
        %v1100 = vlaneseq
        %v1101 = vshrl.u32 %v1100, 7
        %v1102 = vsub.s32 %v1099, %v1101
        %v1103 = vrot.slane %v1081, %v1102
        %v1105 = vunpack.c.l.s4 1966171168
        %v1106 = vunpack.c.0.s8 %v1105
        %v1107 = vlaneseq
        %v1108 = vshrl.u32 %v1107, 7
        %v1109 = vsub.s32 %v1106, %v1108
        %v1110 = vrot.slane %v1082, %v1109
        %v1111 = vcombine.high %v1089, %v1089
        %v1112 = vcombine.high %v1096, %v1096
        %v1113 = vcombine.high %v1103, %v1103
        %v1114 = vcombine.high %v1110, %v1110
        %v1115 = vcombine.high %v187, %v187
        %v1117 = vunpack.c.l.s4 1966171168
        %v1118 = vunpack.c.0.s8 %v1117
        %v1119 = vlaneseq
        %v1120 = vshrl.u32 %v1119, 7
        %v1121 = vsub.s32 %v1118, %v1120
        %v1122 = vrot.slane %v187, %v1121
        %v1124 = vunpack.c.l.s4 1966171168
        %v1125 = vunpack.c.0.s8 %v1124
        %v1126 = vlaneseq
        %v1127 = vshrl.u32 %v1126, 7
        %v1128 = vsub.s32 %v1125, %v1127
        %v1129 = vrot.slane %v1115, %v1128
        %v1130 = vcombine.high %v1122, %v1122
        %v1131 = vcombine.high %v1129, %v1129
        %v1133 = vunpack.c.l.s4 1966171168
        %v1134 = vunpack.c.0.s8 %v1133
        %v1135 = vlaneseq
        %v1136 = vshrl.u32 %v1135, 7
        %v1137 = vsub.s32 %v1134, %v1136
        %v1138 = vrot.slane %v1122, %v1137
        %v1140 = vunpack.c.l.s4 1966171168
        %v1141 = vunpack.c.0.s8 %v1140
        %v1142 = vlaneseq
        %v1143 = vshrl.u32 %v1142, 7
        %v1144 = vsub.s32 %v1141, %v1143
        %v1145 = vrot.slane %v1129, %v1144
        %v1147 = vunpack.c.l.s4 1966171168
        %v1148 = vunpack.c.0.s8 %v1147
        %v1149 = vlaneseq
        %v1150 = vshrl.u32 %v1149, 7
        %v1151 = vsub.s32 %v1148, %v1150
        %v1152 = vrot.slane %v1130, %v1151
        %v1154 = vunpack.c.l.s4 1966171168
        %v1155 = vunpack.c.0.s8 %v1154
        %v1156 = vlaneseq
        %v1157 = vshrl.u32 %v1156, 7
        %v1158 = vsub.s32 %v1155, %v1157
        %v1159 = vrot.slane %v1131, %v1158
        %v1160 = vcombine.high %v1138, %v1138
        %v1161 = vcombine.high %v1145, %v1145
        %v1162 = vcombine.high %v1152, %v1152
        %v1163 = vcombine.high %v1159, %v1159
        %v1164 = vcombine.high %v188, %v188
        %v1166 = vunpack.c.l.s4 1966171168
        %v1167 = vunpack.c.0.s8 %v1166
        %v1168 = vlaneseq
        %v1169 = vshrl.u32 %v1168, 7
        %v1170 = vsub.s32 %v1167, %v1169
        %v1171 = vrot.slane %v188, %v1170
        %v1173 = vunpack.c.l.s4 1966171168
        %v1174 = vunpack.c.0.s8 %v1173
        %v1175 = vlaneseq
        %v1176 = vshrl.u32 %v1175, 7
        %v1177 = vsub.s32 %v1174, %v1176
        %v1178 = vrot.slane %v1164, %v1177
        %v1179 = vcombine.high %v1171, %v1171
        %v1180 = vcombine.high %v1178, %v1178
        %v1182 = vunpack.c.l.s4 1966171168
        %v1183 = vunpack.c.0.s8 %v1182
        %v1184 = vlaneseq
        %v1185 = vshrl.u32 %v1184, 7
        %v1186 = vsub.s32 %v1183, %v1185
        %v1187 = vrot.slane %v1171, %v1186
        %v1189 = vunpack.c.l.s4 1966171168
        %v1190 = vunpack.c.0.s8 %v1189
        %v1191 = vlaneseq
        %v1192 = vshrl.u32 %v1191, 7
        %v1193 = vsub.s32 %v1190, %v1192
        %v1194 = vrot.slane %v1178, %v1193
        %v1196 = vunpack.c.l.s4 1966171168
        %v1197 = vunpack.c.0.s8 %v1196
        %v1198 = vlaneseq
        %v1199 = vshrl.u32 %v1198, 7
        %v1200 = vsub.s32 %v1197, %v1199
        %v1201 = vrot.slane %v1179, %v1200
        %v1203 = vunpack.c.l.s4 1966171168
        %v1204 = vunpack.c.0.s8 %v1203
        %v1205 = vlaneseq
        %v1206 = vshrl.u32 %v1205, 7
        %v1207 = vsub.s32 %v1204, %v1206
        %v1208 = vrot.slane %v1180, %v1207
        %v1209 = vcombine.high %v1187, %v1187
        %v1210 = vcombine.high %v1194, %v1194
        %v1211 = vcombine.high %v1201, %v1201
        %v1212 = vcombine.high %v1208, %v1208
        %v1213 = vcombine.high %v189, %v189
        %v1215 = vunpack.c.l.s4 1966171168
        %v1216 = vunpack.c.0.s8 %v1215
        %v1217 = vlaneseq
        %v1218 = vshrl.u32 %v1217, 7
        %v1219 = vsub.s32 %v1216, %v1218
        %v1220 = vrot.slane %v189, %v1219
        %v1222 = vunpack.c.l.s4 1966171168
        %v1223 = vunpack.c.0.s8 %v1222
        %v1224 = vlaneseq
        %v1225 = vshrl.u32 %v1224, 7
        %v1226 = vsub.s32 %v1223, %v1225
        %v1227 = vrot.slane %v1213, %v1226
        %v1228 = vcombine.high %v1220, %v1220
        %v1229 = vcombine.high %v1227, %v1227
        %v1231 = vunpack.c.l.s4 1966171168
        %v1232 = vunpack.c.0.s8 %v1231
        %v1233 = vlaneseq
        %v1234 = vshrl.u32 %v1233, 7
        %v1235 = vsub.s32 %v1232, %v1234
        %v1236 = vrot.slane %v1220, %v1235
        %v1238 = vunpack.c.l.s4 1966171168
        %v1239 = vunpack.c.0.s8 %v1238
        %v1240 = vlaneseq
        %v1241 = vshrl.u32 %v1240, 7
        %v1242 = vsub.s32 %v1239, %v1241
        %v1243 = vrot.slane %v1227, %v1242
        %v1245 = vunpack.c.l.s4 1966171168
        %v1246 = vunpack.c.0.s8 %v1245
        %v1247 = vlaneseq
        %v1248 = vshrl.u32 %v1247, 7
        %v1249 = vsub.s32 %v1246, %v1248
        %v1250 = vrot.slane %v1228, %v1249
        %v1252 = vunpack.c.l.s4 1966171168
        %v1253 = vunpack.c.0.s8 %v1252
        %v1254 = vlaneseq
        %v1255 = vshrl.u32 %v1254, 7
        %v1256 = vsub.s32 %v1253, %v1255
        %v1257 = vrot.slane %v1229, %v1256
        %v1258 = vcombine.high %v1236, %v1236
        %v1259 = vcombine.high %v1243, %v1243
        %v1260 = vcombine.high %v1250, %v1250
        %v1261 = vcombine.high %v1257, %v1257
        %v1262 = vcombine.high %v190, %v190
        %v1264 = vunpack.c.l.s4 1966171168
        %v1265 = vunpack.c.0.s8 %v1264
        %v1266 = vlaneseq
        %v1267 = vshrl.u32 %v1266, 7
        %v1268 = vsub.s32 %v1265, %v1267
        %v1269 = vrot.slane %v190, %v1268
        %v1271 = vunpack.c.l.s4 1966171168
        %v1272 = vunpack.c.0.s8 %v1271
        %v1273 = vlaneseq
        %v1274 = vshrl.u32 %v1273, 7
        %v1275 = vsub.s32 %v1272, %v1274
        %v1276 = vrot.slane %v1262, %v1275
        %v1277 = vcombine.high %v1269, %v1269
        %v1278 = vcombine.high %v1276, %v1276
        %v1280 = vunpack.c.l.s4 1966171168
        %v1281 = vunpack.c.0.s8 %v1280
        %v1282 = vlaneseq
        %v1283 = vshrl.u32 %v1282, 7
        %v1284 = vsub.s32 %v1281, %v1283
        %v1285 = vrot.slane %v1269, %v1284
        %v1287 = vunpack.c.l.s4 1966171168
        %v1288 = vunpack.c.0.s8 %v1287
        %v1289 = vlaneseq
        %v1290 = vshrl.u32 %v1289, 7
        %v1291 = vsub.s32 %v1288, %v1290
        %v1292 = vrot.slane %v1276, %v1291
        %v1294 = vunpack.c.l.s4 1966171168
        %v1295 = vunpack.c.0.s8 %v1294
        %v1296 = vlaneseq
        %v1297 = vshrl.u32 %v1296, 7
        %v1298 = vsub.s32 %v1295, %v1297
        %v1299 = vrot.slane %v1277, %v1298
        %v1301 = vunpack.c.l.s4 1966171168
        %v1302 = vunpack.c.0.s8 %v1301
        %v1303 = vlaneseq
        %v1304 = vshrl.u32 %v1303, 7
        %v1305 = vsub.s32 %v1302, %v1304
        %v1306 = vrot.slane %v1278, %v1305
        %v1307 = vcombine.high %v1285, %v1285
        %v1308 = vcombine.high %v1292, %v1292
        %v1309 = vcombine.high %v1299, %v1299
        %v1310 = vcombine.high %v1306, %v1306
        %v1311 = vcombine.high %v191, %v191
        %v1313 = vunpack.c.l.s4 1966171168
        %v1314 = vunpack.c.0.s8 %v1313
        %v1315 = vlaneseq
        %v1316 = vshrl.u32 %v1315, 7
        %v1317 = vsub.s32 %v1314, %v1316
        %v1318 = vrot.slane %v191, %v1317
        %v1320 = vunpack.c.l.s4 1966171168
        %v1321 = vunpack.c.0.s8 %v1320
        %v1322 = vlaneseq
        %v1323 = vshrl.u32 %v1322, 7
        %v1324 = vsub.s32 %v1321, %v1323
        %v1325 = vrot.slane %v1311, %v1324
        %v1326 = vcombine.high %v1318, %v1318
        %v1327 = vcombine.high %v1325, %v1325
        %v1329 = vunpack.c.l.s4 1966171168
        %v1330 = vunpack.c.0.s8 %v1329
        %v1331 = vlaneseq
        %v1332 = vshrl.u32 %v1331, 7
        %v1333 = vsub.s32 %v1330, %v1332
        %v1334 = vrot.slane %v1318, %v1333
        %v1336 = vunpack.c.l.s4 1966171168
        %v1337 = vunpack.c.0.s8 %v1336
        %v1338 = vlaneseq
        %v1339 = vshrl.u32 %v1338, 7
        %v1340 = vsub.s32 %v1337, %v1339
        %v1341 = vrot.slane %v1325, %v1340
        %v1343 = vunpack.c.l.s4 1966171168
        %v1344 = vunpack.c.0.s8 %v1343
        %v1345 = vlaneseq
        %v1346 = vshrl.u32 %v1345, 7
        %v1347 = vsub.s32 %v1344, %v1346
        %v1348 = vrot.slane %v1326, %v1347
        %v1350 = vunpack.c.l.s4 1966171168
        %v1351 = vunpack.c.0.s8 %v1350
        %v1352 = vlaneseq
        %v1353 = vshrl.u32 %v1352, 7
        %v1354 = vsub.s32 %v1351, %v1353
        %v1355 = vrot.slane %v1327, %v1354
        %v1356 = vcombine.high %v1334, %v1334
        %v1357 = vcombine.high %v1341, %v1341
        %v1358 = vcombine.high %v1348, %v1348
        %v1359 = vcombine.high %v1355, %v1355
        %v1360 = vcombine.high %v192, %v192
        %v1362 = vunpack.c.l.s4 1966171168
        %v1363 = vunpack.c.0.s8 %v1362
        %v1364 = vlaneseq
        %v1365 = vshrl.u32 %v1364, 7
        %v1366 = vsub.s32 %v1363, %v1365
        %v1367 = vrot.slane %v192, %v1366
        %v1369 = vunpack.c.l.s4 1966171168
        %v1370 = vunpack.c.0.s8 %v1369
        %v1371 = vlaneseq
        %v1372 = vshrl.u32 %v1371, 7
        %v1373 = vsub.s32 %v1370, %v1372
        %v1374 = vrot.slane %v1360, %v1373
        %v1375 = vcombine.high %v1367, %v1367
        %v1376 = vcombine.high %v1374, %v1374
        %v1378 = vunpack.c.l.s4 1966171168
        %v1379 = vunpack.c.0.s8 %v1378
        %v1380 = vlaneseq
        %v1381 = vshrl.u32 %v1380, 7
        %v1382 = vsub.s32 %v1379, %v1381
        %v1383 = vrot.slane %v1367, %v1382
        %v1385 = vunpack.c.l.s4 1966171168
        %v1386 = vunpack.c.0.s8 %v1385
        %v1387 = vlaneseq
        %v1388 = vshrl.u32 %v1387, 7
        %v1389 = vsub.s32 %v1386, %v1388
        %v1390 = vrot.slane %v1374, %v1389
        %v1392 = vunpack.c.l.s4 1966171168
        %v1393 = vunpack.c.0.s8 %v1392
        %v1394 = vlaneseq
        %v1395 = vshrl.u32 %v1394, 7
        %v1396 = vsub.s32 %v1393, %v1395
        %v1397 = vrot.slane %v1375, %v1396
        %v1399 = vunpack.c.l.s4 1966171168
        %v1400 = vunpack.c.0.s8 %v1399
        %v1401 = vlaneseq
        %v1402 = vshrl.u32 %v1401, 7
        %v1403 = vsub.s32 %v1400, %v1402
        %v1404 = vrot.slane %v1376, %v1403
        %v1405 = vcombine.high %v1383, %v1383
        %v1406 = vcombine.high %v1390, %v1390
        %v1407 = vcombine.high %v1397, %v1397
        %v1408 = vcombine.high %v1404, %v1404
        %v1409 = vcombine.high %v193, %v193
        %v1411 = vunpack.c.l.s4 1966171168
        %v1412 = vunpack.c.0.s8 %v1411
        %v1413 = vlaneseq
        %v1414 = vshrl.u32 %v1413, 7
        %v1415 = vsub.s32 %v1412, %v1414
        %v1416 = vrot.slane %v193, %v1415
        %v1418 = vunpack.c.l.s4 1966171168
        %v1419 = vunpack.c.0.s8 %v1418
        %v1420 = vlaneseq
        %v1421 = vshrl.u32 %v1420, 7
        %v1422 = vsub.s32 %v1419, %v1421
        %v1423 = vrot.slane %v1409, %v1422
        %v1424 = vcombine.high %v1416, %v1416
        %v1425 = vcombine.high %v1423, %v1423
        %v1427 = vunpack.c.l.s4 1966171168
        %v1428 = vunpack.c.0.s8 %v1427
        %v1429 = vlaneseq
        %v1430 = vshrl.u32 %v1429, 7
        %v1431 = vsub.s32 %v1428, %v1430
        %v1432 = vrot.slane %v1416, %v1431
        %v1434 = vunpack.c.l.s4 1966171168
        %v1435 = vunpack.c.0.s8 %v1434
        %v1436 = vlaneseq
        %v1437 = vshrl.u32 %v1436, 7
        %v1438 = vsub.s32 %v1435, %v1437
        %v1439 = vrot.slane %v1423, %v1438
        %v1441 = vunpack.c.l.s4 1966171168
        %v1442 = vunpack.c.0.s8 %v1441
        %v1443 = vlaneseq
        %v1444 = vshrl.u32 %v1443, 7
        %v1445 = vsub.s32 %v1442, %v1444
        %v1446 = vrot.slane %v1424, %v1445
        %v1448 = vunpack.c.l.s4 1966171168
        %v1449 = vunpack.c.0.s8 %v1448
        %v1450 = vlaneseq
        %v1451 = vshrl.u32 %v1450, 7
        %v1452 = vsub.s32 %v1449, %v1451
        %v1453 = vrot.slane %v1425, %v1452
        %v1454 = vcombine.high %v1432, %v1432
        %v1455 = vcombine.high %v1439, %v1439
        %v1456 = vcombine.high %v1446, %v1446
        %v1457 = vcombine.high %v1453, %v1453
        %v1458 = vcombine.high %v194, %v194
        %v1460 = vunpack.c.l.s4 1966171168
        %v1461 = vunpack.c.0.s8 %v1460
        %v1462 = vlaneseq
        %v1463 = vshrl.u32 %v1462, 7
        %v1464 = vsub.s32 %v1461, %v1463
        %v1465 = vrot.slane %v194, %v1464
        %v1467 = vunpack.c.l.s4 1966171168
        %v1468 = vunpack.c.0.s8 %v1467
        %v1469 = vlaneseq
        %v1470 = vshrl.u32 %v1469, 7
        %v1471 = vsub.s32 %v1468, %v1470
        %v1472 = vrot.slane %v1458, %v1471
        %v1473 = vcombine.high %v1465, %v1465
        %v1474 = vcombine.high %v1472, %v1472
        %v1476 = vunpack.c.l.s4 1966171168
        %v1477 = vunpack.c.0.s8 %v1476
        %v1478 = vlaneseq
        %v1479 = vshrl.u32 %v1478, 7
        %v1480 = vsub.s32 %v1477, %v1479
        %v1481 = vrot.slane %v1465, %v1480
        %v1483 = vunpack.c.l.s4 1966171168
        %v1484 = vunpack.c.0.s8 %v1483
        %v1485 = vlaneseq
        %v1486 = vshrl.u32 %v1485, 7
        %v1487 = vsub.s32 %v1484, %v1486
        %v1488 = vrot.slane %v1472, %v1487
        %v1490 = vunpack.c.l.s4 1966171168
        %v1491 = vunpack.c.0.s8 %v1490
        %v1492 = vlaneseq
        %v1493 = vshrl.u32 %v1492, 7
        %v1494 = vsub.s32 %v1491, %v1493
        %v1495 = vrot.slane %v1473, %v1494
        %v1497 = vunpack.c.l.s4 1966171168
        %v1498 = vunpack.c.0.s8 %v1497
        %v1499 = vlaneseq
        %v1500 = vshrl.u32 %v1499, 7
        %v1501 = vsub.s32 %v1498, %v1500
        %v1502 = vrot.slane %v1474, %v1501
        %v1503 = vcombine.high %v1481, %v1481
        %v1504 = vcombine.high %v1488, %v1488
        %v1505 = vcombine.high %v1495, %v1495
        %v1506 = vcombine.high %v1502, %v1502
        %v1507 = vcombine.high %v195, %v195
        %v1509 = vunpack.c.l.s4 1966171168
        %v1510 = vunpack.c.0.s8 %v1509
        %v1511 = vlaneseq
        %v1512 = vshrl.u32 %v1511, 7
        %v1513 = vsub.s32 %v1510, %v1512
        %v1514 = vrot.slane %v195, %v1513
        %v1516 = vunpack.c.l.s4 1966171168
        %v1517 = vunpack.c.0.s8 %v1516
        %v1518 = vlaneseq
        %v1519 = vshrl.u32 %v1518, 7
        %v1520 = vsub.s32 %v1517, %v1519
        %v1521 = vrot.slane %v1507, %v1520
        %v1522 = vcombine.high %v1514, %v1514
        %v1523 = vcombine.high %v1521, %v1521
        %v1525 = vunpack.c.l.s4 1966171168
        %v1526 = vunpack.c.0.s8 %v1525
        %v1527 = vlaneseq
        %v1528 = vshrl.u32 %v1527, 7
        %v1529 = vsub.s32 %v1526, %v1528
        %v1530 = vrot.slane %v1514, %v1529
        %v1532 = vunpack.c.l.s4 1966171168
        %v1533 = vunpack.c.0.s8 %v1532
        %v1534 = vlaneseq
        %v1535 = vshrl.u32 %v1534, 7
        %v1536 = vsub.s32 %v1533, %v1535
        %v1537 = vrot.slane %v1521, %v1536
        %v1539 = vunpack.c.l.s4 1966171168
        %v1540 = vunpack.c.0.s8 %v1539
        %v1541 = vlaneseq
        %v1542 = vshrl.u32 %v1541, 7
        %v1543 = vsub.s32 %v1540, %v1542
        %v1544 = vrot.slane %v1522, %v1543
        %v1546 = vunpack.c.l.s4 1966171168
        %v1547 = vunpack.c.0.s8 %v1546
        %v1548 = vlaneseq
        %v1549 = vshrl.u32 %v1548, 7
        %v1550 = vsub.s32 %v1547, %v1549
        %v1551 = vrot.slane %v1523, %v1550
        %v1552 = vcombine.high %v1530, %v1530
        %v1553 = vcombine.high %v1537, %v1537
        %v1554 = vcombine.high %v1544, %v1544
        %v1555 = vcombine.high %v1551, %v1551
        %v1556 = vcombine.high %v196, %v196
        %v1558 = vunpack.c.l.s4 1966171168
        %v1559 = vunpack.c.0.s8 %v1558
        %v1560 = vlaneseq
        %v1561 = vshrl.u32 %v1560, 7
        %v1562 = vsub.s32 %v1559, %v1561
        %v1563 = vrot.slane %v196, %v1562
        %v1565 = vunpack.c.l.s4 1966171168
        %v1566 = vunpack.c.0.s8 %v1565
        %v1567 = vlaneseq
        %v1568 = vshrl.u32 %v1567, 7
        %v1569 = vsub.s32 %v1566, %v1568
        %v1570 = vrot.slane %v1556, %v1569
        %v1571 = vcombine.high %v1563, %v1563
        %v1572 = vcombine.high %v1570, %v1570
        %v1574 = vunpack.c.l.s4 1966171168
        %v1575 = vunpack.c.0.s8 %v1574
        %v1576 = vlaneseq
        %v1577 = vshrl.u32 %v1576, 7
        %v1578 = vsub.s32 %v1575, %v1577
        %v1579 = vrot.slane %v1563, %v1578
        %v1581 = vunpack.c.l.s4 1966171168
        %v1582 = vunpack.c.0.s8 %v1581
        %v1583 = vlaneseq
        %v1584 = vshrl.u32 %v1583, 7
        %v1585 = vsub.s32 %v1582, %v1584
        %v1586 = vrot.slane %v1570, %v1585
        %v1588 = vunpack.c.l.s4 1966171168
        %v1589 = vunpack.c.0.s8 %v1588
        %v1590 = vlaneseq
        %v1591 = vshrl.u32 %v1590, 7
        %v1592 = vsub.s32 %v1589, %v1591
        %v1593 = vrot.slane %v1571, %v1592
        %v1595 = vunpack.c.l.s4 1966171168
        %v1596 = vunpack.c.0.s8 %v1595
        %v1597 = vlaneseq
        %v1598 = vshrl.u32 %v1597, 7
        %v1599 = vsub.s32 %v1596, %v1598
        %v1600 = vrot.slane %v1572, %v1599
        %v1601 = vcombine.high %v1579, %v1579
        %v1602 = vcombine.high %v1586, %v1586
        %v1603 = vcombine.high %v1593, %v1593
        %v1604 = vcombine.high %v1600, %v1600
        %v1605 = vcombine.high %v197, %v197
        %v1607 = vunpack.c.l.s4 1966171168
        %v1608 = vunpack.c.0.s8 %v1607
        %v1609 = vlaneseq
        %v1610 = vshrl.u32 %v1609, 7
        %v1611 = vsub.s32 %v1608, %v1610
        %v1612 = vrot.slane %v197, %v1611
        %v1614 = vunpack.c.l.s4 1966171168
        %v1615 = vunpack.c.0.s8 %v1614
        %v1616 = vlaneseq
        %v1617 = vshrl.u32 %v1616, 7
        %v1618 = vsub.s32 %v1615, %v1617
        %v1619 = vrot.slane %v1605, %v1618
        %v1620 = vcombine.high %v1612, %v1612
        %v1621 = vcombine.high %v1619, %v1619
        %v1623 = vunpack.c.l.s4 1966171168
        %v1624 = vunpack.c.0.s8 %v1623
        %v1625 = vlaneseq
        %v1626 = vshrl.u32 %v1625, 7
        %v1627 = vsub.s32 %v1624, %v1626
        %v1628 = vrot.slane %v1612, %v1627
        %v1630 = vunpack.c.l.s4 1966171168
        %v1631 = vunpack.c.0.s8 %v1630
        %v1632 = vlaneseq
        %v1633 = vshrl.u32 %v1632, 7
        %v1634 = vsub.s32 %v1631, %v1633
        %v1635 = vrot.slane %v1619, %v1634
        %v1637 = vunpack.c.l.s4 1966171168
        %v1638 = vunpack.c.0.s8 %v1637
        %v1639 = vlaneseq
        %v1640 = vshrl.u32 %v1639, 7
        %v1641 = vsub.s32 %v1638, %v1640
        %v1642 = vrot.slane %v1620, %v1641
        %v1644 = vunpack.c.l.s4 1966171168
        %v1645 = vunpack.c.0.s8 %v1644
        %v1646 = vlaneseq
        %v1647 = vshrl.u32 %v1646, 7
        %v1648 = vsub.s32 %v1645, %v1647
        %v1649 = vrot.slane %v1621, %v1648
        %v1650 = vcombine.high %v1628, %v1628
        %v1651 = vcombine.high %v1635, %v1635
        %v1652 = vcombine.high %v1642, %v1642
        %v1653 = vcombine.high %v1649, %v1649
        %v1654 = vcombine.high %v198, %v198
        %v1656 = vunpack.c.l.s4 1966171168
        %v1657 = vunpack.c.0.s8 %v1656
        %v1658 = vlaneseq
        %v1659 = vshrl.u32 %v1658, 7
        %v1660 = vsub.s32 %v1657, %v1659
        %v1661 = vrot.slane %v198, %v1660
        %v1663 = vunpack.c.l.s4 1966171168
        %v1664 = vunpack.c.0.s8 %v1663
        %v1665 = vlaneseq
        %v1666 = vshrl.u32 %v1665, 7
        %v1667 = vsub.s32 %v1664, %v1666
        %v1668 = vrot.slane %v1654, %v1667
        %v1669 = vcombine.high %v1661, %v1661
        %v1670 = vcombine.high %v1668, %v1668
        %v1672 = vunpack.c.l.s4 1966171168
        %v1673 = vunpack.c.0.s8 %v1672
        %v1674 = vlaneseq
        %v1675 = vshrl.u32 %v1674, 7
        %v1676 = vsub.s32 %v1673, %v1675
        %v1677 = vrot.slane %v1661, %v1676
        %v1679 = vunpack.c.l.s4 1966171168
        %v1680 = vunpack.c.0.s8 %v1679
        %v1681 = vlaneseq
        %v1682 = vshrl.u32 %v1681, 7
        %v1683 = vsub.s32 %v1680, %v1682
        %v1684 = vrot.slane %v1668, %v1683
        %v1686 = vunpack.c.l.s4 1966171168
        %v1687 = vunpack.c.0.s8 %v1686
        %v1688 = vlaneseq
        %v1689 = vshrl.u32 %v1688, 7
        %v1690 = vsub.s32 %v1687, %v1689
        %v1691 = vrot.slane %v1669, %v1690
        %v1693 = vunpack.c.l.s4 1966171168
        %v1694 = vunpack.c.0.s8 %v1693
        %v1695 = vlaneseq
        %v1696 = vshrl.u32 %v1695, 7
        %v1697 = vsub.s32 %v1694, %v1696
        %v1698 = vrot.slane %v1670, %v1697
        %v1699 = vcombine.high %v1677, %v1677
        %v1700 = vcombine.high %v1684, %v1684
        %v1701 = vcombine.high %v1691, %v1691
        %v1702 = vcombine.high %v1698, %v1698
        %v1703 = vcombine.high %v199, %v199
        %v1705 = vunpack.c.l.s4 1966171168
        %v1706 = vunpack.c.0.s8 %v1705
        %v1707 = vlaneseq
        %v1708 = vshrl.u32 %v1707, 7
        %v1709 = vsub.s32 %v1706, %v1708
        %v1710 = vrot.slane %v199, %v1709
        %v1712 = vunpack.c.l.s4 1966171168
        %v1713 = vunpack.c.0.s8 %v1712
        %v1714 = vlaneseq
        %v1715 = vshrl.u32 %v1714, 7
        %v1716 = vsub.s32 %v1713, %v1715
        %v1717 = vrot.slane %v1703, %v1716
        %v1718 = vcombine.high %v1710, %v1710
        %v1719 = vcombine.high %v1717, %v1717
        %v1721 = vunpack.c.l.s4 1966171168
        %v1722 = vunpack.c.0.s8 %v1721
        %v1723 = vlaneseq
        %v1724 = vshrl.u32 %v1723, 7
        %v1725 = vsub.s32 %v1722, %v1724
        %v1726 = vrot.slane %v1710, %v1725
        %v1728 = vunpack.c.l.s4 1966171168
        %v1729 = vunpack.c.0.s8 %v1728
        %v1730 = vlaneseq
        %v1731 = vshrl.u32 %v1730, 7
        %v1732 = vsub.s32 %v1729, %v1731
        %v1733 = vrot.slane %v1717, %v1732
        %v1735 = vunpack.c.l.s4 1966171168
        %v1736 = vunpack.c.0.s8 %v1735
        %v1737 = vlaneseq
        %v1738 = vshrl.u32 %v1737, 7
        %v1739 = vsub.s32 %v1736, %v1738
        %v1740 = vrot.slane %v1718, %v1739
        %v1742 = vunpack.c.l.s4 1966171168
        %v1743 = vunpack.c.0.s8 %v1742
        %v1744 = vlaneseq
        %v1745 = vshrl.u32 %v1744, 7
        %v1746 = vsub.s32 %v1743, %v1745
        %v1747 = vrot.slane %v1719, %v1746
        %v1748 = vcombine.high %v1726, %v1726
        %v1749 = vcombine.high %v1733, %v1733
        %v1750 = vcombine.high %v1740, %v1740
        %v1751 = vcombine.high %v1747, %v1747
        %v1752 = vcombine.high %v200, %v200
        %v1754 = vunpack.c.l.s4 1966171168
        %v1755 = vunpack.c.0.s8 %v1754
        %v1756 = vlaneseq
        %v1757 = vshrl.u32 %v1756, 7
        %v1758 = vsub.s32 %v1755, %v1757
        %v1759 = vrot.slane %v200, %v1758
        %v1761 = vunpack.c.l.s4 1966171168
        %v1762 = vunpack.c.0.s8 %v1761
        %v1763 = vlaneseq
        %v1764 = vshrl.u32 %v1763, 7
        %v1765 = vsub.s32 %v1762, %v1764
        %v1766 = vrot.slane %v1752, %v1765
        %v1767 = vcombine.high %v1759, %v1759
        %v1768 = vcombine.high %v1766, %v1766
        %v1770 = vunpack.c.l.s4 1966171168
        %v1771 = vunpack.c.0.s8 %v1770
        %v1772 = vlaneseq
        %v1773 = vshrl.u32 %v1772, 7
        %v1774 = vsub.s32 %v1771, %v1773
        %v1775 = vrot.slane %v1759, %v1774
        %v1777 = vunpack.c.l.s4 1966171168
        %v1778 = vunpack.c.0.s8 %v1777
        %v1779 = vlaneseq
        %v1780 = vshrl.u32 %v1779, 7
        %v1781 = vsub.s32 %v1778, %v1780
        %v1782 = vrot.slane %v1766, %v1781
        %v1784 = vunpack.c.l.s4 1966171168
        %v1785 = vunpack.c.0.s8 %v1784
        %v1786 = vlaneseq
        %v1787 = vshrl.u32 %v1786, 7
        %v1788 = vsub.s32 %v1785, %v1787
        %v1789 = vrot.slane %v1767, %v1788
        %v1791 = vunpack.c.l.s4 1966171168
        %v1792 = vunpack.c.0.s8 %v1791
        %v1793 = vlaneseq
        %v1794 = vshrl.u32 %v1793, 7
        %v1795 = vsub.s32 %v1792, %v1794
        %v1796 = vrot.slane %v1768, %v1795
        %v1797 = vcombine.high %v1775, %v1775
        %v1798 = vcombine.high %v1782, %v1782
        %v1799 = vcombine.high %v1789, %v1789
        %v1800 = vcombine.high %v1796, %v1796
        %v1801 = vlaneseq
        %v1802 = vshrl.u32 %v1801, 7
        %v1803 = vsub.s32 0, %v1802
        %v1804 = vrot.slane %v256, %v1803
        %v1805 = vlaneseq
        %v1806 = vshrl.u32 %v1805, 7
        %v1807 = vsub.s32 0, %v1806
        %v1808 = vrot.slane %v270, %v1807
        %v1809 = vlaneseq
        %v1810 = vshrl.u32 %v1809, 7
        %v1811 = vsub.s32 0, %v1810
        %v1812 = vrot.slane %v278, %v1811
        %v1813 = vlaneseq
        %v1814 = vshrl.u32 %v1813, 7
        %v1815 = vsub.s32 0, %v1814
        %v1816 = vrot.slane %v280, %v1815
        %v1817 = vlaneseq
        %v1818 = vshrl.u32 %v1817, 7
        %v1819 = vsub.s32 0, %v1818
        %v1820 = vrot.slane %v263, %v1819
        %v1821 = vlaneseq
        %v1822 = vshrl.u32 %v1821, 7
        %v1823 = vsub.s32 0, %v1822
        %v1824 = vrot.slane %v277, %v1823
        %v1825 = vlaneseq
        %v1826 = vshrl.u32 %v1825, 7
        %v1827 = vsub.s32 0, %v1826
        %v1828 = vrot.slane %v279, %v1827
        %v1829 = vlaneseq
        %v1830 = vshrl.u32 %v1829, 7
        %v1831 = vsub.s32 0, %v1830
        %v1832 = vrot.slane %v281, %v1831
        %v1833 = vlaneseq
        %v1834 = vshrl.u32 %v1833, 7
        %v1835 = vsub.s32 0, %v1834
        %v1836 = vrot.slane %v305, %v1835
        %v1837 = vlaneseq
        %v1838 = vshrl.u32 %v1837, 7
        %v1839 = vsub.s32 0, %v1838
        %v1840 = vrot.slane %v319, %v1839
        %v1841 = vlaneseq
        %v1842 = vshrl.u32 %v1841, 7
        %v1843 = vsub.s32 0, %v1842
        %v1844 = vrot.slane %v327, %v1843
        %v1845 = vlaneseq
        %v1846 = vshrl.u32 %v1845, 7
        %v1847 = vsub.s32 0, %v1846
        %v1848 = vrot.slane %v329, %v1847
        %v1849 = vlaneseq
        %v1850 = vshrl.u32 %v1849, 7
        %v1851 = vsub.s32 0, %v1850
        %v1852 = vrot.slane %v312, %v1851
        %v1853 = vlaneseq
        %v1854 = vshrl.u32 %v1853, 7
        %v1855 = vsub.s32 0, %v1854
        %v1856 = vrot.slane %v326, %v1855
        %v1857 = vlaneseq
        %v1858 = vshrl.u32 %v1857, 7
        %v1859 = vsub.s32 0, %v1858
        %v1860 = vrot.slane %v328, %v1859
        %v1861 = vlaneseq
        %v1862 = vshrl.u32 %v1861, 7
        %v1863 = vsub.s32 0, %v1862
        %v1864 = vrot.slane %v330, %v1863
        %v1865 = vlaneseq
        %v1866 = vshrl.u32 %v1865, 7
        %v1867 = vsub.s32 0, %v1866
        %v1868 = vrot.slane %v354, %v1867
        %v1869 = vlaneseq
        %v1870 = vshrl.u32 %v1869, 7
        %v1871 = vsub.s32 0, %v1870
        %v1872 = vrot.slane %v368, %v1871
        %v1873 = vlaneseq
        %v1874 = vshrl.u32 %v1873, 7
        %v1875 = vsub.s32 0, %v1874
        %v1876 = vrot.slane %v376, %v1875
        %v1877 = vlaneseq
        %v1878 = vshrl.u32 %v1877, 7
        %v1879 = vsub.s32 0, %v1878
        %v1880 = vrot.slane %v378, %v1879
        %v1881 = vlaneseq
        %v1882 = vshrl.u32 %v1881, 7
        %v1883 = vsub.s32 0, %v1882
        %v1884 = vrot.slane %v361, %v1883
        %v1885 = vlaneseq
        %v1886 = vshrl.u32 %v1885, 7
        %v1887 = vsub.s32 0, %v1886
        %v1888 = vrot.slane %v375, %v1887
        %v1889 = vlaneseq
        %v1890 = vshrl.u32 %v1889, 7
        %v1891 = vsub.s32 0, %v1890
        %v1892 = vrot.slane %v377, %v1891
        %v1893 = vlaneseq
        %v1894 = vshrl.u32 %v1893, 7
        %v1895 = vsub.s32 0, %v1894
        %v1896 = vrot.slane %v379, %v1895
        %v1897 = vlaneseq
        %v1898 = vshrl.u32 %v1897, 7
        %v1899 = vsub.s32 0, %v1898
        %v1900 = vrot.slane %v403, %v1899
        %v1901 = vlaneseq
        %v1902 = vshrl.u32 %v1901, 7
        %v1903 = vsub.s32 0, %v1902
        %v1904 = vrot.slane %v417, %v1903
        %v1905 = vlaneseq
        %v1906 = vshrl.u32 %v1905, 7
        %v1907 = vsub.s32 0, %v1906
        %v1908 = vrot.slane %v425, %v1907
        %v1909 = vlaneseq
        %v1910 = vshrl.u32 %v1909, 7
        %v1911 = vsub.s32 0, %v1910
        %v1912 = vrot.slane %v427, %v1911
        %v1913 = vlaneseq
        %v1914 = vshrl.u32 %v1913, 7
        %v1915 = vsub.s32 0, %v1914
        %v1916 = vrot.slane %v410, %v1915
        %v1917 = vlaneseq
        %v1918 = vshrl.u32 %v1917, 7
        %v1919 = vsub.s32 0, %v1918
        %v1920 = vrot.slane %v424, %v1919
        %v1921 = vlaneseq
        %v1922 = vshrl.u32 %v1921, 7
        %v1923 = vsub.s32 0, %v1922
        %v1924 = vrot.slane %v426, %v1923
        %v1925 = vlaneseq
        %v1926 = vshrl.u32 %v1925, 7
        %v1927 = vsub.s32 0, %v1926
        %v1928 = vrot.slane %v428, %v1927
        %v1929 = vlaneseq
        %v1930 = vshrl.u32 %v1929, 7
        %v1931 = vsub.s32 0, %v1930
        %v1932 = vrot.slane %v452, %v1931
        %v1933 = vlaneseq
        %v1934 = vshrl.u32 %v1933, 7
        %v1935 = vsub.s32 0, %v1934
        %v1936 = vrot.slane %v466, %v1935
        %v1937 = vlaneseq
        %v1938 = vshrl.u32 %v1937, 7
        %v1939 = vsub.s32 0, %v1938
        %v1940 = vrot.slane %v474, %v1939
        %v1941 = vlaneseq
        %v1942 = vshrl.u32 %v1941, 7
        %v1943 = vsub.s32 0, %v1942
        %v1944 = vrot.slane %v476, %v1943
        %v1945 = vlaneseq
        %v1946 = vshrl.u32 %v1945, 7
        %v1947 = vsub.s32 0, %v1946
        %v1948 = vrot.slane %v459, %v1947
        %v1949 = vlaneseq
        %v1950 = vshrl.u32 %v1949, 7
        %v1951 = vsub.s32 0, %v1950
        %v1952 = vrot.slane %v473, %v1951
        %v1953 = vlaneseq
        %v1954 = vshrl.u32 %v1953, 7
        %v1955 = vsub.s32 0, %v1954
        %v1956 = vrot.slane %v475, %v1955
        %v1957 = vlaneseq
        %v1958 = vshrl.u32 %v1957, 7
        %v1959 = vsub.s32 0, %v1958
        %v1960 = vrot.slane %v477, %v1959
        %v1961 = vlaneseq
        %v1962 = vshrl.u32 %v1961, 7
        %v1963 = vsub.s32 0, %v1962
        %v1964 = vrot.slane %v501, %v1963
        %v1965 = vlaneseq
        %v1966 = vshrl.u32 %v1965, 7
        %v1967 = vsub.s32 0, %v1966
        %v1968 = vrot.slane %v515, %v1967
        %v1969 = vlaneseq
        %v1970 = vshrl.u32 %v1969, 7
        %v1971 = vsub.s32 0, %v1970
        %v1972 = vrot.slane %v523, %v1971
        %v1973 = vlaneseq
        %v1974 = vshrl.u32 %v1973, 7
        %v1975 = vsub.s32 0, %v1974
        %v1976 = vrot.slane %v525, %v1975
        %v1977 = vlaneseq
        %v1978 = vshrl.u32 %v1977, 7
        %v1979 = vsub.s32 0, %v1978
        %v1980 = vrot.slane %v508, %v1979
        %v1981 = vlaneseq
        %v1982 = vshrl.u32 %v1981, 7
        %v1983 = vsub.s32 0, %v1982
        %v1984 = vrot.slane %v522, %v1983
        %v1985 = vlaneseq
        %v1986 = vshrl.u32 %v1985, 7
        %v1987 = vsub.s32 0, %v1986
        %v1988 = vrot.slane %v524, %v1987
        %v1989 = vlaneseq
        %v1990 = vshrl.u32 %v1989, 7
        %v1991 = vsub.s32 0, %v1990
        %v1992 = vrot.slane %v526, %v1991
        %v1993 = vlaneseq
        %v1994 = vshrl.u32 %v1993, 7
        %v1995 = vsub.s32 0, %v1994
        %v1996 = vrot.slane %v550, %v1995
        %v1997 = vlaneseq
        %v1998 = vshrl.u32 %v1997, 7
        %v1999 = vsub.s32 0, %v1998
        %v2000 = vrot.slane %v564, %v1999
        %v2001 = vlaneseq
        %v2002 = vshrl.u32 %v2001, 7
        %v2003 = vsub.s32 0, %v2002
        %v2004 = vrot.slane %v572, %v2003
        %v2005 = vlaneseq
        %v2006 = vshrl.u32 %v2005, 7
        %v2007 = vsub.s32 0, %v2006
        %v2008 = vrot.slane %v574, %v2007
        %v2009 = vlaneseq
        %v2010 = vshrl.u32 %v2009, 7
        %v2011 = vsub.s32 0, %v2010
        %v2012 = vrot.slane %v557, %v2011
        %v2013 = vlaneseq
        %v2014 = vshrl.u32 %v2013, 7
        %v2015 = vsub.s32 0, %v2014
        %v2016 = vrot.slane %v571, %v2015
        %v2017 = vlaneseq
        %v2018 = vshrl.u32 %v2017, 7
        %v2019 = vsub.s32 0, %v2018
        %v2020 = vrot.slane %v573, %v2019
        %v2021 = vlaneseq
        %v2022 = vshrl.u32 %v2021, 7
        %v2023 = vsub.s32 0, %v2022
        %v2024 = vrot.slane %v575, %v2023
        %v2025 = vlaneseq
        %v2026 = vshrl.u32 %v2025, 7
        %v2027 = vsub.s32 0, %v2026
        %v2028 = vrot.slane %v599, %v2027
        %v2029 = vlaneseq
        %v2030 = vshrl.u32 %v2029, 7
        %v2031 = vsub.s32 0, %v2030
        %v2032 = vrot.slane %v613, %v2031
        %v2033 = vlaneseq
        %v2034 = vshrl.u32 %v2033, 7
        %v2035 = vsub.s32 0, %v2034
        %v2036 = vrot.slane %v621, %v2035
        %v2037 = vlaneseq
        %v2038 = vshrl.u32 %v2037, 7
        %v2039 = vsub.s32 0, %v2038
        %v2040 = vrot.slane %v623, %v2039
        %v2041 = vlaneseq
        %v2042 = vshrl.u32 %v2041, 7
        %v2043 = vsub.s32 0, %v2042
        %v2044 = vrot.slane %v606, %v2043
        %v2045 = vlaneseq
        %v2046 = vshrl.u32 %v2045, 7
        %v2047 = vsub.s32 0, %v2046
        %v2048 = vrot.slane %v620, %v2047
        %v2049 = vlaneseq
        %v2050 = vshrl.u32 %v2049, 7
        %v2051 = vsub.s32 0, %v2050
        %v2052 = vrot.slane %v622, %v2051
        %v2053 = vlaneseq
        %v2054 = vshrl.u32 %v2053, 7
        %v2055 = vsub.s32 0, %v2054
        %v2056 = vrot.slane %v624, %v2055
        %v2057 = vlaneseq
        %v2058 = vshrl.u32 %v2057, 7
        %v2059 = vsub.s32 0, %v2058
        %v2060 = vrot.slane %v648, %v2059
        %v2061 = vlaneseq
        %v2062 = vshrl.u32 %v2061, 7
        %v2063 = vsub.s32 0, %v2062
        %v2064 = vrot.slane %v662, %v2063
        %v2065 = vlaneseq
        %v2066 = vshrl.u32 %v2065, 7
        %v2067 = vsub.s32 0, %v2066
        %v2068 = vrot.slane %v670, %v2067
        %v2069 = vlaneseq
        %v2070 = vshrl.u32 %v2069, 7
        %v2071 = vsub.s32 0, %v2070
        %v2072 = vrot.slane %v672, %v2071
        %v2073 = vlaneseq
        %v2074 = vshrl.u32 %v2073, 7
        %v2075 = vsub.s32 0, %v2074
        %v2076 = vrot.slane %v655, %v2075
        %v2077 = vlaneseq
        %v2078 = vshrl.u32 %v2077, 7
        %v2079 = vsub.s32 0, %v2078
        %v2080 = vrot.slane %v669, %v2079
        %v2081 = vlaneseq
        %v2082 = vshrl.u32 %v2081, 7
        %v2083 = vsub.s32 0, %v2082
        %v2084 = vrot.slane %v671, %v2083
        %v2085 = vlaneseq
        %v2086 = vshrl.u32 %v2085, 7
        %v2087 = vsub.s32 0, %v2086
        %v2088 = vrot.slane %v673, %v2087
        %v2089 = vlaneseq
        %v2090 = vshrl.u32 %v2089, 7
        %v2091 = vsub.s32 0, %v2090
        %v2092 = vrot.slane %v697, %v2091
        %v2093 = vlaneseq
        %v2094 = vshrl.u32 %v2093, 7
        %v2095 = vsub.s32 0, %v2094
        %v2096 = vrot.slane %v711, %v2095
        %v2097 = vlaneseq
        %v2098 = vshrl.u32 %v2097, 7
        %v2099 = vsub.s32 0, %v2098
        %v2100 = vrot.slane %v719, %v2099
        %v2101 = vlaneseq
        %v2102 = vshrl.u32 %v2101, 7
        %v2103 = vsub.s32 0, %v2102
        %v2104 = vrot.slane %v721, %v2103
        %v2105 = vlaneseq
        %v2106 = vshrl.u32 %v2105, 7
        %v2107 = vsub.s32 0, %v2106
        %v2108 = vrot.slane %v704, %v2107
        %v2109 = vlaneseq
        %v2110 = vshrl.u32 %v2109, 7
        %v2111 = vsub.s32 0, %v2110
        %v2112 = vrot.slane %v718, %v2111
        %v2113 = vlaneseq
        %v2114 = vshrl.u32 %v2113, 7
        %v2115 = vsub.s32 0, %v2114
        %v2116 = vrot.slane %v720, %v2115
        %v2117 = vlaneseq
        %v2118 = vshrl.u32 %v2117, 7
        %v2119 = vsub.s32 0, %v2118
        %v2120 = vrot.slane %v722, %v2119
        %v2121 = vlaneseq
        %v2122 = vshrl.u32 %v2121, 7
        %v2123 = vsub.s32 0, %v2122
        %v2124 = vrot.slane %v746, %v2123
        %v2125 = vlaneseq
        %v2126 = vshrl.u32 %v2125, 7
        %v2127 = vsub.s32 0, %v2126
        %v2128 = vrot.slane %v760, %v2127
        %v2129 = vlaneseq
        %v2130 = vshrl.u32 %v2129, 7
        %v2131 = vsub.s32 0, %v2130
        %v2132 = vrot.slane %v768, %v2131
        %v2133 = vlaneseq
        %v2134 = vshrl.u32 %v2133, 7
        %v2135 = vsub.s32 0, %v2134
        %v2136 = vrot.slane %v770, %v2135
        %v2137 = vlaneseq
        %v2138 = vshrl.u32 %v2137, 7
        %v2139 = vsub.s32 0, %v2138
        %v2140 = vrot.slane %v753, %v2139
        %v2141 = vlaneseq
        %v2142 = vshrl.u32 %v2141, 7
        %v2143 = vsub.s32 0, %v2142
        %v2144 = vrot.slane %v767, %v2143
        %v2145 = vlaneseq
        %v2146 = vshrl.u32 %v2145, 7
        %v2147 = vsub.s32 0, %v2146
        %v2148 = vrot.slane %v769, %v2147
        %v2149 = vlaneseq
        %v2150 = vshrl.u32 %v2149, 7
        %v2151 = vsub.s32 0, %v2150
        %v2152 = vrot.slane %v771, %v2151
        %v2153 = vlaneseq
        %v2154 = vshrl.u32 %v2153, 7
        %v2155 = vsub.s32 0, %v2154
        %v2156 = vrot.slane %v795, %v2155
        %v2157 = vlaneseq
        %v2158 = vshrl.u32 %v2157, 7
        %v2159 = vsub.s32 0, %v2158
        %v2160 = vrot.slane %v809, %v2159
        %v2161 = vlaneseq
        %v2162 = vshrl.u32 %v2161, 7
        %v2163 = vsub.s32 0, %v2162
        %v2164 = vrot.slane %v817, %v2163
        %v2165 = vlaneseq
        %v2166 = vshrl.u32 %v2165, 7
        %v2167 = vsub.s32 0, %v2166
        %v2168 = vrot.slane %v819, %v2167
        %v2169 = vlaneseq
        %v2170 = vshrl.u32 %v2169, 7
        %v2171 = vsub.s32 0, %v2170
        %v2172 = vrot.slane %v802, %v2171
        %v2173 = vlaneseq
        %v2174 = vshrl.u32 %v2173, 7
        %v2175 = vsub.s32 0, %v2174
        %v2176 = vrot.slane %v816, %v2175
        %v2177 = vlaneseq
        %v2178 = vshrl.u32 %v2177, 7
        %v2179 = vsub.s32 0, %v2178
        %v2180 = vrot.slane %v818, %v2179
        %v2181 = vlaneseq
        %v2182 = vshrl.u32 %v2181, 7
        %v2183 = vsub.s32 0, %v2182
        %v2184 = vrot.slane %v820, %v2183
        %v2185 = vlaneseq
        %v2186 = vshrl.u32 %v2185, 7
        %v2187 = vsub.s32 0, %v2186
        %v2188 = vrot.slane %v844, %v2187
        %v2189 = vlaneseq
        %v2190 = vshrl.u32 %v2189, 7
        %v2191 = vsub.s32 0, %v2190
        %v2192 = vrot.slane %v858, %v2191
        %v2193 = vlaneseq
        %v2194 = vshrl.u32 %v2193, 7
        %v2195 = vsub.s32 0, %v2194
        %v2196 = vrot.slane %v866, %v2195
        %v2197 = vlaneseq
        %v2198 = vshrl.u32 %v2197, 7
        %v2199 = vsub.s32 0, %v2198
        %v2200 = vrot.slane %v868, %v2199
        %v2201 = vlaneseq
        %v2202 = vshrl.u32 %v2201, 7
        %v2203 = vsub.s32 0, %v2202
        %v2204 = vrot.slane %v851, %v2203
        %v2205 = vlaneseq
        %v2206 = vshrl.u32 %v2205, 7
        %v2207 = vsub.s32 0, %v2206
        %v2208 = vrot.slane %v865, %v2207
        %v2209 = vlaneseq
        %v2210 = vshrl.u32 %v2209, 7
        %v2211 = vsub.s32 0, %v2210
        %v2212 = vrot.slane %v867, %v2211
        %v2213 = vlaneseq
        %v2214 = vshrl.u32 %v2213, 7
        %v2215 = vsub.s32 0, %v2214
        %v2216 = vrot.slane %v869, %v2215
        %v2217 = vlaneseq
        %v2218 = vshrl.u32 %v2217, 7
        %v2219 = vsub.s32 0, %v2218
        %v2220 = vrot.slane %v893, %v2219
        %v2221 = vlaneseq
        %v2222 = vshrl.u32 %v2221, 7
        %v2223 = vsub.s32 0, %v2222
        %v2224 = vrot.slane %v907, %v2223
        %v2225 = vlaneseq
        %v2226 = vshrl.u32 %v2225, 7
        %v2227 = vsub.s32 0, %v2226
        %v2228 = vrot.slane %v915, %v2227
        %v2229 = vlaneseq
        %v2230 = vshrl.u32 %v2229, 7
        %v2231 = vsub.s32 0, %v2230
        %v2232 = vrot.slane %v917, %v2231
        %v2233 = vlaneseq
        %v2234 = vshrl.u32 %v2233, 7
        %v2235 = vsub.s32 0, %v2234
        %v2236 = vrot.slane %v900, %v2235
        %v2237 = vlaneseq
        %v2238 = vshrl.u32 %v2237, 7
        %v2239 = vsub.s32 0, %v2238
        %v2240 = vrot.slane %v914, %v2239
        %v2241 = vlaneseq
        %v2242 = vshrl.u32 %v2241, 7
        %v2243 = vsub.s32 0, %v2242
        %v2244 = vrot.slane %v916, %v2243
        %v2245 = vlaneseq
        %v2246 = vshrl.u32 %v2245, 7
        %v2247 = vsub.s32 0, %v2246
        %v2248 = vrot.slane %v918, %v2247
        %v2249 = vlaneseq
        %v2250 = vshrl.u32 %v2249, 7
        %v2251 = vsub.s32 0, %v2250
        %v2252 = vrot.slane %v942, %v2251
        %v2253 = vlaneseq
        %v2254 = vshrl.u32 %v2253, 7
        %v2255 = vsub.s32 0, %v2254
        %v2256 = vrot.slane %v956, %v2255
        %v2257 = vlaneseq
        %v2258 = vshrl.u32 %v2257, 7
        %v2259 = vsub.s32 0, %v2258
        %v2260 = vrot.slane %v964, %v2259
        %v2261 = vlaneseq
        %v2262 = vshrl.u32 %v2261, 7
        %v2263 = vsub.s32 0, %v2262
        %v2264 = vrot.slane %v966, %v2263
        %v2265 = vlaneseq
        %v2266 = vshrl.u32 %v2265, 7
        %v2267 = vsub.s32 0, %v2266
        %v2268 = vrot.slane %v949, %v2267
        %v2269 = vlaneseq
        %v2270 = vshrl.u32 %v2269, 7
        %v2271 = vsub.s32 0, %v2270
        %v2272 = vrot.slane %v963, %v2271
        %v2273 = vlaneseq
        %v2274 = vshrl.u32 %v2273, 7
        %v2275 = vsub.s32 0, %v2274
        %v2276 = vrot.slane %v965, %v2275
        %v2277 = vlaneseq
        %v2278 = vshrl.u32 %v2277, 7
        %v2279 = vsub.s32 0, %v2278
        %v2280 = vrot.slane %v967, %v2279
        %v2281 = vlaneseq
        %v2282 = vshrl.u32 %v2281, 7
        %v2283 = vsub.s32 0, %v2282
        %v2284 = vrot.slane %v991, %v2283
        %v2285 = vlaneseq
        %v2286 = vshrl.u32 %v2285, 7
        %v2287 = vsub.s32 0, %v2286
        %v2288 = vrot.slane %v1005, %v2287
        %v2289 = vlaneseq
        %v2290 = vshrl.u32 %v2289, 7
        %v2291 = vsub.s32 0, %v2290
        %v2292 = vrot.slane %v1013, %v2291
        %v2293 = vlaneseq
        %v2294 = vshrl.u32 %v2293, 7
        %v2295 = vsub.s32 0, %v2294
        %v2296 = vrot.slane %v1015, %v2295
        %v2297 = vlaneseq
        %v2298 = vshrl.u32 %v2297, 7
        %v2299 = vsub.s32 0, %v2298
        %v2300 = vrot.slane %v998, %v2299
        %v2301 = vlaneseq
        %v2302 = vshrl.u32 %v2301, 7
        %v2303 = vsub.s32 0, %v2302
        %v2304 = vrot.slane %v1012, %v2303
        %v2305 = vlaneseq
        %v2306 = vshrl.u32 %v2305, 7
        %v2307 = vsub.s32 0, %v2306
        %v2308 = vrot.slane %v1014, %v2307
        %v2309 = vlaneseq
        %v2310 = vshrl.u32 %v2309, 7
        %v2311 = vsub.s32 0, %v2310
        %v2312 = vrot.slane %v1016, %v2311
        %v2313 = vlaneseq
        %v2314 = vshrl.u32 %v2313, 7
        %v2315 = vsub.s32 0, %v2314
        %v2316 = vrot.slane %v1040, %v2315
        %v2317 = vlaneseq
        %v2318 = vshrl.u32 %v2317, 7
        %v2319 = vsub.s32 0, %v2318
        %v2320 = vrot.slane %v1054, %v2319
        %v2321 = vlaneseq
        %v2322 = vshrl.u32 %v2321, 7
        %v2323 = vsub.s32 0, %v2322
        %v2324 = vrot.slane %v1062, %v2323
        %v2325 = vlaneseq
        %v2326 = vshrl.u32 %v2325, 7
        %v2327 = vsub.s32 0, %v2326
        %v2328 = vrot.slane %v1064, %v2327
        %v2329 = vlaneseq
        %v2330 = vshrl.u32 %v2329, 7
        %v2331 = vsub.s32 0, %v2330
        %v2332 = vrot.slane %v1047, %v2331
        %v2333 = vlaneseq
        %v2334 = vshrl.u32 %v2333, 7
        %v2335 = vsub.s32 0, %v2334
        %v2336 = vrot.slane %v1061, %v2335
        %v2337 = vlaneseq
        %v2338 = vshrl.u32 %v2337, 7
        %v2339 = vsub.s32 0, %v2338
        %v2340 = vrot.slane %v1063, %v2339
        %v2341 = vlaneseq
        %v2342 = vshrl.u32 %v2341, 7
        %v2343 = vsub.s32 0, %v2342
        %v2344 = vrot.slane %v1065, %v2343
        %v2345 = vlaneseq
        %v2346 = vshrl.u32 %v2345, 7
        %v2347 = vsub.s32 0, %v2346
        %v2348 = vrot.slane %v1089, %v2347
        %v2349 = vlaneseq
        %v2350 = vshrl.u32 %v2349, 7
        %v2351 = vsub.s32 0, %v2350
        %v2352 = vrot.slane %v1103, %v2351
        %v2353 = vlaneseq
        %v2354 = vshrl.u32 %v2353, 7
        %v2355 = vsub.s32 0, %v2354
        %v2356 = vrot.slane %v1111, %v2355
        %v2357 = vlaneseq
        %v2358 = vshrl.u32 %v2357, 7
        %v2359 = vsub.s32 0, %v2358
        %v2360 = vrot.slane %v1113, %v2359
        %v2361 = vlaneseq
        %v2362 = vshrl.u32 %v2361, 7
        %v2363 = vsub.s32 0, %v2362
        %v2364 = vrot.slane %v1096, %v2363
        %v2365 = vlaneseq
        %v2366 = vshrl.u32 %v2365, 7
        %v2367 = vsub.s32 0, %v2366
        %v2368 = vrot.slane %v1110, %v2367
        %v2369 = vlaneseq
        %v2370 = vshrl.u32 %v2369, 7
        %v2371 = vsub.s32 0, %v2370
        %v2372 = vrot.slane %v1112, %v2371
        %v2373 = vlaneseq
        %v2374 = vshrl.u32 %v2373, 7
        %v2375 = vsub.s32 0, %v2374
        %v2376 = vrot.slane %v1114, %v2375
        %v2377 = vlaneseq
        %v2378 = vshrl.u32 %v2377, 7
        %v2379 = vsub.s32 0, %v2378
        %v2380 = vrot.slane %v1138, %v2379
        %v2381 = vlaneseq
        %v2382 = vshrl.u32 %v2381, 7
        %v2383 = vsub.s32 0, %v2382
        %v2384 = vrot.slane %v1152, %v2383
        %v2385 = vlaneseq
        %v2386 = vshrl.u32 %v2385, 7
        %v2387 = vsub.s32 0, %v2386
        %v2388 = vrot.slane %v1160, %v2387
        %v2389 = vlaneseq
        %v2390 = vshrl.u32 %v2389, 7
        %v2391 = vsub.s32 0, %v2390
        %v2392 = vrot.slane %v1162, %v2391
        %v2393 = vlaneseq
        %v2394 = vshrl.u32 %v2393, 7
        %v2395 = vsub.s32 0, %v2394
        %v2396 = vrot.slane %v1145, %v2395
        %v2397 = vlaneseq
        %v2398 = vshrl.u32 %v2397, 7
        %v2399 = vsub.s32 0, %v2398
        %v2400 = vrot.slane %v1159, %v2399
        %v2401 = vlaneseq
        %v2402 = vshrl.u32 %v2401, 7
        %v2403 = vsub.s32 0, %v2402
        %v2404 = vrot.slane %v1161, %v2403
        %v2405 = vlaneseq
        %v2406 = vshrl.u32 %v2405, 7
        %v2407 = vsub.s32 0, %v2406
        %v2408 = vrot.slane %v1163, %v2407
        %v2409 = vlaneseq
        %v2410 = vshrl.u32 %v2409, 7
        %v2411 = vsub.s32 0, %v2410
        %v2412 = vrot.slane %v1187, %v2411
        %v2413 = vlaneseq
        %v2414 = vshrl.u32 %v2413, 7
        %v2415 = vsub.s32 0, %v2414
        %v2416 = vrot.slane %v1201, %v2415
        %v2417 = vlaneseq
        %v2418 = vshrl.u32 %v2417, 7
        %v2419 = vsub.s32 0, %v2418
        %v2420 = vrot.slane %v1209, %v2419
        %v2421 = vlaneseq
        %v2422 = vshrl.u32 %v2421, 7
        %v2423 = vsub.s32 0, %v2422
        %v2424 = vrot.slane %v1211, %v2423
        %v2425 = vlaneseq
        %v2426 = vshrl.u32 %v2425, 7
        %v2427 = vsub.s32 0, %v2426
        %v2428 = vrot.slane %v1194, %v2427
        %v2429 = vlaneseq
        %v2430 = vshrl.u32 %v2429, 7
        %v2431 = vsub.s32 0, %v2430
        %v2432 = vrot.slane %v1208, %v2431
        %v2433 = vlaneseq
        %v2434 = vshrl.u32 %v2433, 7
        %v2435 = vsub.s32 0, %v2434
        %v2436 = vrot.slane %v1210, %v2435
        %v2437 = vlaneseq
        %v2438 = vshrl.u32 %v2437, 7
        %v2439 = vsub.s32 0, %v2438
        %v2440 = vrot.slane %v1212, %v2439
        %v2441 = vlaneseq
        %v2442 = vshrl.u32 %v2441, 7
        %v2443 = vsub.s32 0, %v2442
        %v2444 = vrot.slane %v1236, %v2443
        %v2445 = vlaneseq
        %v2446 = vshrl.u32 %v2445, 7
        %v2447 = vsub.s32 0, %v2446
        %v2448 = vrot.slane %v1250, %v2447
        %v2449 = vlaneseq
        %v2450 = vshrl.u32 %v2449, 7
        %v2451 = vsub.s32 0, %v2450
        %v2452 = vrot.slane %v1258, %v2451
        %v2453 = vlaneseq
        %v2454 = vshrl.u32 %v2453, 7
        %v2455 = vsub.s32 0, %v2454
        %v2456 = vrot.slane %v1260, %v2455
        %v2457 = vlaneseq
        %v2458 = vshrl.u32 %v2457, 7
        %v2459 = vsub.s32 0, %v2458
        %v2460 = vrot.slane %v1243, %v2459
        %v2461 = vlaneseq
        %v2462 = vshrl.u32 %v2461, 7
        %v2463 = vsub.s32 0, %v2462
        %v2464 = vrot.slane %v1257, %v2463
        %v2465 = vlaneseq
        %v2466 = vshrl.u32 %v2465, 7
        %v2467 = vsub.s32 0, %v2466
        %v2468 = vrot.slane %v1259, %v2467
        %v2469 = vlaneseq
        %v2470 = vshrl.u32 %v2469, 7
        %v2471 = vsub.s32 0, %v2470
        %v2472 = vrot.slane %v1261, %v2471
        %v2473 = vlaneseq
        %v2474 = vshrl.u32 %v2473, 7
        %v2475 = vsub.s32 0, %v2474
        %v2476 = vrot.slane %v1285, %v2475
        %v2477 = vlaneseq
        %v2478 = vshrl.u32 %v2477, 7
        %v2479 = vsub.s32 0, %v2478
        %v2480 = vrot.slane %v1299, %v2479
        %v2481 = vlaneseq
        %v2482 = vshrl.u32 %v2481, 7
        %v2483 = vsub.s32 0, %v2482
        %v2484 = vrot.slane %v1307, %v2483
        %v2485 = vlaneseq
        %v2486 = vshrl.u32 %v2485, 7
        %v2487 = vsub.s32 0, %v2486
        %v2488 = vrot.slane %v1309, %v2487
        %v2489 = vlaneseq
        %v2490 = vshrl.u32 %v2489, 7
        %v2491 = vsub.s32 0, %v2490
        %v2492 = vrot.slane %v1292, %v2491
        %v2493 = vlaneseq
        %v2494 = vshrl.u32 %v2493, 7
        %v2495 = vsub.s32 0, %v2494
        %v2496 = vrot.slane %v1306, %v2495
        %v2497 = vlaneseq
        %v2498 = vshrl.u32 %v2497, 7
        %v2499 = vsub.s32 0, %v2498
        %v2500 = vrot.slane %v1308, %v2499
        %v2501 = vlaneseq
        %v2502 = vshrl.u32 %v2501, 7
        %v2503 = vsub.s32 0, %v2502
        %v2504 = vrot.slane %v1310, %v2503
        %v2505 = vlaneseq
        %v2506 = vshrl.u32 %v2505, 7
        %v2507 = vsub.s32 0, %v2506
        %v2508 = vrot.slane %v1334, %v2507
        %v2509 = vlaneseq
        %v2510 = vshrl.u32 %v2509, 7
        %v2511 = vsub.s32 0, %v2510
        %v2512 = vrot.slane %v1348, %v2511
        %v2513 = vlaneseq
        %v2514 = vshrl.u32 %v2513, 7
        %v2515 = vsub.s32 0, %v2514
        %v2516 = vrot.slane %v1356, %v2515
        %v2517 = vlaneseq
        %v2518 = vshrl.u32 %v2517, 7
        %v2519 = vsub.s32 0, %v2518
        %v2520 = vrot.slane %v1358, %v2519
        %v2521 = vlaneseq
        %v2522 = vshrl.u32 %v2521, 7
        %v2523 = vsub.s32 0, %v2522
        %v2524 = vrot.slane %v1341, %v2523
        %v2525 = vlaneseq
        %v2526 = vshrl.u32 %v2525, 7
        %v2527 = vsub.s32 0, %v2526
        %v2528 = vrot.slane %v1355, %v2527
        %v2529 = vlaneseq
        %v2530 = vshrl.u32 %v2529, 7
        %v2531 = vsub.s32 0, %v2530
        %v2532 = vrot.slane %v1357, %v2531
        %v2533 = vlaneseq
        %v2534 = vshrl.u32 %v2533, 7
        %v2535 = vsub.s32 0, %v2534
        %v2536 = vrot.slane %v1359, %v2535
        %v2537 = vlaneseq
        %v2538 = vshrl.u32 %v2537, 7
        %v2539 = vsub.s32 0, %v2538
        %v2540 = vrot.slane %v1383, %v2539
        %v2541 = vlaneseq
        %v2542 = vshrl.u32 %v2541, 7
        %v2543 = vsub.s32 0, %v2542
        %v2544 = vrot.slane %v1397, %v2543
        %v2545 = vlaneseq
        %v2546 = vshrl.u32 %v2545, 7
        %v2547 = vsub.s32 0, %v2546
        %v2548 = vrot.slane %v1405, %v2547
        %v2549 = vlaneseq
        %v2550 = vshrl.u32 %v2549, 7
        %v2551 = vsub.s32 0, %v2550
        %v2552 = vrot.slane %v1407, %v2551
        %v2553 = vlaneseq
        %v2554 = vshrl.u32 %v2553, 7
        %v2555 = vsub.s32 0, %v2554
        %v2556 = vrot.slane %v1390, %v2555
        %v2557 = vlaneseq
        %v2558 = vshrl.u32 %v2557, 7
        %v2559 = vsub.s32 0, %v2558
        %v2560 = vrot.slane %v1404, %v2559
        %v2561 = vlaneseq
        %v2562 = vshrl.u32 %v2561, 7
        %v2563 = vsub.s32 0, %v2562
        %v2564 = vrot.slane %v1406, %v2563
        %v2565 = vlaneseq
        %v2566 = vshrl.u32 %v2565, 7
        %v2567 = vsub.s32 0, %v2566
        %v2568 = vrot.slane %v1408, %v2567
        %v2569 = vlaneseq
        %v2570 = vshrl.u32 %v2569, 7
        %v2571 = vsub.s32 0, %v2570
        %v2572 = vrot.slane %v1432, %v2571
        %v2573 = vlaneseq
        %v2574 = vshrl.u32 %v2573, 7
        %v2575 = vsub.s32 0, %v2574
        %v2576 = vrot.slane %v1446, %v2575
        %v2577 = vlaneseq
        %v2578 = vshrl.u32 %v2577, 7
        %v2579 = vsub.s32 0, %v2578
        %v2580 = vrot.slane %v1454, %v2579
        %v2581 = vlaneseq
        %v2582 = vshrl.u32 %v2581, 7
        %v2583 = vsub.s32 0, %v2582
        %v2584 = vrot.slane %v1456, %v2583
        %v2585 = vlaneseq
        %v2586 = vshrl.u32 %v2585, 7
        %v2587 = vsub.s32 0, %v2586
        %v2588 = vrot.slane %v1439, %v2587
        %v2589 = vlaneseq
        %v2590 = vshrl.u32 %v2589, 7
        %v2591 = vsub.s32 0, %v2590
        %v2592 = vrot.slane %v1453, %v2591
        %v2593 = vlaneseq
        %v2594 = vshrl.u32 %v2593, 7
        %v2595 = vsub.s32 0, %v2594
        %v2596 = vrot.slane %v1455, %v2595
        %v2597 = vlaneseq
        %v2598 = vshrl.u32 %v2597, 7
        %v2599 = vsub.s32 0, %v2598
        %v2600 = vrot.slane %v1457, %v2599
        %v2601 = vlaneseq
        %v2602 = vshrl.u32 %v2601, 7
        %v2603 = vsub.s32 0, %v2602
        %v2604 = vrot.slane %v1481, %v2603
        %v2605 = vlaneseq
        %v2606 = vshrl.u32 %v2605, 7
        %v2607 = vsub.s32 0, %v2606
        %v2608 = vrot.slane %v1495, %v2607
        %v2609 = vlaneseq
        %v2610 = vshrl.u32 %v2609, 7
        %v2611 = vsub.s32 0, %v2610
        %v2612 = vrot.slane %v1503, %v2611
        %v2613 = vlaneseq
        %v2614 = vshrl.u32 %v2613, 7
        %v2615 = vsub.s32 0, %v2614
        %v2616 = vrot.slane %v1505, %v2615
        %v2617 = vlaneseq
        %v2618 = vshrl.u32 %v2617, 7
        %v2619 = vsub.s32 0, %v2618
        %v2620 = vrot.slane %v1488, %v2619
        %v2621 = vlaneseq
        %v2622 = vshrl.u32 %v2621, 7
        %v2623 = vsub.s32 0, %v2622
        %v2624 = vrot.slane %v1502, %v2623
        %v2625 = vlaneseq
        %v2626 = vshrl.u32 %v2625, 7
        %v2627 = vsub.s32 0, %v2626
        %v2628 = vrot.slane %v1504, %v2627
        %v2629 = vlaneseq
        %v2630 = vshrl.u32 %v2629, 7
        %v2631 = vsub.s32 0, %v2630
        %v2632 = vrot.slane %v1506, %v2631
        %v2633 = vlaneseq
        %v2634 = vshrl.u32 %v2633, 7
        %v2635 = vsub.s32 0, %v2634
        %v2636 = vrot.slane %v1530, %v2635
        %v2637 = vlaneseq
        %v2638 = vshrl.u32 %v2637, 7
        %v2639 = vsub.s32 0, %v2638
        %v2640 = vrot.slane %v1544, %v2639
        %v2641 = vlaneseq
        %v2642 = vshrl.u32 %v2641, 7
        %v2643 = vsub.s32 0, %v2642
        %v2644 = vrot.slane %v1552, %v2643
        %v2645 = vlaneseq
        %v2646 = vshrl.u32 %v2645, 7
        %v2647 = vsub.s32 0, %v2646
        %v2648 = vrot.slane %v1554, %v2647
        %v2649 = vlaneseq
        %v2650 = vshrl.u32 %v2649, 7
        %v2651 = vsub.s32 0, %v2650
        %v2652 = vrot.slane %v1537, %v2651
        %v2653 = vlaneseq
        %v2654 = vshrl.u32 %v2653, 7
        %v2655 = vsub.s32 0, %v2654
        %v2656 = vrot.slane %v1551, %v2655
        %v2657 = vlaneseq
        %v2658 = vshrl.u32 %v2657, 7
        %v2659 = vsub.s32 0, %v2658
        %v2660 = vrot.slane %v1553, %v2659
        %v2661 = vlaneseq
        %v2662 = vshrl.u32 %v2661, 7
        %v2663 = vsub.s32 0, %v2662
        %v2664 = vrot.slane %v1555, %v2663
        %v2665 = vlaneseq
        %v2666 = vshrl.u32 %v2665, 7
        %v2667 = vsub.s32 0, %v2666
        %v2668 = vrot.slane %v1579, %v2667
        %v2669 = vlaneseq
        %v2670 = vshrl.u32 %v2669, 7
        %v2671 = vsub.s32 0, %v2670
        %v2672 = vrot.slane %v1593, %v2671
        %v2673 = vlaneseq
        %v2674 = vshrl.u32 %v2673, 7
        %v2675 = vsub.s32 0, %v2674
        %v2676 = vrot.slane %v1601, %v2675
        %v2677 = vlaneseq
        %v2678 = vshrl.u32 %v2677, 7
        %v2679 = vsub.s32 0, %v2678
        %v2680 = vrot.slane %v1603, %v2679
        %v2681 = vlaneseq
        %v2682 = vshrl.u32 %v2681, 7
        %v2683 = vsub.s32 0, %v2682
        %v2684 = vrot.slane %v1586, %v2683
        %v2685 = vlaneseq
        %v2686 = vshrl.u32 %v2685, 7
        %v2687 = vsub.s32 0, %v2686
        %v2688 = vrot.slane %v1600, %v2687
        %v2689 = vlaneseq
        %v2690 = vshrl.u32 %v2689, 7
        %v2691 = vsub.s32 0, %v2690
        %v2692 = vrot.slane %v1602, %v2691
        %v2693 = vlaneseq
        %v2694 = vshrl.u32 %v2693, 7
        %v2695 = vsub.s32 0, %v2694
        %v2696 = vrot.slane %v1604, %v2695
        %v2697 = vlaneseq
        %v2698 = vshrl.u32 %v2697, 7
        %v2699 = vsub.s32 0, %v2698
        %v2700 = vrot.slane %v1628, %v2699
        %v2701 = vlaneseq
        %v2702 = vshrl.u32 %v2701, 7
        %v2703 = vsub.s32 0, %v2702
        %v2704 = vrot.slane %v1642, %v2703
        %v2705 = vlaneseq
        %v2706 = vshrl.u32 %v2705, 7
        %v2707 = vsub.s32 0, %v2706
        %v2708 = vrot.slane %v1650, %v2707
        %v2709 = vlaneseq
        %v2710 = vshrl.u32 %v2709, 7
        %v2711 = vsub.s32 0, %v2710
        %v2712 = vrot.slane %v1652, %v2711
        %v2713 = vlaneseq
        %v2714 = vshrl.u32 %v2713, 7
        %v2715 = vsub.s32 0, %v2714
        %v2716 = vrot.slane %v1635, %v2715
        %v2717 = vlaneseq
        %v2718 = vshrl.u32 %v2717, 7
        %v2719 = vsub.s32 0, %v2718
        %v2720 = vrot.slane %v1649, %v2719
        %v2721 = vlaneseq
        %v2722 = vshrl.u32 %v2721, 7
        %v2723 = vsub.s32 0, %v2722
        %v2724 = vrot.slane %v1651, %v2723
        %v2725 = vlaneseq
        %v2726 = vshrl.u32 %v2725, 7
        %v2727 = vsub.s32 0, %v2726
        %v2728 = vrot.slane %v1653, %v2727
        %v2729 = vlaneseq
        %v2730 = vshrl.u32 %v2729, 7
        %v2731 = vsub.s32 0, %v2730
        %v2732 = vrot.slane %v1677, %v2731
        %v2733 = vlaneseq
        %v2734 = vshrl.u32 %v2733, 7
        %v2735 = vsub.s32 0, %v2734
        %v2736 = vrot.slane %v1691, %v2735
        %v2737 = vlaneseq
        %v2738 = vshrl.u32 %v2737, 7
        %v2739 = vsub.s32 0, %v2738
        %v2740 = vrot.slane %v1699, %v2739
        %v2741 = vlaneseq
        %v2742 = vshrl.u32 %v2741, 7
        %v2743 = vsub.s32 0, %v2742
        %v2744 = vrot.slane %v1701, %v2743
        %v2745 = vlaneseq
        %v2746 = vshrl.u32 %v2745, 7
        %v2747 = vsub.s32 0, %v2746
        %v2748 = vrot.slane %v1684, %v2747
        %v2749 = vlaneseq
        %v2750 = vshrl.u32 %v2749, 7
        %v2751 = vsub.s32 0, %v2750
        %v2752 = vrot.slane %v1698, %v2751
        %v2753 = vlaneseq
        %v2754 = vshrl.u32 %v2753, 7
        %v2755 = vsub.s32 0, %v2754
        %v2756 = vrot.slane %v1700, %v2755
        %v2757 = vlaneseq
        %v2758 = vshrl.u32 %v2757, 7
        %v2759 = vsub.s32 0, %v2758
        %v2760 = vrot.slane %v1702, %v2759
        %v2761 = vlaneseq
        %v2762 = vshrl.u32 %v2761, 7
        %v2763 = vsub.s32 0, %v2762
        %v2764 = vrot.slane %v1726, %v2763
        %v2765 = vlaneseq
        %v2766 = vshrl.u32 %v2765, 7
        %v2767 = vsub.s32 0, %v2766
        %v2768 = vrot.slane %v1740, %v2767
        %v2769 = vlaneseq
        %v2770 = vshrl.u32 %v2769, 7
        %v2771 = vsub.s32 0, %v2770
        %v2772 = vrot.slane %v1748, %v2771
        %v2773 = vlaneseq
        %v2774 = vshrl.u32 %v2773, 7
        %v2775 = vsub.s32 0, %v2774
        %v2776 = vrot.slane %v1750, %v2775
        %v2777 = vlaneseq
        %v2778 = vshrl.u32 %v2777, 7
        %v2779 = vsub.s32 0, %v2778
        %v2780 = vrot.slane %v1733, %v2779
        %v2781 = vlaneseq
        %v2782 = vshrl.u32 %v2781, 7
        %v2783 = vsub.s32 0, %v2782
        %v2784 = vrot.slane %v1747, %v2783
        %v2785 = vlaneseq
        %v2786 = vshrl.u32 %v2785, 7
        %v2787 = vsub.s32 0, %v2786
        %v2788 = vrot.slane %v1749, %v2787
        %v2789 = vlaneseq
        %v2790 = vshrl.u32 %v2789, 7
        %v2791 = vsub.s32 0, %v2790
        %v2792 = vrot.slane %v1751, %v2791
        %v2793 = vlaneseq
        %v2794 = vshrl.u32 %v2793, 7
        %v2795 = vsub.s32 0, %v2794
        %v2796 = vrot.slane %v1775, %v2795
        %v2797 = vlaneseq
        %v2798 = vshrl.u32 %v2797, 7
        %v2799 = vsub.s32 0, %v2798
        %v2800 = vrot.slane %v1789, %v2799
        %v2801 = vlaneseq
        %v2802 = vshrl.u32 %v2801, 7
        %v2803 = vsub.s32 0, %v2802
        %v2804 = vrot.slane %v1797, %v2803
        %v2805 = vlaneseq
        %v2806 = vshrl.u32 %v2805, 7
        %v2807 = vsub.s32 0, %v2806
        %v2808 = vrot.slane %v1799, %v2807
        %v2809 = vlaneseq
        %v2810 = vshrl.u32 %v2809, 7
        %v2811 = vsub.s32 0, %v2810
        %v2812 = vrot.slane %v1782, %v2811
        %v2813 = vlaneseq
        %v2814 = vshrl.u32 %v2813, 7
        %v2815 = vsub.s32 0, %v2814
        %v2816 = vrot.slane %v1796, %v2815
        %v2817 = vlaneseq
        %v2818 = vshrl.u32 %v2817, 7
        %v2819 = vsub.s32 0, %v2818
        %v2820 = vrot.slane %v1798, %v2819
        %v2821 = vlaneseq
        %v2822 = vshrl.u32 %v2821, 7
        %v2823 = vsub.s32 0, %v2822
        %v2824 = vrot.slane %v1800, %v2823
        %vm2825 = vcmask 31744
        %2826 = vst.msk [vmem:[#allocation2] sm:$0xff] %vm2825, 0.0
        %2827 = vst.msk [vmem:[#allocation2 + $0x8] sm:$0xff] %vm2825, 0.0
        %2828 = vst.msk [vmem:[#allocation2 + $0x10] sm:$0xff] %vm2825, 0.0
        %2829 = vst.msk [vmem:[#allocation2 + $0x18] sm:$0xff] %vm2825, 0.0
        %vm2830 = vcmask 25600
        %2831 = vst.msk [vmem:[#allocation2 + $0x20] sm:$0x3] %vm2830, 0.0
        %2832 = vst.msk [vmem:[#allocation2 + $0x28] sm:$0xff] %vm2825, 0.0
        %2833 = vst.msk [vmem:[#allocation2 + $0x30] sm:$0xff] %vm2825, 0.0
        %2834 = vst.msk [vmem:[#allocation2 + $0x38] sm:$0xff] %vm2825, 0.0
        %2835 = vst.msk [vmem:[#allocation2 + $0x40] sm:$0xff] %vm2825, 0.0
        %2836 = vst.msk [vmem:[#allocation2 + $0x48] sm:$0x3] %vm2830, 0.0
        %2837 = vst.msk [vmem:[#allocation2 + $0x50] sm:$0xff] %vm2825, 0.0
        %2838 = vst.msk [vmem:[#allocation2 + $0x58] sm:$0xff] %vm2825, 0.0
        %2839 = vst.msk [vmem:[#allocation2 + $0x60] sm:$0xff] %vm2825, 0.0
        %2840 = vst.msk [vmem:[#allocation2 + $0x68] sm:$0xff] %vm2825, 0.0
        %2841 = vst.msk [vmem:[#allocation2 + $0x70] sm:$0x3] %vm2830, 0.0
        %2842 = vst.msk [vmem:[#allocation2 + $0x78] sm:$0xff] %vm2825, 0.0
        %2843 = vst.msk [vmem:[#allocation2 + $0x80] sm:$0xff] %vm2825, 0.0
        %2844 = vst.msk [vmem:[#allocation2 + $0x88] sm:$0xff] %vm2825, 0.0
        %2845 = vst.msk [vmem:[#allocation2 + $0x90] sm:$0xff] %vm2825, 0.0
        %2846 = vst.msk [vmem:[#allocation2 + $0x98] sm:$0x3] %vm2830, 0.0
        %2847 = vst.msk [vmem:[#allocation2 + $0xa0] sm:$0xff] %vm2825, 0.0
        %2848 = vst.msk [vmem:[#allocation2 + $0xa8] sm:$0xff] %vm2825, 0.0
        %2849 = vst.msk [vmem:[#allocation2 + $0xb0] sm:$0xff] %vm2825, 0.0
        %2850 = vst.msk [vmem:[#allocation2 + $0xb8] sm:$0xff] %vm2825, 0.0
        %2851 = vst.msk [vmem:[#allocation2 + $0xc0] sm:$0x3] %vm2830, 0.0
        %2852 = vst.msk [vmem:[#allocation2 + $0xc8] sm:$0xff] %vm2825, 0.0
        %2853 = vst.msk [vmem:[#allocation2 + $0xd0] sm:$0xff] %vm2825, 0.0
        %2854 = vst.msk [vmem:[#allocation2 + $0xd8] sm:$0xff] %vm2825, 0.0
        %2855 = vst.msk [vmem:[#allocation2 + $0xe0] sm:$0xff] %vm2825, 0.0
        %2856 = vst.msk [vmem:[#allocation2 + $0xe8] sm:$0x3] %vm2830, 0.0
        %2857 = vst.msk [vmem:[#allocation2 + $0xf0] sm:$0xff] %vm2825, 0.0
        %2858 = vst.msk [vmem:[#allocation2 + $0xf8] sm:$0xff] %vm2825, 0.0
        %2859 = vst.msk [vmem:[#allocation2 + $0x100] sm:$0xff] %vm2825, 0.0
        %2860 = vst.msk [vmem:[#allocation2 + $0x108] sm:$0xff] %vm2825, 0.0
        %2861 = vst.msk [vmem:[#allocation2 + $0x110] sm:$0x3] %vm2830, 0.0
        %2862 = vst.msk [vmem:[#allocation2 + $0x118] sm:$0xff] %vm2825, 0.0
        %2863 = vst.msk [vmem:[#allocation2 + $0x120] sm:$0xff] %vm2825, 0.0
        %2864 = vst.msk [vmem:[#allocation2 + $0x128] sm:$0xff] %vm2825, 0.0
        %2865 = vst.msk [vmem:[#allocation2 + $0x130] sm:$0xff] %vm2825, 0.0
        %2866 = vst.msk [vmem:[#allocation2 + $0x138] sm:$0x3] %vm2830, 0.0
        %2867 = vst.msk [vmem:[#allocation2 + $0x140] sm:$0xff] %vm2825, 0.0
        %2868 = vst.msk [vmem:[#allocation2 + $0x148] sm:$0xff] %vm2825, 0.0
        %2869 = vst.msk [vmem:[#allocation2 + $0x150] sm:$0xff] %vm2825, 0.0
        %2870 = vst.msk [vmem:[#allocation2 + $0x158] sm:$0xff] %vm2825, 0.0
        %2871 = vst.msk [vmem:[#allocation2 + $0x160] sm:$0x3] %vm2830, 0.0
        %2872 = vst.msk [vmem:[#allocation2 + $0x168] sm:$0xff] %vm2825, 0.0
        %2873 = vst.msk [vmem:[#allocation2 + $0x170] sm:$0xff] %vm2825, 0.0
        %2874 = vst.msk [vmem:[#allocation2 + $0x178] sm:$0xff] %vm2825, 0.0
        %2875 = vst.msk [vmem:[#allocation2 + $0x180] sm:$0xff] %vm2825, 0.0
        %2876 = vst.msk [vmem:[#allocation2 + $0x188] sm:$0x3] %vm2830, 0.0
        %2877 = vst.msk [vmem:[#allocation2 + $0x190] sm:$0xff] %vm2825, 0.0
        %2878 = vst.msk [vmem:[#allocation2 + $0x198] sm:$0xff] %vm2825, 0.0
        %2879 = vst.msk [vmem:[#allocation2 + $0x1a0] sm:$0xff] %vm2825, 0.0
        %2880 = vst.msk [vmem:[#allocation2 + $0x1a8] sm:$0xff] %vm2825, 0.0
        %2881 = vst.msk [vmem:[#allocation2 + $0x1b0] sm:$0x3] %vm2830, 0.0
        %2882 = vst.msk [vmem:[#allocation2 + $0x1b8] sm:$0xff] %vm2825, 0.0
        %2883 = vst.msk [vmem:[#allocation2 + $0x1c0] sm:$0xff] %vm2825, 0.0
        %2884 = vst.msk [vmem:[#allocation2 + $0x1c8] sm:$0xff] %vm2825, 0.0
        %2885 = vst.msk [vmem:[#allocation2 + $0x1d0] sm:$0xff] %vm2825, 0.0
        %2886 = vst.msk [vmem:[#allocation2 + $0x1d8] sm:$0x3] %vm2830, 0.0
        %2887 = vst.msk [vmem:[#allocation2 + $0x1e0] sm:$0xff] %vm2825, 0.0
        %2888 = vst.msk [vmem:[#allocation2 + $0x1e8] sm:$0xff] %vm2825, 0.0
        %2889 = vst.msk [vmem:[#allocation2 + $0x1f0] sm:$0xff] %vm2825, 0.0
        %2890 = vst.msk [vmem:[#allocation2 + $0x1f8] sm:$0xff] %vm2825, 0.0
        %2891 = vst.msk [vmem:[#allocation2 + $0x200] sm:$0x3] %vm2830, 0.0
        %2892 = vst.msk [vmem:[#allocation2 + $0x208] sm:$0xff] %vm2825, 0.0
        %2893 = vst.msk [vmem:[#allocation2 + $0x210] sm:$0xff] %vm2825, 0.0
        %2894 = vst.msk [vmem:[#allocation2 + $0x218] sm:$0xff] %vm2825, 0.0
        %2895 = vst.msk [vmem:[#allocation2 + $0x220] sm:$0xff] %vm2825, 0.0
        %2896 = vst.msk [vmem:[#allocation2 + $0x228] sm:$0x3] %vm2830, 0.0
        %2897 = vst.msk [vmem:[#allocation2 + $0x230] sm:$0xff] %vm2825, 0.0
        %2898 = vst.msk [vmem:[#allocation2 + $0x238] sm:$0xff] %vm2825, 0.0
        %2899 = vst.msk [vmem:[#allocation2 + $0x240] sm:$0xff] %vm2825, 0.0
        %2900 = vst.msk [vmem:[#allocation2 + $0x248] sm:$0xff] %vm2825, 0.0
        %2901 = vst.msk [vmem:[#allocation2 + $0x250] sm:$0x3] %vm2830, 0.0
        %2902 = vst.msk [vmem:[#allocation2 + $0x258] sm:$0xff] %vm2825, 0.0
        %2903 = vst.msk [vmem:[#allocation2 + $0x260] sm:$0xff] %vm2825, 0.0
        %2904 = vst.msk [vmem:[#allocation2 + $0x268] sm:$0xff] %vm2825, 0.0
        %2905 = vst.msk [vmem:[#allocation2 + $0x270] sm:$0xff] %vm2825, 0.0
        %2906 = vst.msk [vmem:[#allocation2 + $0x278] sm:$0x3] %vm2830, 0.0
        %2907 = vst.msk [vmem:[#allocation2 + $0x280] sm:$0xff] %vm2825, 0.0
        %2908 = vst.msk [vmem:[#allocation2 + $0x288] sm:$0xff] %vm2825, 0.0
        %2909 = vst.msk [vmem:[#allocation2 + $0x290] sm:$0xff] %vm2825, 0.0
        %2910 = vst.msk [vmem:[#allocation2 + $0x298] sm:$0xff] %vm2825, 0.0
        %2911 = vst.msk [vmem:[#allocation2 + $0x2a0] sm:$0x3] %vm2830, 0.0
        %2912 = vst.msk [vmem:[#allocation2 + $0x2a8] sm:$0xff] %vm2825, 0.0
        %2913 = vst.msk [vmem:[#allocation2 + $0x2b0] sm:$0xff] %vm2825, 0.0
        %2914 = vst.msk [vmem:[#allocation2 + $0x2b8] sm:$0xff] %vm2825, 0.0
        %2915 = vst.msk [vmem:[#allocation2 + $0x2c0] sm:$0xff] %vm2825, 0.0
        %2916 = vst.msk [vmem:[#allocation2 + $0x2c8] sm:$0x3] %vm2830, 0.0
        %2917 = vst.msk [vmem:[#allocation2 + $0x2d0] sm:$0xff] %vm2825, 0.0
        %2918 = vst.msk [vmem:[#allocation2 + $0x2d8] sm:$0xff] %vm2825, 0.0
        %2919 = vst.msk [vmem:[#allocation2 + $0x2e0] sm:$0xff] %vm2825, 0.0
        %2920 = vst.msk [vmem:[#allocation2 + $0x2e8] sm:$0xff] %vm2825, 0.0
        %2921 = vst.msk [vmem:[#allocation2 + $0x2f0] sm:$0x3] %vm2830, 0.0
        %2922 = vst.msk [vmem:[#allocation2 + $0x2f8] sm:$0xff] %vm2825, 0.0
        %2923 = vst.msk [vmem:[#allocation2 + $0x300] sm:$0xff] %vm2825, 0.0
        %2924 = vst.msk [vmem:[#allocation2 + $0x308] sm:$0xff] %vm2825, 0.0
        %2925 = vst.msk [vmem:[#allocation2 + $0x310] sm:$0xff] %vm2825, 0.0
        %2926 = vst.msk [vmem:[#allocation2 + $0x318] sm:$0x3] %vm2830, 0.0
        %2927 = vst.msk [vmem:[#allocation2 + $0x320] sm:$0xff] %vm2825, 0.0
        %2928 = vst.msk [vmem:[#allocation2 + $0x328] sm:$0xff] %vm2825, 0.0
        %2929 = vst.msk [vmem:[#allocation2 + $0x330] sm:$0xff] %vm2825, 0.0
        %2930 = vst.msk [vmem:[#allocation2 + $0x338] sm:$0xff] %vm2825, 0.0
        %2931 = vst.msk [vmem:[#allocation2 + $0x340] sm:$0x3] %vm2830, 0.0
        %2932 = vst.msk [vmem:[#allocation2 + $0x348] sm:$0xff] %vm2825, 0.0
        %2933 = vst.msk [vmem:[#allocation2 + $0x350] sm:$0xff] %vm2825, 0.0
        %2934 = vst.msk [vmem:[#allocation2 + $0x358] sm:$0xff] %vm2825, 0.0
        %2935 = vst.msk [vmem:[#allocation2 + $0x360] sm:$0xff] %vm2825, 0.0
        %2936 = vst.msk [vmem:[#allocation2 + $0x368] sm:$0x3] %vm2830, 0.0
        %2937 = vst.msk [vmem:[#allocation2 + $0x370] sm:$0xff] %vm2825, 0.0
        %2938 = vst.msk [vmem:[#allocation2 + $0x378] sm:$0xff] %vm2825, 0.0
        %2939 = vst.msk [vmem:[#allocation2 + $0x380] sm:$0xff] %vm2825, 0.0
        %2940 = vst.msk [vmem:[#allocation2 + $0x388] sm:$0xff] %vm2825, 0.0
        %2941 = vst.msk [vmem:[#allocation2 + $0x390] sm:$0x3] %vm2830, 0.0
        %2942 = vst.msk [vmem:[#allocation2 + $0x398] sm:$0xff] %vm2825, 0.0
        %2943 = vst.msk [vmem:[#allocation2 + $0x3a0] sm:$0xff] %vm2825, 0.0
        %2944 = vst.msk [vmem:[#allocation2 + $0x3a8] sm:$0xff] %vm2825, 0.0
        %2945 = vst.msk [vmem:[#allocation2 + $0x3b0] sm:$0xff] %vm2825, 0.0
        %2946 = vst.msk [vmem:[#allocation2 + $0x3b8] sm:$0x3] %vm2830, 0.0
        %2947 = vst.msk [vmem:[#allocation2 + $0x3c0] sm:$0xff] %vm2825, 0.0
        %2948 = vst.msk [vmem:[#allocation2 + $0x3c8] sm:$0xff] %vm2825, 0.0
        %2949 = vst.msk [vmem:[#allocation2 + $0x3d0] sm:$0xff] %vm2825, 0.0
        %2950 = vst.msk [vmem:[#allocation2 + $0x3d8] sm:$0xff] %vm2825, 0.0
        %2951 = vst.msk [vmem:[#allocation2 + $0x3e0] sm:$0x3] %vm2830, 0.0
        %2952 = vst.msk [vmem:[#allocation2 + $0x3e8] sm:$0xff] %vm2825, 0.0
        %2953 = vst.msk [vmem:[#allocation2 + $0x3f0] sm:$0xff] %vm2825, 0.0
        %2954 = vst.msk [vmem:[#allocation2 + $0x3f8] sm:$0xff] %vm2825, 0.0
        %2955 = vst.msk [vmem:[#allocation2 + $0x400] sm:$0xff] %vm2825, 0.0
        %2956 = vst.msk [vmem:[#allocation2 + $0x408] sm:$0x3] %vm2830, 0.0
        %2957 = vst.msk [vmem:[#allocation2 + $0x410] sm:$0xff] %vm2825, 0.0
        %2958 = vst.msk [vmem:[#allocation2 + $0x418] sm:$0xff] %vm2825, 0.0
        %2959 = vst.msk [vmem:[#allocation2 + $0x420] sm:$0xff] %vm2825, 0.0
        %2960 = vst.msk [vmem:[#allocation2 + $0x428] sm:$0xff] %vm2825, 0.0
        %2961 = vst.msk [vmem:[#allocation2 + $0x430] sm:$0x3] %vm2830, 0.0
        %2962 = vst.msk [vmem:[#allocation2 + $0x438] sm:$0xff] %vm2825, 0.0
        %2963 = vst.msk [vmem:[#allocation2 + $0x440] sm:$0xff] %vm2825, 0.0
        %2964 = vst.msk [vmem:[#allocation2 + $0x448] sm:$0xff] %vm2825, 0.0
        %2965 = vst.msk [vmem:[#allocation2 + $0x450] sm:$0xff] %vm2825, 0.0
        %2966 = vst.msk [vmem:[#allocation2 + $0x458] sm:$0x3] %vm2830, 0.0
        %2967 = vst.msk [vmem:[#allocation2 + $0x460] sm:$0xff] %vm2825, 0.0
        %2968 = vst.msk [vmem:[#allocation2 + $0x468] sm:$0xff] %vm2825, 0.0
        %2969 = vst.msk [vmem:[#allocation2 + $0x470] sm:$0xff] %vm2825, 0.0
        %2970 = vst.msk [vmem:[#allocation2 + $0x478] sm:$0xff] %vm2825, 0.0
        %2971 = vst.msk [vmem:[#allocation2 + $0x480] sm:$0x3] %vm2830, 0.0
        %2972 = vst.msk [vmem:[#allocation2 + $0x488] sm:$0xff] %vm2825, 0.0
        %2973 = vst.msk [vmem:[#allocation2 + $0x490] sm:$0xff] %vm2825, 0.0
        %2974 = vst.msk [vmem:[#allocation2 + $0x498] sm:$0xff] %vm2825, 0.0
        %2975 = vst.msk [vmem:[#allocation2 + $0x4a0] sm:$0xff] %vm2825, 0.0
        %2976 = vst.msk [vmem:[#allocation2 + $0x4a8] sm:$0x3] %vm2830, 0.0
        %2977 = vst.msk [vmem:[#allocation2 + $0x4b0] sm:$0xff] %vm2825, 0.0
        %2978 = vst.msk [vmem:[#allocation2 + $0x4b8] sm:$0xff] %vm2825, 0.0
        %2979 = vst.msk [vmem:[#allocation2 + $0x4c0] sm:$0xff] %vm2825, 0.0
        %2980 = vst.msk [vmem:[#allocation2 + $0x4c8] sm:$0xff] %vm2825, 0.0
        %2981 = vst.msk [vmem:[#allocation2 + $0x4d0] sm:$0x3] %vm2830, 0.0
        %2982 = vst.msk [vmem:[#allocation2 + $0x4d8] sm:$0xff] %vm2825, 0.0
        %2983 = vst.msk [vmem:[#allocation2 + $0x4e0] sm:$0xff] %vm2825, 0.0
        %2984 = vst.msk [vmem:[#allocation2 + $0x4e8] sm:$0xff] %vm2825, 0.0
        %2985 = vst.msk [vmem:[#allocation2 + $0x4f0] sm:$0xff] %vm2825, 0.0
        %2986 = vst.msk [vmem:[#allocation2 + $0x4f8] sm:$0x3] %vm2830, 0.0
        %2987 = vst.msk [vmem:[#allocation2 + $0x500] sm:$0xff] %vm2825, 0.0
        %2988 = vst.msk [vmem:[#allocation2 + $0x508] sm:$0xff] %vm2825, 0.0
        %2989 = vst.msk [vmem:[#allocation2 + $0x510] sm:$0xff] %vm2825, 0.0
        %2990 = vst.msk [vmem:[#allocation2 + $0x518] sm:$0xff] %vm2825, 0.0
        %2991 = vst.msk [vmem:[#allocation2 + $0x520] sm:$0x3] %vm2830, 0.0
        %2992 = vst.msk [vmem:[#allocation2 + $0x528] sm:$0xff] %vm2825, 0.0
        %2993 = vst.msk [vmem:[#allocation2 + $0x530] sm:$0xff] %vm2825, 0.0
        %2994 = vst.msk [vmem:[#allocation2 + $0x538] sm:$0xff] %vm2825, 0.0
        %2995 = vst.msk [vmem:[#allocation2 + $0x540] sm:$0xff] %vm2825, 0.0
        %2996 = vst.msk [vmem:[#allocation2 + $0x548] sm:$0x3] %vm2830, 0.0
        %v2997 = vcombine.low %v1804, %v1808
        %v2998 = vcombine.low %v1812, %v1816
        %v3000 = vunpack.c.l.s4 1983009808
        %v3001 = vunpack.c.0.s8 %v3000
        %v3002 = vlaneseq
        %v3003 = vshrl.u32 %v3002, 7
        %v3004 = vsub.s32 %v3001, %v3003
        %v3005 = vrot.slane %v2997, %v3004
        %v3007 = vunpack.c.l.s4 1983009808
        %v3008 = vunpack.c.0.s8 %v3007
        %v3009 = vlaneseq
        %v3010 = vshrl.u32 %v3009, 7
        %v3011 = vsub.s32 %v3008, %v3010
        %v3012 = vrot.slane %v2998, %v3011
        %v3013 = vcombine.low %v3005, %v3012
        %v3014 = vcombine.low %v1820, %v1824
        %v3015 = vcombine.low %v1828, %v1832
        %v3017 = vunpack.c.l.s4 1983009808
        %v3018 = vunpack.c.0.s8 %v3017
        %v3019 = vlaneseq
        %v3020 = vshrl.u32 %v3019, 7
        %v3021 = vsub.s32 %v3018, %v3020
        %v3022 = vrot.slane %v3014, %v3021
        %v3024 = vunpack.c.l.s4 1983009808
        %v3025 = vunpack.c.0.s8 %v3024
        %v3026 = vlaneseq
        %v3027 = vshrl.u32 %v3026, 7
        %v3028 = vsub.s32 %v3025, %v3027
        %v3029 = vrot.slane %v3015, %v3028
        %v3030 = vcombine.low %v3022, %v3029
        %v3031 = vcombine.low %v1836, %v1840
        %v3032 = vcombine.low %v1844, %v1848
        %v3034 = vunpack.c.l.s4 1983009808
        %v3035 = vunpack.c.0.s8 %v3034
        %v3036 = vlaneseq
        %v3037 = vshrl.u32 %v3036, 7
        %v3038 = vsub.s32 %v3035, %v3037
        %v3039 = vrot.slane %v3031, %v3038
        %v3041 = vunpack.c.l.s4 1983009808
        %v3042 = vunpack.c.0.s8 %v3041
        %v3043 = vlaneseq
        %v3044 = vshrl.u32 %v3043, 7
        %v3045 = vsub.s32 %v3042, %v3044
        %v3046 = vrot.slane %v3032, %v3045
        %v3047 = vcombine.low %v3039, %v3046
        %v3048 = vcombine.low %v1852, %v1856
        %v3049 = vcombine.low %v1860, %v1864
        %v3051 = vunpack.c.l.s4 1983009808
        %v3052 = vunpack.c.0.s8 %v3051
        %v3053 = vlaneseq
        %v3054 = vshrl.u32 %v3053, 7
        %v3055 = vsub.s32 %v3052, %v3054
        %v3056 = vrot.slane %v3048, %v3055
        %v3058 = vunpack.c.l.s4 1983009808
        %v3059 = vunpack.c.0.s8 %v3058
        %v3060 = vlaneseq
        %v3061 = vshrl.u32 %v3060, 7
        %v3062 = vsub.s32 %v3059, %v3061
        %v3063 = vrot.slane %v3049, %v3062
        %v3064 = vcombine.low %v3056, %v3063
        %v3065 = vcombine.low %v1868, %v1872
        %v3066 = vcombine.low %v1876, %v1880
        %v3068 = vunpack.c.l.s4 1983009808
        %v3069 = vunpack.c.0.s8 %v3068
        %v3070 = vlaneseq
        %v3071 = vshrl.u32 %v3070, 7
        %v3072 = vsub.s32 %v3069, %v3071
        %v3073 = vrot.slane %v3065, %v3072
        %v3075 = vunpack.c.l.s4 1983009808
        %v3076 = vunpack.c.0.s8 %v3075
        %v3077 = vlaneseq
        %v3078 = vshrl.u32 %v3077, 7
        %v3079 = vsub.s32 %v3076, %v3078
        %v3080 = vrot.slane %v3066, %v3079
        %v3081 = vcombine.low %v3073, %v3080
        %v3082 = vcombine.low %v1884, %v1888
        %v3083 = vcombine.low %v1892, %v1896
        %v3085 = vunpack.c.l.s4 1983009808
        %v3086 = vunpack.c.0.s8 %v3085
        %v3087 = vlaneseq
        %v3088 = vshrl.u32 %v3087, 7
        %v3089 = vsub.s32 %v3086, %v3088
        %v3090 = vrot.slane %v3082, %v3089
        %v3092 = vunpack.c.l.s4 1983009808
        %v3093 = vunpack.c.0.s8 %v3092
        %v3094 = vlaneseq
        %v3095 = vshrl.u32 %v3094, 7
        %v3096 = vsub.s32 %v3093, %v3095
        %v3097 = vrot.slane %v3083, %v3096
        %v3098 = vcombine.low %v3090, %v3097
        %v3099 = vcombine.low %v1900, %v1904
        %v3100 = vcombine.low %v1908, %v1912
        %v3102 = vunpack.c.l.s4 1983009808
        %v3103 = vunpack.c.0.s8 %v3102
        %v3104 = vlaneseq
        %v3105 = vshrl.u32 %v3104, 7
        %v3106 = vsub.s32 %v3103, %v3105
        %v3107 = vrot.slane %v3099, %v3106
        %v3109 = vunpack.c.l.s4 1983009808
        %v3110 = vunpack.c.0.s8 %v3109
        %v3111 = vlaneseq
        %v3112 = vshrl.u32 %v3111, 7
        %v3113 = vsub.s32 %v3110, %v3112
        %v3114 = vrot.slane %v3100, %v3113
        %v3115 = vcombine.low %v3107, %v3114
        %v3116 = vcombine.low %v1916, %v1920
        %v3117 = vcombine.low %v1924, %v1928
        %v3119 = vunpack.c.l.s4 1983009808
        %v3120 = vunpack.c.0.s8 %v3119
        %v3121 = vlaneseq
        %v3122 = vshrl.u32 %v3121, 7
        %v3123 = vsub.s32 %v3120, %v3122
        %v3124 = vrot.slane %v3116, %v3123
        %v3126 = vunpack.c.l.s4 1983009808
        %v3127 = vunpack.c.0.s8 %v3126
        %v3128 = vlaneseq
        %v3129 = vshrl.u32 %v3128, 7
        %v3130 = vsub.s32 %v3127, %v3129
        %v3131 = vrot.slane %v3117, %v3130
        %v3132 = vcombine.low %v3124, %v3131
        %v3133 = vcombine.low %v1932, %v1936
        %v3134 = vcombine.low %v1940, %v1944
        %v3136 = vunpack.c.l.s4 1983009808
        %v3137 = vunpack.c.0.s8 %v3136
        %v3138 = vlaneseq
        %v3139 = vshrl.u32 %v3138, 7
        %v3140 = vsub.s32 %v3137, %v3139
        %v3141 = vrot.slane %v3133, %v3140
        %v3143 = vunpack.c.l.s4 1983009808
        %v3144 = vunpack.c.0.s8 %v3143
        %v3145 = vlaneseq
        %v3146 = vshrl.u32 %v3145, 7
        %v3147 = vsub.s32 %v3144, %v3146
        %v3148 = vrot.slane %v3134, %v3147
        %v3149 = vcombine.low %v3141, %v3148
        %v3150 = vcombine.low %v1948, %v1952
        %v3151 = vcombine.low %v1956, %v1960
        %v3153 = vunpack.c.l.s4 1983009808
        %v3154 = vunpack.c.0.s8 %v3153
        %v3155 = vlaneseq
        %v3156 = vshrl.u32 %v3155, 7
        %v3157 = vsub.s32 %v3154, %v3156
        %v3158 = vrot.slane %v3150, %v3157
        %v3160 = vunpack.c.l.s4 1983009808
        %v3161 = vunpack.c.0.s8 %v3160
        %v3162 = vlaneseq
        %v3163 = vshrl.u32 %v3162, 7
        %v3164 = vsub.s32 %v3161, %v3163
        %v3165 = vrot.slane %v3151, %v3164
        %v3166 = vcombine.low %v3158, %v3165
        %v3167 = vcombine.low %v1964, %v1968
        %v3168 = vcombine.low %v1972, %v1976
        %v3170 = vunpack.c.l.s4 1983009808
        %v3171 = vunpack.c.0.s8 %v3170
        %v3172 = vlaneseq
        %v3173 = vshrl.u32 %v3172, 7
        %v3174 = vsub.s32 %v3171, %v3173
        %v3175 = vrot.slane %v3167, %v3174
        %v3177 = vunpack.c.l.s4 1983009808
        %v3178 = vunpack.c.0.s8 %v3177
        %v3179 = vlaneseq
        %v3180 = vshrl.u32 %v3179, 7
        %v3181 = vsub.s32 %v3178, %v3180
        %v3182 = vrot.slane %v3168, %v3181
        %v3183 = vcombine.low %v3175, %v3182
        %v3184 = vcombine.low %v1980, %v1984
        %v3185 = vcombine.low %v1988, %v1992
        %v3187 = vunpack.c.l.s4 1983009808
        %v3188 = vunpack.c.0.s8 %v3187
        %v3189 = vlaneseq
        %v3190 = vshrl.u32 %v3189, 7
        %v3191 = vsub.s32 %v3188, %v3190
        %v3192 = vrot.slane %v3184, %v3191
        %v3194 = vunpack.c.l.s4 1983009808
        %v3195 = vunpack.c.0.s8 %v3194
        %v3196 = vlaneseq
        %v3197 = vshrl.u32 %v3196, 7
        %v3198 = vsub.s32 %v3195, %v3197
        %v3199 = vrot.slane %v3185, %v3198
        %v3200 = vcombine.low %v3192, %v3199
        %v3201 = vcombine.low %v1996, %v2000
        %v3202 = vcombine.low %v2004, %v2008
        %v3204 = vunpack.c.l.s4 1983009808
        %v3205 = vunpack.c.0.s8 %v3204
        %v3206 = vlaneseq
        %v3207 = vshrl.u32 %v3206, 7
        %v3208 = vsub.s32 %v3205, %v3207
        %v3209 = vrot.slane %v3201, %v3208
        %v3211 = vunpack.c.l.s4 1983009808
        %v3212 = vunpack.c.0.s8 %v3211
        %v3213 = vlaneseq
        %v3214 = vshrl.u32 %v3213, 7
        %v3215 = vsub.s32 %v3212, %v3214
        %v3216 = vrot.slane %v3202, %v3215
        %v3217 = vcombine.low %v3209, %v3216
        %v3218 = vcombine.low %v2012, %v2016
        %v3219 = vcombine.low %v2020, %v2024
        %v3221 = vunpack.c.l.s4 1983009808
        %v3222 = vunpack.c.0.s8 %v3221
        %v3223 = vlaneseq
        %v3224 = vshrl.u32 %v3223, 7
        %v3225 = vsub.s32 %v3222, %v3224
        %v3226 = vrot.slane %v3218, %v3225
        %v3228 = vunpack.c.l.s4 1983009808
        %v3229 = vunpack.c.0.s8 %v3228
        %v3230 = vlaneseq
        %v3231 = vshrl.u32 %v3230, 7
        %v3232 = vsub.s32 %v3229, %v3231
        %v3233 = vrot.slane %v3219, %v3232
        %v3234 = vcombine.low %v3226, %v3233
        %v3235 = vcombine.low %v2028, %v2032
        %v3236 = vcombine.low %v2036, %v2040
        %v3238 = vunpack.c.l.s4 1983009808
        %v3239 = vunpack.c.0.s8 %v3238
        %v3240 = vlaneseq
        %v3241 = vshrl.u32 %v3240, 7
        %v3242 = vsub.s32 %v3239, %v3241
        %v3243 = vrot.slane %v3235, %v3242
        %v3245 = vunpack.c.l.s4 1983009808
        %v3246 = vunpack.c.0.s8 %v3245
        %v3247 = vlaneseq
        %v3248 = vshrl.u32 %v3247, 7
        %v3249 = vsub.s32 %v3246, %v3248
        %v3250 = vrot.slane %v3236, %v3249
        %v3251 = vcombine.low %v3243, %v3250
        %v3252 = vcombine.low %v2044, %v2048
        %v3253 = vcombine.low %v2052, %v2056
        %v3255 = vunpack.c.l.s4 1983009808
        %v3256 = vunpack.c.0.s8 %v3255
        %v3257 = vlaneseq
        %v3258 = vshrl.u32 %v3257, 7
        %v3259 = vsub.s32 %v3256, %v3258
        %v3260 = vrot.slane %v3252, %v3259
        %v3262 = vunpack.c.l.s4 1983009808
        %v3263 = vunpack.c.0.s8 %v3262
        %v3264 = vlaneseq
        %v3265 = vshrl.u32 %v3264, 7
        %v3266 = vsub.s32 %v3263, %v3265
        %v3267 = vrot.slane %v3253, %v3266
        %v3268 = vcombine.low %v3260, %v3267
        %v3269 = vcombine.low %v2060, %v2064
        %v3270 = vcombine.low %v2068, %v2072
        %v3272 = vunpack.c.l.s4 1983009808
        %v3273 = vunpack.c.0.s8 %v3272
        %v3274 = vlaneseq
        %v3275 = vshrl.u32 %v3274, 7
        %v3276 = vsub.s32 %v3273, %v3275
        %v3277 = vrot.slane %v3269, %v3276
        %v3279 = vunpack.c.l.s4 1983009808
        %v3280 = vunpack.c.0.s8 %v3279
        %v3281 = vlaneseq
        %v3282 = vshrl.u32 %v3281, 7
        %v3283 = vsub.s32 %v3280, %v3282
        %v3284 = vrot.slane %v3270, %v3283
        %v3285 = vcombine.low %v3277, %v3284
        %v3286 = vcombine.low %v2076, %v2080
        %v3287 = vcombine.low %v2084, %v2088
        %v3289 = vunpack.c.l.s4 1983009808
        %v3290 = vunpack.c.0.s8 %v3289
        %v3291 = vlaneseq
        %v3292 = vshrl.u32 %v3291, 7
        %v3293 = vsub.s32 %v3290, %v3292
        %v3294 = vrot.slane %v3286, %v3293
        %v3296 = vunpack.c.l.s4 1983009808
        %v3297 = vunpack.c.0.s8 %v3296
        %v3298 = vlaneseq
        %v3299 = vshrl.u32 %v3298, 7
        %v3300 = vsub.s32 %v3297, %v3299
        %v3301 = vrot.slane %v3287, %v3300
        %v3302 = vcombine.low %v3294, %v3301
        %v3303 = vcombine.low %v2092, %v2096
        %v3304 = vcombine.low %v2100, %v2104
        %v3306 = vunpack.c.l.s4 1983009808
        %v3307 = vunpack.c.0.s8 %v3306
        %v3308 = vlaneseq
        %v3309 = vshrl.u32 %v3308, 7
        %v3310 = vsub.s32 %v3307, %v3309
        %v3311 = vrot.slane %v3303, %v3310
        %v3313 = vunpack.c.l.s4 1983009808
        %v3314 = vunpack.c.0.s8 %v3313
        %v3315 = vlaneseq
        %v3316 = vshrl.u32 %v3315, 7
        %v3317 = vsub.s32 %v3314, %v3316
        %v3318 = vrot.slane %v3304, %v3317
        %v3319 = vcombine.low %v3311, %v3318
        %v3320 = vcombine.low %v2108, %v2112
        %v3321 = vcombine.low %v2116, %v2120
        %v3323 = vunpack.c.l.s4 1983009808
        %v3324 = vunpack.c.0.s8 %v3323
        %v3325 = vlaneseq
        %v3326 = vshrl.u32 %v3325, 7
        %v3327 = vsub.s32 %v3324, %v3326
        %v3328 = vrot.slane %v3320, %v3327
        %v3330 = vunpack.c.l.s4 1983009808
        %v3331 = vunpack.c.0.s8 %v3330
        %v3332 = vlaneseq
        %v3333 = vshrl.u32 %v3332, 7
        %v3334 = vsub.s32 %v3331, %v3333
        %v3335 = vrot.slane %v3321, %v3334
        %v3336 = vcombine.low %v3328, %v3335
        %v3337 = vcombine.low %v2124, %v2128
        %v3338 = vcombine.low %v2132, %v2136
        %v3340 = vunpack.c.l.s4 1983009808
        %v3341 = vunpack.c.0.s8 %v3340
        %v3342 = vlaneseq
        %v3343 = vshrl.u32 %v3342, 7
        %v3344 = vsub.s32 %v3341, %v3343
        %v3345 = vrot.slane %v3337, %v3344
        %v3347 = vunpack.c.l.s4 1983009808
        %v3348 = vunpack.c.0.s8 %v3347
        %v3349 = vlaneseq
        %v3350 = vshrl.u32 %v3349, 7
        %v3351 = vsub.s32 %v3348, %v3350
        %v3352 = vrot.slane %v3338, %v3351
        %v3353 = vcombine.low %v3345, %v3352
        %v3354 = vcombine.low %v2140, %v2144
        %v3355 = vcombine.low %v2148, %v2152
        %v3357 = vunpack.c.l.s4 1983009808
        %v3358 = vunpack.c.0.s8 %v3357
        %v3359 = vlaneseq
        %v3360 = vshrl.u32 %v3359, 7
        %v3361 = vsub.s32 %v3358, %v3360
        %v3362 = vrot.slane %v3354, %v3361
        %v3364 = vunpack.c.l.s4 1983009808
        %v3365 = vunpack.c.0.s8 %v3364
        %v3366 = vlaneseq
        %v3367 = vshrl.u32 %v3366, 7
        %v3368 = vsub.s32 %v3365, %v3367
        %v3369 = vrot.slane %v3355, %v3368
        %v3370 = vcombine.low %v3362, %v3369
        %v3371 = vcombine.low %v2156, %v2160
        %v3372 = vcombine.low %v2164, %v2168
        %v3374 = vunpack.c.l.s4 1983009808
        %v3375 = vunpack.c.0.s8 %v3374
        %v3376 = vlaneseq
        %v3377 = vshrl.u32 %v3376, 7
        %v3378 = vsub.s32 %v3375, %v3377
        %v3379 = vrot.slane %v3371, %v3378
        %v3381 = vunpack.c.l.s4 1983009808
        %v3382 = vunpack.c.0.s8 %v3381
        %v3383 = vlaneseq
        %v3384 = vshrl.u32 %v3383, 7
        %v3385 = vsub.s32 %v3382, %v3384
        %v3386 = vrot.slane %v3372, %v3385
        %v3387 = vcombine.low %v3379, %v3386
        %v3388 = vcombine.low %v2172, %v2176
        %v3389 = vcombine.low %v2180, %v2184
        %v3391 = vunpack.c.l.s4 1983009808
        %v3392 = vunpack.c.0.s8 %v3391
        %v3393 = vlaneseq
        %v3394 = vshrl.u32 %v3393, 7
        %v3395 = vsub.s32 %v3392, %v3394
        %v3396 = vrot.slane %v3388, %v3395
        %v3398 = vunpack.c.l.s4 1983009808
        %v3399 = vunpack.c.0.s8 %v3398
        %v3400 = vlaneseq
        %v3401 = vshrl.u32 %v3400, 7
        %v3402 = vsub.s32 %v3399, %v3401
        %v3403 = vrot.slane %v3389, %v3402
        %v3404 = vcombine.low %v3396, %v3403
        %v3405 = vcombine.low %v2188, %v2192
        %v3406 = vcombine.low %v2196, %v2200
        %v3408 = vunpack.c.l.s4 1983009808
        %v3409 = vunpack.c.0.s8 %v3408
        %v3410 = vlaneseq
        %v3411 = vshrl.u32 %v3410, 7
        %v3412 = vsub.s32 %v3409, %v3411
        %v3413 = vrot.slane %v3405, %v3412
        %v3415 = vunpack.c.l.s4 1983009808
        %v3416 = vunpack.c.0.s8 %v3415
        %v3417 = vlaneseq
        %v3418 = vshrl.u32 %v3417, 7
        %v3419 = vsub.s32 %v3416, %v3418
        %v3420 = vrot.slane %v3406, %v3419
        %v3421 = vcombine.low %v3413, %v3420
        %v3422 = vcombine.low %v2204, %v2208
        %v3423 = vcombine.low %v2212, %v2216
        %v3425 = vunpack.c.l.s4 1983009808
        %v3426 = vunpack.c.0.s8 %v3425
        %v3427 = vlaneseq
        %v3428 = vshrl.u32 %v3427, 7
        %v3429 = vsub.s32 %v3426, %v3428
        %v3430 = vrot.slane %v3422, %v3429
        %v3432 = vunpack.c.l.s4 1983009808
        %v3433 = vunpack.c.0.s8 %v3432
        %v3434 = vlaneseq
        %v3435 = vshrl.u32 %v3434, 7
        %v3436 = vsub.s32 %v3433, %v3435
        %v3437 = vrot.slane %v3423, %v3436
        %v3438 = vcombine.low %v3430, %v3437
        %v3439 = vcombine.low %v2220, %v2224
        %v3440 = vcombine.low %v2228, %v2232
        %v3442 = vunpack.c.l.s4 1983009808
        %v3443 = vunpack.c.0.s8 %v3442
        %v3444 = vlaneseq
        %v3445 = vshrl.u32 %v3444, 7
        %v3446 = vsub.s32 %v3443, %v3445
        %v3447 = vrot.slane %v3439, %v3446
        %v3449 = vunpack.c.l.s4 1983009808
        %v3450 = vunpack.c.0.s8 %v3449
        %v3451 = vlaneseq
        %v3452 = vshrl.u32 %v3451, 7
        %v3453 = vsub.s32 %v3450, %v3452
        %v3454 = vrot.slane %v3440, %v3453
        %v3455 = vcombine.low %v3447, %v3454
        %v3456 = vcombine.low %v2236, %v2240
        %v3457 = vcombine.low %v2244, %v2248
        %v3459 = vunpack.c.l.s4 1983009808
        %v3460 = vunpack.c.0.s8 %v3459
        %v3461 = vlaneseq
        %v3462 = vshrl.u32 %v3461, 7
        %v3463 = vsub.s32 %v3460, %v3462
        %v3464 = vrot.slane %v3456, %v3463
        %v3466 = vunpack.c.l.s4 1983009808
        %v3467 = vunpack.c.0.s8 %v3466
        %v3468 = vlaneseq
        %v3469 = vshrl.u32 %v3468, 7
        %v3470 = vsub.s32 %v3467, %v3469
        %v3471 = vrot.slane %v3457, %v3470
        %v3472 = vcombine.low %v3464, %v3471
        %v3473 = vcombine.low %v2252, %v2256
        %v3474 = vcombine.low %v2260, %v2264
        %v3476 = vunpack.c.l.s4 1983009808
        %v3477 = vunpack.c.0.s8 %v3476
        %v3478 = vlaneseq
        %v3479 = vshrl.u32 %v3478, 7
        %v3480 = vsub.s32 %v3477, %v3479
        %v3481 = vrot.slane %v3473, %v3480
        %v3483 = vunpack.c.l.s4 1983009808
        %v3484 = vunpack.c.0.s8 %v3483
        %v3485 = vlaneseq
        %v3486 = vshrl.u32 %v3485, 7
        %v3487 = vsub.s32 %v3484, %v3486
        %v3488 = vrot.slane %v3474, %v3487
        %v3489 = vcombine.low %v3481, %v3488
        %v3490 = vcombine.low %v2268, %v2272
        %v3491 = vcombine.low %v2276, %v2280
        %v3493 = vunpack.c.l.s4 1983009808
        %v3494 = vunpack.c.0.s8 %v3493
        %v3495 = vlaneseq
        %v3496 = vshrl.u32 %v3495, 7
        %v3497 = vsub.s32 %v3494, %v3496
        %v3498 = vrot.slane %v3490, %v3497
        %v3500 = vunpack.c.l.s4 1983009808
        %v3501 = vunpack.c.0.s8 %v3500
        %v3502 = vlaneseq
        %v3503 = vshrl.u32 %v3502, 7
        %v3504 = vsub.s32 %v3501, %v3503
        %v3505 = vrot.slane %v3491, %v3504
        %v3506 = vcombine.low %v3498, %v3505
        %v3507 = vcombine.low %v2284, %v2288
        %v3508 = vcombine.low %v2292, %v2296
        %v3510 = vunpack.c.l.s4 1983009808
        %v3511 = vunpack.c.0.s8 %v3510
        %v3512 = vlaneseq
        %v3513 = vshrl.u32 %v3512, 7
        %v3514 = vsub.s32 %v3511, %v3513
        %v3515 = vrot.slane %v3507, %v3514
        %v3517 = vunpack.c.l.s4 1983009808
        %v3518 = vunpack.c.0.s8 %v3517
        %v3519 = vlaneseq
        %v3520 = vshrl.u32 %v3519, 7
        %v3521 = vsub.s32 %v3518, %v3520
        %v3522 = vrot.slane %v3508, %v3521
        %v3523 = vcombine.low %v3515, %v3522
        %v3524 = vcombine.low %v2300, %v2304
        %v3525 = vcombine.low %v2308, %v2312
        %v3527 = vunpack.c.l.s4 1983009808
        %v3528 = vunpack.c.0.s8 %v3527
        %v3529 = vlaneseq
        %v3530 = vshrl.u32 %v3529, 7
        %v3531 = vsub.s32 %v3528, %v3530
        %v3532 = vrot.slane %v3524, %v3531
        %v3534 = vunpack.c.l.s4 1983009808
        %v3535 = vunpack.c.0.s8 %v3534
        %v3536 = vlaneseq
        %v3537 = vshrl.u32 %v3536, 7
        %v3538 = vsub.s32 %v3535, %v3537
        %v3539 = vrot.slane %v3525, %v3538
        %v3540 = vcombine.low %v3532, %v3539
        %v3541 = vcombine.low %v2316, %v2320
        %v3542 = vcombine.low %v2324, %v2328
        %v3544 = vunpack.c.l.s4 1983009808
        %v3545 = vunpack.c.0.s8 %v3544
        %v3546 = vlaneseq
        %v3547 = vshrl.u32 %v3546, 7
        %v3548 = vsub.s32 %v3545, %v3547
        %v3549 = vrot.slane %v3541, %v3548
        %v3551 = vunpack.c.l.s4 1983009808
        %v3552 = vunpack.c.0.s8 %v3551
        %v3553 = vlaneseq
        %v3554 = vshrl.u32 %v3553, 7
        %v3555 = vsub.s32 %v3552, %v3554
        %v3556 = vrot.slane %v3542, %v3555
        %v3557 = vcombine.low %v3549, %v3556
        %v3558 = vcombine.low %v2332, %v2336
        %v3559 = vcombine.low %v2340, %v2344
        %v3561 = vunpack.c.l.s4 1983009808
        %v3562 = vunpack.c.0.s8 %v3561
        %v3563 = vlaneseq
        %v3564 = vshrl.u32 %v3563, 7
        %v3565 = vsub.s32 %v3562, %v3564
        %v3566 = vrot.slane %v3558, %v3565
        %v3568 = vunpack.c.l.s4 1983009808
        %v3569 = vunpack.c.0.s8 %v3568
        %v3570 = vlaneseq
        %v3571 = vshrl.u32 %v3570, 7
        %v3572 = vsub.s32 %v3569, %v3571
        %v3573 = vrot.slane %v3559, %v3572
        %v3574 = vcombine.low %v3566, %v3573
        %v3575 = vcombine.low %v2348, %v2352
        %v3576 = vcombine.low %v2356, %v2360
        %v3578 = vunpack.c.l.s4 1983009808
        %v3579 = vunpack.c.0.s8 %v3578
        %v3580 = vlaneseq
        %v3581 = vshrl.u32 %v3580, 7
        %v3582 = vsub.s32 %v3579, %v3581
        %v3583 = vrot.slane %v3575, %v3582
        %v3585 = vunpack.c.l.s4 1983009808
        %v3586 = vunpack.c.0.s8 %v3585
        %v3587 = vlaneseq
        %v3588 = vshrl.u32 %v3587, 7
        %v3589 = vsub.s32 %v3586, %v3588
        %v3590 = vrot.slane %v3576, %v3589
        %v3591 = vcombine.low %v3583, %v3590
        %v3592 = vcombine.low %v2364, %v2368
        %v3593 = vcombine.low %v2372, %v2376
        %v3595 = vunpack.c.l.s4 1983009808
        %v3596 = vunpack.c.0.s8 %v3595
        %v3597 = vlaneseq
        %v3598 = vshrl.u32 %v3597, 7
        %v3599 = vsub.s32 %v3596, %v3598
        %v3600 = vrot.slane %v3592, %v3599
        %v3602 = vunpack.c.l.s4 1983009808
        %v3603 = vunpack.c.0.s8 %v3602
        %v3604 = vlaneseq
        %v3605 = vshrl.u32 %v3604, 7
        %v3606 = vsub.s32 %v3603, %v3605
        %v3607 = vrot.slane %v3593, %v3606
        %v3608 = vcombine.low %v3600, %v3607
        %v3609 = vcombine.low %v2380, %v2384
        %v3610 = vcombine.low %v2388, %v2392
        %v3612 = vunpack.c.l.s4 1983009808
        %v3613 = vunpack.c.0.s8 %v3612
        %v3614 = vlaneseq
        %v3615 = vshrl.u32 %v3614, 7
        %v3616 = vsub.s32 %v3613, %v3615
        %v3617 = vrot.slane %v3609, %v3616
        %v3619 = vunpack.c.l.s4 1983009808
        %v3620 = vunpack.c.0.s8 %v3619
        %v3621 = vlaneseq
        %v3622 = vshrl.u32 %v3621, 7
        %v3623 = vsub.s32 %v3620, %v3622
        %v3624 = vrot.slane %v3610, %v3623
        %v3625 = vcombine.low %v3617, %v3624
        %v3626 = vcombine.low %v2396, %v2400
        %v3627 = vcombine.low %v2404, %v2408
        %v3629 = vunpack.c.l.s4 1983009808
        %v3630 = vunpack.c.0.s8 %v3629
        %v3631 = vlaneseq
        %v3632 = vshrl.u32 %v3631, 7
        %v3633 = vsub.s32 %v3630, %v3632
        %v3634 = vrot.slane %v3626, %v3633
        %v3636 = vunpack.c.l.s4 1983009808
        %v3637 = vunpack.c.0.s8 %v3636
        %v3638 = vlaneseq
        %v3639 = vshrl.u32 %v3638, 7
        %v3640 = vsub.s32 %v3637, %v3639
        %v3641 = vrot.slane %v3627, %v3640
        %v3642 = vcombine.low %v3634, %v3641
        %v3643 = vcombine.low %v2412, %v2416
        %v3644 = vcombine.low %v2420, %v2424
        %v3646 = vunpack.c.l.s4 1983009808
        %v3647 = vunpack.c.0.s8 %v3646
        %v3648 = vlaneseq
        %v3649 = vshrl.u32 %v3648, 7
        %v3650 = vsub.s32 %v3647, %v3649
        %v3651 = vrot.slane %v3643, %v3650
        %v3653 = vunpack.c.l.s4 1983009808
        %v3654 = vunpack.c.0.s8 %v3653
        %v3655 = vlaneseq
        %v3656 = vshrl.u32 %v3655, 7
        %v3657 = vsub.s32 %v3654, %v3656
        %v3658 = vrot.slane %v3644, %v3657
        %v3659 = vcombine.low %v3651, %v3658
        %v3660 = vcombine.low %v2428, %v2432
        %v3661 = vcombine.low %v2436, %v2440
        %v3663 = vunpack.c.l.s4 1983009808
        %v3664 = vunpack.c.0.s8 %v3663
        %v3665 = vlaneseq
        %v3666 = vshrl.u32 %v3665, 7
        %v3667 = vsub.s32 %v3664, %v3666
        %v3668 = vrot.slane %v3660, %v3667
        %v3670 = vunpack.c.l.s4 1983009808
        %v3671 = vunpack.c.0.s8 %v3670
        %v3672 = vlaneseq
        %v3673 = vshrl.u32 %v3672, 7
        %v3674 = vsub.s32 %v3671, %v3673
        %v3675 = vrot.slane %v3661, %v3674
        %v3676 = vcombine.low %v3668, %v3675
        %v3677 = vcombine.low %v2444, %v2448
        %v3678 = vcombine.low %v2452, %v2456
        %v3680 = vunpack.c.l.s4 1983009808
        %v3681 = vunpack.c.0.s8 %v3680
        %v3682 = vlaneseq
        %v3683 = vshrl.u32 %v3682, 7
        %v3684 = vsub.s32 %v3681, %v3683
        %v3685 = vrot.slane %v3677, %v3684
        %v3687 = vunpack.c.l.s4 1983009808
        %v3688 = vunpack.c.0.s8 %v3687
        %v3689 = vlaneseq
        %v3690 = vshrl.u32 %v3689, 7
        %v3691 = vsub.s32 %v3688, %v3690
        %v3692 = vrot.slane %v3678, %v3691
        %v3693 = vcombine.low %v3685, %v3692
        %v3694 = vcombine.low %v2460, %v2464
        %v3695 = vcombine.low %v2468, %v2472
        %v3697 = vunpack.c.l.s4 1983009808
        %v3698 = vunpack.c.0.s8 %v3697
        %v3699 = vlaneseq
        %v3700 = vshrl.u32 %v3699, 7
        %v3701 = vsub.s32 %v3698, %v3700
        %v3702 = vrot.slane %v3694, %v3701
        %v3704 = vunpack.c.l.s4 1983009808
        %v3705 = vunpack.c.0.s8 %v3704
        %v3706 = vlaneseq
        %v3707 = vshrl.u32 %v3706, 7
        %v3708 = vsub.s32 %v3705, %v3707
        %v3709 = vrot.slane %v3695, %v3708
        %v3710 = vcombine.low %v3702, %v3709
        %v3711 = vcombine.low %v2476, %v2480
        %v3712 = vcombine.low %v2484, %v2488
        %v3714 = vunpack.c.l.s4 1983009808
        %v3715 = vunpack.c.0.s8 %v3714
        %v3716 = vlaneseq
        %v3717 = vshrl.u32 %v3716, 7
        %v3718 = vsub.s32 %v3715, %v3717
        %v3719 = vrot.slane %v3711, %v3718
        %v3721 = vunpack.c.l.s4 1983009808
        %v3722 = vunpack.c.0.s8 %v3721
        %v3723 = vlaneseq
        %v3724 = vshrl.u32 %v3723, 7
        %v3725 = vsub.s32 %v3722, %v3724
        %v3726 = vrot.slane %v3712, %v3725
        %v3727 = vcombine.low %v3719, %v3726
        %v3728 = vcombine.low %v2492, %v2496
        %v3729 = vcombine.low %v2500, %v2504
        %v3731 = vunpack.c.l.s4 1983009808
        %v3732 = vunpack.c.0.s8 %v3731
        %v3733 = vlaneseq
        %v3734 = vshrl.u32 %v3733, 7
        %v3735 = vsub.s32 %v3732, %v3734
        %v3736 = vrot.slane %v3728, %v3735
        %v3738 = vunpack.c.l.s4 1983009808
        %v3739 = vunpack.c.0.s8 %v3738
        %v3740 = vlaneseq
        %v3741 = vshrl.u32 %v3740, 7
        %v3742 = vsub.s32 %v3739, %v3741
        %v3743 = vrot.slane %v3729, %v3742
        %v3744 = vcombine.low %v3736, %v3743
        %v3745 = vcombine.low %v2508, %v2512
        %v3746 = vcombine.low %v2516, %v2520
        %v3748 = vunpack.c.l.s4 1983009808
        %v3749 = vunpack.c.0.s8 %v3748
        %v3750 = vlaneseq
        %v3751 = vshrl.u32 %v3750, 7
        %v3752 = vsub.s32 %v3749, %v3751
        %v3753 = vrot.slane %v3745, %v3752
        %v3755 = vunpack.c.l.s4 1983009808
        %v3756 = vunpack.c.0.s8 %v3755
        %v3757 = vlaneseq
        %v3758 = vshrl.u32 %v3757, 7
        %v3759 = vsub.s32 %v3756, %v3758
        %v3760 = vrot.slane %v3746, %v3759
        %v3761 = vcombine.low %v3753, %v3760
        %v3762 = vcombine.low %v2524, %v2528
        %v3763 = vcombine.low %v2532, %v2536
        %v3765 = vunpack.c.l.s4 1983009808
        %v3766 = vunpack.c.0.s8 %v3765
        %v3767 = vlaneseq
        %v3768 = vshrl.u32 %v3767, 7
        %v3769 = vsub.s32 %v3766, %v3768
        %v3770 = vrot.slane %v3762, %v3769
        %v3772 = vunpack.c.l.s4 1983009808
        %v3773 = vunpack.c.0.s8 %v3772
        %v3774 = vlaneseq
        %v3775 = vshrl.u32 %v3774, 7
        %v3776 = vsub.s32 %v3773, %v3775
        %v3777 = vrot.slane %v3763, %v3776
        %v3778 = vcombine.low %v3770, %v3777
        %v3779 = vcombine.low %v2540, %v2544
        %v3780 = vcombine.low %v2548, %v2552
        %v3782 = vunpack.c.l.s4 1983009808
        %v3783 = vunpack.c.0.s8 %v3782
        %v3784 = vlaneseq
        %v3785 = vshrl.u32 %v3784, 7
        %v3786 = vsub.s32 %v3783, %v3785
        %v3787 = vrot.slane %v3779, %v3786
        %v3789 = vunpack.c.l.s4 1983009808
        %v3790 = vunpack.c.0.s8 %v3789
        %v3791 = vlaneseq
        %v3792 = vshrl.u32 %v3791, 7
        %v3793 = vsub.s32 %v3790, %v3792
        %v3794 = vrot.slane %v3780, %v3793
        %v3795 = vcombine.low %v3787, %v3794
        %v3796 = vcombine.low %v2556, %v2560
        %v3797 = vcombine.low %v2564, %v2568
        %v3799 = vunpack.c.l.s4 1983009808
        %v3800 = vunpack.c.0.s8 %v3799
        %v3801 = vlaneseq
        %v3802 = vshrl.u32 %v3801, 7
        %v3803 = vsub.s32 %v3800, %v3802
        %v3804 = vrot.slane %v3796, %v3803
        %v3806 = vunpack.c.l.s4 1983009808
        %v3807 = vunpack.c.0.s8 %v3806
        %v3808 = vlaneseq
        %v3809 = vshrl.u32 %v3808, 7
        %v3810 = vsub.s32 %v3807, %v3809
        %v3811 = vrot.slane %v3797, %v3810
        %v3812 = vcombine.low %v3804, %v3811
        %v3813 = vcombine.low %v2572, %v2576
        %v3814 = vcombine.low %v2580, %v2584
        %v3816 = vunpack.c.l.s4 1983009808
        %v3817 = vunpack.c.0.s8 %v3816
        %v3818 = vlaneseq
        %v3819 = vshrl.u32 %v3818, 7
        %v3820 = vsub.s32 %v3817, %v3819
        %v3821 = vrot.slane %v3813, %v3820
        %v3823 = vunpack.c.l.s4 1983009808
        %v3824 = vunpack.c.0.s8 %v3823
        %v3825 = vlaneseq
        %v3826 = vshrl.u32 %v3825, 7
        %v3827 = vsub.s32 %v3824, %v3826
        %v3828 = vrot.slane %v3814, %v3827
        %v3829 = vcombine.low %v3821, %v3828
        %v3830 = vcombine.low %v2588, %v2592
        %v3831 = vcombine.low %v2596, %v2600
        %v3833 = vunpack.c.l.s4 1983009808
        %v3834 = vunpack.c.0.s8 %v3833
        %v3835 = vlaneseq
        %v3836 = vshrl.u32 %v3835, 7
        %v3837 = vsub.s32 %v3834, %v3836
        %v3838 = vrot.slane %v3830, %v3837
        %v3840 = vunpack.c.l.s4 1983009808
        %v3841 = vunpack.c.0.s8 %v3840
        %v3842 = vlaneseq
        %v3843 = vshrl.u32 %v3842, 7
        %v3844 = vsub.s32 %v3841, %v3843
        %v3845 = vrot.slane %v3831, %v3844
        %v3846 = vcombine.low %v3838, %v3845
        %v3847 = vcombine.low %v2604, %v2608
        %v3848 = vcombine.low %v2612, %v2616
        %v3850 = vunpack.c.l.s4 1983009808
        %v3851 = vunpack.c.0.s8 %v3850
        %v3852 = vlaneseq
        %v3853 = vshrl.u32 %v3852, 7
        %v3854 = vsub.s32 %v3851, %v3853
        %v3855 = vrot.slane %v3847, %v3854
        %v3857 = vunpack.c.l.s4 1983009808
        %v3858 = vunpack.c.0.s8 %v3857
        %v3859 = vlaneseq
        %v3860 = vshrl.u32 %v3859, 7
        %v3861 = vsub.s32 %v3858, %v3860
        %v3862 = vrot.slane %v3848, %v3861
        %v3863 = vcombine.low %v3855, %v3862
        %v3864 = vcombine.low %v2620, %v2624
        %v3865 = vcombine.low %v2628, %v2632
        %v3867 = vunpack.c.l.s4 1983009808
        %v3868 = vunpack.c.0.s8 %v3867
        %v3869 = vlaneseq
        %v3870 = vshrl.u32 %v3869, 7
        %v3871 = vsub.s32 %v3868, %v3870
        %v3872 = vrot.slane %v3864, %v3871
        %v3874 = vunpack.c.l.s4 1983009808
        %v3875 = vunpack.c.0.s8 %v3874
        %v3876 = vlaneseq
        %v3877 = vshrl.u32 %v3876, 7
        %v3878 = vsub.s32 %v3875, %v3877
        %v3879 = vrot.slane %v3865, %v3878
        %v3880 = vcombine.low %v3872, %v3879
        %v3881 = vcombine.low %v2636, %v2640
        %v3882 = vcombine.low %v2644, %v2648
        %v3884 = vunpack.c.l.s4 1983009808
        %v3885 = vunpack.c.0.s8 %v3884
        %v3886 = vlaneseq
        %v3887 = vshrl.u32 %v3886, 7
        %v3888 = vsub.s32 %v3885, %v3887
        %v3889 = vrot.slane %v3881, %v3888
        %v3891 = vunpack.c.l.s4 1983009808
        %v3892 = vunpack.c.0.s8 %v3891
        %v3893 = vlaneseq
        %v3894 = vshrl.u32 %v3893, 7
        %v3895 = vsub.s32 %v3892, %v3894
        %v3896 = vrot.slane %v3882, %v3895
        %v3897 = vcombine.low %v3889, %v3896
        %v3898 = vcombine.low %v2652, %v2656
        %v3899 = vcombine.low %v2660, %v2664
        %v3901 = vunpack.c.l.s4 1983009808
        %v3902 = vunpack.c.0.s8 %v3901
        %v3903 = vlaneseq
        %v3904 = vshrl.u32 %v3903, 7
        %v3905 = vsub.s32 %v3902, %v3904
        %v3906 = vrot.slane %v3898, %v3905
        %v3908 = vunpack.c.l.s4 1983009808
        %v3909 = vunpack.c.0.s8 %v3908
        %v3910 = vlaneseq
        %v3911 = vshrl.u32 %v3910, 7
        %v3912 = vsub.s32 %v3909, %v3911
        %v3913 = vrot.slane %v3899, %v3912
        %v3914 = vcombine.low %v3906, %v3913
        %v3915 = vcombine.low %v2668, %v2672
        %v3916 = vcombine.low %v2676, %v2680
        %v3918 = vunpack.c.l.s4 1983009808
        %v3919 = vunpack.c.0.s8 %v3918
        %v3920 = vlaneseq
        %v3921 = vshrl.u32 %v3920, 7
        %v3922 = vsub.s32 %v3919, %v3921
        %v3923 = vrot.slane %v3915, %v3922
        %v3925 = vunpack.c.l.s4 1983009808
        %v3926 = vunpack.c.0.s8 %v3925
        %v3927 = vlaneseq
        %v3928 = vshrl.u32 %v3927, 7
        %v3929 = vsub.s32 %v3926, %v3928
        %v3930 = vrot.slane %v3916, %v3929
        %v3931 = vcombine.low %v3923, %v3930
        %v3932 = vcombine.low %v2684, %v2688
        %v3933 = vcombine.low %v2692, %v2696
        %v3935 = vunpack.c.l.s4 1983009808
        %v3936 = vunpack.c.0.s8 %v3935
        %v3937 = vlaneseq
        %v3938 = vshrl.u32 %v3937, 7
        %v3939 = vsub.s32 %v3936, %v3938
        %v3940 = vrot.slane %v3932, %v3939
        %v3942 = vunpack.c.l.s4 1983009808
        %v3943 = vunpack.c.0.s8 %v3942
        %v3944 = vlaneseq
        %v3945 = vshrl.u32 %v3944, 7
        %v3946 = vsub.s32 %v3943, %v3945
        %v3947 = vrot.slane %v3933, %v3946
        %v3948 = vcombine.low %v3940, %v3947
        %v3949 = vcombine.low %v2700, %v2704
        %v3950 = vcombine.low %v2708, %v2712
        %v3952 = vunpack.c.l.s4 1983009808
        %v3953 = vunpack.c.0.s8 %v3952
        %v3954 = vlaneseq
        %v3955 = vshrl.u32 %v3954, 7
        %v3956 = vsub.s32 %v3953, %v3955
        %v3957 = vrot.slane %v3949, %v3956
        %v3959 = vunpack.c.l.s4 1983009808
        %v3960 = vunpack.c.0.s8 %v3959
        %v3961 = vlaneseq
        %v3962 = vshrl.u32 %v3961, 7
        %v3963 = vsub.s32 %v3960, %v3962
        %v3964 = vrot.slane %v3950, %v3963
        %v3965 = vcombine.low %v3957, %v3964
        %v3966 = vcombine.low %v2716, %v2720
        %v3967 = vcombine.low %v2724, %v2728
        %v3969 = vunpack.c.l.s4 1983009808
        %v3970 = vunpack.c.0.s8 %v3969
        %v3971 = vlaneseq
        %v3972 = vshrl.u32 %v3971, 7
        %v3973 = vsub.s32 %v3970, %v3972
        %v3974 = vrot.slane %v3966, %v3973
        %v3976 = vunpack.c.l.s4 1983009808
        %v3977 = vunpack.c.0.s8 %v3976
        %v3978 = vlaneseq
        %v3979 = vshrl.u32 %v3978, 7
        %v3980 = vsub.s32 %v3977, %v3979
        %v3981 = vrot.slane %v3967, %v3980
        %v3982 = vcombine.low %v3974, %v3981
        %v3983 = vcombine.low %v2732, %v2736
        %v3984 = vcombine.low %v2740, %v2744
        %v3986 = vunpack.c.l.s4 1983009808
        %v3987 = vunpack.c.0.s8 %v3986
        %v3988 = vlaneseq
        %v3989 = vshrl.u32 %v3988, 7
        %v3990 = vsub.s32 %v3987, %v3989
        %v3991 = vrot.slane %v3983, %v3990
        %v3993 = vunpack.c.l.s4 1983009808
        %v3994 = vunpack.c.0.s8 %v3993
        %v3995 = vlaneseq
        %v3996 = vshrl.u32 %v3995, 7
        %v3997 = vsub.s32 %v3994, %v3996
        %v3998 = vrot.slane %v3984, %v3997
        %v3999 = vcombine.low %v3991, %v3998
        %v4000 = vcombine.low %v2748, %v2752
        %v4001 = vcombine.low %v2756, %v2760
        %v4003 = vunpack.c.l.s4 1983009808
        %v4004 = vunpack.c.0.s8 %v4003
        %v4005 = vlaneseq
        %v4006 = vshrl.u32 %v4005, 7
        %v4007 = vsub.s32 %v4004, %v4006
        %v4008 = vrot.slane %v4000, %v4007
        %v4010 = vunpack.c.l.s4 1983009808
        %v4011 = vunpack.c.0.s8 %v4010
        %v4012 = vlaneseq
        %v4013 = vshrl.u32 %v4012, 7
        %v4014 = vsub.s32 %v4011, %v4013
        %v4015 = vrot.slane %v4001, %v4014
        %v4016 = vcombine.low %v4008, %v4015
        %v4017 = vcombine.low %v2764, %v2768
        %v4018 = vcombine.low %v2772, %v2776
        %v4020 = vunpack.c.l.s4 1983009808
        %v4021 = vunpack.c.0.s8 %v4020
        %v4022 = vlaneseq
        %v4023 = vshrl.u32 %v4022, 7
        %v4024 = vsub.s32 %v4021, %v4023
        %v4025 = vrot.slane %v4017, %v4024
        %v4027 = vunpack.c.l.s4 1983009808
        %v4028 = vunpack.c.0.s8 %v4027
        %v4029 = vlaneseq
        %v4030 = vshrl.u32 %v4029, 7
        %v4031 = vsub.s32 %v4028, %v4030
        %v4032 = vrot.slane %v4018, %v4031
        %v4033 = vcombine.low %v4025, %v4032
        %v4034 = vcombine.low %v2780, %v2784
        %v4035 = vcombine.low %v2788, %v2792
        %v4037 = vunpack.c.l.s4 1983009808
        %v4038 = vunpack.c.0.s8 %v4037
        %v4039 = vlaneseq
        %v4040 = vshrl.u32 %v4039, 7
        %v4041 = vsub.s32 %v4038, %v4040
        %v4042 = vrot.slane %v4034, %v4041
        %v4044 = vunpack.c.l.s4 1983009808
        %v4045 = vunpack.c.0.s8 %v4044
        %v4046 = vlaneseq
        %v4047 = vshrl.u32 %v4046, 7
        %v4048 = vsub.s32 %v4045, %v4047
        %v4049 = vrot.slane %v4035, %v4048
        %v4050 = vcombine.low %v4042, %v4049
        %v4051 = vcombine.low %v2796, %v2800
        %v4052 = vcombine.low %v2804, %v2808
        %v4054 = vunpack.c.l.s4 1983009808
        %v4055 = vunpack.c.0.s8 %v4054
        %v4056 = vlaneseq
        %v4057 = vshrl.u32 %v4056, 7
        %v4058 = vsub.s32 %v4055, %v4057
        %v4059 = vrot.slane %v4051, %v4058
        %v4061 = vunpack.c.l.s4 1983009808
        %v4062 = vunpack.c.0.s8 %v4061
        %v4063 = vlaneseq
        %v4064 = vshrl.u32 %v4063, 7
        %v4065 = vsub.s32 %v4062, %v4064
        %v4066 = vrot.slane %v4052, %v4065
        %v4067 = vcombine.low %v4059, %v4066
        %v4068 = vcombine.low %v2812, %v2816
        %v4069 = vcombine.low %v2820, %v2824
        %v4071 = vunpack.c.l.s4 1983009808
        %v4072 = vunpack.c.0.s8 %v4071
        %v4073 = vlaneseq
        %v4074 = vshrl.u32 %v4073, 7
        %v4075 = vsub.s32 %v4072, %v4074
        %v4076 = vrot.slane %v4068, %v4075
        %v4078 = vunpack.c.l.s4 1983009808
        %v4079 = vunpack.c.0.s8 %v4078
        %v4080 = vlaneseq
        %v4081 = vshrl.u32 %v4080, 7
        %v4082 = vsub.s32 %v4079, %v4081
        %v4083 = vrot.slane %v4069, %v4082
        %v4084 = vcombine.low %v4076, %v4083
        %s4149 = scalar_lea.vmem [#allocation2], 40
        %4150 = vst.msk [vmem:[%s4149 + $0x1] sm:$0xff] %vm2825, %v3013
        %4151 = vst.msk [vmem:[%s4149 + $0x9] sm:$0xff] %vm2825, %v3030
        %4152 = vst.msk [vmem:[%s4149 + $0x11] sm:$0xff] %vm2825, %v3047
        %4153 = vst.msk [vmem:[%s4149 + $0x19] sm:$0xff] %vm2825, %v3064
        %4154 = vst.msk [vmem:[%s4149 + $0x29] sm:$0xff] %vm2825, %v3013
        %4155 = vst.msk [vmem:[%s4149 + $0x31] sm:$0xff] %vm2825, %v3030
        %4156 = vst.msk [vmem:[%s4149 + $0x39] sm:$0xff] %vm2825, %v3047
        %4157 = vst.msk [vmem:[%s4149 + $0x41] sm:$0xff] %vm2825, %v3064
        %4158 = vst.msk [vmem:[%s4149 + $0x51] sm:$0xff] %vm2825, %v3081
        %4159 = vst.msk [vmem:[%s4149 + $0x59] sm:$0xff] %vm2825, %v3098
        %4160 = vst.msk [vmem:[%s4149 + $0x61] sm:$0xff] %vm2825, %v3115
        %4161 = vst.msk [vmem:[%s4149 + $0x69] sm:$0xff] %vm2825, %v3132
        %4162 = vst.msk [vmem:[%s4149 + $0x79] sm:$0xff] %vm2825, %v3081
        %4163 = vst.msk [vmem:[%s4149 + $0x81] sm:$0xff] %vm2825, %v3098
        %4164 = vst.msk [vmem:[%s4149 + $0x89] sm:$0xff] %vm2825, %v3115
        %4165 = vst.msk [vmem:[%s4149 + $0x91] sm:$0xff] %vm2825, %v3132
        %4166 = vst.msk [vmem:[%s4149 + $0xa1] sm:$0xff] %vm2825, %v3149
        %4167 = vst.msk [vmem:[%s4149 + $0xa9] sm:$0xff] %vm2825, %v3166
        %4168 = vst.msk [vmem:[%s4149 + $0xb1] sm:$0xff] %vm2825, %v3183
        %4169 = vst.msk [vmem:[%s4149 + $0xb9] sm:$0xff] %vm2825, %v3200
        %4170 = vst.msk [vmem:[%s4149 + $0xc9] sm:$0xff] %vm2825, %v3149
        %4171 = vst.msk [vmem:[%s4149 + $0xd1] sm:$0xff] %vm2825, %v3166
        %4172 = vst.msk [vmem:[%s4149 + $0xd9] sm:$0xff] %vm2825, %v3183
        %4173 = vst.msk [vmem:[%s4149 + $0xe1] sm:$0xff] %vm2825, %v3200
        %4174 = vst.msk [vmem:[%s4149 + $0xf1] sm:$0xff] %vm2825, %v3217
        %4175 = vst.msk [vmem:[%s4149 + $0xf9] sm:$0xff] %vm2825, %v3234
        %4176 = vst.msk [vmem:[%s4149 + $0x101] sm:$0xff] %vm2825, %v3251
        %4177 = vst.msk [vmem:[%s4149 + $0x109] sm:$0xff] %vm2825, %v3268
        %4178 = vst.msk [vmem:[%s4149 + $0x119] sm:$0xff] %vm2825, %v3217
        %4179 = vst.msk [vmem:[%s4149 + $0x121] sm:$0xff] %vm2825, %v3234
        %4180 = vst.msk [vmem:[%s4149 + $0x129] sm:$0xff] %vm2825, %v3251
        %4181 = vst.msk [vmem:[%s4149 + $0x131] sm:$0xff] %vm2825, %v3268
        %4182 = vst.msk [vmem:[%s4149 + $0x141] sm:$0xff] %vm2825, %v3285
        %4183 = vst.msk [vmem:[%s4149 + $0x149] sm:$0xff] %vm2825, %v3302
        %4184 = vst.msk [vmem:[%s4149 + $0x151] sm:$0xff] %vm2825, %v3319
        %4185 = vst.msk [vmem:[%s4149 + $0x159] sm:$0xff] %vm2825, %v3336
        %4186 = vst.msk [vmem:[%s4149 + $0x169] sm:$0xff] %vm2825, %v3285
        %4187 = vst.msk [vmem:[%s4149 + $0x171] sm:$0xff] %vm2825, %v3302
        %4188 = vst.msk [vmem:[%s4149 + $0x179] sm:$0xff] %vm2825, %v3319
        %4189 = vst.msk [vmem:[%s4149 + $0x181] sm:$0xff] %vm2825, %v3336
        %4190 = vst.msk [vmem:[%s4149 + $0x191] sm:$0xff] %vm2825, %v3353
        %4191 = vst.msk [vmem:[%s4149 + $0x199] sm:$0xff] %vm2825, %v3370
        %4192 = vst.msk [vmem:[%s4149 + $0x1a1] sm:$0xff] %vm2825, %v3387
        %4193 = vst.msk [vmem:[%s4149 + $0x1a9] sm:$0xff] %vm2825, %v3404
        %4194 = vst.msk [vmem:[%s4149 + $0x1b9] sm:$0xff] %vm2825, %v3353
        %4195 = vst.msk [vmem:[%s4149 + $0x1c1] sm:$0xff] %vm2825, %v3370
        %4196 = vst.msk [vmem:[%s4149 + $0x1c9] sm:$0xff] %vm2825, %v3387
        %4197 = vst.msk [vmem:[%s4149 + $0x1d1] sm:$0xff] %vm2825, %v3404
        %4198 = vst.msk [vmem:[%s4149 + $0x1e1] sm:$0xff] %vm2825, %v3421
        %4199 = vst.msk [vmem:[%s4149 + $0x1e9] sm:$0xff] %vm2825, %v3438
        %4200 = vst.msk [vmem:[%s4149 + $0x1f1] sm:$0xff] %vm2825, %v3455
        %4201 = vst.msk [vmem:[%s4149 + $0x1f9] sm:$0xff] %vm2825, %v3472
        %4202 = vst.msk [vmem:[%s4149 + $0x209] sm:$0xff] %vm2825, %v3421
        %4203 = vst.msk [vmem:[%s4149 + $0x211] sm:$0xff] %vm2825, %v3438
        %4204 = vst.msk [vmem:[%s4149 + $0x219] sm:$0xff] %vm2825, %v3455
        %4205 = vst.msk [vmem:[%s4149 + $0x221] sm:$0xff] %vm2825, %v3472
        %4206 = vst.msk [vmem:[%s4149 + $0x231] sm:$0xff] %vm2825, %v3489
        %4207 = vst.msk [vmem:[%s4149 + $0x239] sm:$0xff] %vm2825, %v3506
        %4208 = vst.msk [vmem:[%s4149 + $0x241] sm:$0xff] %vm2825, %v3523
        %4209 = vst.msk [vmem:[%s4149 + $0x249] sm:$0xff] %vm2825, %v3540
        %4210 = vst.msk [vmem:[%s4149 + $0x259] sm:$0xff] %vm2825, %v3489
        %4211 = vst.msk [vmem:[%s4149 + $0x261] sm:$0xff] %vm2825, %v3506
        %4212 = vst.msk [vmem:[%s4149 + $0x269] sm:$0xff] %vm2825, %v3523
        %4213 = vst.msk [vmem:[%s4149 + $0x271] sm:$0xff] %vm2825, %v3540
        %4214 = vst.msk [vmem:[%s4149 + $0x281] sm:$0xff] %vm2825, %v3557
        %4215 = vst.msk [vmem:[%s4149 + $0x289] sm:$0xff] %vm2825, %v3574
        %4216 = vst.msk [vmem:[%s4149 + $0x291] sm:$0xff] %vm2825, %v3591
        %4217 = vst.msk [vmem:[%s4149 + $0x299] sm:$0xff] %vm2825, %v3608
        %4218 = vst.msk [vmem:[%s4149 + $0x2a9] sm:$0xff] %vm2825, %v3557
        %4219 = vst.msk [vmem:[%s4149 + $0x2b1] sm:$0xff] %vm2825, %v3574
        %4220 = vst.msk [vmem:[%s4149 + $0x2b9] sm:$0xff] %vm2825, %v3591
        %4221 = vst.msk [vmem:[%s4149 + $0x2c1] sm:$0xff] %vm2825, %v3608
        %4222 = vst.msk [vmem:[%s4149 + $0x2d1] sm:$0xff] %vm2825, %v3625
        %4223 = vst.msk [vmem:[%s4149 + $0x2d9] sm:$0xff] %vm2825, %v3642
        %4224 = vst.msk [vmem:[%s4149 + $0x2e1] sm:$0xff] %vm2825, %v3659
        %4225 = vst.msk [vmem:[%s4149 + $0x2e9] sm:$0xff] %vm2825, %v3676
        %4226 = vst.msk [vmem:[%s4149 + $0x2f9] sm:$0xff] %vm2825, %v3625
        %4227 = vst.msk [vmem:[%s4149 + $0x301] sm:$0xff] %vm2825, %v3642
        %4228 = vst.msk [vmem:[%s4149 + $0x309] sm:$0xff] %vm2825, %v3659
        %4229 = vst.msk [vmem:[%s4149 + $0x311] sm:$0xff] %vm2825, %v3676
        %4230 = vst.msk [vmem:[%s4149 + $0x321] sm:$0xff] %vm2825, %v3693
        %4231 = vst.msk [vmem:[%s4149 + $0x329] sm:$0xff] %vm2825, %v3710
        %4232 = vst.msk [vmem:[%s4149 + $0x331] sm:$0xff] %vm2825, %v3727
        %4233 = vst.msk [vmem:[%s4149 + $0x339] sm:$0xff] %vm2825, %v3744
        %4234 = vst.msk [vmem:[%s4149 + $0x349] sm:$0xff] %vm2825, %v3693
        %4235 = vst.msk [vmem:[%s4149 + $0x351] sm:$0xff] %vm2825, %v3710
        %4236 = vst.msk [vmem:[%s4149 + $0x359] sm:$0xff] %vm2825, %v3727
        %4237 = vst.msk [vmem:[%s4149 + $0x361] sm:$0xff] %vm2825, %v3744
        %4238 = vst.msk [vmem:[%s4149 + $0x371] sm:$0xff] %vm2825, %v3761
        %4239 = vst.msk [vmem:[%s4149 + $0x379] sm:$0xff] %vm2825, %v3778
        %4240 = vst.msk [vmem:[%s4149 + $0x381] sm:$0xff] %vm2825, %v3795
        %4241 = vst.msk [vmem:[%s4149 + $0x389] sm:$0xff] %vm2825, %v3812
        %4242 = vst.msk [vmem:[%s4149 + $0x399] sm:$0xff] %vm2825, %v3761
        %4243 = vst.msk [vmem:[%s4149 + $0x3a1] sm:$0xff] %vm2825, %v3778
        %4244 = vst.msk [vmem:[%s4149 + $0x3a9] sm:$0xff] %vm2825, %v3795
        %4245 = vst.msk [vmem:[%s4149 + $0x3b1] sm:$0xff] %vm2825, %v3812
        %4246 = vst.msk [vmem:[%s4149 + $0x3c1] sm:$0xff] %vm2825, %v3829
        %4247 = vst.msk [vmem:[%s4149 + $0x3c9] sm:$0xff] %vm2825, %v3846
        %4248 = vst.msk [vmem:[%s4149 + $0x3d1] sm:$0xff] %vm2825, %v3863
        %4249 = vst.msk [vmem:[%s4149 + $0x3d9] sm:$0xff] %vm2825, %v3880
        %4250 = vst.msk [vmem:[%s4149 + $0x3e9] sm:$0xff] %vm2825, %v3829
        %4251 = vst.msk [vmem:[%s4149 + $0x3f1] sm:$0xff] %vm2825, %v3846
        %4252 = vst.msk [vmem:[%s4149 + $0x3f9] sm:$0xff] %vm2825, %v3863
        %4253 = vst.msk [vmem:[%s4149 + $0x401] sm:$0xff] %vm2825, %v3880
        %4254 = vst.msk [vmem:[%s4149 + $0x411] sm:$0xff] %vm2825, %v3897
        %4255 = vst.msk [vmem:[%s4149 + $0x419] sm:$0xff] %vm2825, %v3914
        %4256 = vst.msk [vmem:[%s4149 + $0x421] sm:$0xff] %vm2825, %v3931
        %4257 = vst.msk [vmem:[%s4149 + $0x429] sm:$0xff] %vm2825, %v3948
        %4258 = vst.msk [vmem:[%s4149 + $0x439] sm:$0xff] %vm2825, %v3897
        %4259 = vst.msk [vmem:[%s4149 + $0x441] sm:$0xff] %vm2825, %v3914
        %4260 = vst.msk [vmem:[%s4149 + $0x449] sm:$0xff] %vm2825, %v3931
        %4261 = vst.msk [vmem:[%s4149 + $0x451] sm:$0xff] %vm2825, %v3948
        %4262 = vst.msk [vmem:[%s4149 + $0x461] sm:$0xff] %vm2825, %v3965
        %4263 = vst.msk [vmem:[%s4149 + $0x469] sm:$0xff] %vm2825, %v3982
        %4264 = vst.msk [vmem:[%s4149 + $0x471] sm:$0xff] %vm2825, %v3999
        %4265 = vst.msk [vmem:[%s4149 + $0x479] sm:$0xff] %vm2825, %v4016
        %4266 = vst.msk [vmem:[%s4149 + $0x489] sm:$0xff] %vm2825, %v3965
        %4267 = vst.msk [vmem:[%s4149 + $0x491] sm:$0xff] %vm2825, %v3982
        %4268 = vst.msk [vmem:[%s4149 + $0x499] sm:$0xff] %vm2825, %v3999
        %4269 = vst.msk [vmem:[%s4149 + $0x4a1] sm:$0xff] %vm2825, %v4016
        %4270 = vst.msk [vmem:[%s4149 + $0x4b1] sm:$0xff] %vm2825, %v4033
        %4271 = vst.msk [vmem:[%s4149 + $0x4b9] sm:$0xff] %vm2825, %v4050
        %4272 = vst.msk [vmem:[%s4149 + $0x4c1] sm:$0xff] %vm2825, %v4067
        %4273 = vst.msk [vmem:[%s4149 + $0x4c9] sm:$0xff] %vm2825, %v4084
        %4274 = vst.msk [vmem:[%s4149 + $0x4d9] sm:$0xff] %vm2825, %v4033
        %4275 = vst.msk [vmem:[%s4149 + $0x4e1] sm:$0xff] %vm2825, %v4050
        %4276 = vst.msk [vmem:[%s4149 + $0x4e9] sm:$0xff] %vm2825, %v4067
        %4277 = vst.msk [vmem:[%s4149 + $0x4f1] sm:$0xff] %vm2825, %v4084
        %v4278 = vld [vmem:[#allocation2] sm:$0xff]
        %v4279 = vld [vmem:[#allocation2 + $0x8] sm:$0xff]
        %v4280 = vld [vmem:[#allocation2 + $0x10] sm:$0xff]
        %v4281 = vld [vmem:[#allocation2 + $0x18] sm:$0xff]
        %v4282 = vld [vmem:[#allocation2 + $0x20] sm:$0x3]
        %v4283 = vld [vmem:[#allocation2 + $0x28] sm:$0xff]
        %v4284 = vld [vmem:[#allocation2 + $0x30] sm:$0xff]
        %v4285 = vld [vmem:[#allocation2 + $0x38] sm:$0xff]
        %v4286 = vld [vmem:[#allocation2 + $0x40] sm:$0xff]
        %v4287 = vld [vmem:[#allocation2 + $0x48] sm:$0x3]
        %v4288 = vld [vmem:[#allocation2 + $0x50] sm:$0xff]
        %v4289 = vld [vmem:[#allocation2 + $0x58] sm:$0xff]
        %v4290 = vld [vmem:[#allocation2 + $0x60] sm:$0xff]
        %v4291 = vld [vmem:[#allocation2 + $0x68] sm:$0xff]
        %v4292 = vld [vmem:[#allocation2 + $0x70] sm:$0x3]
        %v4293 = vld [vmem:[#allocation2 + $0x78] sm:$0xff]
        %v4294 = vld [vmem:[#allocation2 + $0x80] sm:$0xff]
        %v4295 = vld [vmem:[#allocation2 + $0x88] sm:$0xff]
        %v4296 = vld [vmem:[#allocation2 + $0x90] sm:$0xff]
        %v4297 = vld [vmem:[#allocation2 + $0x98] sm:$0x3]
        %v4298 = vld [vmem:[#allocation2 + $0xa0] sm:$0xff]
        %v4299 = vld [vmem:[#allocation2 + $0xa8] sm:$0xff]
        %v4300 = vld [vmem:[#allocation2 + $0xb0] sm:$0xff]
        %v4301 = vld [vmem:[#allocation2 + $0xb8] sm:$0xff]
        %v4302 = vld [vmem:[#allocation2 + $0xc0] sm:$0x3]
        %v4303 = vld [vmem:[#allocation2 + $0xc8] sm:$0xff]
        %v4304 = vld [vmem:[#allocation2 + $0xd0] sm:$0xff]
        %v4305 = vld [vmem:[#allocation2 + $0xd8] sm:$0xff]
        %v4306 = vld [vmem:[#allocation2 + $0xe0] sm:$0xff]
        %v4307 = vld [vmem:[#allocation2 + $0xe8] sm:$0x3]
        %v4308 = vld [vmem:[#allocation2 + $0xf0] sm:$0xff]
        %v4309 = vld [vmem:[#allocation2 + $0xf8] sm:$0xff]
        %v4310 = vld [vmem:[#allocation2 + $0x100] sm:$0xff]
        %v4311 = vld [vmem:[#allocation2 + $0x108] sm:$0xff]
        %v4312 = vld [vmem:[#allocation2 + $0x110] sm:$0x3]
        %v4313 = vld [vmem:[#allocation2 + $0x118] sm:$0xff]
        %v4314 = vld [vmem:[#allocation2 + $0x120] sm:$0xff]
        %v4315 = vld [vmem:[#allocation2 + $0x128] sm:$0xff]
        %v4316 = vld [vmem:[#allocation2 + $0x130] sm:$0xff]
        %v4317 = vld [vmem:[#allocation2 + $0x138] sm:$0x3]
        %v4318 = vld [vmem:[#allocation2 + $0x140] sm:$0xff]
        %v4319 = vld [vmem:[#allocation2 + $0x148] sm:$0xff]
        %v4320 = vld [vmem:[#allocation2 + $0x150] sm:$0xff]
        %v4321 = vld [vmem:[#allocation2 + $0x158] sm:$0xff]
        %v4322 = vld [vmem:[#allocation2 + $0x160] sm:$0x3]
        %v4323 = vld [vmem:[#allocation2 + $0x168] sm:$0xff]
        %v4324 = vld [vmem:[#allocation2 + $0x170] sm:$0xff]
        %v4325 = vld [vmem:[#allocation2 + $0x178] sm:$0xff]
        %v4326 = vld [vmem:[#allocation2 + $0x180] sm:$0xff]
        %v4327 = vld [vmem:[#allocation2 + $0x188] sm:$0x3]
        %v4328 = vld [vmem:[#allocation2 + $0x190] sm:$0xff]
        %v4329 = vld [vmem:[#allocation2 + $0x198] sm:$0xff]
        %v4330 = vld [vmem:[#allocation2 + $0x1a0] sm:$0xff]
        %v4331 = vld [vmem:[#allocation2 + $0x1a8] sm:$0xff]
        %v4332 = vld [vmem:[#allocation2 + $0x1b0] sm:$0x3]
        %v4333 = vld [vmem:[#allocation2 + $0x1b8] sm:$0xff]
        %v4334 = vld [vmem:[#allocation2 + $0x1c0] sm:$0xff]
        %v4335 = vld [vmem:[#allocation2 + $0x1c8] sm:$0xff]
        %v4336 = vld [vmem:[#allocation2 + $0x1d0] sm:$0xff]
        %v4337 = vld [vmem:[#allocation2 + $0x1d8] sm:$0x3]
        %v4338 = vld [vmem:[#allocation2 + $0x1e0] sm:$0xff]
        %v4339 = vld [vmem:[#allocation2 + $0x1e8] sm:$0xff]
        %v4340 = vld [vmem:[#allocation2 + $0x1f0] sm:$0xff]
        %v4341 = vld [vmem:[#allocation2 + $0x1f8] sm:$0xff]
        %v4342 = vld [vmem:[#allocation2 + $0x200] sm:$0x3]
        %v4343 = vld [vmem:[#allocation2 + $0x208] sm:$0xff]
        %v4344 = vld [vmem:[#allocation2 + $0x210] sm:$0xff]
        %v4345 = vld [vmem:[#allocation2 + $0x218] sm:$0xff]
        %v4346 = vld [vmem:[#allocation2 + $0x220] sm:$0xff]
        %v4347 = vld [vmem:[#allocation2 + $0x228] sm:$0x3]
        %v4348 = vld [vmem:[#allocation2 + $0x230] sm:$0xff]
        %v4349 = vld [vmem:[#allocation2 + $0x238] sm:$0xff]
        %v4350 = vld [vmem:[#allocation2 + $0x240] sm:$0xff]
        %v4351 = vld [vmem:[#allocation2 + $0x248] sm:$0xff]
        %v4352 = vld [vmem:[#allocation2 + $0x250] sm:$0x3]
        %v4353 = vld [vmem:[#allocation2 + $0x258] sm:$0xff]
        %v4354 = vld [vmem:[#allocation2 + $0x260] sm:$0xff]
        %v4355 = vld [vmem:[#allocation2 + $0x268] sm:$0xff]
        %v4356 = vld [vmem:[#allocation2 + $0x270] sm:$0xff]
        %v4357 = vld [vmem:[#allocation2 + $0x278] sm:$0x3]
        %v4358 = vld [vmem:[#allocation2 + $0x280] sm:$0xff]
        %v4359 = vld [vmem:[#allocation2 + $0x288] sm:$0xff]
        %v4360 = vld [vmem:[#allocation2 + $0x290] sm:$0xff]
        %v4361 = vld [vmem:[#allocation2 + $0x298] sm:$0xff]
        %v4362 = vld [vmem:[#allocation2 + $0x2a0] sm:$0x3]
        %v4363 = vld [vmem:[#allocation2 + $0x2a8] sm:$0xff]
        %v4364 = vld [vmem:[#allocation2 + $0x2b0] sm:$0xff]
        %v4365 = vld [vmem:[#allocation2 + $0x2b8] sm:$0xff]
        %v4366 = vld [vmem:[#allocation2 + $0x2c0] sm:$0xff]
        %v4367 = vld [vmem:[#allocation2 + $0x2c8] sm:$0x3]
        %v4368 = vld [vmem:[#allocation2 + $0x2d0] sm:$0xff]
        %v4369 = vld [vmem:[#allocation2 + $0x2d8] sm:$0xff]
        %v4370 = vld [vmem:[#allocation2 + $0x2e0] sm:$0xff]
        %v4371 = vld [vmem:[#allocation2 + $0x2e8] sm:$0xff]
        %v4372 = vld [vmem:[#allocation2 + $0x2f0] sm:$0x3]
        %v4373 = vld [vmem:[#allocation2 + $0x2f8] sm:$0xff]
        %v4374 = vld [vmem:[#allocation2 + $0x300] sm:$0xff]
        %v4375 = vld [vmem:[#allocation2 + $0x308] sm:$0xff]
        %v4376 = vld [vmem:[#allocation2 + $0x310] sm:$0xff]
        %v4377 = vld [vmem:[#allocation2 + $0x318] sm:$0x3]
        %v4378 = vld [vmem:[#allocation2 + $0x320] sm:$0xff]
        %v4379 = vld [vmem:[#allocation2 + $0x328] sm:$0xff]
        %v4380 = vld [vmem:[#allocation2 + $0x330] sm:$0xff]
        %v4381 = vld [vmem:[#allocation2 + $0x338] sm:$0xff]
        %v4382 = vld [vmem:[#allocation2 + $0x340] sm:$0x3]
        %v4383 = vld [vmem:[#allocation2 + $0x348] sm:$0xff]
        %v4384 = vld [vmem:[#allocation2 + $0x350] sm:$0xff]
        %v4385 = vld [vmem:[#allocation2 + $0x358] sm:$0xff]
        %v4386 = vld [vmem:[#allocation2 + $0x360] sm:$0xff]
        %v4387 = vld [vmem:[#allocation2 + $0x368] sm:$0x3]
        %v4388 = vld [vmem:[#allocation2 + $0x370] sm:$0xff]
        %v4389 = vld [vmem:[#allocation2 + $0x378] sm:$0xff]
        %v4390 = vld [vmem:[#allocation2 + $0x380] sm:$0xff]
        %v4391 = vld [vmem:[#allocation2 + $0x388] sm:$0xff]
        %v4392 = vld [vmem:[#allocation2 + $0x390] sm:$0x3]
        %v4393 = vld [vmem:[#allocation2 + $0x398] sm:$0xff]
        %v4394 = vld [vmem:[#allocation2 + $0x3a0] sm:$0xff]
        %v4395 = vld [vmem:[#allocation2 + $0x3a8] sm:$0xff]
        %v4396 = vld [vmem:[#allocation2 + $0x3b0] sm:$0xff]
        %v4397 = vld [vmem:[#allocation2 + $0x3b8] sm:$0x3]
        %v4398 = vld [vmem:[#allocation2 + $0x3c0] sm:$0xff]
        %v4399 = vld [vmem:[#allocation2 + $0x3c8] sm:$0xff]
        %v4400 = vld [vmem:[#allocation2 + $0x3d0] sm:$0xff]
        %v4401 = vld [vmem:[#allocation2 + $0x3d8] sm:$0xff]
        %v4402 = vld [vmem:[#allocation2 + $0x3e0] sm:$0x3]
        %v4403 = vld [vmem:[#allocation2 + $0x3e8] sm:$0xff]
        %v4404 = vld [vmem:[#allocation2 + $0x3f0] sm:$0xff]
        %v4405 = vld [vmem:[#allocation2 + $0x3f8] sm:$0xff]
        %v4406 = vld [vmem:[#allocation2 + $0x400] sm:$0xff]
        %v4407 = vld [vmem:[#allocation2 + $0x408] sm:$0x3]
        %v4408 = vld [vmem:[#allocation2 + $0x410] sm:$0xff]
        %v4409 = vld [vmem:[#allocation2 + $0x418] sm:$0xff]
        %v4410 = vld [vmem:[#allocation2 + $0x420] sm:$0xff]
        %v4411 = vld [vmem:[#allocation2 + $0x428] sm:$0xff]
        %v4412 = vld [vmem:[#allocation2 + $0x430] sm:$0x3]
        %v4413 = vld [vmem:[#allocation2 + $0x438] sm:$0xff]
        %v4414 = vld [vmem:[#allocation2 + $0x440] sm:$0xff]
        %v4415 = vld [vmem:[#allocation2 + $0x448] sm:$0xff]
        %v4416 = vld [vmem:[#allocation2 + $0x450] sm:$0xff]
        %v4417 = vld [vmem:[#allocation2 + $0x458] sm:$0x3]
        %v4418 = vld [vmem:[#allocation2 + $0x460] sm:$0xff]
        %v4419 = vld [vmem:[#allocation2 + $0x468] sm:$0xff]
        %v4420 = vld [vmem:[#allocation2 + $0x470] sm:$0xff]
        %v4421 = vld [vmem:[#allocation2 + $0x478] sm:$0xff]
        %v4422 = vld [vmem:[#allocation2 + $0x480] sm:$0x3]
        %v4423 = vld [vmem:[#allocation2 + $0x488] sm:$0xff]
        %v4424 = vld [vmem:[#allocation2 + $0x490] sm:$0xff]
        %v4425 = vld [vmem:[#allocation2 + $0x498] sm:$0xff]
        %v4426 = vld [vmem:[#allocation2 + $0x4a0] sm:$0xff]
        %v4427 = vld [vmem:[#allocation2 + $0x4a8] sm:$0x3]
        %v4428 = vld [vmem:[#allocation2 + $0x4b0] sm:$0xff]
        %v4429 = vld [vmem:[#allocation2 + $0x4b8] sm:$0xff]
        %v4430 = vld [vmem:[#allocation2 + $0x4c0] sm:$0xff]
        %v4431 = vld [vmem:[#allocation2 + $0x4c8] sm:$0xff]
        %v4432 = vld [vmem:[#allocation2 + $0x4d0] sm:$0x3]
        %v4433 = vld [vmem:[#allocation2 + $0x4d8] sm:$0xff]
        %v4434 = vld [vmem:[#allocation2 + $0x4e0] sm:$0xff]
        %v4435 = vld [vmem:[#allocation2 + $0x4e8] sm:$0xff]
        %v4436 = vld [vmem:[#allocation2 + $0x4f0] sm:$0xff]
        %v4437 = vld [vmem:[#allocation2 + $0x4f8] sm:$0x3]
        %v4438 = vld [vmem:[#allocation2 + $0x500] sm:$0xff]
        %v4439 = vld [vmem:[#allocation2 + $0x508] sm:$0xff]
        %v4440 = vld [vmem:[#allocation2 + $0x510] sm:$0xff]
        %v4441 = vld [vmem:[#allocation2 + $0x518] sm:$0xff]
        %v4442 = vld [vmem:[#allocation2 + $0x520] sm:$0x3]
        %v4443 = vld [vmem:[#allocation2 + $0x528] sm:$0xff]
        %v4444 = vld [vmem:[#allocation2 + $0x530] sm:$0xff]
        %v4445 = vld [vmem:[#allocation2 + $0x538] sm:$0xff]
        %v4446 = vld [vmem:[#allocation2 + $0x540] sm:$0xff]
        %v4447 = vld [vmem:[#allocation2 + $0x548] sm:$0x3]
        %v4448 = vld [vmem:[%s1] sm:$0xff]
        %vm4609 = vcmask 1046528
        %v4610 = vrot.slane %v4278, 1
        %v4611 = vrot.slane %v4279, 1
        %v4612 = vsel %vm4609, %v4610, %v4611
        %v4613 = vrot.slane %v4280, 1
        %v4614 = vsel %vm4609, %v4611, %v4613
        %v4615 = vrot.slane %v4281, 1
        %v4616 = vsel %vm4609, %v4613, %v4615
        %v4617 = vrot.slane %v4282, 1
        %v4618 = vsel %vm4609, %v4615, %v4617
        %v4619 = vrot.slane %v4283, 1
        %v4620 = vrot.slane %v4284, 1
        %v4621 = vsel %vm4609, %v4619, %v4620
        %v4622 = vrot.slane %v4285, 1
        %v4623 = vsel %vm4609, %v4620, %v4622
        %v4624 = vrot.slane %v4286, 1
        %v4625 = vsel %vm4609, %v4622, %v4624
        %v4626 = vrot.slane %v4287, 1
        %v4627 = vsel %vm4609, %v4624, %v4626
        %v4628 = vrot.slane %v4288, 1
        %v4629 = vrot.slane %v4289, 1
        %v4630 = vsel %vm4609, %v4628, %v4629
        %v4631 = vrot.slane %v4290, 1
        %v4632 = vsel %vm4609, %v4629, %v4631
        %v4633 = vrot.slane %v4291, 1
        %v4634 = vsel %vm4609, %v4631, %v4633
        %v4635 = vrot.slane %v4292, 1
        %v4636 = vsel %vm4609, %v4633, %v4635
        %v4637 = vrot.slane %v4293, 1
        %v4638 = vrot.slane %v4294, 1
        %v4639 = vsel %vm4609, %v4637, %v4638
        %v4640 = vrot.slane %v4295, 1
        %v4641 = vsel %vm4609, %v4638, %v4640
        %v4642 = vrot.slane %v4296, 1
        %v4643 = vsel %vm4609, %v4640, %v4642
        %v4644 = vrot.slane %v4297, 1
        %v4645 = vsel %vm4609, %v4642, %v4644
        %v4646 = vrot.slane %v4298, 1
        %v4647 = vrot.slane %v4299, 1
        %v4648 = vsel %vm4609, %v4646, %v4647
        %v4649 = vrot.slane %v4300, 1
        %v4650 = vsel %vm4609, %v4647, %v4649
        %v4651 = vrot.slane %v4301, 1
        %v4652 = vsel %vm4609, %v4649, %v4651
        %v4653 = vrot.slane %v4302, 1
        %v4654 = vsel %vm4609, %v4651, %v4653
        %v4655 = vrot.slane %v4303, 1
        %v4656 = vrot.slane %v4304, 1
        %v4657 = vsel %vm4609, %v4655, %v4656
        %v4658 = vrot.slane %v4305, 1
        %v4659 = vsel %vm4609, %v4656, %v4658
        %v4660 = vrot.slane %v4306, 1
        %v4661 = vsel %vm4609, %v4658, %v4660
        %v4662 = vrot.slane %v4307, 1
        %v4663 = vsel %vm4609, %v4660, %v4662
        %v4664 = vrot.slane %v4308, 1
        %v4665 = vrot.slane %v4309, 1
        %v4666 = vsel %vm4609, %v4664, %v4665
        %v4667 = vrot.slane %v4310, 1
        %v4668 = vsel %vm4609, %v4665, %v4667
        %v4669 = vrot.slane %v4311, 1
        %v4670 = vsel %vm4609, %v4667, %v4669
        %v4671 = vrot.slane %v4312, 1
        %v4672 = vsel %vm4609, %v4669, %v4671
        %v4673 = vrot.slane %v4313, 1
        %v4674 = vrot.slane %v4314, 1
        %v4675 = vsel %vm4609, %v4673, %v4674
        %v4676 = vrot.slane %v4315, 1
        %v4677 = vsel %vm4609, %v4674, %v4676
        %v4678 = vrot.slane %v4316, 1
        %v4679 = vsel %vm4609, %v4676, %v4678
        %v4680 = vrot.slane %v4317, 1
        %v4681 = vsel %vm4609, %v4678, %v4680
        %v4682 = vrot.slane %v4318, 1
        %v4683 = vrot.slane %v4319, 1
        %v4684 = vsel %vm4609, %v4682, %v4683
        %v4685 = vrot.slane %v4320, 1
        %v4686 = vsel %vm4609, %v4683, %v4685
        %v4687 = vrot.slane %v4321, 1
        %v4688 = vsel %vm4609, %v4685, %v4687
        %v4689 = vrot.slane %v4322, 1
        %v4690 = vsel %vm4609, %v4687, %v4689
        %v4691 = vrot.slane %v4323, 1
        %v4692 = vrot.slane %v4324, 1
        %v4693 = vsel %vm4609, %v4691, %v4692
        %v4694 = vrot.slane %v4325, 1
        %v4695 = vsel %vm4609, %v4692, %v4694
        %v4696 = vrot.slane %v4326, 1
        %v4697 = vsel %vm4609, %v4694, %v4696
        %v4698 = vrot.slane %v4327, 1
        %v4699 = vsel %vm4609, %v4696, %v4698
        %v4700 = vrot.slane %v4328, 1
        %v4701 = vrot.slane %v4329, 1
        %v4702 = vsel %vm4609, %v4700, %v4701
        %v4703 = vrot.slane %v4330, 1
        %v4704 = vsel %vm4609, %v4701, %v4703
        %v4705 = vrot.slane %v4331, 1
        %v4706 = vsel %vm4609, %v4703, %v4705
        %v4707 = vrot.slane %v4332, 1
        %v4708 = vsel %vm4609, %v4705, %v4707
        %v4709 = vrot.slane %v4333, 1
        %v4710 = vrot.slane %v4334, 1
        %v4711 = vsel %vm4609, %v4709, %v4710
        %v4712 = vrot.slane %v4335, 1
        %v4713 = vsel %vm4609, %v4710, %v4712
        %v4714 = vrot.slane %v4336, 1
        %v4715 = vsel %vm4609, %v4712, %v4714
        %v4716 = vrot.slane %v4337, 1
        %v4717 = vsel %vm4609, %v4714, %v4716
        %v4718 = vrot.slane %v4338, 1
        %v4719 = vrot.slane %v4339, 1
        %v4720 = vsel %vm4609, %v4718, %v4719
        %v4721 = vrot.slane %v4340, 1
        %v4722 = vsel %vm4609, %v4719, %v4721
        %v4723 = vrot.slane %v4341, 1
        %v4724 = vsel %vm4609, %v4721, %v4723
        %v4725 = vrot.slane %v4342, 1
        %v4726 = vsel %vm4609, %v4723, %v4725
        %v4727 = vrot.slane %v4343, 1
        %v4728 = vrot.slane %v4344, 1
        %v4729 = vsel %vm4609, %v4727, %v4728
        %v4730 = vrot.slane %v4345, 1
        %v4731 = vsel %vm4609, %v4728, %v4730
        %v4732 = vrot.slane %v4346, 1
        %v4733 = vsel %vm4609, %v4730, %v4732
        %v4734 = vrot.slane %v4347, 1
        %v4735 = vsel %vm4609, %v4732, %v4734
        %v4736 = vrot.slane %v4348, 1
        %v4737 = vrot.slane %v4349, 1
        %v4738 = vsel %vm4609, %v4736, %v4737
        %v4739 = vrot.slane %v4350, 1
        %v4740 = vsel %vm4609, %v4737, %v4739
        %v4741 = vrot.slane %v4351, 1
        %v4742 = vsel %vm4609, %v4739, %v4741
        %v4743 = vrot.slane %v4352, 1
        %v4744 = vsel %vm4609, %v4741, %v4743
        %v4745 = vrot.slane %v4353, 1
        %v4746 = vrot.slane %v4354, 1
        %v4747 = vsel %vm4609, %v4745, %v4746
        %v4748 = vrot.slane %v4355, 1
        %v4749 = vsel %vm4609, %v4746, %v4748
        %v4750 = vrot.slane %v4356, 1
        %v4751 = vsel %vm4609, %v4748, %v4750
        %v4752 = vrot.slane %v4357, 1
        %v4753 = vsel %vm4609, %v4750, %v4752
        %v4754 = vrot.slane %v4358, 1
        %v4755 = vrot.slane %v4359, 1
        %v4756 = vsel %vm4609, %v4754, %v4755
        %v4757 = vrot.slane %v4360, 1
        %v4758 = vsel %vm4609, %v4755, %v4757
        %v4759 = vrot.slane %v4361, 1
        %v4760 = vsel %vm4609, %v4757, %v4759
        %v4761 = vrot.slane %v4362, 1
        %v4762 = vsel %vm4609, %v4759, %v4761
        %v4763 = vrot.slane %v4363, 1
        %v4764 = vrot.slane %v4364, 1
        %v4765 = vsel %vm4609, %v4763, %v4764
        %v4766 = vrot.slane %v4365, 1
        %v4767 = vsel %vm4609, %v4764, %v4766
        %v4768 = vrot.slane %v4366, 1
        %v4769 = vsel %vm4609, %v4766, %v4768
        %v4770 = vrot.slane %v4367, 1
        %v4771 = vsel %vm4609, %v4768, %v4770
        %v4772 = vrot.slane %v4368, 1
        %v4773 = vrot.slane %v4369, 1
        %v4774 = vsel %vm4609, %v4772, %v4773
        %v4775 = vrot.slane %v4370, 1
        %v4776 = vsel %vm4609, %v4773, %v4775
        %v4777 = vrot.slane %v4371, 1
        %v4778 = vsel %vm4609, %v4775, %v4777
        %v4779 = vrot.slane %v4372, 1
        %v4780 = vsel %vm4609, %v4777, %v4779
        %v4781 = vrot.slane %v4373, 1
        %v4782 = vrot.slane %v4374, 1
        %v4783 = vsel %vm4609, %v4781, %v4782
        %v4784 = vrot.slane %v4375, 1
        %v4785 = vsel %vm4609, %v4782, %v4784
        %v4786 = vrot.slane %v4376, 1
        %v4787 = vsel %vm4609, %v4784, %v4786
        %v4788 = vrot.slane %v4377, 1
        %v4789 = vsel %vm4609, %v4786, %v4788
        %v4790 = vrot.slane %v4378, 1
        %v4791 = vrot.slane %v4379, 1
        %v4792 = vsel %vm4609, %v4790, %v4791
        %v4793 = vrot.slane %v4380, 1
        %v4794 = vsel %vm4609, %v4791, %v4793
        %v4795 = vrot.slane %v4381, 1
        %v4796 = vsel %vm4609, %v4793, %v4795
        %v4797 = vrot.slane %v4382, 1
        %v4798 = vsel %vm4609, %v4795, %v4797
        %v4799 = vrot.slane %v4383, 1
        %v4800 = vrot.slane %v4384, 1
        %v4801 = vsel %vm4609, %v4799, %v4800
        %v4802 = vrot.slane %v4385, 1
        %v4803 = vsel %vm4609, %v4800, %v4802
        %v4804 = vrot.slane %v4386, 1
        %v4805 = vsel %vm4609, %v4802, %v4804
        %v4806 = vrot.slane %v4387, 1
        %v4807 = vsel %vm4609, %v4804, %v4806
        %v4808 = vrot.slane %v4388, 1
        %v4809 = vrot.slane %v4389, 1
        %v4810 = vsel %vm4609, %v4808, %v4809
        %v4811 = vrot.slane %v4390, 1
        %v4812 = vsel %vm4609, %v4809, %v4811
        %v4813 = vrot.slane %v4391, 1
        %v4814 = vsel %vm4609, %v4811, %v4813
        %v4815 = vrot.slane %v4392, 1
        %v4816 = vsel %vm4609, %v4813, %v4815
        %v4817 = vrot.slane %v4393, 1
        %v4818 = vrot.slane %v4394, 1
        %v4819 = vsel %vm4609, %v4817, %v4818
        %v4820 = vrot.slane %v4395, 1
        %v4821 = vsel %vm4609, %v4818, %v4820
        %v4822 = vrot.slane %v4396, 1
        %v4823 = vsel %vm4609, %v4820, %v4822
        %v4824 = vrot.slane %v4397, 1
        %v4825 = vsel %vm4609, %v4822, %v4824
        %v4826 = vrot.slane %v4398, 1
        %v4827 = vrot.slane %v4399, 1
        %v4828 = vsel %vm4609, %v4826, %v4827
        %v4829 = vrot.slane %v4400, 1
        %v4830 = vsel %vm4609, %v4827, %v4829
        %v4831 = vrot.slane %v4401, 1
        %v4832 = vsel %vm4609, %v4829, %v4831
        %v4833 = vrot.slane %v4402, 1
        %v4834 = vsel %vm4609, %v4831, %v4833
        %v4835 = vrot.slane %v4403, 1
        %v4836 = vrot.slane %v4404, 1
        %v4837 = vsel %vm4609, %v4835, %v4836
        %v4838 = vrot.slane %v4405, 1
        %v4839 = vsel %vm4609, %v4836, %v4838
        %v4840 = vrot.slane %v4406, 1
        %v4841 = vsel %vm4609, %v4838, %v4840
        %v4842 = vrot.slane %v4407, 1
        %v4843 = vsel %vm4609, %v4840, %v4842
        %v4844 = vrot.slane %v4408, 1
        %v4845 = vrot.slane %v4409, 1
        %v4846 = vsel %vm4609, %v4844, %v4845
        %v4847 = vrot.slane %v4410, 1
        %v4848 = vsel %vm4609, %v4845, %v4847
        %v4849 = vrot.slane %v4411, 1
        %v4850 = vsel %vm4609, %v4847, %v4849
        %v4851 = vrot.slane %v4412, 1
        %v4852 = vsel %vm4609, %v4849, %v4851
        %v4853 = vrot.slane %v4413, 1
        %v4854 = vrot.slane %v4414, 1
        %v4855 = vsel %vm4609, %v4853, %v4854
        %v4856 = vrot.slane %v4415, 1
        %v4857 = vsel %vm4609, %v4854, %v4856
        %v4858 = vrot.slane %v4416, 1
        %v4859 = vsel %vm4609, %v4856, %v4858
        %v4860 = vrot.slane %v4417, 1
        %v4861 = vsel %vm4609, %v4858, %v4860
        %v4862 = vrot.slane %v4418, 1
        %v4863 = vrot.slane %v4419, 1
        %v4864 = vsel %vm4609, %v4862, %v4863
        %v4865 = vrot.slane %v4420, 1
        %v4866 = vsel %vm4609, %v4863, %v4865
        %v4867 = vrot.slane %v4421, 1
        %v4868 = vsel %vm4609, %v4865, %v4867
        %v4869 = vrot.slane %v4422, 1
        %v4870 = vsel %vm4609, %v4867, %v4869
        %v4871 = vrot.slane %v4423, 1
        %v4872 = vrot.slane %v4424, 1
        %v4873 = vsel %vm4609, %v4871, %v4872
        %v4874 = vrot.slane %v4425, 1
        %v4875 = vsel %vm4609, %v4872, %v4874
        %v4876 = vrot.slane %v4426, 1
        %v4877 = vsel %vm4609, %v4874, %v4876
        %v4878 = vrot.slane %v4427, 1
        %v4879 = vsel %vm4609, %v4876, %v4878
        %v4880 = vrot.slane %v4428, 1
        %v4881 = vrot.slane %v4429, 1
        %v4882 = vsel %vm4609, %v4880, %v4881
        %v4883 = vrot.slane %v4430, 1
        %v4884 = vsel %vm4609, %v4881, %v4883
        %v4885 = vrot.slane %v4431, 1
        %v4886 = vsel %vm4609, %v4883, %v4885
        %v4887 = vrot.slane %v4432, 1
        %v4888 = vsel %vm4609, %v4885, %v4887
        %v4889 = vrot.slane %v4433, 1
        %v4890 = vrot.slane %v4434, 1
        %v4891 = vsel %vm4609, %v4889, %v4890
        %v4892 = vrot.slane %v4435, 1
        %v4893 = vsel %vm4609, %v4890, %v4892
        %v4894 = vrot.slane %v4436, 1
        %v4895 = vsel %vm4609, %v4892, %v4894
        %v4896 = vrot.slane %v4437, 1
        %v4897 = vsel %vm4609, %v4894, %v4896
        %s4898 = scalar_lea.vmem %s1, 8
        %v4899 = vld [vmem:[%s4898] sm:$0xff]
        %v4901 = vsel %vm2825, %v4899, 0
        %v4903 = vsel %vm2825, %v4612, 0
        %v4905 = vsel %vm2825, %v4614, 0
        %v4907 = vsel %vm2825, %v4616, 0
        %v4909 = vsel %vm2825, %v4618, 0
        %v4911 = vsel %vm2825, %v4621, 0
        %v4913 = vsel %vm2825, %v4623, 0
        %v4915 = vsel %vm2825, %v4625, 0
        %v4917 = vsel %vm2825, %v4627, 0
        %v4919 = vsel %vm2825, %v4630, 0
        %v4921 = vsel %vm2825, %v4632, 0
        %v4923 = vsel %vm2825, %v4634, 0
        %v4925 = vsel %vm2825, %v4636, 0
        %v4927 = vsel %vm2825, %v4639, 0
        %v4929 = vsel %vm2825, %v4641, 0
        %v4931 = vsel %vm2825, %v4643, 0
        %v4933 = vsel %vm2825, %v4645, 0
        %v4935 = vsel %vm2825, %v4648, 0
        %v4937 = vsel %vm2825, %v4650, 0
        %v4939 = vsel %vm2825, %v4652, 0
        %v4941 = vsel %vm2825, %v4654, 0
        %v4943 = vsel %vm2825, %v4657, 0
        %v4945 = vsel %vm2825, %v4659, 0
        %v4947 = vsel %vm2825, %v4661, 0
        %v4949 = vsel %vm2825, %v4663, 0
        %v4951 = vsel %vm2825, %v4666, 0
        %v4953 = vsel %vm2825, %v4668, 0
        %v4955 = vsel %vm2825, %v4670, 0
        %v4957 = vsel %vm2825, %v4672, 0
        %v4959 = vsel %vm2825, %v4675, 0
        %v4961 = vsel %vm2825, %v4677, 0
        %v4963 = vsel %vm2825, %v4679, 0
        %v4965 = vsel %vm2825, %v4681, 0
        %v4967 = vsel %vm2825, %v4684, 0
        %v4969 = vsel %vm2825, %v4686, 0
        %v4971 = vsel %vm2825, %v4688, 0
        %v4973 = vsel %vm2825, %v4690, 0
        %v4975 = vsel %vm2825, %v4693, 0
        %v4977 = vsel %vm2825, %v4695, 0
        %v4979 = vsel %vm2825, %v4697, 0
        %v4981 = vsel %vm2825, %v4699, 0
        %v4983 = vsel %vm2825, %v4702, 0
        %v4985 = vsel %vm2825, %v4704, 0
        %v4987 = vsel %vm2825, %v4706, 0
        %v4989 = vsel %vm2825, %v4708, 0
        %v4991 = vsel %vm2825, %v4711, 0
        %v4993 = vsel %vm2825, %v4713, 0
        %v4995 = vsel %vm2825, %v4715, 0
        %v4997 = vsel %vm2825, %v4717, 0
        %v4999 = vsel %vm2825, %v4720, 0
        %v5001 = vsel %vm2825, %v4722, 0
        %v5003 = vsel %vm2825, %v4724, 0
        %v5005 = vsel %vm2825, %v4726, 0
        %v5007 = vsel %vm2825, %v4729, 0
        %v5009 = vsel %vm2825, %v4731, 0
        %v5011 = vsel %vm2825, %v4733, 0
        %v5013 = vsel %vm2825, %v4735, 0
        %v5015 = vsel %vm2825, %v4738, 0
        %v5017 = vsel %vm2825, %v4740, 0
        %v5019 = vsel %vm2825, %v4742, 0
        %v5021 = vsel %vm2825, %v4744, 0
        %v5023 = vsel %vm2825, %v4747, 0
        %v5025 = vsel %vm2825, %v4749, 0
        %v5027 = vsel %vm2825, %v4751, 0
        %v5029 = vsel %vm2825, %v4753, 0
        %v5031 = vsel %vm2825, %v4756, 0
        %v5033 = vsel %vm2825, %v4758, 0
        %v5035 = vsel %vm2825, %v4760, 0
        %v5037 = vsel %vm2825, %v4762, 0
        %v5039 = vsel %vm2825, %v4765, 0
        %v5041 = vsel %vm2825, %v4767, 0
        %v5043 = vsel %vm2825, %v4769, 0
        %v5045 = vsel %vm2825, %v4771, 0
        %v5047 = vsel %vm2825, %v4774, 0
        %v5049 = vsel %vm2825, %v4776, 0
        %v5051 = vsel %vm2825, %v4778, 0
        %v5053 = vsel %vm2825, %v4780, 0
        %v5055 = vsel %vm2825, %v4783, 0
        %v5057 = vsel %vm2825, %v4785, 0
        %v5059 = vsel %vm2825, %v4787, 0
        %v5061 = vsel %vm2825, %v4789, 0
        %v5063 = vsel %vm2825, %v4792, 0
        %v5065 = vsel %vm2825, %v4794, 0
        %v5067 = vsel %vm2825, %v4796, 0
        %v5069 = vsel %vm2825, %v4798, 0
        %v5071 = vsel %vm2825, %v4801, 0
        %v5073 = vsel %vm2825, %v4803, 0
        %v5075 = vsel %vm2825, %v4805, 0
        %v5077 = vsel %vm2825, %v4807, 0
        %v5079 = vsel %vm2825, %v4810, 0
        %v5081 = vsel %vm2825, %v4812, 0
        %v5083 = vsel %vm2825, %v4814, 0
        %v5085 = vsel %vm2825, %v4816, 0
        %v5087 = vsel %vm2825, %v4819, 0
        %v5089 = vsel %vm2825, %v4821, 0
        %v5091 = vsel %vm2825, %v4823, 0
        %v5093 = vsel %vm2825, %v4825, 0
        %v5095 = vsel %vm2825, %v4828, 0
        %v5097 = vsel %vm2825, %v4830, 0
        %v5099 = vsel %vm2825, %v4832, 0
        %v5101 = vsel %vm2825, %v4834, 0
        %v5103 = vsel %vm2825, %v4837, 0
        %v5105 = vsel %vm2825, %v4839, 0
        %v5107 = vsel %vm2825, %v4841, 0
        %v5109 = vsel %vm2825, %v4843, 0
        %v5111 = vsel %vm2825, %v4846, 0
        %v5113 = vsel %vm2825, %v4848, 0
        %v5115 = vsel %vm2825, %v4850, 0
        %v5117 = vsel %vm2825, %v4852, 0
        %v5119 = vsel %vm2825, %v4855, 0
        %v5121 = vsel %vm2825, %v4857, 0
        %v5123 = vsel %vm2825, %v4859, 0
        %v5125 = vsel %vm2825, %v4861, 0
        %v5127 = vsel %vm2825, %v4864, 0
        %v5129 = vsel %vm2825, %v4866, 0
        %v5131 = vsel %vm2825, %v4868, 0
        %v5133 = vsel %vm2825, %v4870, 0
        %v5135 = vsel %vm2825, %v4873, 0
        %v5137 = vsel %vm2825, %v4875, 0
        %v5139 = vsel %vm2825, %v4877, 0
        %v5141 = vsel %vm2825, %v4879, 0
        %v5143 = vsel %vm2825, %v4882, 0
        %v5145 = vsel %vm2825, %v4884, 0
        %v5147 = vsel %vm2825, %v4886, 0
        %v5149 = vsel %vm2825, %v4888, 0
        %v5151 = vsel %vm2825, %v4891, 0
        %v5153 = vsel %vm2825, %v4893, 0
        %v5155 = vsel %vm2825, %v4895, 0
        %v5157 = vsel %vm2825, %v4897, 0
        %5159 = vmatprep.subr.mxu0 0.0
        %5160 = vmatpush1.xpose.msra.mxu0 %v4903
        %5161 = vmatprep.subr.mxu0 0.0
        %5162 = vmatpush1.xpose.msra.mxu0 %v4905
        %5163 = vmatprep.subr.mxu0 0.0
        %5164 = vmatpush1.xpose.msra.mxu0 %v4907
        %5165 = vmatprep.subr.mxu0 0.0
        %5166 = vmatpush1.xpose.msra.mxu0 %v4909
        %5167 = vmatprep.subr.mxu0 0.0
        %5168 = vmatpush1.xpose.msra.mxu0 %v4911
        %5169 = vmatprep.subr.mxu0 0.0
        %5170 = vmatpush1.xpose.msra.mxu0 %v4913
        %5171 = vmatprep.subr.mxu0 0.0
        %5172 = vmatpush1.xpose.msra.mxu0 %v4915
        %5173 = vmatprep.subr.mxu0 0.0
        %5174 = vmatpush1.xpose.msra.mxu0 %v4917
        %5175 = vmatprep.subr.mxu0 0.0
        %5176 = vmatpush1.xpose.msra.mxu0 %v4919
        %5177 = vmatprep.subr.mxu0 0.0
        %5178 = vmatpush1.xpose.msra.mxu0 %v4921
        %5179 = vmatprep.subr.mxu0 0.0
        %5180 = vmatpush1.xpose.msra.mxu0 %v4923
        %5181 = vmatprep.subr.mxu0 0.0
        %5182 = vmatpush1.xpose.msra.mxu0 %v4925
        %5183 = vmatprep.subr.mxu0 0.0
        %5184 = vmatpush1.xpose.msra.mxu0 %v4927
        %5185 = vmatprep.subr.mxu0 0.0
        %5186 = vmatpush1.xpose.msra.mxu0 %v4929
        %5187 = vmatprep.subr.mxu0 0.0
        %5188 = vmatpush1.xpose.msra.mxu0 %v4931
        %5189 = vmatprep.subr.mxu0 0.0
        %5190 = vmatpush1.xpose.msra.mxu0 %v4933
        %5191 = vmatprep.subr.mxu0 0.0
        %5192 = vmatpush1.xpose.msra.mxu0 %v4935
        %5193 = vmatprep.subr.mxu0 0.0
        %5194 = vmatpush1.xpose.msra.mxu0 %v4937
        %5195 = vmatprep.subr.mxu0 0.0
        %5196 = vmatpush1.xpose.msra.mxu0 %v4939
        %5197 = vmatprep.subr.mxu0 0.0
        %5198 = vmatpush1.xpose.msra.mxu0 %v4941
        %5199 = vmatprep.subr.mxu0 0.0
        %5200 = vmatpush1.xpose.msra.mxu0 %v4943
        %5201 = vmatprep.subr.mxu0 0.0
        %5202 = vmatpush1.xpose.msra.mxu0 %v4945
        %5203 = vmatprep.subr.mxu0 0.0
        %5204 = vmatpush1.xpose.msra.mxu0 %v4947
        %5205 = vmatprep.subr.mxu0 0.0
        %5206 = vmatpush1.xpose.msra.mxu0 %v4949
        %5207 = vmatprep.subr.mxu0 0.0
        %5208 = vmatpush1.xpose.msra.mxu0 %v4951
        %5209 = vmatprep.subr.mxu0 0.0
        %5210 = vmatpush1.xpose.msra.mxu0 %v4953
        %5211 = vmatprep.subr.mxu0 0.0
        %5212 = vmatpush1.xpose.msra.mxu0 %v4955
        %5213 = vmatprep.subr.mxu0 0.0
        %5214 = vmatpush1.xpose.msra.mxu0 %v4957
        %5215 = vmatprep.subr.mxu0 0.0
        %5216 = vmatpush1.xpose.msra.mxu0 %v4959
        %5217 = vmatprep.subr.mxu0 0.0
        %5218 = vmatpush1.xpose.msra.mxu0 %v4961
        %5219 = vmatprep.subr.mxu0 0.0
        %5220 = vmatpush1.xpose.msra.mxu0 %v4963
        %5221 = vmatprep.subr.mxu0 0.0
        %5222 = vmatpush1.xpose.msra.mxu0 %v4965
        %5223 = vmatprep.mubr.f32.mxu0 0.0
        %5224 = vmatmul.mubr.f32.gmra.mrb[0].mxu0 %v4901
        %v5225 = vpop.f32.mrb[0].mxu0
        %v5226 = vadd.f32 0.0, %v5225
        %v5227 = vpop.f32.mrb[0].mxu0
        %v5228 = vadd.f32 0.0, %v5227
        %5229 = vdwg.mxu0
        %5230 = vmatprep.subr.mxu0 0.0
        %5231 = vmatpush1.xpose.msra.mxu0 %v4967
        %5232 = vmatprep.subr.mxu0 0.0
        %5233 = vmatpush1.xpose.msra.mxu0 %v4969
        %5234 = vmatprep.subr.mxu0 0.0
        %5235 = vmatpush1.xpose.msra.mxu0 %v4971
        %5236 = vmatprep.subr.mxu0 0.0
        %5237 = vmatpush1.xpose.msra.mxu0 %v4973
        %5238 = vmatprep.subr.mxu0 0.0
        %5239 = vmatpush1.xpose.msra.mxu0 %v4975
        %5240 = vmatprep.subr.mxu0 0.0
        %5241 = vmatpush1.xpose.msra.mxu0 %v4977
        %5242 = vmatprep.subr.mxu0 0.0
        %5243 = vmatpush1.xpose.msra.mxu0 %v4979
        %5244 = vmatprep.subr.mxu0 0.0
        %5245 = vmatpush1.xpose.msra.mxu0 %v4981
        %5246 = vmatprep.subr.mxu0 0.0
        %5247 = vmatpush1.xpose.msra.mxu0 %v4983
        %5248 = vmatprep.subr.mxu0 0.0
        %5249 = vmatpush1.xpose.msra.mxu0 %v4985
        %5250 = vmatprep.subr.mxu0 0.0
        %5251 = vmatpush1.xpose.msra.mxu0 %v4987
        %5252 = vmatprep.subr.mxu0 0.0
        %5253 = vmatpush1.xpose.msra.mxu0 %v4989
        %5254 = vmatprep.subr.mxu0 0.0
        %5255 = vmatpush1.xpose.msra.mxu0 %v4991
        %5256 = vmatprep.subr.mxu0 0.0
        %5257 = vmatpush1.xpose.msra.mxu0 %v4993
        %5258 = vmatprep.subr.mxu0 0.0
        %5259 = vmatpush1.xpose.msra.mxu0 %v4995
        %5260 = vmatprep.subr.mxu0 0.0
        %5261 = vmatpush1.xpose.msra.mxu0 %v4997
        %5262 = vmatprep.subr.mxu0 0.0
        %5263 = vmatpush1.xpose.msra.mxu0 %v4999
        %5264 = vmatprep.subr.mxu0 0.0
        %5265 = vmatpush1.xpose.msra.mxu0 %v5001
        %5266 = vmatprep.subr.mxu0 0.0
        %5267 = vmatpush1.xpose.msra.mxu0 %v5003
        %5268 = vmatprep.subr.mxu0 0.0
        %5269 = vmatpush1.xpose.msra.mxu0 %v5005
        %5270 = vmatprep.subr.mxu0 0.0
        %5271 = vmatpush1.xpose.msra.mxu0 %v5007
        %5272 = vmatprep.subr.mxu0 0.0
        %5273 = vmatpush1.xpose.msra.mxu0 %v5009
        %5274 = vmatprep.subr.mxu0 0.0
        %5275 = vmatpush1.xpose.msra.mxu0 %v5011
        %5276 = vmatprep.subr.mxu0 0.0
        %5277 = vmatpush1.xpose.msra.mxu0 %v5013
        %5278 = vmatprep.subr.mxu0 0.0
        %5279 = vmatpush1.xpose.msra.mxu0 %v5015
        %5280 = vmatprep.subr.mxu0 0.0
        %5281 = vmatpush1.xpose.msra.mxu0 %v5017
        %5282 = vmatprep.subr.mxu0 0.0
        %5283 = vmatpush1.xpose.msra.mxu0 %v5019
        %5284 = vmatprep.subr.mxu0 0.0
        %5285 = vmatpush1.xpose.msra.mxu0 %v5021
        %5286 = vmatprep.subr.mxu0 0.0
        %5287 = vmatpush1.xpose.msra.mxu0 %v5023
        %5288 = vmatprep.subr.mxu0 0.0
        %5289 = vmatpush1.xpose.msra.mxu0 %v5025
        %5290 = vmatprep.subr.mxu0 0.0
        %5291 = vmatpush1.xpose.msra.mxu0 %v5027
        %5292 = vmatprep.subr.mxu0 0.0
        %5293 = vmatpush1.xpose.msra.mxu0 %v5029
        %5294 = vmatprep.mubr.f32.mxu0 0.0
        %5295 = vmatmul.mubr.f32.gmra.mrb[0].mxu0 %v4901
        %v5296 = vpop.f32.mrb[0].mxu0
        %v5297 = vadd.f32 0.0, %v5296
        %v5298 = vpop.f32.mrb[0].mxu0
        %v5299 = vadd.f32 0.0, %v5298
        %5300 = vdwg.mxu0
        %5301 = vmatprep.subr.mxu0 0.0
        %5302 = vmatpush1.xpose.msra.mxu0 %v5031
        %5303 = vmatprep.subr.mxu0 0.0
        %5304 = vmatpush1.xpose.msra.mxu0 %v5033
        %5305 = vmatprep.subr.mxu0 0.0
        %5306 = vmatpush1.xpose.msra.mxu0 %v5035
        %5307 = vmatprep.subr.mxu0 0.0
        %5308 = vmatpush1.xpose.msra.mxu0 %v5037
        %5309 = vmatprep.subr.mxu0 0.0
        %5310 = vmatpush1.xpose.msra.mxu0 %v5039
        %5311 = vmatprep.subr.mxu0 0.0
        %5312 = vmatpush1.xpose.msra.mxu0 %v5041
        %5313 = vmatprep.subr.mxu0 0.0
        %5314 = vmatpush1.xpose.msra.mxu0 %v5043
        %5315 = vmatprep.subr.mxu0 0.0
        %5316 = vmatpush1.xpose.msra.mxu0 %v5045
        %5317 = vmatprep.subr.mxu0 0.0
        %5318 = vmatpush1.xpose.msra.mxu0 %v5047
        %5319 = vmatprep.subr.mxu0 0.0
        %5320 = vmatpush1.xpose.msra.mxu0 %v5049
        %5321 = vmatprep.subr.mxu0 0.0
        %5322 = vmatpush1.xpose.msra.mxu0 %v5051
        %5323 = vmatprep.subr.mxu0 0.0
        %5324 = vmatpush1.xpose.msra.mxu0 %v5053
        %5325 = vmatprep.subr.mxu0 0.0
        %5326 = vmatpush1.xpose.msra.mxu0 %v5055
        %5327 = vmatprep.subr.mxu0 0.0
        %5328 = vmatpush1.xpose.msra.mxu0 %v5057
        %5329 = vmatprep.subr.mxu0 0.0
        %5330 = vmatpush1.xpose.msra.mxu0 %v5059
        %5331 = vmatprep.subr.mxu0 0.0
        %5332 = vmatpush1.xpose.msra.mxu0 %v5061
        %5333 = vmatprep.subr.mxu0 0.0
        %5334 = vmatpush1.xpose.msra.mxu0 %v5063
        %5335 = vmatprep.subr.mxu0 0.0
        %5336 = vmatpush1.xpose.msra.mxu0 %v5065
        %5337 = vmatprep.subr.mxu0 0.0
        %5338 = vmatpush1.xpose.msra.mxu0 %v5067
        %5339 = vmatprep.subr.mxu0 0.0
        %5340 = vmatpush1.xpose.msra.mxu0 %v5069
        %5341 = vmatprep.subr.mxu0 0.0
        %5342 = vmatpush1.xpose.msra.mxu0 %v5071
        %5343 = vmatprep.subr.mxu0 0.0
        %5344 = vmatpush1.xpose.msra.mxu0 %v5073
        %5345 = vmatprep.subr.mxu0 0.0
        %5346 = vmatpush1.xpose.msra.mxu0 %v5075
        %5347 = vmatprep.subr.mxu0 0.0
        %5348 = vmatpush1.xpose.msra.mxu0 %v5077
        %5349 = vmatprep.subr.mxu0 0.0
        %5350 = vmatpush1.xpose.msra.mxu0 %v5079
        %5351 = vmatprep.subr.mxu0 0.0
        %5352 = vmatpush1.xpose.msra.mxu0 %v5081
        %5353 = vmatprep.subr.mxu0 0.0
        %5354 = vmatpush1.xpose.msra.mxu0 %v5083
        %5355 = vmatprep.subr.mxu0 0.0
        %5356 = vmatpush1.xpose.msra.mxu0 %v5085
        %5357 = vmatprep.subr.mxu0 0.0
        %5358 = vmatpush1.xpose.msra.mxu0 %v5087
        %5359 = vmatprep.subr.mxu0 0.0
        %5360 = vmatpush1.xpose.msra.mxu0 %v5089
        %5361 = vmatprep.subr.mxu0 0.0
        %5362 = vmatpush1.xpose.msra.mxu0 %v5091
        %5363 = vmatprep.subr.mxu0 0.0
        %5364 = vmatpush1.xpose.msra.mxu0 %v5093
        %5365 = vmatprep.mubr.f32.mxu0 0.0
        %5366 = vmatmul.mubr.f32.gmra.mrb[0].mxu0 %v4901
        %v5367 = vpop.f32.mrb[0].mxu0
        %v5368 = vadd.f32 0.0, %v5367
        %v5369 = vpop.f32.mrb[0].mxu0
        %v5370 = vadd.f32 0.0, %v5369
        %5371 = vdwg.mxu0
        %5372 = vmatprep.subr.mxu0 0.0
        %5373 = vmatpush1.xpose.msra.mxu0 %v5095
        %5374 = vmatprep.subr.mxu0 0.0
        %5375 = vmatpush1.xpose.msra.mxu0 %v5097
        %5376 = vmatprep.subr.mxu0 0.0
        %5377 = vmatpush1.xpose.msra.mxu0 %v5099
        %5378 = vmatprep.subr.mxu0 0.0
        %5379 = vmatpush1.xpose.msra.mxu0 %v5101
        %5380 = vmatprep.subr.mxu0 0.0
        %5381 = vmatpush1.xpose.msra.mxu0 %v5103
        %5382 = vmatprep.subr.mxu0 0.0
        %5383 = vmatpush1.xpose.msra.mxu0 %v5105
        %5384 = vmatprep.subr.mxu0 0.0
        %5385 = vmatpush1.xpose.msra.mxu0 %v5107
        %5386 = vmatprep.subr.mxu0 0.0
        %5387 = vmatpush1.xpose.msra.mxu0 %v5109
        %5388 = vmatprep.subr.mxu0 0.0
        %5389 = vmatpush1.xpose.msra.mxu0 %v5111
        %5390 = vmatprep.subr.mxu0 0.0
        %5391 = vmatpush1.xpose.msra.mxu0 %v5113
        %5392 = vmatprep.subr.mxu0 0.0
        %5393 = vmatpush1.xpose.msra.mxu0 %v5115
        %5394 = vmatprep.subr.mxu0 0.0
        %5395 = vmatpush1.xpose.msra.mxu0 %v5117
        %5396 = vmatprep.subr.mxu0 0.0
        %5397 = vmatpush1.xpose.msra.mxu0 %v5119
        %5398 = vmatprep.subr.mxu0 0.0
        %5399 = vmatpush1.xpose.msra.mxu0 %v5121
        %5400 = vmatprep.subr.mxu0 0.0
        %5401 = vmatpush1.xpose.msra.mxu0 %v5123
        %5402 = vmatprep.subr.mxu0 0.0
        %5403 = vmatpush1.xpose.msra.mxu0 %v5125
        %5404 = vmatprep.subr.mxu0 0.0
        %5405 = vmatpush1.xpose.msra.mxu0 %v5127
        %5406 = vmatprep.subr.mxu0 0.0
        %5407 = vmatpush1.xpose.msra.mxu0 %v5129
        %5408 = vmatprep.subr.mxu0 0.0
        %5409 = vmatpush1.xpose.msra.mxu0 %v5131
        %5410 = vmatprep.subr.mxu0 0.0
        %5411 = vmatpush1.xpose.msra.mxu0 %v5133
        %5412 = vmatprep.subr.mxu0 0.0
        %5413 = vmatpush1.xpose.msra.mxu0 %v5135
        %5414 = vmatprep.subr.mxu0 0.0
        %5415 = vmatpush1.xpose.msra.mxu0 %v5137
        %5416 = vmatprep.subr.mxu0 0.0
        %5417 = vmatpush1.xpose.msra.mxu0 %v5139
        %5418 = vmatprep.subr.mxu0 0.0
        %5419 = vmatpush1.xpose.msra.mxu0 %v5141
        %5420 = vmatprep.subr.mxu0 0.0
        %5421 = vmatpush1.xpose.msra.mxu0 %v5143
        %5422 = vmatprep.subr.mxu0 0.0
        %5423 = vmatpush1.xpose.msra.mxu0 %v5145
        %5424 = vmatprep.subr.mxu0 0.0
        %5425 = vmatpush1.xpose.msra.mxu0 %v5147
        %5426 = vmatprep.subr.mxu0 0.0
        %5427 = vmatpush1.xpose.msra.mxu0 %v5149
        %5428 = vmatprep.subr.mxu0 0.0
        %5429 = vmatpush1.xpose.msra.mxu0 %v5151
        %5430 = vmatprep.subr.mxu0 0.0
        %5431 = vmatpush1.xpose.msra.mxu0 %v5153
        %5432 = vmatprep.subr.mxu0 0.0
        %5433 = vmatpush1.xpose.msra.mxu0 %v5155
        %5434 = vmatprep.subr.mxu0 0.0
        %5435 = vmatpush1.xpose.msra.mxu0 %v5157
        %5436 = vmatprep.mubr.f32.mxu0 0.0
        %5437 = vmatmul.mubr.f32.gmra.mrb[0].mxu0 %v4901
        %v5438 = vpop.f32.mrb[0].mxu0
        %v5439 = vadd.f32 0.0, %v5438
        %v5440 = vpop.f32.mrb[0].mxu0
        %v5441 = vadd.f32 0.0, %v5440
        %5442 = vdwg.mxu0
        %v5444 = vsel %vm2825, %v4448, 0
        %v5446 = vsel %vm2825, %v4278, 0
        %v5448 = vsel %vm2825, %v4279, 0
        %v5450 = vsel %vm2825, %v4280, 0
        %v5452 = vsel %vm2825, %v4281, 0
        %v5454 = vsel %vm2825, %v4283, 0
        %v5456 = vsel %vm2825, %v4284, 0
        %v5458 = vsel %vm2825, %v4285, 0
        %v5460 = vsel %vm2825, %v4286, 0
        %v5462 = vsel %vm2825, %v4288, 0
        %v5464 = vsel %vm2825, %v4289, 0
        %v5466 = vsel %vm2825, %v4290, 0
        %v5468 = vsel %vm2825, %v4291, 0
        %v5470 = vsel %vm2825, %v4293, 0
        %v5472 = vsel %vm2825, %v4294, 0
        %v5474 = vsel %vm2825, %v4295, 0
        %v5476 = vsel %vm2825, %v4296, 0
        %v5478 = vsel %vm2825, %v4298, 0
        %v5480 = vsel %vm2825, %v4299, 0
        %v5482 = vsel %vm2825, %v4300, 0
        %v5484 = vsel %vm2825, %v4301, 0
        %v5486 = vsel %vm2825, %v4303, 0
        %v5488 = vsel %vm2825, %v4304, 0
        %v5490 = vsel %vm2825, %v4305, 0
        %v5492 = vsel %vm2825, %v4306, 0
        %v5494 = vsel %vm2825, %v4308, 0
        %v5496 = vsel %vm2825, %v4309, 0
        %v5498 = vsel %vm2825, %v4310, 0
        %v5500 = vsel %vm2825, %v4311, 0
        %v5502 = vsel %vm2825, %v4313, 0
        %v5504 = vsel %vm2825, %v4314, 0
        %v5506 = vsel %vm2825, %v4315, 0
        %v5508 = vsel %vm2825, %v4316, 0
        %v5510 = vsel %vm2825, %v4318, 0
        %v5512 = vsel %vm2825, %v4319, 0
        %v5514 = vsel %vm2825, %v4320, 0
        %v5516 = vsel %vm2825, %v4321, 0
        %v5518 = vsel %vm2825, %v4323, 0
        %v5520 = vsel %vm2825, %v4324, 0
        %v5522 = vsel %vm2825, %v4325, 0
        %v5524 = vsel %vm2825, %v4326, 0
        %v5526 = vsel %vm2825, %v4328, 0
        %v5528 = vsel %vm2825, %v4329, 0
        %v5530 = vsel %vm2825, %v4330, 0
        %v5532 = vsel %vm2825, %v4331, 0
        %v5534 = vsel %vm2825, %v4333, 0
        %v5536 = vsel %vm2825, %v4334, 0
        %v5538 = vsel %vm2825, %v4335, 0
        %v5540 = vsel %vm2825, %v4336, 0
        %v5542 = vsel %vm2825, %v4338, 0
        %v5544 = vsel %vm2825, %v4339, 0
        %v5546 = vsel %vm2825, %v4340, 0
        %v5548 = vsel %vm2825, %v4341, 0
        %v5550 = vsel %vm2825, %v4343, 0
        %v5552 = vsel %vm2825, %v4344, 0
        %v5554 = vsel %vm2825, %v4345, 0
        %v5556 = vsel %vm2825, %v4346, 0
        %v5558 = vsel %vm2825, %v4348, 0
        %v5560 = vsel %vm2825, %v4349, 0
        %v5562 = vsel %vm2825, %v4350, 0
        %v5564 = vsel %vm2825, %v4351, 0
        %v5566 = vsel %vm2825, %v4353, 0
        %v5568 = vsel %vm2825, %v4354, 0
        %v5570 = vsel %vm2825, %v4355, 0
        %v5572 = vsel %vm2825, %v4356, 0
        %v5574 = vsel %vm2825, %v4358, 0
        %v5576 = vsel %vm2825, %v4359, 0
        %v5578 = vsel %vm2825, %v4360, 0
        %v5580 = vsel %vm2825, %v4361, 0
        %v5582 = vsel %vm2825, %v4363, 0
        %v5584 = vsel %vm2825, %v4364, 0
        %v5586 = vsel %vm2825, %v4365, 0
        %v5588 = vsel %vm2825, %v4366, 0
        %v5590 = vsel %vm2825, %v4368, 0
        %v5592 = vsel %vm2825, %v4369, 0
        %v5594 = vsel %vm2825, %v4370, 0
        %v5596 = vsel %vm2825, %v4371, 0
        %v5598 = vsel %vm2825, %v4373, 0
        %v5600 = vsel %vm2825, %v4374, 0
        %v5602 = vsel %vm2825, %v4375, 0
        %v5604 = vsel %vm2825, %v4376, 0
        %v5606 = vsel %vm2825, %v4378, 0
        %v5608 = vsel %vm2825, %v4379, 0
        %v5610 = vsel %vm2825, %v4380, 0
        %v5612 = vsel %vm2825, %v4381, 0
        %v5614 = vsel %vm2825, %v4383, 0
        %v5616 = vsel %vm2825, %v4384, 0
        %v5618 = vsel %vm2825, %v4385, 0
        %v5620 = vsel %vm2825, %v4386, 0
        %v5622 = vsel %vm2825, %v4388, 0
        %v5624 = vsel %vm2825, %v4389, 0
        %v5626 = vsel %vm2825, %v4390, 0
        %v5628 = vsel %vm2825, %v4391, 0
        %v5630 = vsel %vm2825, %v4393, 0
        %v5632 = vsel %vm2825, %v4394, 0
        %v5634 = vsel %vm2825, %v4395, 0
        %v5636 = vsel %vm2825, %v4396, 0
        %v5638 = vsel %vm2825, %v4398, 0
        %v5640 = vsel %vm2825, %v4399, 0
        %v5642 = vsel %vm2825, %v4400, 0
        %v5644 = vsel %vm2825, %v4401, 0
        %v5646 = vsel %vm2825, %v4403, 0
        %v5648 = vsel %vm2825, %v4404, 0
        %v5650 = vsel %vm2825, %v4405, 0
        %v5652 = vsel %vm2825, %v4406, 0
        %v5654 = vsel %vm2825, %v4408, 0
        %v5656 = vsel %vm2825, %v4409, 0
        %v5658 = vsel %vm2825, %v4410, 0
        %v5660 = vsel %vm2825, %v4411, 0
        %v5662 = vsel %vm2825, %v4413, 0
        %v5664 = vsel %vm2825, %v4414, 0
        %v5666 = vsel %vm2825, %v4415, 0
        %v5668 = vsel %vm2825, %v4416, 0
        %v5670 = vsel %vm2825, %v4418, 0
        %v5672 = vsel %vm2825, %v4419, 0
        %v5674 = vsel %vm2825, %v4420, 0
        %v5676 = vsel %vm2825, %v4421, 0
        %v5678 = vsel %vm2825, %v4423, 0
        %v5680 = vsel %vm2825, %v4424, 0
        %v5682 = vsel %vm2825, %v4425, 0
        %v5684 = vsel %vm2825, %v4426, 0
        %v5686 = vsel %vm2825, %v4428, 0
        %v5688 = vsel %vm2825, %v4429, 0
        %v5690 = vsel %vm2825, %v4430, 0
        %v5692 = vsel %vm2825, %v4431, 0
        %v5694 = vsel %vm2825, %v4433, 0
        %v5696 = vsel %vm2825, %v4434, 0
        %v5698 = vsel %vm2825, %v4435, 0
        %v5700 = vsel %vm2825, %v4436, 0
        %5702 = vmatprep.subr.mxu0 0.0
        %5703 = vmatpush1.xpose.msra.mxu0 %v5446
        %5704 = vmatprep.subr.mxu0 0.0
        %5705 = vmatpush1.xpose.msra.mxu0 %v5448
        %5706 = vmatprep.subr.mxu0 0.0
        %5707 = vmatpush1.xpose.msra.mxu0 %v5450
        %5708 = vmatprep.subr.mxu0 0.0
        %5709 = vmatpush1.xpose.msra.mxu0 %v5452
        %5710 = vmatprep.subr.mxu0 0.0
        %5711 = vmatpush1.xpose.msra.mxu0 %v5454
        %5712 = vmatprep.subr.mxu0 0.0
        %5713 = vmatpush1.xpose.msra.mxu0 %v5456
        %5714 = vmatprep.subr.mxu0 0.0
        %5715 = vmatpush1.xpose.msra.mxu0 %v5458
        %5716 = vmatprep.subr.mxu0 0.0
        %5717 = vmatpush1.xpose.msra.mxu0 %v5460
        %5718 = vmatprep.subr.mxu0 0.0
        %5719 = vmatpush1.xpose.msra.mxu0 %v5462
        %5720 = vmatprep.subr.mxu0 0.0
        %5721 = vmatpush1.xpose.msra.mxu0 %v5464
        %5722 = vmatprep.subr.mxu0 0.0
        %5723 = vmatpush1.xpose.msra.mxu0 %v5466
        %5724 = vmatprep.subr.mxu0 0.0
        %5725 = vmatpush1.xpose.msra.mxu0 %v5468
        %5726 = vmatprep.subr.mxu0 0.0
        %5727 = vmatpush1.xpose.msra.mxu0 %v5470
        %5728 = vmatprep.subr.mxu0 0.0
        %5729 = vmatpush1.xpose.msra.mxu0 %v5472
        %5730 = vmatprep.subr.mxu0 0.0
        %5731 = vmatpush1.xpose.msra.mxu0 %v5474
        %5732 = vmatprep.subr.mxu0 0.0
        %5733 = vmatpush1.xpose.msra.mxu0 %v5476
        %5734 = vmatprep.subr.mxu0 0.0
        %5735 = vmatpush1.xpose.msra.mxu0 %v5478
        %5736 = vmatprep.subr.mxu0 0.0
        %5737 = vmatpush1.xpose.msra.mxu0 %v5480
        %5738 = vmatprep.subr.mxu0 0.0
        %5739 = vmatpush1.xpose.msra.mxu0 %v5482
        %5740 = vmatprep.subr.mxu0 0.0
        %5741 = vmatpush1.xpose.msra.mxu0 %v5484
        %5742 = vmatprep.subr.mxu0 0.0
        %5743 = vmatpush1.xpose.msra.mxu0 %v5486
        %5744 = vmatprep.subr.mxu0 0.0
        %5745 = vmatpush1.xpose.msra.mxu0 %v5488
        %5746 = vmatprep.subr.mxu0 0.0
        %5747 = vmatpush1.xpose.msra.mxu0 %v5490
        %5748 = vmatprep.subr.mxu0 0.0
        %5749 = vmatpush1.xpose.msra.mxu0 %v5492
        %5750 = vmatprep.subr.mxu0 0.0
        %5751 = vmatpush1.xpose.msra.mxu0 %v5494
        %5752 = vmatprep.subr.mxu0 0.0
        %5753 = vmatpush1.xpose.msra.mxu0 %v5496
        %5754 = vmatprep.subr.mxu0 0.0
        %5755 = vmatpush1.xpose.msra.mxu0 %v5498
        %5756 = vmatprep.subr.mxu0 0.0
        %5757 = vmatpush1.xpose.msra.mxu0 %v5500
        %5758 = vmatprep.subr.mxu0 0.0
        %5759 = vmatpush1.xpose.msra.mxu0 %v5502
        %5760 = vmatprep.subr.mxu0 0.0
        %5761 = vmatpush1.xpose.msra.mxu0 %v5504
        %5762 = vmatprep.subr.mxu0 0.0
        %5763 = vmatpush1.xpose.msra.mxu0 %v5506
        %5764 = vmatprep.subr.mxu0 0.0
        %5765 = vmatpush1.xpose.msra.mxu0 %v5508
        %5766 = vmatprep.mubr.f32.mxu0 0.0
        %5767 = vmatmul.mubr.f32.gmra.mrb[0].mxu0 %v5444
        %v5768 = vpop.f32.mrb[0].mxu0
        %v5769 = vadd.f32 %v5226, %v5768
        %v5770 = vpop.f32.mrb[0].mxu0
        %v5771 = vadd.f32 %v5228, %v5770
        %5772 = vdwg.mxu0
        %5773 = vmatprep.subr.mxu0 0.0
        %5774 = vmatpush1.xpose.msra.mxu0 %v5510
        %5775 = vmatprep.subr.mxu0 0.0
        %5776 = vmatpush1.xpose.msra.mxu0 %v5512
        %5777 = vmatprep.subr.mxu0 0.0
        %5778 = vmatpush1.xpose.msra.mxu0 %v5514
        %5779 = vmatprep.subr.mxu0 0.0
        %5780 = vmatpush1.xpose.msra.mxu0 %v5516
        %5781 = vmatprep.subr.mxu0 0.0
        %5782 = vmatpush1.xpose.msra.mxu0 %v5518
        %5783 = vmatprep.subr.mxu0 0.0
        %5784 = vmatpush1.xpose.msra.mxu0 %v5520
        %5785 = vmatprep.subr.mxu0 0.0
        %5786 = vmatpush1.xpose.msra.mxu0 %v5522
        %5787 = vmatprep.subr.mxu0 0.0
        %5788 = vmatpush1.xpose.msra.mxu0 %v5524
        %5789 = vmatprep.subr.mxu0 0.0
        %5790 = vmatpush1.xpose.msra.mxu0 %v5526
        %5791 = vmatprep.subr.mxu0 0.0
        %5792 = vmatpush1.xpose.msra.mxu0 %v5528
        %5793 = vmatprep.subr.mxu0 0.0
        %5794 = vmatpush1.xpose.msra.mxu0 %v5530
        %5795 = vmatprep.subr.mxu0 0.0
        %5796 = vmatpush1.xpose.msra.mxu0 %v5532
        %5797 = vmatprep.subr.mxu0 0.0
        %5798 = vmatpush1.xpose.msra.mxu0 %v5534
        %5799 = vmatprep.subr.mxu0 0.0
        %5800 = vmatpush1.xpose.msra.mxu0 %v5536
        %5801 = vmatprep.subr.mxu0 0.0
        %5802 = vmatpush1.xpose.msra.mxu0 %v5538
        %5803 = vmatprep.subr.mxu0 0.0
        %5804 = vmatpush1.xpose.msra.mxu0 %v5540
        %5805 = vmatprep.subr.mxu0 0.0
        %5806 = vmatpush1.xpose.msra.mxu0 %v5542
        %5807 = vmatprep.subr.mxu0 0.0
        %5808 = vmatpush1.xpose.msra.mxu0 %v5544
        %5809 = vmatprep.subr.mxu0 0.0
        %5810 = vmatpush1.xpose.msra.mxu0 %v5546
        %5811 = vmatprep.subr.mxu0 0.0
        %5812 = vmatpush1.xpose.msra.mxu0 %v5548
        %5813 = vmatprep.subr.mxu0 0.0
        %5814 = vmatpush1.xpose.msra.mxu0 %v5550
        %5815 = vmatprep.subr.mxu0 0.0
        %5816 = vmatpush1.xpose.msra.mxu0 %v5552
        %5817 = vmatprep.subr.mxu0 0.0
        %5818 = vmatpush1.xpose.msra.mxu0 %v5554
        %5819 = vmatprep.subr.mxu0 0.0
        %5820 = vmatpush1.xpose.msra.mxu0 %v5556
        %5821 = vmatprep.subr.mxu0 0.0
        %5822 = vmatpush1.xpose.msra.mxu0 %v5558
        %5823 = vmatprep.subr.mxu0 0.0
        %5824 = vmatpush1.xpose.msra.mxu0 %v5560
        %5825 = vmatprep.subr.mxu0 0.0
        %5826 = vmatpush1.xpose.msra.mxu0 %v5562
        %5827 = vmatprep.subr.mxu0 0.0
        %5828 = vmatpush1.xpose.msra.mxu0 %v5564
        %5829 = vmatprep.subr.mxu0 0.0
        %5830 = vmatpush1.xpose.msra.mxu0 %v5566
        %5831 = vmatprep.subr.mxu0 0.0
        %5832 = vmatpush1.xpose.msra.mxu0 %v5568
        %5833 = vmatprep.subr.mxu0 0.0
        %5834 = vmatpush1.xpose.msra.mxu0 %v5570
        %5835 = vmatprep.subr.mxu0 0.0
        %5836 = vmatpush1.xpose.msra.mxu0 %v5572
        %5837 = vmatprep.mubr.f32.mxu0 0.0
        %5838 = vmatmul.mubr.f32.gmra.mrb[0].mxu0 %v5444
        %v5839 = vpop.f32.mrb[0].mxu0
        %v5840 = vadd.f32 %v5297, %v5839
        %v5841 = vpop.f32.mrb[0].mxu0
        %v5842 = vadd.f32 %v5299, %v5841
        %5843 = vdwg.mxu0
        %5844 = vmatprep.subr.mxu0 0.0
        %5845 = vmatpush1.xpose.msra.mxu0 %v5574
        %5846 = vmatprep.subr.mxu0 0.0
        %5847 = vmatpush1.xpose.msra.mxu0 %v5576
        %5848 = vmatprep.subr.mxu0 0.0
        %5849 = vmatpush1.xpose.msra.mxu0 %v5578
        %5850 = vmatprep.subr.mxu0 0.0
        %5851 = vmatpush1.xpose.msra.mxu0 %v5580
        %5852 = vmatprep.subr.mxu0 0.0
        %5853 = vmatpush1.xpose.msra.mxu0 %v5582
        %5854 = vmatprep.subr.mxu0 0.0
        %5855 = vmatpush1.xpose.msra.mxu0 %v5584
        %5856 = vmatprep.subr.mxu0 0.0
        %5857 = vmatpush1.xpose.msra.mxu0 %v5586
        %5858 = vmatprep.subr.mxu0 0.0
        %5859 = vmatpush1.xpose.msra.mxu0 %v5588
        %5860 = vmatprep.subr.mxu0 0.0
        %5861 = vmatpush1.xpose.msra.mxu0 %v5590
        %5862 = vmatprep.subr.mxu0 0.0
        %5863 = vmatpush1.xpose.msra.mxu0 %v5592
        %5864 = vmatprep.subr.mxu0 0.0
        %5865 = vmatpush1.xpose.msra.mxu0 %v5594
        %5866 = vmatprep.subr.mxu0 0.0
        %5867 = vmatpush1.xpose.msra.mxu0 %v5596
        %5868 = vmatprep.subr.mxu0 0.0
        %5869 = vmatpush1.xpose.msra.mxu0 %v5598
        %5870 = vmatprep.subr.mxu0 0.0
        %5871 = vmatpush1.xpose.msra.mxu0 %v5600
        %5872 = vmatprep.subr.mxu0 0.0
        %5873 = vmatpush1.xpose.msra.mxu0 %v5602
        %5874 = vmatprep.subr.mxu0 0.0
        %5875 = vmatpush1.xpose.msra.mxu0 %v5604
        %5876 = vmatprep.subr.mxu0 0.0
        %5877 = vmatpush1.xpose.msra.mxu0 %v5606
        %5878 = vmatprep.subr.mxu0 0.0
        %5879 = vmatpush1.xpose.msra.mxu0 %v5608
        %5880 = vmatprep.subr.mxu0 0.0
        %5881 = vmatpush1.xpose.msra.mxu0 %v5610
        %5882 = vmatprep.subr.mxu0 0.0
        %5883 = vmatpush1.xpose.msra.mxu0 %v5612
        %5884 = vmatprep.subr.mxu0 0.0
        %5885 = vmatpush1.xpose.msra.mxu0 %v5614
        %5886 = vmatprep.subr.mxu0 0.0
        %5887 = vmatpush1.xpose.msra.mxu0 %v5616
        %5888 = vmatprep.subr.mxu0 0.0
        %5889 = vmatpush1.xpose.msra.mxu0 %v5618
        %5890 = vmatprep.subr.mxu0 0.0
        %5891 = vmatpush1.xpose.msra.mxu0 %v5620
        %5892 = vmatprep.subr.mxu0 0.0
        %5893 = vmatpush1.xpose.msra.mxu0 %v5622
        %5894 = vmatprep.subr.mxu0 0.0
        %5895 = vmatpush1.xpose.msra.mxu0 %v5624
        %5896 = vmatprep.subr.mxu0 0.0
        %5897 = vmatpush1.xpose.msra.mxu0 %v5626
        %5898 = vmatprep.subr.mxu0 0.0
        %5899 = vmatpush1.xpose.msra.mxu0 %v5628
        %5900 = vmatprep.subr.mxu0 0.0
        %5901 = vmatpush1.xpose.msra.mxu0 %v5630
        %5902 = vmatprep.subr.mxu0 0.0
        %5903 = vmatpush1.xpose.msra.mxu0 %v5632
        %5904 = vmatprep.subr.mxu0 0.0
        %5905 = vmatpush1.xpose.msra.mxu0 %v5634
        %5906 = vmatprep.subr.mxu0 0.0
        %5907 = vmatpush1.xpose.msra.mxu0 %v5636
        %5908 = vmatprep.mubr.f32.mxu0 0.0
        %5909 = vmatmul.mubr.f32.gmra.mrb[0].mxu0 %v5444
        %v5910 = vpop.f32.mrb[0].mxu0
        %v5911 = vadd.f32 %v5368, %v5910
        %v5912 = vpop.f32.mrb[0].mxu0
        %v5913 = vadd.f32 %v5370, %v5912
        %5914 = vdwg.mxu0
        %5915 = vmatprep.subr.mxu0 0.0
        %5916 = vmatpush1.xpose.msra.mxu0 %v5638
        %5917 = vmatprep.subr.mxu0 0.0
        %5918 = vmatpush1.xpose.msra.mxu0 %v5640
        %5919 = vmatprep.subr.mxu0 0.0
        %5920 = vmatpush1.xpose.msra.mxu0 %v5642
        %5921 = vmatprep.subr.mxu0 0.0
        %5922 = vmatpush1.xpose.msra.mxu0 %v5644
        %5923 = vmatprep.subr.mxu0 0.0
        %5924 = vmatpush1.xpose.msra.mxu0 %v5646
        %5925 = vmatprep.subr.mxu0 0.0
        %5926 = vmatpush1.xpose.msra.mxu0 %v5648
        %5927 = vmatprep.subr.mxu0 0.0
        %5928 = vmatpush1.xpose.msra.mxu0 %v5650
        %5929 = vmatprep.subr.mxu0 0.0
        %5930 = vmatpush1.xpose.msra.mxu0 %v5652
        %5931 = vmatprep.subr.mxu0 0.0
        %5932 = vmatpush1.xpose.msra.mxu0 %v5654
        %5933 = vmatprep.subr.mxu0 0.0
        %5934 = vmatpush1.xpose.msra.mxu0 %v5656
        %5935 = vmatprep.subr.mxu0 0.0
        %5936 = vmatpush1.xpose.msra.mxu0 %v5658
        %5937 = vmatprep.subr.mxu0 0.0
        %5938 = vmatpush1.xpose.msra.mxu0 %v5660
        %5939 = vmatprep.subr.mxu0 0.0
        %5940 = vmatpush1.xpose.msra.mxu0 %v5662
        %5941 = vmatprep.subr.mxu0 0.0
        %5942 = vmatpush1.xpose.msra.mxu0 %v5664
        %5943 = vmatprep.subr.mxu0 0.0
        %5944 = vmatpush1.xpose.msra.mxu0 %v5666
        %5945 = vmatprep.subr.mxu0 0.0
        %5946 = vmatpush1.xpose.msra.mxu0 %v5668
        %5947 = vmatprep.subr.mxu0 0.0
        %5948 = vmatpush1.xpose.msra.mxu0 %v5670
        %5949 = vmatprep.subr.mxu0 0.0
        %5950 = vmatpush1.xpose.msra.mxu0 %v5672
        %5951 = vmatprep.subr.mxu0 0.0
        %5952 = vmatpush1.xpose.msra.mxu0 %v5674
        %5953 = vmatprep.subr.mxu0 0.0
        %5954 = vmatpush1.xpose.msra.mxu0 %v5676
        %5955 = vmatprep.subr.mxu0 0.0
        %5956 = vmatpush1.xpose.msra.mxu0 %v5678
        %5957 = vmatprep.subr.mxu0 0.0
        %5958 = vmatpush1.xpose.msra.mxu0 %v5680
        %5959 = vmatprep.subr.mxu0 0.0
        %5960 = vmatpush1.xpose.msra.mxu0 %v5682
        %5961 = vmatprep.subr.mxu0 0.0
        %5962 = vmatpush1.xpose.msra.mxu0 %v5684
        %5963 = vmatprep.subr.mxu0 0.0
        %5964 = vmatpush1.xpose.msra.mxu0 %v5686
        %5965 = vmatprep.subr.mxu0 0.0
        %5966 = vmatpush1.xpose.msra.mxu0 %v5688
        %5967 = vmatprep.subr.mxu0 0.0
        %5968 = vmatpush1.xpose.msra.mxu0 %v5690
        %5969 = vmatprep.subr.mxu0 0.0
        %5970 = vmatpush1.xpose.msra.mxu0 %v5692
        %5971 = vmatprep.subr.mxu0 0.0
        %5972 = vmatpush1.xpose.msra.mxu0 %v5694
        %5973 = vmatprep.subr.mxu0 0.0
        %5974 = vmatpush1.xpose.msra.mxu0 %v5696
        %5975 = vmatprep.subr.mxu0 0.0
        %5976 = vmatpush1.xpose.msra.mxu0 %v5698
        %5977 = vmatprep.subr.mxu0 0.0
        %5978 = vmatpush1.xpose.msra.mxu0 %v5700
        %5979 = vmatprep.mubr.f32.mxu0 0.0
        %5980 = vmatmul.mubr.f32.gmra.mrb[0].mxu0 %v5444
        %v5981 = vpop.f32.mrb[0].mxu0
        %v5982 = vadd.f32 %v5439, %v5981
        %v5983 = vpop.f32.mrb[0].mxu0
        %v5984 = vadd.f32 %v5441, %v5983
        %5985 = vdwg.mxu0
        %vm5986 = vcmask 1045504
        %v5987 = vrot.slane %v4278, 2
        %v5988 = vrot.slane %v4279, 2
        %v5989 = vsel %vm5986, %v5987, %v5988
        %v5990 = vrot.slane %v4280, 2
        %v5991 = vsel %vm5986, %v5988, %v5990
        %v5992 = vrot.slane %v4281, 2
        %v5993 = vsel %vm5986, %v5990, %v5992
        %v5994 = vrot.slane %v4282, 2
        %v5995 = vsel %vm5986, %v5992, %v5994
        %v5996 = vrot.slane %v4283, 2
        %v5997 = vrot.slane %v4284, 2
        %v5998 = vsel %vm5986, %v5996, %v5997
        %v5999 = vrot.slane %v4285, 2
        %v6000 = vsel %vm5986, %v5997, %v5999
        %v6001 = vrot.slane %v4286, 2
        %v6002 = vsel %vm5986, %v5999, %v6001
        %v6003 = vrot.slane %v4287, 2
        %v6004 = vsel %vm5986, %v6001, %v6003
        %v6005 = vrot.slane %v4288, 2
        %v6006 = vrot.slane %v4289, 2
        %v6007 = vsel %vm5986, %v6005, %v6006
        %v6008 = vrot.slane %v4290, 2
        %v6009 = vsel %vm5986, %v6006, %v6008
        %v6010 = vrot.slane %v4291, 2
        %v6011 = vsel %vm5986, %v6008, %v6010
        %v6012 = vrot.slane %v4292, 2
        %v6013 = vsel %vm5986, %v6010, %v6012
        %v6014 = vrot.slane %v4293, 2
        %v6015 = vrot.slane %v4294, 2
        %v6016 = vsel %vm5986, %v6014, %v6015
        %v6017 = vrot.slane %v4295, 2
        %v6018 = vsel %vm5986, %v6015, %v6017
        %v6019 = vrot.slane %v4296, 2
        %v6020 = vsel %vm5986, %v6017, %v6019
        %v6021 = vrot.slane %v4297, 2
        %v6022 = vsel %vm5986, %v6019, %v6021
        %v6023 = vrot.slane %v4298, 2
        %v6024 = vrot.slane %v4299, 2
        %v6025 = vsel %vm5986, %v6023, %v6024
        %v6026 = vrot.slane %v4300, 2
        %v6027 = vsel %vm5986, %v6024, %v6026
        %v6028 = vrot.slane %v4301, 2
        %v6029 = vsel %vm5986, %v6026, %v6028
        %v6030 = vrot.slane %v4302, 2
        %v6031 = vsel %vm5986, %v6028, %v6030
        %v6032 = vrot.slane %v4303, 2
        %v6033 = vrot.slane %v4304, 2
        %v6034 = vsel %vm5986, %v6032, %v6033
        %v6035 = vrot.slane %v4305, 2
        %v6036 = vsel %vm5986, %v6033, %v6035
        %v6037 = vrot.slane %v4306, 2
        %v6038 = vsel %vm5986, %v6035, %v6037
        %v6039 = vrot.slane %v4307, 2
        %v6040 = vsel %vm5986, %v6037, %v6039
        %v6041 = vrot.slane %v4308, 2
        %v6042 = vrot.slane %v4309, 2
        %v6043 = vsel %vm5986, %v6041, %v6042
        %v6044 = vrot.slane %v4310, 2
        %v6045 = vsel %vm5986, %v6042, %v6044
        %v6046 = vrot.slane %v4311, 2
        %v6047 = vsel %vm5986, %v6044, %v6046
        %v6048 = vrot.slane %v4312, 2
        %v6049 = vsel %vm5986, %v6046, %v6048
        %v6050 = vrot.slane %v4313, 2
        %v6051 = vrot.slane %v4314, 2
        %v6052 = vsel %vm5986, %v6050, %v6051
        %v6053 = vrot.slane %v4315, 2
        %v6054 = vsel %vm5986, %v6051, %v6053
        %v6055 = vrot.slane %v4316, 2
        %v6056 = vsel %vm5986, %v6053, %v6055
        %v6057 = vrot.slane %v4317, 2
        %v6058 = vsel %vm5986, %v6055, %v6057
        %v6059 = vrot.slane %v4318, 2
        %v6060 = vrot.slane %v4319, 2
        %v6061 = vsel %vm5986, %v6059, %v6060
        %v6062 = vrot.slane %v4320, 2
        %v6063 = vsel %vm5986, %v6060, %v6062
        %v6064 = vrot.slane %v4321, 2
        %v6065 = vsel %vm5986, %v6062, %v6064
        %v6066 = vrot.slane %v4322, 2
        %v6067 = vsel %vm5986, %v6064, %v6066
        %v6068 = vrot.slane %v4323, 2
        %v6069 = vrot.slane %v4324, 2
        %v6070 = vsel %vm5986, %v6068, %v6069
        %v6071 = vrot.slane %v4325, 2
        %v6072 = vsel %vm5986, %v6069, %v6071
        %v6073 = vrot.slane %v4326, 2
        %v6074 = vsel %vm5986, %v6071, %v6073
        %v6075 = vrot.slane %v4327, 2
        %v6076 = vsel %vm5986, %v6073, %v6075
        %v6077 = vrot.slane %v4328, 2
        %v6078 = vrot.slane %v4329, 2
        %v6079 = vsel %vm5986, %v6077, %v6078
        %v6080 = vrot.slane %v4330, 2
        %v6081 = vsel %vm5986, %v6078, %v6080
        %v6082 = vrot.slane %v4331, 2
        %v6083 = vsel %vm5986, %v6080, %v6082
        %v6084 = vrot.slane %v4332, 2
        %v6085 = vsel %vm5986, %v6082, %v6084
        %v6086 = vrot.slane %v4333, 2
        %v6087 = vrot.slane %v4334, 2
        %v6088 = vsel %vm5986, %v6086, %v6087
        %v6089 = vrot.slane %v4335, 2
        %v6090 = vsel %vm5986, %v6087, %v6089
        %v6091 = vrot.slane %v4336, 2
        %v6092 = vsel %vm5986, %v6089, %v6091
        %v6093 = vrot.slane %v4337, 2
        %v6094 = vsel %vm5986, %v6091, %v6093
        %v6095 = vrot.slane %v4338, 2
        %v6096 = vrot.slane %v4339, 2
        %v6097 = vsel %vm5986, %v6095, %v6096
        %v6098 = vrot.slane %v4340, 2
        %v6099 = vsel %vm5986, %v6096, %v6098
        %v6100 = vrot.slane %v4341, 2
        %v6101 = vsel %vm5986, %v6098, %v6100
        %v6102 = vrot.slane %v4342, 2
        %v6103 = vsel %vm5986, %v6100, %v6102
        %v6104 = vrot.slane %v4343, 2
        %v6105 = vrot.slane %v4344, 2
        %v6106 = vsel %vm5986, %v6104, %v6105
        %v6107 = vrot.slane %v4345, 2
        %v6108 = vsel %vm5986, %v6105, %v6107
        %v6109 = vrot.slane %v4346, 2
        %v6110 = vsel %vm5986, %v6107, %v6109
        %v6111 = vrot.slane %v4347, 2
        %v6112 = vsel %vm5986, %v6109, %v6111
        %v6113 = vrot.slane %v4348, 2
        %v6114 = vrot.slane %v4349, 2
        %v6115 = vsel %vm5986, %v6113, %v6114
        %v6116 = vrot.slane %v4350, 2
        %v6117 = vsel %vm5986, %v6114, %v6116
        %v6118 = vrot.slane %v4351, 2
        %v6119 = vsel %vm5986, %v6116, %v6118
        %v6120 = vrot.slane %v4352, 2
        %v6121 = vsel %vm5986, %v6118, %v6120
        %v6122 = vrot.slane %v4353, 2
        %v6123 = vrot.slane %v4354, 2
        %v6124 = vsel %vm5986, %v6122, %v6123
        %v6125 = vrot.slane %v4355, 2
        %v6126 = vsel %vm5986, %v6123, %v6125
        %v6127 = vrot.slane %v4356, 2
        %v6128 = vsel %vm5986, %v6125, %v6127
        %v6129 = vrot.slane %v4357, 2
        %v6130 = vsel %vm5986, %v6127, %v6129
        %v6131 = vrot.slane %v4358, 2
        %v6132 = vrot.slane %v4359, 2
        %v6133 = vsel %vm5986, %v6131, %v6132
        %v6134 = vrot.slane %v4360, 2
        %v6135 = vsel %vm5986, %v6132, %v6134
        %v6136 = vrot.slane %v4361, 2
        %v6137 = vsel %vm5986, %v6134, %v6136
        %v6138 = vrot.slane %v4362, 2
        %v6139 = vsel %vm5986, %v6136, %v6138
        %v6140 = vrot.slane %v4363, 2
        %v6141 = vrot.slane %v4364, 2
        %v6142 = vsel %vm5986, %v6140, %v6141
        %v6143 = vrot.slane %v4365, 2
        %v6144 = vsel %vm5986, %v6141, %v6143
        %v6145 = vrot.slane %v4366, 2
        %v6146 = vsel %vm5986, %v6143, %v6145
        %v6147 = vrot.slane %v4367, 2
        %v6148 = vsel %vm5986, %v6145, %v6147
        %v6149 = vrot.slane %v4368, 2
        %v6150 = vrot.slane %v4369, 2
        %v6151 = vsel %vm5986, %v6149, %v6150
        %v6152 = vrot.slane %v4370, 2
        %v6153 = vsel %vm5986, %v6150, %v6152
        %v6154 = vrot.slane %v4371, 2
        %v6155 = vsel %vm5986, %v6152, %v6154
        %v6156 = vrot.slane %v4372, 2
        %v6157 = vsel %vm5986, %v6154, %v6156
        %v6158 = vrot.slane %v4373, 2
        %v6159 = vrot.slane %v4374, 2
        %v6160 = vsel %vm5986, %v6158, %v6159
        %v6161 = vrot.slane %v4375, 2
        %v6162 = vsel %vm5986, %v6159, %v6161
        %v6163 = vrot.slane %v4376, 2
        %v6164 = vsel %vm5986, %v6161, %v6163
        %v6165 = vrot.slane %v4377, 2
        %v6166 = vsel %vm5986, %v6163, %v6165
        %v6167 = vrot.slane %v4378, 2
        %v6168 = vrot.slane %v4379, 2
        %v6169 = vsel %vm5986, %v6167, %v6168
        %v6170 = vrot.slane %v4380, 2
        %v6171 = vsel %vm5986, %v6168, %v6170
        %v6172 = vrot.slane %v4381, 2
        %v6173 = vsel %vm5986, %v6170, %v6172
        %v6174 = vrot.slane %v4382, 2
        %v6175 = vsel %vm5986, %v6172, %v6174
        %v6176 = vrot.slane %v4383, 2
        %v6177 = vrot.slane %v4384, 2
        %v6178 = vsel %vm5986, %v6176, %v6177
        %v6179 = vrot.slane %v4385, 2
        %v6180 = vsel %vm5986, %v6177, %v6179
        %v6181 = vrot.slane %v4386, 2
        %v6182 = vsel %vm5986, %v6179, %v6181
        %v6183 = vrot.slane %v4387, 2
        %v6184 = vsel %vm5986, %v6181, %v6183
        %v6185 = vrot.slane %v4388, 2
        %v6186 = vrot.slane %v4389, 2
        %v6187 = vsel %vm5986, %v6185, %v6186
        %v6188 = vrot.slane %v4390, 2
        %v6189 = vsel %vm5986, %v6186, %v6188
        %v6190 = vrot.slane %v4391, 2
        %v6191 = vsel %vm5986, %v6188, %v6190
        %v6192 = vrot.slane %v4392, 2
        %v6193 = vsel %vm5986, %v6190, %v6192
        %v6194 = vrot.slane %v4393, 2
        %v6195 = vrot.slane %v4394, 2
        %v6196 = vsel %vm5986, %v6194, %v6195
        %v6197 = vrot.slane %v4395, 2
        %v6198 = vsel %vm5986, %v6195, %v6197
        %v6199 = vrot.slane %v4396, 2
        %v6200 = vsel %vm5986, %v6197, %v6199
        %v6201 = vrot.slane %v4397, 2
        %v6202 = vsel %vm5986, %v6199, %v6201
        %v6203 = vrot.slane %v4398, 2
        %v6204 = vrot.slane %v4399, 2
        %v6205 = vsel %vm5986, %v6203, %v6204
        %v6206 = vrot.slane %v4400, 2
        %v6207 = vsel %vm5986, %v6204, %v6206
        %v6208 = vrot.slane %v4401, 2
        %v6209 = vsel %vm5986, %v6206, %v6208
        %v6210 = vrot.slane %v4402, 2
        %v6211 = vsel %vm5986, %v6208, %v6210
        %v6212 = vrot.slane %v4403, 2
        %v6213 = vrot.slane %v4404, 2
        %v6214 = vsel %vm5986, %v6212, %v6213
        %v6215 = vrot.slane %v4405, 2
        %v6216 = vsel %vm5986, %v6213, %v6215
        %v6217 = vrot.slane %v4406, 2
        %v6218 = vsel %vm5986, %v6215, %v6217
        %v6219 = vrot.slane %v4407, 2
        %v6220 = vsel %vm5986, %v6217, %v6219
        %v6221 = vrot.slane %v4408, 2
        %v6222 = vrot.slane %v4409, 2
        %v6223 = vsel %vm5986, %v6221, %v6222
        %v6224 = vrot.slane %v4410, 2
        %v6225 = vsel %vm5986, %v6222, %v6224
        %v6226 = vrot.slane %v4411, 2
        %v6227 = vsel %vm5986, %v6224, %v6226
        %v6228 = vrot.slane %v4412, 2
        %v6229 = vsel %vm5986, %v6226, %v6228
        %v6230 = vrot.slane %v4413, 2
        %v6231 = vrot.slane %v4414, 2
        %v6232 = vsel %vm5986, %v6230, %v6231
        %v6233 = vrot.slane %v4415, 2
        %v6234 = vsel %vm5986, %v6231, %v6233
        %v6235 = vrot.slane %v4416, 2
        %v6236 = vsel %vm5986, %v6233, %v6235
        %v6237 = vrot.slane %v4417, 2
        %v6238 = vsel %vm5986, %v6235, %v6237
        %v6239 = vrot.slane %v4418, 2
        %v6240 = vrot.slane %v4419, 2
        %v6241 = vsel %vm5986, %v6239, %v6240
        %v6242 = vrot.slane %v4420, 2
        %v6243 = vsel %vm5986, %v6240, %v6242
        %v6244 = vrot.slane %v4421, 2
        %v6245 = vsel %vm5986, %v6242, %v6244
        %v6246 = vrot.slane %v4422, 2
        %v6247 = vsel %vm5986, %v6244, %v6246
        %v6248 = vrot.slane %v4423, 2
        %v6249 = vrot.slane %v4424, 2
        %v6250 = vsel %vm5986, %v6248, %v6249
        %v6251 = vrot.slane %v4425, 2
        %v6252 = vsel %vm5986, %v6249, %v6251
        %v6253 = vrot.slane %v4426, 2
        %v6254 = vsel %vm5986, %v6251, %v6253
        %v6255 = vrot.slane %v4427, 2
        %v6256 = vsel %vm5986, %v6253, %v6255
        %v6257 = vrot.slane %v4428, 2
        %v6258 = vrot.slane %v4429, 2
        %v6259 = vsel %vm5986, %v6257, %v6258
        %v6260 = vrot.slane %v4430, 2
        %v6261 = vsel %vm5986, %v6258, %v6260
        %v6262 = vrot.slane %v4431, 2
        %v6263 = vsel %vm5986, %v6260, %v6262
        %v6264 = vrot.slane %v4432, 2
        %v6265 = vsel %vm5986, %v6262, %v6264
        %v6266 = vrot.slane %v4433, 2
        %v6267 = vrot.slane %v4434, 2
        %v6268 = vsel %vm5986, %v6266, %v6267
        %v6269 = vrot.slane %v4435, 2
        %v6270 = vsel %vm5986, %v6267, %v6269
        %v6271 = vrot.slane %v4436, 2
        %v6272 = vsel %vm5986, %v6269, %v6271
        %v6273 = vrot.slane %v4437, 2
        %v6274 = vsel %vm5986, %v6271, %v6273
        %s6275 = scalar_lea.vmem %s1, 16
        %v6276 = vld [vmem:[%s6275] sm:$0xff]
        %v6278 = vsel %vm2825, %v6276, 0
        %v6280 = vsel %vm2825, %v5989, 0
        %v6282 = vsel %vm2825, %v5991, 0
        %v6284 = vsel %vm2825, %v5993, 0
        %v6286 = vsel %vm2825, %v5995, 0
        %v6288 = vsel %vm2825, %v5998, 0
        %v6290 = vsel %vm2825, %v6000, 0
        %v6292 = vsel %vm2825, %v6002, 0
        %v6294 = vsel %vm2825, %v6004, 0
        %v6296 = vsel %vm2825, %v6007, 0
        %v6298 = vsel %vm2825, %v6009, 0
        %v6300 = vsel %vm2825, %v6011, 0
        %v6302 = vsel %vm2825, %v6013, 0
        %v6304 = vsel %vm2825, %v6016, 0
        %v6306 = vsel %vm2825, %v6018, 0
        %v6308 = vsel %vm2825, %v6020, 0
        %v6310 = vsel %vm2825, %v6022, 0
        %v6312 = vsel %vm2825, %v6025, 0
        %v6314 = vsel %vm2825, %v6027, 0
        %v6316 = vsel %vm2825, %v6029, 0
        %v6318 = vsel %vm2825, %v6031, 0
        %v6320 = vsel %vm2825, %v6034, 0
        %v6322 = vsel %vm2825, %v6036, 0
        %v6324 = vsel %vm2825, %v6038, 0
        %v6326 = vsel %vm2825, %v6040, 0
        %v6328 = vsel %vm2825, %v6043, 0
        %v6330 = vsel %vm2825, %v6045, 0
        %v6332 = vsel %vm2825, %v6047, 0
        %v6334 = vsel %vm2825, %v6049, 0
        %v6336 = vsel %vm2825, %v6052, 0
        %v6338 = vsel %vm2825, %v6054, 0
        %v6340 = vsel %vm2825, %v6056, 0
        %v6342 = vsel %vm2825, %v6058, 0
        %v6344 = vsel %vm2825, %v6061, 0
        %v6346 = vsel %vm2825, %v6063, 0
        %v6348 = vsel %vm2825, %v6065, 0
        %v6350 = vsel %vm2825, %v6067, 0
        %v6352 = vsel %vm2825, %v6070, 0
        %v6354 = vsel %vm2825, %v6072, 0
        %v6356 = vsel %vm2825, %v6074, 0
        %v6358 = vsel %vm2825, %v6076, 0
        %v6360 = vsel %vm2825, %v6079, 0
        %v6362 = vsel %vm2825, %v6081, 0
        %v6364 = vsel %vm2825, %v6083, 0
        %v6366 = vsel %vm2825, %v6085, 0
        %v6368 = vsel %vm2825, %v6088, 0
        %v6370 = vsel %vm2825, %v6090, 0
        %v6372 = vsel %vm2825, %v6092, 0
        %v6374 = vsel %vm2825, %v6094, 0
        %v6376 = vsel %vm2825, %v6097, 0
        %v6378 = vsel %vm2825, %v6099, 0
        %v6380 = vsel %vm2825, %v6101, 0
        %v6382 = vsel %vm2825, %v6103, 0
        %v6384 = vsel %vm2825, %v6106, 0
        %v6386 = vsel %vm2825, %v6108, 0
        %v6388 = vsel %vm2825, %v6110, 0
        %v6390 = vsel %vm2825, %v6112, 0
        %v6392 = vsel %vm2825, %v6115, 0
        %v6394 = vsel %vm2825, %v6117, 0
        %v6396 = vsel %vm2825, %v6119, 0
        %v6398 = vsel %vm2825, %v6121, 0
        %v6400 = vsel %vm2825, %v6124, 0
        %v6402 = vsel %vm2825, %v6126, 0
        %v6404 = vsel %vm2825, %v6128, 0
        %v6406 = vsel %vm2825, %v6130, 0
        %v6408 = vsel %vm2825, %v6133, 0
        %v6410 = vsel %vm2825, %v6135, 0
        %v6412 = vsel %vm2825, %v6137, 0
        %v6414 = vsel %vm2825, %v6139, 0
        %v6416 = vsel %vm2825, %v6142, 0
        %v6418 = vsel %vm2825, %v6144, 0
        %v6420 = vsel %vm2825, %v6146, 0
        %v6422 = vsel %vm2825, %v6148, 0
        %v6424 = vsel %vm2825, %v6151, 0
        %v6426 = vsel %vm2825, %v6153, 0
        %v6428 = vsel %vm2825, %v6155, 0
        %v6430 = vsel %vm2825, %v6157, 0
        %v6432 = vsel %vm2825, %v6160, 0
        %v6434 = vsel %vm2825, %v6162, 0
        %v6436 = vsel %vm2825, %v6164, 0
        %v6438 = vsel %vm2825, %v6166, 0
        %v6440 = vsel %vm2825, %v6169, 0
        %v6442 = vsel %vm2825, %v6171, 0
        %v6444 = vsel %vm2825, %v6173, 0
        %v6446 = vsel %vm2825, %v6175, 0
        %v6448 = vsel %vm2825, %v6178, 0
        %v6450 = vsel %vm2825, %v6180, 0
        %v6452 = vsel %vm2825, %v6182, 0
        %v6454 = vsel %vm2825, %v6184, 0
        %v6456 = vsel %vm2825, %v6187, 0
        %v6458 = vsel %vm2825, %v6189, 0
        %v6460 = vsel %vm2825, %v6191, 0
        %v6462 = vsel %vm2825, %v6193, 0
        %v6464 = vsel %vm2825, %v6196, 0
        %v6466 = vsel %vm2825, %v6198, 0
        %v6468 = vsel %vm2825, %v6200, 0
        %v6470 = vsel %vm2825, %v6202, 0
        %v6472 = vsel %vm2825, %v6205, 0
        %v6474 = vsel %vm2825, %v6207, 0
        %v6476 = vsel %vm2825, %v6209, 0
        %v6478 = vsel %vm2825, %v6211, 0
        %v6480 = vsel %vm2825, %v6214, 0
        %v6482 = vsel %vm2825, %v6216, 0
        %v6484 = vsel %vm2825, %v6218, 0
        %v6486 = vsel %vm2825, %v6220, 0
        %v6488 = vsel %vm2825, %v6223, 0
        %v6490 = vsel %vm2825, %v6225, 0
        %v6492 = vsel %vm2825, %v6227, 0
        %v6494 = vsel %vm2825, %v6229, 0
        %v6496 = vsel %vm2825, %v6232, 0
        %v6498 = vsel %vm2825, %v6234, 0
        %v6500 = vsel %vm2825, %v6236, 0
        %v6502 = vsel %vm2825, %v6238, 0
        %v6504 = vsel %vm2825, %v6241, 0
        %v6506 = vsel %vm2825, %v6243, 0
        %v6508 = vsel %vm2825, %v6245, 0
        %v6510 = vsel %vm2825, %v6247, 0
        %v6512 = vsel %vm2825, %v6250, 0
        %v6514 = vsel %vm2825, %v6252, 0
        %v6516 = vsel %vm2825, %v6254, 0
        %v6518 = vsel %vm2825, %v6256, 0
        %v6520 = vsel %vm2825, %v6259, 0
        %v6522 = vsel %vm2825, %v6261, 0
        %v6524 = vsel %vm2825, %v6263, 0
        %v6526 = vsel %vm2825, %v6265, 0
        %v6528 = vsel %vm2825, %v6268, 0
        %v6530 = vsel %vm2825, %v6270, 0
        %v6532 = vsel %vm2825, %v6272, 0
        %v6534 = vsel %vm2825, %v6274, 0
        %6536 = vmatprep.subr.mxu0 0.0
        %6537 = vmatpush1.xpose.msra.mxu0 %v6280
        %6538 = vmatprep.subr.mxu0 0.0
        %6539 = vmatpush1.xpose.msra.mxu0 %v6282
        %6540 = vmatprep.subr.mxu0 0.0
        %6541 = vmatpush1.xpose.msra.mxu0 %v6284
        %6542 = vmatprep.subr.mxu0 0.0
        %6543 = vmatpush1.xpose.msra.mxu0 %v6286
        %6544 = vmatprep.subr.mxu0 0.0
        %6545 = vmatpush1.xpose.msra.mxu0 %v6288
        %6546 = vmatprep.subr.mxu0 0.0
        %6547 = vmatpush1.xpose.msra.mxu0 %v6290
        %6548 = vmatprep.subr.mxu0 0.0
        %6549 = vmatpush1.xpose.msra.mxu0 %v6292
        %6550 = vmatprep.subr.mxu0 0.0
        %6551 = vmatpush1.xpose.msra.mxu0 %v6294
        %6552 = vmatprep.subr.mxu0 0.0
        %6553 = vmatpush1.xpose.msra.mxu0 %v6296
        %6554 = vmatprep.subr.mxu0 0.0
        %6555 = vmatpush1.xpose.msra.mxu0 %v6298
        %6556 = vmatprep.subr.mxu0 0.0
        %6557 = vmatpush1.xpose.msra.mxu0 %v6300
        %6558 = vmatprep.subr.mxu0 0.0
        %6559 = vmatpush1.xpose.msra.mxu0 %v6302
        %6560 = vmatprep.subr.mxu0 0.0
        %6561 = vmatpush1.xpose.msra.mxu0 %v6304
        %6562 = vmatprep.subr.mxu0 0.0
        %6563 = vmatpush1.xpose.msra.mxu0 %v6306
        %6564 = vmatprep.subr.mxu0 0.0
        %6565 = vmatpush1.xpose.msra.mxu0 %v6308
        %6566 = vmatprep.subr.mxu0 0.0
        %6567 = vmatpush1.xpose.msra.mxu0 %v6310
        %6568 = vmatprep.subr.mxu0 0.0
        %6569 = vmatpush1.xpose.msra.mxu0 %v6312
        %6570 = vmatprep.subr.mxu0 0.0
        %6571 = vmatpush1.xpose.msra.mxu0 %v6314
        %6572 = vmatprep.subr.mxu0 0.0
        %6573 = vmatpush1.xpose.msra.mxu0 %v6316
        %6574 = vmatprep.subr.mxu0 0.0
        %6575 = vmatpush1.xpose.msra.mxu0 %v6318
        %6576 = vmatprep.subr.mxu0 0.0
        %6577 = vmatpush1.xpose.msra.mxu0 %v6320
        %6578 = vmatprep.subr.mxu0 0.0
        %6579 = vmatpush1.xpose.msra.mxu0 %v6322
        %6580 = vmatprep.subr.mxu0 0.0
        %6581 = vmatpush1.xpose.msra.mxu0 %v6324
        %6582 = vmatprep.subr.mxu0 0.0
        %6583 = vmatpush1.xpose.msra.mxu0 %v6326
        %6584 = vmatprep.subr.mxu0 0.0
        %6585 = vmatpush1.xpose.msra.mxu0 %v6328
        %6586 = vmatprep.subr.mxu0 0.0
        %6587 = vmatpush1.xpose.msra.mxu0 %v6330
        %6588 = vmatprep.subr.mxu0 0.0
        %6589 = vmatpush1.xpose.msra.mxu0 %v6332
        %6590 = vmatprep.subr.mxu0 0.0
        %6591 = vmatpush1.xpose.msra.mxu0 %v6334
        %6592 = vmatprep.subr.mxu0 0.0
        %6593 = vmatpush1.xpose.msra.mxu0 %v6336
        %6594 = vmatprep.subr.mxu0 0.0
        %6595 = vmatpush1.xpose.msra.mxu0 %v6338
        %6596 = vmatprep.subr.mxu0 0.0
        %6597 = vmatpush1.xpose.msra.mxu0 %v6340
        %6598 = vmatprep.subr.mxu0 0.0
        %6599 = vmatpush1.xpose.msra.mxu0 %v6342
        %6600 = vmatprep.mubr.f32.mxu0 0.0
        %6601 = vmatmul.mubr.f32.gmra.mrb[0].mxu0 %v6278
        %v6602 = vpop.f32.mrb[0].mxu0
        %v6603 = vadd.f32 0.0, %v6602
        %v6604 = vpop.f32.mrb[0].mxu0
        %v6605 = vadd.f32 0.0, %v6604
        %6606 = vdwg.mxu0
        %6607 = vmatprep.subr.mxu0 0.0
        %6608 = vmatpush1.xpose.msra.mxu0 %v6344
        %6609 = vmatprep.subr.mxu0 0.0
        %6610 = vmatpush1.xpose.msra.mxu0 %v6346
        %6611 = vmatprep.subr.mxu0 0.0
        %6612 = vmatpush1.xpose.msra.mxu0 %v6348
        %6613 = vmatprep.subr.mxu0 0.0
        %6614 = vmatpush1.xpose.msra.mxu0 %v6350
        %6615 = vmatprep.subr.mxu0 0.0
        %6616 = vmatpush1.xpose.msra.mxu0 %v6352
        %6617 = vmatprep.subr.mxu0 0.0
        %6618 = vmatpush1.xpose.msra.mxu0 %v6354
        %6619 = vmatprep.subr.mxu0 0.0
        %6620 = vmatpush1.xpose.msra.mxu0 %v6356
        %6621 = vmatprep.subr.mxu0 0.0
        %6622 = vmatpush1.xpose.msra.mxu0 %v6358
        %6623 = vmatprep.subr.mxu0 0.0
        %6624 = vmatpush1.xpose.msra.mxu0 %v6360
        %6625 = vmatprep.subr.mxu0 0.0
        %6626 = vmatpush1.xpose.msra.mxu0 %v6362
        %6627 = vmatprep.subr.mxu0 0.0
        %6628 = vmatpush1.xpose.msra.mxu0 %v6364
        %6629 = vmatprep.subr.mxu0 0.0
        %6630 = vmatpush1.xpose.msra.mxu0 %v6366
        %6631 = vmatprep.subr.mxu0 0.0
        %6632 = vmatpush1.xpose.msra.mxu0 %v6368
        %6633 = vmatprep.subr.mxu0 0.0
        %6634 = vmatpush1.xpose.msra.mxu0 %v6370
        %6635 = vmatprep.subr.mxu0 0.0
        %6636 = vmatpush1.xpose.msra.mxu0 %v6372
        %6637 = vmatprep.subr.mxu0 0.0
        %6638 = vmatpush1.xpose.msra.mxu0 %v6374
        %6639 = vmatprep.subr.mxu0 0.0
        %6640 = vmatpush1.xpose.msra.mxu0 %v6376
        %6641 = vmatprep.subr.mxu0 0.0
        %6642 = vmatpush1.xpose.msra.mxu0 %v6378
        %6643 = vmatprep.subr.mxu0 0.0
        %6644 = vmatpush1.xpose.msra.mxu0 %v6380
        %6645 = vmatprep.subr.mxu0 0.0
        %6646 = vmatpush1.xpose.msra.mxu0 %v6382
        %6647 = vmatprep.subr.mxu0 0.0
        %6648 = vmatpush1.xpose.msra.mxu0 %v6384
        %6649 = vmatprep.subr.mxu0 0.0
        %6650 = vmatpush1.xpose.msra.mxu0 %v6386
        %6651 = vmatprep.subr.mxu0 0.0
        %6652 = vmatpush1.xpose.msra.mxu0 %v6388
        %6653 = vmatprep.subr.mxu0 0.0
        %6654 = vmatpush1.xpose.msra.mxu0 %v6390
        %6655 = vmatprep.subr.mxu0 0.0
        %6656 = vmatpush1.xpose.msra.mxu0 %v6392
        %6657 = vmatprep.subr.mxu0 0.0
        %6658 = vmatpush1.xpose.msra.mxu0 %v6394
        %6659 = vmatprep.subr.mxu0 0.0
        %6660 = vmatpush1.xpose.msra.mxu0 %v6396
        %6661 = vmatprep.subr.mxu0 0.0
        %6662 = vmatpush1.xpose.msra.mxu0 %v6398
        %6663 = vmatprep.subr.mxu0 0.0
        %6664 = vmatpush1.xpose.msra.mxu0 %v6400
        %6665 = vmatprep.subr.mxu0 0.0
        %6666 = vmatpush1.xpose.msra.mxu0 %v6402
        %6667 = vmatprep.subr.mxu0 0.0
        %6668 = vmatpush1.xpose.msra.mxu0 %v6404
        %6669 = vmatprep.subr.mxu0 0.0
        %6670 = vmatpush1.xpose.msra.mxu0 %v6406
        %6671 = vmatprep.mubr.f32.mxu0 0.0
        %6672 = vmatmul.mubr.f32.gmra.mrb[0].mxu0 %v6278
        %v6673 = vpop.f32.mrb[0].mxu0
        %v6674 = vadd.f32 0.0, %v6673
        %v6675 = vpop.f32.mrb[0].mxu0
        %v6676 = vadd.f32 0.0, %v6675
        %6677 = vdwg.mxu0
        %6678 = vmatprep.subr.mxu0 0.0
        %6679 = vmatpush1.xpose.msra.mxu0 %v6408
        %6680 = vmatprep.subr.mxu0 0.0
        %6681 = vmatpush1.xpose.msra.mxu0 %v6410
        %6682 = vmatprep.subr.mxu0 0.0
        %6683 = vmatpush1.xpose.msra.mxu0 %v6412
        %6684 = vmatprep.subr.mxu0 0.0
        %6685 = vmatpush1.xpose.msra.mxu0 %v6414
        %6686 = vmatprep.subr.mxu0 0.0
        %6687 = vmatpush1.xpose.msra.mxu0 %v6416
        %6688 = vmatprep.subr.mxu0 0.0
        %6689 = vmatpush1.xpose.msra.mxu0 %v6418
        %6690 = vmatprep.subr.mxu0 0.0
        %6691 = vmatpush1.xpose.msra.mxu0 %v6420
        %6692 = vmatprep.subr.mxu0 0.0
        %6693 = vmatpush1.xpose.msra.mxu0 %v6422
        %6694 = vmatprep.subr.mxu0 0.0
        %6695 = vmatpush1.xpose.msra.mxu0 %v6424
        %6696 = vmatprep.subr.mxu0 0.0
        %6697 = vmatpush1.xpose.msra.mxu0 %v6426
        %6698 = vmatprep.subr.mxu0 0.0
        %6699 = vmatpush1.xpose.msra.mxu0 %v6428
        %6700 = vmatprep.subr.mxu0 0.0
        %6701 = vmatpush1.xpose.msra.mxu0 %v6430
        %6702 = vmatprep.subr.mxu0 0.0
        %6703 = vmatpush1.xpose.msra.mxu0 %v6432
        %6704 = vmatprep.subr.mxu0 0.0
        %6705 = vmatpush1.xpose.msra.mxu0 %v6434
        %6706 = vmatprep.subr.mxu0 0.0
        %6707 = vmatpush1.xpose.msra.mxu0 %v6436
        %6708 = vmatprep.subr.mxu0 0.0
        %6709 = vmatpush1.xpose.msra.mxu0 %v6438
        %6710 = vmatprep.subr.mxu0 0.0
        %6711 = vmatpush1.xpose.msra.mxu0 %v6440
        %6712 = vmatprep.subr.mxu0 0.0
        %6713 = vmatpush1.xpose.msra.mxu0 %v6442
        %6714 = vmatprep.subr.mxu0 0.0
        %6715 = vmatpush1.xpose.msra.mxu0 %v6444
        %6716 = vmatprep.subr.mxu0 0.0
        %6717 = vmatpush1.xpose.msra.mxu0 %v6446
        %6718 = vmatprep.subr.mxu0 0.0
        %6719 = vmatpush1.xpose.msra.mxu0 %v6448
        %6720 = vmatprep.subr.mxu0 0.0
        %6721 = vmatpush1.xpose.msra.mxu0 %v6450
        %6722 = vmatprep.subr.mxu0 0.0
        %6723 = vmatpush1.xpose.msra.mxu0 %v6452
        %6724 = vmatprep.subr.mxu0 0.0
        %6725 = vmatpush1.xpose.msra.mxu0 %v6454
        %6726 = vmatprep.subr.mxu0 0.0
        %6727 = vmatpush1.xpose.msra.mxu0 %v6456
        %6728 = vmatprep.subr.mxu0 0.0
        %6729 = vmatpush1.xpose.msra.mxu0 %v6458
        %6730 = vmatprep.subr.mxu0 0.0
        %6731 = vmatpush1.xpose.msra.mxu0 %v6460
        %6732 = vmatprep.subr.mxu0 0.0
        %6733 = vmatpush1.xpose.msra.mxu0 %v6462
        %6734 = vmatprep.subr.mxu0 0.0
        %6735 = vmatpush1.xpose.msra.mxu0 %v6464
        %6736 = vmatprep.subr.mxu0 0.0
        %6737 = vmatpush1.xpose.msra.mxu0 %v6466
        %6738 = vmatprep.subr.mxu0 0.0
        %6739 = vmatpush1.xpose.msra.mxu0 %v6468
        %6740 = vmatprep.subr.mxu0 0.0
        %6741 = vmatpush1.xpose.msra.mxu0 %v6470
        %6742 = vmatprep.mubr.f32.mxu0 0.0
        %6743 = vmatmul.mubr.f32.gmra.mrb[0].mxu0 %v6278
        %v6744 = vpop.f32.mrb[0].mxu0
        %v6745 = vadd.f32 0.0, %v6744
        %v6746 = vpop.f32.mrb[0].mxu0
        %v6747 = vadd.f32 0.0, %v6746
        %6748 = vdwg.mxu0
        %6749 = vmatprep.subr.mxu0 0.0
        %6750 = vmatpush1.xpose.msra.mxu0 %v6472
        %6751 = vmatprep.subr.mxu0 0.0
        %6752 = vmatpush1.xpose.msra.mxu0 %v6474
        %6753 = vmatprep.subr.mxu0 0.0
        %6754 = vmatpush1.xpose.msra.mxu0 %v6476
        %6755 = vmatprep.subr.mxu0 0.0
        %6756 = vmatpush1.xpose.msra.mxu0 %v6478
        %6757 = vmatprep.subr.mxu0 0.0
        %6758 = vmatpush1.xpose.msra.mxu0 %v6480
        %6759 = vmatprep.subr.mxu0 0.0
        %6760 = vmatpush1.xpose.msra.mxu0 %v6482
        %6761 = vmatprep.subr.mxu0 0.0
        %6762 = vmatpush1.xpose.msra.mxu0 %v6484
        %6763 = vmatprep.subr.mxu0 0.0
        %6764 = vmatpush1.xpose.msra.mxu0 %v6486
        %6765 = vmatprep.subr.mxu0 0.0
        %6766 = vmatpush1.xpose.msra.mxu0 %v6488
        %6767 = vmatprep.subr.mxu0 0.0
        %6768 = vmatpush1.xpose.msra.mxu0 %v6490
        %6769 = vmatprep.subr.mxu0 0.0
        %6770 = vmatpush1.xpose.msra.mxu0 %v6492
        %6771 = vmatprep.subr.mxu0 0.0
        %6772 = vmatpush1.xpose.msra.mxu0 %v6494
        %6773 = vmatprep.subr.mxu0 0.0
        %6774 = vmatpush1.xpose.msra.mxu0 %v6496
        %6775 = vmatprep.subr.mxu0 0.0
        %6776 = vmatpush1.xpose.msra.mxu0 %v6498
        %6777 = vmatprep.subr.mxu0 0.0
        %6778 = vmatpush1.xpose.msra.mxu0 %v6500
        %6779 = vmatprep.subr.mxu0 0.0
        %6780 = vmatpush1.xpose.msra.mxu0 %v6502
        %6781 = vmatprep.subr.mxu0 0.0
        %6782 = vmatpush1.xpose.msra.mxu0 %v6504
        %6783 = vmatprep.subr.mxu0 0.0
        %6784 = vmatpush1.xpose.msra.mxu0 %v6506
        %6785 = vmatprep.subr.mxu0 0.0
        %6786 = vmatpush1.xpose.msra.mxu0 %v6508
        %6787 = vmatprep.subr.mxu0 0.0
        %6788 = vmatpush1.xpose.msra.mxu0 %v6510
        %6789 = vmatprep.subr.mxu0 0.0
        %6790 = vmatpush1.xpose.msra.mxu0 %v6512
        %6791 = vmatprep.subr.mxu0 0.0
        %6792 = vmatpush1.xpose.msra.mxu0 %v6514
        %6793 = vmatprep.subr.mxu0 0.0
        %6794 = vmatpush1.xpose.msra.mxu0 %v6516
        %6795 = vmatprep.subr.mxu0 0.0
        %6796 = vmatpush1.xpose.msra.mxu0 %v6518
        %6797 = vmatprep.subr.mxu0 0.0
        %6798 = vmatpush1.xpose.msra.mxu0 %v6520
        %6799 = vmatprep.subr.mxu0 0.0
        %6800 = vmatpush1.xpose.msra.mxu0 %v6522
        %6801 = vmatprep.subr.mxu0 0.0
        %6802 = vmatpush1.xpose.msra.mxu0 %v6524
        %6803 = vmatprep.subr.mxu0 0.0
        %6804 = vmatpush1.xpose.msra.mxu0 %v6526
        %6805 = vmatprep.subr.mxu0 0.0
        %6806 = vmatpush1.xpose.msra.mxu0 %v6528
        %6807 = vmatprep.subr.mxu0 0.0
        %6808 = vmatpush1.xpose.msra.mxu0 %v6530
        %6809 = vmatprep.subr.mxu0 0.0
        %6810 = vmatpush1.xpose.msra.mxu0 %v6532
        %6811 = vmatprep.subr.mxu0 0.0
        %6812 = vmatpush1.xpose.msra.mxu0 %v6534
        %6813 = vmatprep.mubr.f32.mxu0 0.0
        %6814 = vmatmul.mubr.f32.gmra.mrb[0].mxu0 %v6278
        %v6815 = vpop.f32.mrb[0].mxu0
        %v6816 = vadd.f32 0.0, %v6815
        %v6817 = vpop.f32.mrb[0].mxu0
        %v6818 = vadd.f32 0.0, %v6817
        %6819 = vdwg.mxu0
        %v6820 = vadd.f32 %v5769, %v6603
        %v6821 = vadd.f32 %v5771, %v6605
        %v6822 = vadd.f32 %v5840, %v6674
        %v6823 = vadd.f32 %v5842, %v6676
        %v6824 = vadd.f32 %v5911, %v6745
        %v6825 = vadd.f32 %v5913, %v6747
        %v6826 = vadd.f32 %v5982, %v6816
        %v6827 = vadd.f32 %v5984, %v6818
        %s6828 = scalar_lea.vmem %s1, 24
        %v6829 = vld [vmem:[%s6828] sm:$0xff]
        %v6831 = vsel %vm2825, %v6829, 0
        %v6834 = vsel %vm2825, %v4438, 0
        %v6837 = vsel %vm2825, %v4439, 0
        %v6840 = vsel %vm2825, %v4440, 0
        %v6843 = vsel %vm2825, %v4441, 0
        %6845 = vmatprep.subr.mxu0 0.0
        %6846 = vmatpush1.xpose.msra.mxu0 %v5454
        %6847 = vmatprep.subr.mxu0 0.0
        %6848 = vmatpush1.xpose.msra.mxu0 %v5456
        %6849 = vmatprep.subr.mxu0 0.0
        %6850 = vmatpush1.xpose.msra.mxu0 %v5458
        %6851 = vmatprep.subr.mxu0 0.0
        %6852 = vmatpush1.xpose.msra.mxu0 %v5460
        %6853 = vmatprep.subr.mxu0 0.0
        %6854 = vmatpush1.xpose.msra.mxu0 %v5462
        %6855 = vmatprep.subr.mxu0 0.0
        %6856 = vmatpush1.xpose.msra.mxu0 %v5464
        %6857 = vmatprep.subr.mxu0 0.0
        %6858 = vmatpush1.xpose.msra.mxu0 %v5466
        %6859 = vmatprep.subr.mxu0 0.0
        %6860 = vmatpush1.xpose.msra.mxu0 %v5468
        %6861 = vmatprep.subr.mxu0 0.0
        %6862 = vmatpush1.xpose.msra.mxu0 %v5470
        %6863 = vmatprep.subr.mxu0 0.0
        %6864 = vmatpush1.xpose.msra.mxu0 %v5472
        %6865 = vmatprep.subr.mxu0 0.0
        %6866 = vmatpush1.xpose.msra.mxu0 %v5474
        %6867 = vmatprep.subr.mxu0 0.0
        %6868 = vmatpush1.xpose.msra.mxu0 %v5476
        %6869 = vmatprep.subr.mxu0 0.0
        %6870 = vmatpush1.xpose.msra.mxu0 %v5478
        %6871 = vmatprep.subr.mxu0 0.0
        %6872 = vmatpush1.xpose.msra.mxu0 %v5480
        %6873 = vmatprep.subr.mxu0 0.0
        %6874 = vmatpush1.xpose.msra.mxu0 %v5482
        %6875 = vmatprep.subr.mxu0 0.0
        %6876 = vmatpush1.xpose.msra.mxu0 %v5484
        %6877 = vmatprep.subr.mxu0 0.0
        %6878 = vmatpush1.xpose.msra.mxu0 %v5486
        %6879 = vmatprep.subr.mxu0 0.0
        %6880 = vmatpush1.xpose.msra.mxu0 %v5488
        %6881 = vmatprep.subr.mxu0 0.0
        %6882 = vmatpush1.xpose.msra.mxu0 %v5490
        %6883 = vmatprep.subr.mxu0 0.0
        %6884 = vmatpush1.xpose.msra.mxu0 %v5492
        %6885 = vmatprep.subr.mxu0 0.0
        %6886 = vmatpush1.xpose.msra.mxu0 %v5494
        %6887 = vmatprep.subr.mxu0 0.0
        %6888 = vmatpush1.xpose.msra.mxu0 %v5496
        %6889 = vmatprep.subr.mxu0 0.0
        %6890 = vmatpush1.xpose.msra.mxu0 %v5498
        %6891 = vmatprep.subr.mxu0 0.0
        %6892 = vmatpush1.xpose.msra.mxu0 %v5500
        %6893 = vmatprep.subr.mxu0 0.0
        %6894 = vmatpush1.xpose.msra.mxu0 %v5502
        %6895 = vmatprep.subr.mxu0 0.0
        %6896 = vmatpush1.xpose.msra.mxu0 %v5504
        %6897 = vmatprep.subr.mxu0 0.0
        %6898 = vmatpush1.xpose.msra.mxu0 %v5506
        %6899 = vmatprep.subr.mxu0 0.0
        %6900 = vmatpush1.xpose.msra.mxu0 %v5508
        %6901 = vmatprep.subr.mxu0 0.0
        %6902 = vmatpush1.xpose.msra.mxu0 %v5510
        %6903 = vmatprep.subr.mxu0 0.0
        %6904 = vmatpush1.xpose.msra.mxu0 %v5512
        %6905 = vmatprep.subr.mxu0 0.0
        %6906 = vmatpush1.xpose.msra.mxu0 %v5514
        %6907 = vmatprep.subr.mxu0 0.0
        %6908 = vmatpush1.xpose.msra.mxu0 %v5516
        %6909 = vmatprep.mubr.f32.mxu0 0.0
        %6910 = vmatmul.mubr.f32.gmra.mrb[0].mxu0 %v6831
        %v6911 = vpop.f32.mrb[0].mxu0
        %v6912 = vadd.f32 0.0, %v6911
        %v6913 = vpop.f32.mrb[0].mxu0
        %v6914 = vadd.f32 0.0, %v6913
        %6915 = vdwg.mxu0
        %6916 = vmatprep.subr.mxu0 0.0
        %6917 = vmatpush1.xpose.msra.mxu0 %v5518
        %6918 = vmatprep.subr.mxu0 0.0
        %6919 = vmatpush1.xpose.msra.mxu0 %v5520
        %6920 = vmatprep.subr.mxu0 0.0
        %6921 = vmatpush1.xpose.msra.mxu0 %v5522
        %6922 = vmatprep.subr.mxu0 0.0
        %6923 = vmatpush1.xpose.msra.mxu0 %v5524
        %6924 = vmatprep.subr.mxu0 0.0
        %6925 = vmatpush1.xpose.msra.mxu0 %v5526
        %6926 = vmatprep.subr.mxu0 0.0
        %6927 = vmatpush1.xpose.msra.mxu0 %v5528
        %6928 = vmatprep.subr.mxu0 0.0
        %6929 = vmatpush1.xpose.msra.mxu0 %v5530
        %6930 = vmatprep.subr.mxu0 0.0
        %6931 = vmatpush1.xpose.msra.mxu0 %v5532
        %6932 = vmatprep.subr.mxu0 0.0
        %6933 = vmatpush1.xpose.msra.mxu0 %v5534
        %6934 = vmatprep.subr.mxu0 0.0
        %6935 = vmatpush1.xpose.msra.mxu0 %v5536
        %6936 = vmatprep.subr.mxu0 0.0
        %6937 = vmatpush1.xpose.msra.mxu0 %v5538
        %6938 = vmatprep.subr.mxu0 0.0
        %6939 = vmatpush1.xpose.msra.mxu0 %v5540
        %6940 = vmatprep.subr.mxu0 0.0
        %6941 = vmatpush1.xpose.msra.mxu0 %v5542
        %6942 = vmatprep.subr.mxu0 0.0
        %6943 = vmatpush1.xpose.msra.mxu0 %v5544
        %6944 = vmatprep.subr.mxu0 0.0
        %6945 = vmatpush1.xpose.msra.mxu0 %v5546
        %6946 = vmatprep.subr.mxu0 0.0
        %6947 = vmatpush1.xpose.msra.mxu0 %v5548
        %6948 = vmatprep.subr.mxu0 0.0
        %6949 = vmatpush1.xpose.msra.mxu0 %v5550
        %6950 = vmatprep.subr.mxu0 0.0
        %6951 = vmatpush1.xpose.msra.mxu0 %v5552
        %6952 = vmatprep.subr.mxu0 0.0
        %6953 = vmatpush1.xpose.msra.mxu0 %v5554
        %6954 = vmatprep.subr.mxu0 0.0
        %6955 = vmatpush1.xpose.msra.mxu0 %v5556
        %6956 = vmatprep.subr.mxu0 0.0
        %6957 = vmatpush1.xpose.msra.mxu0 %v5558
        %6958 = vmatprep.subr.mxu0 0.0
        %6959 = vmatpush1.xpose.msra.mxu0 %v5560
        %6960 = vmatprep.subr.mxu0 0.0
        %6961 = vmatpush1.xpose.msra.mxu0 %v5562
        %6962 = vmatprep.subr.mxu0 0.0
        %6963 = vmatpush1.xpose.msra.mxu0 %v5564
        %6964 = vmatprep.subr.mxu0 0.0
        %6965 = vmatpush1.xpose.msra.mxu0 %v5566
        %6966 = vmatprep.subr.mxu0 0.0
        %6967 = vmatpush1.xpose.msra.mxu0 %v5568
        %6968 = vmatprep.subr.mxu0 0.0
        %6969 = vmatpush1.xpose.msra.mxu0 %v5570
        %6970 = vmatprep.subr.mxu0 0.0
        %6971 = vmatpush1.xpose.msra.mxu0 %v5572
        %6972 = vmatprep.subr.mxu0 0.0
        %6973 = vmatpush1.xpose.msra.mxu0 %v5574
        %6974 = vmatprep.subr.mxu0 0.0
        %6975 = vmatpush1.xpose.msra.mxu0 %v5576
        %6976 = vmatprep.subr.mxu0 0.0
        %6977 = vmatpush1.xpose.msra.mxu0 %v5578
        %6978 = vmatprep.subr.mxu0 0.0
        %6979 = vmatpush1.xpose.msra.mxu0 %v5580
        %6980 = vmatprep.mubr.f32.mxu0 0.0
        %6981 = vmatmul.mubr.f32.gmra.mrb[0].mxu0 %v6831
        %v6982 = vpop.f32.mrb[0].mxu0
        %v6983 = vadd.f32 0.0, %v6982
        %v6984 = vpop.f32.mrb[0].mxu0
        %v6985 = vadd.f32 0.0, %v6984
        %6986 = vdwg.mxu0
        %6987 = vmatprep.subr.mxu0 0.0
        %6988 = vmatpush1.xpose.msra.mxu0 %v5582
        %6989 = vmatprep.subr.mxu0 0.0
        %6990 = vmatpush1.xpose.msra.mxu0 %v5584
        %6991 = vmatprep.subr.mxu0 0.0
        %6992 = vmatpush1.xpose.msra.mxu0 %v5586
        %6993 = vmatprep.subr.mxu0 0.0
        %6994 = vmatpush1.xpose.msra.mxu0 %v5588
        %6995 = vmatprep.subr.mxu0 0.0
        %6996 = vmatpush1.xpose.msra.mxu0 %v5590
        %6997 = vmatprep.subr.mxu0 0.0
        %6998 = vmatpush1.xpose.msra.mxu0 %v5592
        %6999 = vmatprep.subr.mxu0 0.0
        %7000 = vmatpush1.xpose.msra.mxu0 %v5594
        %7001 = vmatprep.subr.mxu0 0.0
        %7002 = vmatpush1.xpose.msra.mxu0 %v5596
        %7003 = vmatprep.subr.mxu0 0.0
        %7004 = vmatpush1.xpose.msra.mxu0 %v5598
        %7005 = vmatprep.subr.mxu0 0.0
        %7006 = vmatpush1.xpose.msra.mxu0 %v5600
        %7007 = vmatprep.subr.mxu0 0.0
        %7008 = vmatpush1.xpose.msra.mxu0 %v5602
        %7009 = vmatprep.subr.mxu0 0.0
        %7010 = vmatpush1.xpose.msra.mxu0 %v5604
        %7011 = vmatprep.subr.mxu0 0.0
        %7012 = vmatpush1.xpose.msra.mxu0 %v5606
        %7013 = vmatprep.subr.mxu0 0.0
        %7014 = vmatpush1.xpose.msra.mxu0 %v5608
        %7015 = vmatprep.subr.mxu0 0.0
        %7016 = vmatpush1.xpose.msra.mxu0 %v5610
        %7017 = vmatprep.subr.mxu0 0.0
        %7018 = vmatpush1.xpose.msra.mxu0 %v5612
        %7019 = vmatprep.subr.mxu0 0.0
        %7020 = vmatpush1.xpose.msra.mxu0 %v5614
        %7021 = vmatprep.subr.mxu0 0.0
        %7022 = vmatpush1.xpose.msra.mxu0 %v5616
        %7023 = vmatprep.subr.mxu0 0.0
        %7024 = vmatpush1.xpose.msra.mxu0 %v5618
        %7025 = vmatprep.subr.mxu0 0.0
        %7026 = vmatpush1.xpose.msra.mxu0 %v5620
        %7027 = vmatprep.subr.mxu0 0.0
        %7028 = vmatpush1.xpose.msra.mxu0 %v5622
        %7029 = vmatprep.subr.mxu0 0.0
        %7030 = vmatpush1.xpose.msra.mxu0 %v5624
        %7031 = vmatprep.subr.mxu0 0.0
        %7032 = vmatpush1.xpose.msra.mxu0 %v5626
        %7033 = vmatprep.subr.mxu0 0.0
        %7034 = vmatpush1.xpose.msra.mxu0 %v5628
        %7035 = vmatprep.subr.mxu0 0.0
        %7036 = vmatpush1.xpose.msra.mxu0 %v5630
        %7037 = vmatprep.subr.mxu0 0.0
        %7038 = vmatpush1.xpose.msra.mxu0 %v5632
        %7039 = vmatprep.subr.mxu0 0.0
        %7040 = vmatpush1.xpose.msra.mxu0 %v5634
        %7041 = vmatprep.subr.mxu0 0.0
        %7042 = vmatpush1.xpose.msra.mxu0 %v5636
        %7043 = vmatprep.subr.mxu0 0.0
        %7044 = vmatpush1.xpose.msra.mxu0 %v5638
        %7045 = vmatprep.subr.mxu0 0.0
        %7046 = vmatpush1.xpose.msra.mxu0 %v5640
        %7047 = vmatprep.subr.mxu0 0.0
        %7048 = vmatpush1.xpose.msra.mxu0 %v5642
        %7049 = vmatprep.subr.mxu0 0.0
        %7050 = vmatpush1.xpose.msra.mxu0 %v5644
        %7051 = vmatprep.mubr.f32.mxu0 0.0
        %7052 = vmatmul.mubr.f32.gmra.mrb[0].mxu0 %v6831
        %v7053 = vpop.f32.mrb[0].mxu0
        %v7054 = vadd.f32 0.0, %v7053
        %v7055 = vpop.f32.mrb[0].mxu0
        %v7056 = vadd.f32 0.0, %v7055
        %7057 = vdwg.mxu0
        %7058 = vmatprep.subr.mxu0 0.0
        %7059 = vmatpush1.xpose.msra.mxu0 %v5646
        %7060 = vmatprep.subr.mxu0 0.0
        %7061 = vmatpush1.xpose.msra.mxu0 %v5648
        %7062 = vmatprep.subr.mxu0 0.0
        %7063 = vmatpush1.xpose.msra.mxu0 %v5650
        %7064 = vmatprep.subr.mxu0 0.0
        %7065 = vmatpush1.xpose.msra.mxu0 %v5652
        %7066 = vmatprep.subr.mxu0 0.0
        %7067 = vmatpush1.xpose.msra.mxu0 %v5654
        %7068 = vmatprep.subr.mxu0 0.0
        %7069 = vmatpush1.xpose.msra.mxu0 %v5656
        %7070 = vmatprep.subr.mxu0 0.0
        %7071 = vmatpush1.xpose.msra.mxu0 %v5658
        %7072 = vmatprep.subr.mxu0 0.0
        %7073 = vmatpush1.xpose.msra.mxu0 %v5660
        %7074 = vmatprep.subr.mxu0 0.0
        %7075 = vmatpush1.xpose.msra.mxu0 %v5662
        %7076 = vmatprep.subr.mxu0 0.0
        %7077 = vmatpush1.xpose.msra.mxu0 %v5664
        %7078 = vmatprep.subr.mxu0 0.0
        %7079 = vmatpush1.xpose.msra.mxu0 %v5666
        %7080 = vmatprep.subr.mxu0 0.0
        %7081 = vmatpush1.xpose.msra.mxu0 %v5668
        %7082 = vmatprep.subr.mxu0 0.0
        %7083 = vmatpush1.xpose.msra.mxu0 %v5670
        %7084 = vmatprep.subr.mxu0 0.0
        %7085 = vmatpush1.xpose.msra.mxu0 %v5672
        %7086 = vmatprep.subr.mxu0 0.0
        %7087 = vmatpush1.xpose.msra.mxu0 %v5674
        %7088 = vmatprep.subr.mxu0 0.0
        %7089 = vmatpush1.xpose.msra.mxu0 %v5676
        %7090 = vmatprep.subr.mxu0 0.0
        %7091 = vmatpush1.xpose.msra.mxu0 %v5678
        %7092 = vmatprep.subr.mxu0 0.0
        %7093 = vmatpush1.xpose.msra.mxu0 %v5680
        %7094 = vmatprep.subr.mxu0 0.0
        %7095 = vmatpush1.xpose.msra.mxu0 %v5682
        %7096 = vmatprep.subr.mxu0 0.0
        %7097 = vmatpush1.xpose.msra.mxu0 %v5684
        %7098 = vmatprep.subr.mxu0 0.0
        %7099 = vmatpush1.xpose.msra.mxu0 %v5686
        %7100 = vmatprep.subr.mxu0 0.0
        %7101 = vmatpush1.xpose.msra.mxu0 %v5688
        %7102 = vmatprep.subr.mxu0 0.0
        %7103 = vmatpush1.xpose.msra.mxu0 %v5690
        %7104 = vmatprep.subr.mxu0 0.0
        %7105 = vmatpush1.xpose.msra.mxu0 %v5692
        %7106 = vmatprep.subr.mxu0 0.0
        %7107 = vmatpush1.xpose.msra.mxu0 %v5694
        %7108 = vmatprep.subr.mxu0 0.0
        %7109 = vmatpush1.xpose.msra.mxu0 %v5696
        %7110 = vmatprep.subr.mxu0 0.0
        %7111 = vmatpush1.xpose.msra.mxu0 %v5698
        %7112 = vmatprep.subr.mxu0 0.0
        %7113 = vmatpush1.xpose.msra.mxu0 %v5700
        %7114 = vmatprep.subr.mxu0 0.0
        %7115 = vmatpush1.xpose.msra.mxu0 %v6834
        %7116 = vmatprep.subr.mxu0 0.0
        %7117 = vmatpush1.xpose.msra.mxu0 %v6837
        %7118 = vmatprep.subr.mxu0 0.0
        %7119 = vmatpush1.xpose.msra.mxu0 %v6840
        %7120 = vmatprep.subr.mxu0 0.0
        %7121 = vmatpush1.xpose.msra.mxu0 %v6843
        %7122 = vmatprep.mubr.f32.mxu0 0.0
        %7123 = vmatmul.mubr.f32.gmra.mrb[0].mxu0 %v6831
        %v7124 = vpop.f32.mrb[0].mxu0
        %v7125 = vadd.f32 0.0, %v7124
        %v7126 = vpop.f32.mrb[0].mxu0
        %v7127 = vadd.f32 0.0, %v7126
        %7128 = vdwg.mxu0
        %v7129 = vadd.f32 %v6820, %v6912
        %v7130 = vadd.f32 %v6821, %v6914
        %v7131 = vadd.f32 %v6822, %v6983
        %v7132 = vadd.f32 %v6823, %v6985
        %v7133 = vadd.f32 %v6824, %v7054
        %v7134 = vadd.f32 %v6825, %v7056
        %v7135 = vadd.f32 %v6826, %v7125
        %v7136 = vadd.f32 %v6827, %v7127
        %v7138 = vrot.slane %v4438, 1
        %v7139 = vrot.slane %v4439, 1
        %v7140 = vsel %vm4609, %v7138, %v7139
        %v7141 = vrot.slane %v4440, 1
        %v7142 = vsel %vm4609, %v7139, %v7141
        %v7143 = vrot.slane %v4441, 1
        %v7144 = vsel %vm4609, %v7141, %v7143
        %v7145 = vrot.slane %v4442, 1
        %v7146 = vsel %vm4609, %v7143, %v7145
        %s7147 = scalar_lea.vmem %s1, 32
        %v7148 = vld [vmem:[%s7147] sm:$0xff]
        %v7150 = vsel %vm2825, %v7148, 0
        %v7152 = vsel %vm2825, %v7140, 0
        %v7154 = vsel %vm2825, %v7142, 0
        %v7156 = vsel %vm2825, %v7144, 0
        %v7158 = vsel %vm2825, %v7146, 0
        %7160 = vmatprep.subr.mxu0 0.0
        %7161 = vmatpush1.xpose.msra.mxu0 %v4911
        %7162 = vmatprep.subr.mxu0 0.0
        %7163 = vmatpush1.xpose.msra.mxu0 %v4913
        %7164 = vmatprep.subr.mxu0 0.0
        %7165 = vmatpush1.xpose.msra.mxu0 %v4915
        %7166 = vmatprep.subr.mxu0 0.0
        %7167 = vmatpush1.xpose.msra.mxu0 %v4917
        %7168 = vmatprep.subr.mxu0 0.0
        %7169 = vmatpush1.xpose.msra.mxu0 %v4919
        %7170 = vmatprep.subr.mxu0 0.0
        %7171 = vmatpush1.xpose.msra.mxu0 %v4921
        %7172 = vmatprep.subr.mxu0 0.0
        %7173 = vmatpush1.xpose.msra.mxu0 %v4923
        %7174 = vmatprep.subr.mxu0 0.0
        %7175 = vmatpush1.xpose.msra.mxu0 %v4925
        %7176 = vmatprep.subr.mxu0 0.0
        %7177 = vmatpush1.xpose.msra.mxu0 %v4927
        %7178 = vmatprep.subr.mxu0 0.0
        %7179 = vmatpush1.xpose.msra.mxu0 %v4929
        %7180 = vmatprep.subr.mxu0 0.0
        %7181 = vmatpush1.xpose.msra.mxu0 %v4931
        %7182 = vmatprep.subr.mxu0 0.0
        %7183 = vmatpush1.xpose.msra.mxu0 %v4933
        %7184 = vmatprep.subr.mxu0 0.0
        %7185 = vmatpush1.xpose.msra.mxu0 %v4935
        %7186 = vmatprep.subr.mxu0 0.0
        %7187 = vmatpush1.xpose.msra.mxu0 %v4937
        %7188 = vmatprep.subr.mxu0 0.0
        %7189 = vmatpush1.xpose.msra.mxu0 %v4939
        %7190 = vmatprep.subr.mxu0 0.0
        %7191 = vmatpush1.xpose.msra.mxu0 %v4941
        %7192 = vmatprep.subr.mxu0 0.0
        %7193 = vmatpush1.xpose.msra.mxu0 %v4943
        %7194 = vmatprep.subr.mxu0 0.0
        %7195 = vmatpush1.xpose.msra.mxu0 %v4945
        %7196 = vmatprep.subr.mxu0 0.0
        %7197 = vmatpush1.xpose.msra.mxu0 %v4947
        %7198 = vmatprep.subr.mxu0 0.0
        %7199 = vmatpush1.xpose.msra.mxu0 %v4949
        %7200 = vmatprep.subr.mxu0 0.0
        %7201 = vmatpush1.xpose.msra.mxu0 %v4951
        %7202 = vmatprep.subr.mxu0 0.0
        %7203 = vmatpush1.xpose.msra.mxu0 %v4953
        %7204 = vmatprep.subr.mxu0 0.0
        %7205 = vmatpush1.xpose.msra.mxu0 %v4955
        %7206 = vmatprep.subr.mxu0 0.0
        %7207 = vmatpush1.xpose.msra.mxu0 %v4957
        %7208 = vmatprep.subr.mxu0 0.0
        %7209 = vmatpush1.xpose.msra.mxu0 %v4959
        %7210 = vmatprep.subr.mxu0 0.0
        %7211 = vmatpush1.xpose.msra.mxu0 %v4961
        %7212 = vmatprep.subr.mxu0 0.0
        %7213 = vmatpush1.xpose.msra.mxu0 %v4963
        %7214 = vmatprep.subr.mxu0 0.0
        %7215 = vmatpush1.xpose.msra.mxu0 %v4965
        %7216 = vmatprep.subr.mxu0 0.0
        %7217 = vmatpush1.xpose.msra.mxu0 %v4967
        %7218 = vmatprep.subr.mxu0 0.0
        %7219 = vmatpush1.xpose.msra.mxu0 %v4969
        %7220 = vmatprep.subr.mxu0 0.0
        %7221 = vmatpush1.xpose.msra.mxu0 %v4971
        %7222 = vmatprep.subr.mxu0 0.0
        %7223 = vmatpush1.xpose.msra.mxu0 %v4973
        %7224 = vmatprep.mubr.f32.mxu0 0.0
        %7225 = vmatmul.mubr.f32.gmra.mrb[0].mxu0 %v7150
        %v7226 = vpop.f32.mrb[0].mxu0
        %v7227 = vadd.f32 0.0, %v7226
        %v7228 = vpop.f32.mrb[0].mxu0
        %v7229 = vadd.f32 0.0, %v7228
        %7230 = vdwg.mxu0
        %7231 = vmatprep.subr.mxu0 0.0
        %7232 = vmatpush1.xpose.msra.mxu0 %v4975
        %7233 = vmatprep.subr.mxu0 0.0
        %7234 = vmatpush1.xpose.msra.mxu0 %v4977
        %7235 = vmatprep.subr.mxu0 0.0
        %7236 = vmatpush1.xpose.msra.mxu0 %v4979
        %7237 = vmatprep.subr.mxu0 0.0
        %7238 = vmatpush1.xpose.msra.mxu0 %v4981
        %7239 = vmatprep.subr.mxu0 0.0
        %7240 = vmatpush1.xpose.msra.mxu0 %v4983
        %7241 = vmatprep.subr.mxu0 0.0
        %7242 = vmatpush1.xpose.msra.mxu0 %v4985
        %7243 = vmatprep.subr.mxu0 0.0
        %7244 = vmatpush1.xpose.msra.mxu0 %v4987
        %7245 = vmatprep.subr.mxu0 0.0
        %7246 = vmatpush1.xpose.msra.mxu0 %v4989
        %7247 = vmatprep.subr.mxu0 0.0
        %7248 = vmatpush1.xpose.msra.mxu0 %v4991
        %7249 = vmatprep.subr.mxu0 0.0
        %7250 = vmatpush1.xpose.msra.mxu0 %v4993
        %7251 = vmatprep.subr.mxu0 0.0
        %7252 = vmatpush1.xpose.msra.mxu0 %v4995
        %7253 = vmatprep.subr.mxu0 0.0
        %7254 = vmatpush1.xpose.msra.mxu0 %v4997
        %7255 = vmatprep.subr.mxu0 0.0
        %7256 = vmatpush1.xpose.msra.mxu0 %v4999
        %7257 = vmatprep.subr.mxu0 0.0
        %7258 = vmatpush1.xpose.msra.mxu0 %v5001
        %7259 = vmatprep.subr.mxu0 0.0
        %7260 = vmatpush1.xpose.msra.mxu0 %v5003
        %7261 = vmatprep.subr.mxu0 0.0
        %7262 = vmatpush1.xpose.msra.mxu0 %v5005
        %7263 = vmatprep.subr.mxu0 0.0
        %7264 = vmatpush1.xpose.msra.mxu0 %v5007
        %7265 = vmatprep.subr.mxu0 0.0
        %7266 = vmatpush1.xpose.msra.mxu0 %v5009
        %7267 = vmatprep.subr.mxu0 0.0
        %7268 = vmatpush1.xpose.msra.mxu0 %v5011
        %7269 = vmatprep.subr.mxu0 0.0
        %7270 = vmatpush1.xpose.msra.mxu0 %v5013
        %7271 = vmatprep.subr.mxu0 0.0
        %7272 = vmatpush1.xpose.msra.mxu0 %v5015
        %7273 = vmatprep.subr.mxu0 0.0
        %7274 = vmatpush1.xpose.msra.mxu0 %v5017
        %7275 = vmatprep.subr.mxu0 0.0
        %7276 = vmatpush1.xpose.msra.mxu0 %v5019
        %7277 = vmatprep.subr.mxu0 0.0
        %7278 = vmatpush1.xpose.msra.mxu0 %v5021
        %7279 = vmatprep.subr.mxu0 0.0
        %7280 = vmatpush1.xpose.msra.mxu0 %v5023
        %7281 = vmatprep.subr.mxu0 0.0
        %7282 = vmatpush1.xpose.msra.mxu0 %v5025
        %7283 = vmatprep.subr.mxu0 0.0
        %7284 = vmatpush1.xpose.msra.mxu0 %v5027
        %7285 = vmatprep.subr.mxu0 0.0
        %7286 = vmatpush1.xpose.msra.mxu0 %v5029
        %7287 = vmatprep.subr.mxu0 0.0
        %7288 = vmatpush1.xpose.msra.mxu0 %v5031
        %7289 = vmatprep.subr.mxu0 0.0
        %7290 = vmatpush1.xpose.msra.mxu0 %v5033
        %7291 = vmatprep.subr.mxu0 0.0
        %7292 = vmatpush1.xpose.msra.mxu0 %v5035
        %7293 = vmatprep.subr.mxu0 0.0
        %7294 = vmatpush1.xpose.msra.mxu0 %v5037
        %7295 = vmatprep.mubr.f32.mxu0 0.0
        %7296 = vmatmul.mubr.f32.gmra.mrb[0].mxu0 %v7150
        %v7297 = vpop.f32.mrb[0].mxu0
        %v7298 = vadd.f32 0.0, %v7297
        %v7299 = vpop.f32.mrb[0].mxu0
        %v7300 = vadd.f32 0.0, %v7299
        %7301 = vdwg.mxu0
        %7302 = vmatprep.subr.mxu0 0.0
        %7303 = vmatpush1.xpose.msra.mxu0 %v5039
        %7304 = vmatprep.subr.mxu0 0.0
        %7305 = vmatpush1.xpose.msra.mxu0 %v5041
        %7306 = vmatprep.subr.mxu0 0.0
        %7307 = vmatpush1.xpose.msra.mxu0 %v5043
        %7308 = vmatprep.subr.mxu0 0.0
        %7309 = vmatpush1.xpose.msra.mxu0 %v5045
        %7310 = vmatprep.subr.mxu0 0.0
        %7311 = vmatpush1.xpose.msra.mxu0 %v5047
        %7312 = vmatprep.subr.mxu0 0.0
        %7313 = vmatpush1.xpose.msra.mxu0 %v5049
        %7314 = vmatprep.subr.mxu0 0.0
        %7315 = vmatpush1.xpose.msra.mxu0 %v5051
        %7316 = vmatprep.subr.mxu0 0.0
        %7317 = vmatpush1.xpose.msra.mxu0 %v5053
        %7318 = vmatprep.subr.mxu0 0.0
        %7319 = vmatpush1.xpose.msra.mxu0 %v5055
        %7320 = vmatprep.subr.mxu0 0.0
        %7321 = vmatpush1.xpose.msra.mxu0 %v5057
        %7322 = vmatprep.subr.mxu0 0.0
        %7323 = vmatpush1.xpose.msra.mxu0 %v5059
        %7324 = vmatprep.subr.mxu0 0.0
        %7325 = vmatpush1.xpose.msra.mxu0 %v5061
        %7326 = vmatprep.subr.mxu0 0.0
        %7327 = vmatpush1.xpose.msra.mxu0 %v5063
        %7328 = vmatprep.subr.mxu0 0.0
        %7329 = vmatpush1.xpose.msra.mxu0 %v5065
        %7330 = vmatprep.subr.mxu0 0.0
        %7331 = vmatpush1.xpose.msra.mxu0 %v5067
        %7332 = vmatprep.subr.mxu0 0.0
        %7333 = vmatpush1.xpose.msra.mxu0 %v5069
        %7334 = vmatprep.subr.mxu0 0.0
        %7335 = vmatpush1.xpose.msra.mxu0 %v5071
        %7336 = vmatprep.subr.mxu0 0.0
        %7337 = vmatpush1.xpose.msra.mxu0 %v5073
        %7338 = vmatprep.subr.mxu0 0.0
        %7339 = vmatpush1.xpose.msra.mxu0 %v5075
        %7340 = vmatprep.subr.mxu0 0.0
        %7341 = vmatpush1.xpose.msra.mxu0 %v5077
        %7342 = vmatprep.subr.mxu0 0.0
        %7343 = vmatpush1.xpose.msra.mxu0 %v5079
        %7344 = vmatprep.subr.mxu0 0.0
        %7345 = vmatpush1.xpose.msra.mxu0 %v5081
        %7346 = vmatprep.subr.mxu0 0.0
        %7347 = vmatpush1.xpose.msra.mxu0 %v5083
        %7348 = vmatprep.subr.mxu0 0.0
        %7349 = vmatpush1.xpose.msra.mxu0 %v5085
        %7350 = vmatprep.subr.mxu0 0.0
        %7351 = vmatpush1.xpose.msra.mxu0 %v5087
        %7352 = vmatprep.subr.mxu0 0.0
        %7353 = vmatpush1.xpose.msra.mxu0 %v5089
        %7354 = vmatprep.subr.mxu0 0.0
        %7355 = vmatpush1.xpose.msra.mxu0 %v5091
        %7356 = vmatprep.subr.mxu0 0.0
        %7357 = vmatpush1.xpose.msra.mxu0 %v5093
        %7358 = vmatprep.subr.mxu0 0.0
        %7359 = vmatpush1.xpose.msra.mxu0 %v5095
        %7360 = vmatprep.subr.mxu0 0.0
        %7361 = vmatpush1.xpose.msra.mxu0 %v5097
        %7362 = vmatprep.subr.mxu0 0.0
        %7363 = vmatpush1.xpose.msra.mxu0 %v5099
        %7364 = vmatprep.subr.mxu0 0.0
        %7365 = vmatpush1.xpose.msra.mxu0 %v5101
        %7366 = vmatprep.mubr.f32.mxu0 0.0
        %7367 = vmatmul.mubr.f32.gmra.mrb[0].mxu0 %v7150
        %v7368 = vpop.f32.mrb[0].mxu0
        %v7369 = vadd.f32 0.0, %v7368
        %v7370 = vpop.f32.mrb[0].mxu0
        %v7371 = vadd.f32 0.0, %v7370
        %7372 = vdwg.mxu0
        %7373 = vmatprep.subr.mxu0 0.0
        %7374 = vmatpush1.xpose.msra.mxu0 %v5103
        %7375 = vmatprep.subr.mxu0 0.0
        %7376 = vmatpush1.xpose.msra.mxu0 %v5105
        %7377 = vmatprep.subr.mxu0 0.0
        %7378 = vmatpush1.xpose.msra.mxu0 %v5107
        %7379 = vmatprep.subr.mxu0 0.0
        %7380 = vmatpush1.xpose.msra.mxu0 %v5109
        %7381 = vmatprep.subr.mxu0 0.0
        %7382 = vmatpush1.xpose.msra.mxu0 %v5111
        %7383 = vmatprep.subr.mxu0 0.0
        %7384 = vmatpush1.xpose.msra.mxu0 %v5113
        %7385 = vmatprep.subr.mxu0 0.0
        %7386 = vmatpush1.xpose.msra.mxu0 %v5115
        %7387 = vmatprep.subr.mxu0 0.0
        %7388 = vmatpush1.xpose.msra.mxu0 %v5117
        %7389 = vmatprep.subr.mxu0 0.0
        %7390 = vmatpush1.xpose.msra.mxu0 %v5119
        %7391 = vmatprep.subr.mxu0 0.0
        %7392 = vmatpush1.xpose.msra.mxu0 %v5121
        %7393 = vmatprep.subr.mxu0 0.0
        %7394 = vmatpush1.xpose.msra.mxu0 %v5123
        %7395 = vmatprep.subr.mxu0 0.0
        %7396 = vmatpush1.xpose.msra.mxu0 %v5125
        %7397 = vmatprep.subr.mxu0 0.0
        %7398 = vmatpush1.xpose.msra.mxu0 %v5127
        %7399 = vmatprep.subr.mxu0 0.0
        %7400 = vmatpush1.xpose.msra.mxu0 %v5129
        %7401 = vmatprep.subr.mxu0 0.0
        %7402 = vmatpush1.xpose.msra.mxu0 %v5131
        %7403 = vmatprep.subr.mxu0 0.0
        %7404 = vmatpush1.xpose.msra.mxu0 %v5133
        %7405 = vmatprep.subr.mxu0 0.0
        %7406 = vmatpush1.xpose.msra.mxu0 %v5135
        %7407 = vmatprep.subr.mxu0 0.0
        %7408 = vmatpush1.xpose.msra.mxu0 %v5137
        %7409 = vmatprep.subr.mxu0 0.0
        %7410 = vmatpush1.xpose.msra.mxu0 %v5139
        %7411 = vmatprep.subr.mxu0 0.0
        %7412 = vmatpush1.xpose.msra.mxu0 %v5141
        %7413 = vmatprep.subr.mxu0 0.0
        %7414 = vmatpush1.xpose.msra.mxu0 %v5143
        %7415 = vmatprep.subr.mxu0 0.0
        %7416 = vmatpush1.xpose.msra.mxu0 %v5145
        %7417 = vmatprep.subr.mxu0 0.0
        %7418 = vmatpush1.xpose.msra.mxu0 %v5147
        %7419 = vmatprep.subr.mxu0 0.0
        %7420 = vmatpush1.xpose.msra.mxu0 %v5149
        %7421 = vmatprep.subr.mxu0 0.0
        %7422 = vmatpush1.xpose.msra.mxu0 %v5151
        %7423 = vmatprep.subr.mxu0 0.0
        %7424 = vmatpush1.xpose.msra.mxu0 %v5153
        %7425 = vmatprep.subr.mxu0 0.0
        %7426 = vmatpush1.xpose.msra.mxu0 %v5155
        %7427 = vmatprep.subr.mxu0 0.0
        %7428 = vmatpush1.xpose.msra.mxu0 %v5157
        %7429 = vmatprep.subr.mxu0 0.0
        %7430 = vmatpush1.xpose.msra.mxu0 %v7152
        %7431 = vmatprep.subr.mxu0 0.0
        %7432 = vmatpush1.xpose.msra.mxu0 %v7154
        %7433 = vmatprep.subr.mxu0 0.0
        %7434 = vmatpush1.xpose.msra.mxu0 %v7156
        %7435 = vmatprep.subr.mxu0 0.0
        %7436 = vmatpush1.xpose.msra.mxu0 %v7158
        %7437 = vmatprep.mubr.f32.mxu0 0.0
        %7438 = vmatmul.mubr.f32.gmra.mrb[0].mxu0 %v7150
        %v7439 = vpop.f32.mrb[0].mxu0
        %v7440 = vadd.f32 0.0, %v7439
        %v7441 = vpop.f32.mrb[0].mxu0
        %v7442 = vadd.f32 0.0, %v7441
        %7443 = vdwg.mxu0
        %v7444 = vadd.f32 %v7129, %v7227
        %v7445 = vadd.f32 %v7130, %v7229
        %v7446 = vadd.f32 %v7131, %v7298
        %v7447 = vadd.f32 %v7132, %v7300
        %v7448 = vadd.f32 %v7133, %v7369
        %v7449 = vadd.f32 %v7134, %v7371
        %v7450 = vadd.f32 %v7135, %v7440
        %v7451 = vadd.f32 %v7136, %v7442
        %v7452 = vrot.slane %v4438, 2
        %v7453 = vrot.slane %v4439, 2
        %v7454 = vsel %vm5986, %v7452, %v7453
        %v7455 = vrot.slane %v4440, 2
        %v7456 = vsel %vm5986, %v7453, %v7455
        %v7457 = vrot.slane %v4441, 2
        %v7458 = vsel %vm5986, %v7455, %v7457
        %v7459 = vrot.slane %v4442, 2
        %v7460 = vsel %vm5986, %v7457, %v7459
        %s7461 = scalar_lea.vmem %s1, 40
        %v7462 = vld [vmem:[%s7461] sm:$0xff]
        %v7464 = vsel %vm2825, %v7462, 0
        %v7466 = vsel %vm2825, %v7454, 0
        %v7468 = vsel %vm2825, %v7456, 0
        %v7470 = vsel %vm2825, %v7458, 0
        %v7472 = vsel %vm2825, %v7460, 0
        %7474 = vmatprep.subr.mxu0 0.0
        %7475 = vmatpush1.xpose.msra.mxu0 %v6288
        %7476 = vmatprep.subr.mxu0 0.0
        %7477 = vmatpush1.xpose.msra.mxu0 %v6290
        %7478 = vmatprep.subr.mxu0 0.0
        %7479 = vmatpush1.xpose.msra.mxu0 %v6292
        %7480 = vmatprep.subr.mxu0 0.0
        %7481 = vmatpush1.xpose.msra.mxu0 %v6294
        %7482 = vmatprep.subr.mxu0 0.0
        %7483 = vmatpush1.xpose.msra.mxu0 %v6296
        %7484 = vmatprep.subr.mxu0 0.0
        %7485 = vmatpush1.xpose.msra.mxu0 %v6298
        %7486 = vmatprep.subr.mxu0 0.0
        %7487 = vmatpush1.xpose.msra.mxu0 %v6300
        %7488 = vmatprep.subr.mxu0 0.0
        %7489 = vmatpush1.xpose.msra.mxu0 %v6302
        %7490 = vmatprep.subr.mxu0 0.0
        %7491 = vmatpush1.xpose.msra.mxu0 %v6304
        %7492 = vmatprep.subr.mxu0 0.0
        %7493 = vmatpush1.xpose.msra.mxu0 %v6306
        %7494 = vmatprep.subr.mxu0 0.0
        %7495 = vmatpush1.xpose.msra.mxu0 %v6308
        %7496 = vmatprep.subr.mxu0 0.0
        %7497 = vmatpush1.xpose.msra.mxu0 %v6310
        %7498 = vmatprep.subr.mxu0 0.0
        %7499 = vmatpush1.xpose.msra.mxu0 %v6312
        %7500 = vmatprep.subr.mxu0 0.0
        %7501 = vmatpush1.xpose.msra.mxu0 %v6314
        %7502 = vmatprep.subr.mxu0 0.0
        %7503 = vmatpush1.xpose.msra.mxu0 %v6316
        %7504 = vmatprep.subr.mxu0 0.0
        %7505 = vmatpush1.xpose.msra.mxu0 %v6318
        %7506 = vmatprep.subr.mxu0 0.0
        %7507 = vmatpush1.xpose.msra.mxu0 %v6320
        %7508 = vmatprep.subr.mxu0 0.0
        %7509 = vmatpush1.xpose.msra.mxu0 %v6322
        %7510 = vmatprep.subr.mxu0 0.0
        %7511 = vmatpush1.xpose.msra.mxu0 %v6324
        %7512 = vmatprep.subr.mxu0 0.0
        %7513 = vmatpush1.xpose.msra.mxu0 %v6326
        %7514 = vmatprep.subr.mxu0 0.0
        %7515 = vmatpush1.xpose.msra.mxu0 %v6328
        %7516 = vmatprep.subr.mxu0 0.0
        %7517 = vmatpush1.xpose.msra.mxu0 %v6330
        %7518 = vmatprep.subr.mxu0 0.0
        %7519 = vmatpush1.xpose.msra.mxu0 %v6332
        %7520 = vmatprep.subr.mxu0 0.0
        %7521 = vmatpush1.xpose.msra.mxu0 %v6334
        %7522 = vmatprep.subr.mxu0 0.0
        %7523 = vmatpush1.xpose.msra.mxu0 %v6336
        %7524 = vmatprep.subr.mxu0 0.0
        %7525 = vmatpush1.xpose.msra.mxu0 %v6338
        %7526 = vmatprep.subr.mxu0 0.0
        %7527 = vmatpush1.xpose.msra.mxu0 %v6340
        %7528 = vmatprep.subr.mxu0 0.0
        %7529 = vmatpush1.xpose.msra.mxu0 %v6342
        %7530 = vmatprep.subr.mxu0 0.0
        %7531 = vmatpush1.xpose.msra.mxu0 %v6344
        %7532 = vmatprep.subr.mxu0 0.0
        %7533 = vmatpush1.xpose.msra.mxu0 %v6346
        %7534 = vmatprep.subr.mxu0 0.0
        %7535 = vmatpush1.xpose.msra.mxu0 %v6348
        %7536 = vmatprep.subr.mxu0 0.0
        %7537 = vmatpush1.xpose.msra.mxu0 %v6350
        %7538 = vmatprep.mubr.f32.mxu0 0.0
        %7539 = vmatmul.mubr.f32.gmra.mrb[0].mxu0 %v7464
        %v7540 = vpop.f32.mrb[0].mxu0
        %v7541 = vadd.f32 0.0, %v7540
        %v7542 = vpop.f32.mrb[0].mxu0
        %v7543 = vadd.f32 0.0, %v7542
        %7544 = vdwg.mxu0
        %7545 = vmatprep.subr.mxu0 0.0
        %7546 = vmatpush1.xpose.msra.mxu0 %v6352
        %7547 = vmatprep.subr.mxu0 0.0
        %7548 = vmatpush1.xpose.msra.mxu0 %v6354
        %7549 = vmatprep.subr.mxu0 0.0
        %7550 = vmatpush1.xpose.msra.mxu0 %v6356
        %7551 = vmatprep.subr.mxu0 0.0
        %7552 = vmatpush1.xpose.msra.mxu0 %v6358
        %7553 = vmatprep.subr.mxu0 0.0
        %7554 = vmatpush1.xpose.msra.mxu0 %v6360
        %7555 = vmatprep.subr.mxu0 0.0
        %7556 = vmatpush1.xpose.msra.mxu0 %v6362
        %7557 = vmatprep.subr.mxu0 0.0
        %7558 = vmatpush1.xpose.msra.mxu0 %v6364
        %7559 = vmatprep.subr.mxu0 0.0
        %7560 = vmatpush1.xpose.msra.mxu0 %v6366
        %7561 = vmatprep.subr.mxu0 0.0
        %7562 = vmatpush1.xpose.msra.mxu0 %v6368
        %7563 = vmatprep.subr.mxu0 0.0
        %7564 = vmatpush1.xpose.msra.mxu0 %v6370
        %7565 = vmatprep.subr.mxu0 0.0
        %7566 = vmatpush1.xpose.msra.mxu0 %v6372
        %7567 = vmatprep.subr.mxu0 0.0
        %7568 = vmatpush1.xpose.msra.mxu0 %v6374
        %7569 = vmatprep.subr.mxu0 0.0
        %7570 = vmatpush1.xpose.msra.mxu0 %v6376
        %7571 = vmatprep.subr.mxu0 0.0
        %7572 = vmatpush1.xpose.msra.mxu0 %v6378
        %7573 = vmatprep.subr.mxu0 0.0
        %7574 = vmatpush1.xpose.msra.mxu0 %v6380
        %7575 = vmatprep.subr.mxu0 0.0
        %7576 = vmatpush1.xpose.msra.mxu0 %v6382
        %7577 = vmatprep.subr.mxu0 0.0
        %7578 = vmatpush1.xpose.msra.mxu0 %v6384
        %7579 = vmatprep.subr.mxu0 0.0
        %7580 = vmatpush1.xpose.msra.mxu0 %v6386
        %7581 = vmatprep.subr.mxu0 0.0
        %7582 = vmatpush1.xpose.msra.mxu0 %v6388
        %7583 = vmatprep.subr.mxu0 0.0
        %7584 = vmatpush1.xpose.msra.mxu0 %v6390
        %7585 = vmatprep.subr.mxu0 0.0
        %7586 = vmatpush1.xpose.msra.mxu0 %v6392
        %7587 = vmatprep.subr.mxu0 0.0
        %7588 = vmatpush1.xpose.msra.mxu0 %v6394
        %7589 = vmatprep.subr.mxu0 0.0
        %7590 = vmatpush1.xpose.msra.mxu0 %v6396
        %7591 = vmatprep.subr.mxu0 0.0
        %7592 = vmatpush1.xpose.msra.mxu0 %v6398
        %7593 = vmatprep.subr.mxu0 0.0
        %7594 = vmatpush1.xpose.msra.mxu0 %v6400
        %7595 = vmatprep.subr.mxu0 0.0
        %7596 = vmatpush1.xpose.msra.mxu0 %v6402
        %7597 = vmatprep.subr.mxu0 0.0
        %7598 = vmatpush1.xpose.msra.mxu0 %v6404
        %7599 = vmatprep.subr.mxu0 0.0
        %7600 = vmatpush1.xpose.msra.mxu0 %v6406
        %7601 = vmatprep.subr.mxu0 0.0
        %7602 = vmatpush1.xpose.msra.mxu0 %v6408
        %7603 = vmatprep.subr.mxu0 0.0
        %7604 = vmatpush1.xpose.msra.mxu0 %v6410
        %7605 = vmatprep.subr.mxu0 0.0
        %7606 = vmatpush1.xpose.msra.mxu0 %v6412
        %7607 = vmatprep.subr.mxu0 0.0
        %7608 = vmatpush1.xpose.msra.mxu0 %v6414
        %7609 = vmatprep.mubr.f32.mxu0 0.0
        %7610 = vmatmul.mubr.f32.gmra.mrb[0].mxu0 %v7464
        %v7611 = vpop.f32.mrb[0].mxu0
        %v7612 = vadd.f32 0.0, %v7611
        %v7613 = vpop.f32.mrb[0].mxu0
        %v7614 = vadd.f32 0.0, %v7613
        %7615 = vdwg.mxu0
        %7616 = vmatprep.subr.mxu0 0.0
        %7617 = vmatpush1.xpose.msra.mxu0 %v6416
        %7618 = vmatprep.subr.mxu0 0.0
        %7619 = vmatpush1.xpose.msra.mxu0 %v6418
        %7620 = vmatprep.subr.mxu0 0.0
        %7621 = vmatpush1.xpose.msra.mxu0 %v6420
        %7622 = vmatprep.subr.mxu0 0.0
        %7623 = vmatpush1.xpose.msra.mxu0 %v6422
        %7624 = vmatprep.subr.mxu0 0.0
        %7625 = vmatpush1.xpose.msra.mxu0 %v6424
        %7626 = vmatprep.subr.mxu0 0.0
        %7627 = vmatpush1.xpose.msra.mxu0 %v6426
        %7628 = vmatprep.subr.mxu0 0.0
        %7629 = vmatpush1.xpose.msra.mxu0 %v6428
        %7630 = vmatprep.subr.mxu0 0.0
        %7631 = vmatpush1.xpose.msra.mxu0 %v6430
        %7632 = vmatprep.subr.mxu0 0.0
        %7633 = vmatpush1.xpose.msra.mxu0 %v6432
        %7634 = vmatprep.subr.mxu0 0.0
        %7635 = vmatpush1.xpose.msra.mxu0 %v6434
        %7636 = vmatprep.subr.mxu0 0.0
        %7637 = vmatpush1.xpose.msra.mxu0 %v6436
        %7638 = vmatprep.subr.mxu0 0.0
        %7639 = vmatpush1.xpose.msra.mxu0 %v6438
        %7640 = vmatprep.subr.mxu0 0.0
        %7641 = vmatpush1.xpose.msra.mxu0 %v6440
        %7642 = vmatprep.subr.mxu0 0.0
        %7643 = vmatpush1.xpose.msra.mxu0 %v6442
        %7644 = vmatprep.subr.mxu0 0.0
        %7645 = vmatpush1.xpose.msra.mxu0 %v6444
        %7646 = vmatprep.subr.mxu0 0.0
        %7647 = vmatpush1.xpose.msra.mxu0 %v6446
        %7648 = vmatprep.subr.mxu0 0.0
        %7649 = vmatpush1.xpose.msra.mxu0 %v6448
        %7650 = vmatprep.subr.mxu0 0.0
        %7651 = vmatpush1.xpose.msra.mxu0 %v6450
        %7652 = vmatprep.subr.mxu0 0.0
        %7653 = vmatpush1.xpose.msra.mxu0 %v6452
        %7654 = vmatprep.subr.mxu0 0.0
        %7655 = vmatpush1.xpose.msra.mxu0 %v6454
        %7656 = vmatprep.subr.mxu0 0.0
        %7657 = vmatpush1.xpose.msra.mxu0 %v6456
        %7658 = vmatprep.subr.mxu0 0.0
        %7659 = vmatpush1.xpose.msra.mxu0 %v6458
        %7660 = vmatprep.subr.mxu0 0.0
        %7661 = vmatpush1.xpose.msra.mxu0 %v6460
        %7662 = vmatprep.subr.mxu0 0.0
        %7663 = vmatpush1.xpose.msra.mxu0 %v6462
        %7664 = vmatprep.subr.mxu0 0.0
        %7665 = vmatpush1.xpose.msra.mxu0 %v6464
        %7666 = vmatprep.subr.mxu0 0.0
        %7667 = vmatpush1.xpose.msra.mxu0 %v6466
        %7668 = vmatprep.subr.mxu0 0.0
        %7669 = vmatpush1.xpose.msra.mxu0 %v6468
        %7670 = vmatprep.subr.mxu0 0.0
        %7671 = vmatpush1.xpose.msra.mxu0 %v6470
        %7672 = vmatprep.subr.mxu0 0.0
        %7673 = vmatpush1.xpose.msra.mxu0 %v6472
        %7674 = vmatprep.subr.mxu0 0.0
        %7675 = vmatpush1.xpose.msra.mxu0 %v6474
        %7676 = vmatprep.subr.mxu0 0.0
        %7677 = vmatpush1.xpose.msra.mxu0 %v6476
        %7678 = vmatprep.subr.mxu0 0.0
        %7679 = vmatpush1.xpose.msra.mxu0 %v6478
        %7680 = vmatprep.mubr.f32.mxu0 0.0
        %7681 = vmatmul.mubr.f32.gmra.mrb[0].mxu0 %v7464
        %v7682 = vpop.f32.mrb[0].mxu0
        %v7683 = vadd.f32 0.0, %v7682
        %v7684 = vpop.f32.mrb[0].mxu0
        %v7685 = vadd.f32 0.0, %v7684
        %7686 = vdwg.mxu0
        %7687 = vmatprep.subr.mxu0 0.0
        %7688 = vmatpush1.xpose.msra.mxu0 %v6480
        %7689 = vmatprep.subr.mxu0 0.0
        %7690 = vmatpush1.xpose.msra.mxu0 %v6482
        %7691 = vmatprep.subr.mxu0 0.0
        %7692 = vmatpush1.xpose.msra.mxu0 %v6484
        %7693 = vmatprep.subr.mxu0 0.0
        %7694 = vmatpush1.xpose.msra.mxu0 %v6486
        %7695 = vmatprep.subr.mxu0 0.0
        %7696 = vmatpush1.xpose.msra.mxu0 %v6488
        %7697 = vmatprep.subr.mxu0 0.0
        %7698 = vmatpush1.xpose.msra.mxu0 %v6490
        %7699 = vmatprep.subr.mxu0 0.0
        %7700 = vmatpush1.xpose.msra.mxu0 %v6492
        %7701 = vmatprep.subr.mxu0 0.0
        %7702 = vmatpush1.xpose.msra.mxu0 %v6494
        %7703 = vmatprep.subr.mxu0 0.0
        %7704 = vmatpush1.xpose.msra.mxu0 %v6496
        %7705 = vmatprep.subr.mxu0 0.0
        %7706 = vmatpush1.xpose.msra.mxu0 %v6498
        %7707 = vmatprep.subr.mxu0 0.0
        %7708 = vmatpush1.xpose.msra.mxu0 %v6500
        %7709 = vmatprep.subr.mxu0 0.0
        %7710 = vmatpush1.xpose.msra.mxu0 %v6502
        %7711 = vmatprep.subr.mxu0 0.0
        %7712 = vmatpush1.xpose.msra.mxu0 %v6504
        %7713 = vmatprep.subr.mxu0 0.0
        %7714 = vmatpush1.xpose.msra.mxu0 %v6506
        %7715 = vmatprep.subr.mxu0 0.0
        %7716 = vmatpush1.xpose.msra.mxu0 %v6508
        %7717 = vmatprep.subr.mxu0 0.0
        %7718 = vmatpush1.xpose.msra.mxu0 %v6510
        %7719 = vmatprep.subr.mxu0 0.0
        %7720 = vmatpush1.xpose.msra.mxu0 %v6512
        %7721 = vmatprep.subr.mxu0 0.0
        %7722 = vmatpush1.xpose.msra.mxu0 %v6514
        %7723 = vmatprep.subr.mxu0 0.0
        %7724 = vmatpush1.xpose.msra.mxu0 %v6516
        %7725 = vmatprep.subr.mxu0 0.0
        %7726 = vmatpush1.xpose.msra.mxu0 %v6518
        %7727 = vmatprep.subr.mxu0 0.0
        %7728 = vmatpush1.xpose.msra.mxu0 %v6520
        %7729 = vmatprep.subr.mxu0 0.0
        %7730 = vmatpush1.xpose.msra.mxu0 %v6522
        %7731 = vmatprep.subr.mxu0 0.0
        %7732 = vmatpush1.xpose.msra.mxu0 %v6524
        %7733 = vmatprep.subr.mxu0 0.0
        %7734 = vmatpush1.xpose.msra.mxu0 %v6526
        %7735 = vmatprep.subr.mxu0 0.0
        %7736 = vmatpush1.xpose.msra.mxu0 %v6528
        %7737 = vmatprep.subr.mxu0 0.0
        %7738 = vmatpush1.xpose.msra.mxu0 %v6530
        %7739 = vmatprep.subr.mxu0 0.0
        %7740 = vmatpush1.xpose.msra.mxu0 %v6532
        %7741 = vmatprep.subr.mxu0 0.0
        %7742 = vmatpush1.xpose.msra.mxu0 %v6534
        %7743 = vmatprep.subr.mxu0 0.0
        %7744 = vmatpush1.xpose.msra.mxu0 %v7466
        %7745 = vmatprep.subr.mxu0 0.0
        %7746 = vmatpush1.xpose.msra.mxu0 %v7468
        %7747 = vmatprep.subr.mxu0 0.0
        %7748 = vmatpush1.xpose.msra.mxu0 %v7470
        %7749 = vmatprep.subr.mxu0 0.0
        %7750 = vmatpush1.xpose.msra.mxu0 %v7472
        %7751 = vmatprep.mubr.f32.mxu0 0.0
        %7752 = vmatmul.mubr.f32.gmra.mrb[0].mxu0 %v7464
        %v7753 = vpop.f32.mrb[0].mxu0
        %v7754 = vadd.f32 0.0, %v7753
        %v7755 = vpop.f32.mrb[0].mxu0
        %v7756 = vadd.f32 0.0, %v7755
        %7757 = vdwg.mxu0
        %v7758 = vadd.f32 %v7444, %v7541
        %v7759 = vadd.f32 %v7445, %v7543
        %v7760 = vadd.f32 %v7446, %v7612
        %v7761 = vadd.f32 %v7447, %v7614
        %v7762 = vadd.f32 %v7448, %v7683
        %v7763 = vadd.f32 %v7449, %v7685
        %v7764 = vadd.f32 %v7450, %v7754
        %v7765 = vadd.f32 %v7451, %v7756
        %s7766 = scalar_lea.vmem %s1, 48
        %v7767 = vld [vmem:[%s7766] sm:$0xff]
        %v7769 = vsel %vm2825, %v7767, 0
        %v7772 = vsel %vm2825, %v4443, 0
        %v7775 = vsel %vm2825, %v4444, 0
        %v7778 = vsel %vm2825, %v4445, 0
        %v7781 = vsel %vm2825, %v4446, 0
        %7783 = vmatprep.subr.mxu0 0.0
        %7784 = vmatpush1.xpose.msra.mxu0 %v5462
        %7785 = vmatprep.subr.mxu0 0.0
        %7786 = vmatpush1.xpose.msra.mxu0 %v5464
        %7787 = vmatprep.subr.mxu0 0.0
        %7788 = vmatpush1.xpose.msra.mxu0 %v5466
        %7789 = vmatprep.subr.mxu0 0.0
        %7790 = vmatpush1.xpose.msra.mxu0 %v5468
        %7791 = vmatprep.subr.mxu0 0.0
        %7792 = vmatpush1.xpose.msra.mxu0 %v5470
        %7793 = vmatprep.subr.mxu0 0.0
        %7794 = vmatpush1.xpose.msra.mxu0 %v5472
        %7795 = vmatprep.subr.mxu0 0.0
        %7796 = vmatpush1.xpose.msra.mxu0 %v5474
        %7797 = vmatprep.subr.mxu0 0.0
        %7798 = vmatpush1.xpose.msra.mxu0 %v5476
        %7799 = vmatprep.subr.mxu0 0.0
        %7800 = vmatpush1.xpose.msra.mxu0 %v5478
        %7801 = vmatprep.subr.mxu0 0.0
        %7802 = vmatpush1.xpose.msra.mxu0 %v5480
        %7803 = vmatprep.subr.mxu0 0.0
        %7804 = vmatpush1.xpose.msra.mxu0 %v5482
        %7805 = vmatprep.subr.mxu0 0.0
        %7806 = vmatpush1.xpose.msra.mxu0 %v5484
        %7807 = vmatprep.subr.mxu0 0.0
        %7808 = vmatpush1.xpose.msra.mxu0 %v5486
        %7809 = vmatprep.subr.mxu0 0.0
        %7810 = vmatpush1.xpose.msra.mxu0 %v5488
        %7811 = vmatprep.subr.mxu0 0.0
        %7812 = vmatpush1.xpose.msra.mxu0 %v5490
        %7813 = vmatprep.subr.mxu0 0.0
        %7814 = vmatpush1.xpose.msra.mxu0 %v5492
        %7815 = vmatprep.subr.mxu0 0.0
        %7816 = vmatpush1.xpose.msra.mxu0 %v5494
        %7817 = vmatprep.subr.mxu0 0.0
        %7818 = vmatpush1.xpose.msra.mxu0 %v5496
        %7819 = vmatprep.subr.mxu0 0.0
        %7820 = vmatpush1.xpose.msra.mxu0 %v5498
        %7821 = vmatprep.subr.mxu0 0.0
        %7822 = vmatpush1.xpose.msra.mxu0 %v5500
        %7823 = vmatprep.subr.mxu0 0.0
        %7824 = vmatpush1.xpose.msra.mxu0 %v5502
        %7825 = vmatprep.subr.mxu0 0.0
        %7826 = vmatpush1.xpose.msra.mxu0 %v5504
        %7827 = vmatprep.subr.mxu0 0.0
        %7828 = vmatpush1.xpose.msra.mxu0 %v5506
        %7829 = vmatprep.subr.mxu0 0.0
        %7830 = vmatpush1.xpose.msra.mxu0 %v5508
        %7831 = vmatprep.subr.mxu0 0.0
        %7832 = vmatpush1.xpose.msra.mxu0 %v5510
        %7833 = vmatprep.subr.mxu0 0.0
        %7834 = vmatpush1.xpose.msra.mxu0 %v5512
        %7835 = vmatprep.subr.mxu0 0.0
        %7836 = vmatpush1.xpose.msra.mxu0 %v5514
        %7837 = vmatprep.subr.mxu0 0.0
        %7838 = vmatpush1.xpose.msra.mxu0 %v5516
        %7839 = vmatprep.subr.mxu0 0.0
        %7840 = vmatpush1.xpose.msra.mxu0 %v5518
        %7841 = vmatprep.subr.mxu0 0.0
        %7842 = vmatpush1.xpose.msra.mxu0 %v5520
        %7843 = vmatprep.subr.mxu0 0.0
        %7844 = vmatpush1.xpose.msra.mxu0 %v5522
        %7845 = vmatprep.subr.mxu0 0.0
        %7846 = vmatpush1.xpose.msra.mxu0 %v5524
        %7847 = vmatprep.mubr.f32.mxu0 0.0
        %7848 = vmatmul.mubr.f32.gmra.mrb[0].mxu0 %v7769
        %v7849 = vpop.f32.mrb[0].mxu0
        %v7850 = vadd.f32 0.0, %v7849
        %v7851 = vpop.f32.mrb[0].mxu0
        %v7852 = vadd.f32 0.0, %v7851
        %7853 = vdwg.mxu0
        %7854 = vmatprep.subr.mxu0 0.0
        %7855 = vmatpush1.xpose.msra.mxu0 %v5526
        %7856 = vmatprep.subr.mxu0 0.0
        %7857 = vmatpush1.xpose.msra.mxu0 %v5528
        %7858 = vmatprep.subr.mxu0 0.0
        %7859 = vmatpush1.xpose.msra.mxu0 %v5530
        %7860 = vmatprep.subr.mxu0 0.0
        %7861 = vmatpush1.xpose.msra.mxu0 %v5532
        %7862 = vmatprep.subr.mxu0 0.0
        %7863 = vmatpush1.xpose.msra.mxu0 %v5534
        %7864 = vmatprep.subr.mxu0 0.0
        %7865 = vmatpush1.xpose.msra.mxu0 %v5536
        %7866 = vmatprep.subr.mxu0 0.0
        %7867 = vmatpush1.xpose.msra.mxu0 %v5538
        %7868 = vmatprep.subr.mxu0 0.0
        %7869 = vmatpush1.xpose.msra.mxu0 %v5540
        %7870 = vmatprep.subr.mxu0 0.0
        %7871 = vmatpush1.xpose.msra.mxu0 %v5542
        %7872 = vmatprep.subr.mxu0 0.0
        %7873 = vmatpush1.xpose.msra.mxu0 %v5544
        %7874 = vmatprep.subr.mxu0 0.0
        %7875 = vmatpush1.xpose.msra.mxu0 %v5546
        %7876 = vmatprep.subr.mxu0 0.0
        %7877 = vmatpush1.xpose.msra.mxu0 %v5548
        %7878 = vmatprep.subr.mxu0 0.0
        %7879 = vmatpush1.xpose.msra.mxu0 %v5550
        %7880 = vmatprep.subr.mxu0 0.0
        %7881 = vmatpush1.xpose.msra.mxu0 %v5552
        %7882 = vmatprep.subr.mxu0 0.0
        %7883 = vmatpush1.xpose.msra.mxu0 %v5554
        %7884 = vmatprep.subr.mxu0 0.0
        %7885 = vmatpush1.xpose.msra.mxu0 %v5556
        %7886 = vmatprep.subr.mxu0 0.0
        %7887 = vmatpush1.xpose.msra.mxu0 %v5558
        %7888 = vmatprep.subr.mxu0 0.0
        %7889 = vmatpush1.xpose.msra.mxu0 %v5560
        %7890 = vmatprep.subr.mxu0 0.0
        %7891 = vmatpush1.xpose.msra.mxu0 %v5562
        %7892 = vmatprep.subr.mxu0 0.0
        %7893 = vmatpush1.xpose.msra.mxu0 %v5564
        %7894 = vmatprep.subr.mxu0 0.0
        %7895 = vmatpush1.xpose.msra.mxu0 %v5566
        %7896 = vmatprep.subr.mxu0 0.0
        %7897 = vmatpush1.xpose.msra.mxu0 %v5568
        %7898 = vmatprep.subr.mxu0 0.0
        %7899 = vmatpush1.xpose.msra.mxu0 %v5570
        %7900 = vmatprep.subr.mxu0 0.0
        %7901 = vmatpush1.xpose.msra.mxu0 %v5572
        %7902 = vmatprep.subr.mxu0 0.0
        %7903 = vmatpush1.xpose.msra.mxu0 %v5574
        %7904 = vmatprep.subr.mxu0 0.0
        %7905 = vmatpush1.xpose.msra.mxu0 %v5576
        %7906 = vmatprep.subr.mxu0 0.0
        %7907 = vmatpush1.xpose.msra.mxu0 %v5578
        %7908 = vmatprep.subr.mxu0 0.0
        %7909 = vmatpush1.xpose.msra.mxu0 %v5580
        %7910 = vmatprep.subr.mxu0 0.0
        %7911 = vmatpush1.xpose.msra.mxu0 %v5582
        %7912 = vmatprep.subr.mxu0 0.0
        %7913 = vmatpush1.xpose.msra.mxu0 %v5584
        %7914 = vmatprep.subr.mxu0 0.0
        %7915 = vmatpush1.xpose.msra.mxu0 %v5586
        %7916 = vmatprep.subr.mxu0 0.0
        %7917 = vmatpush1.xpose.msra.mxu0 %v5588
        %7918 = vmatprep.mubr.f32.mxu0 0.0
        %7919 = vmatmul.mubr.f32.gmra.mrb[0].mxu0 %v7769
        %v7920 = vpop.f32.mrb[0].mxu0
        %v7921 = vadd.f32 0.0, %v7920
        %v7922 = vpop.f32.mrb[0].mxu0
        %v7923 = vadd.f32 0.0, %v7922
        %7924 = vdwg.mxu0
        %7925 = vmatprep.subr.mxu0 0.0
        %7926 = vmatpush1.xpose.msra.mxu0 %v5590
        %7927 = vmatprep.subr.mxu0 0.0
        %7928 = vmatpush1.xpose.msra.mxu0 %v5592
        %7929 = vmatprep.subr.mxu0 0.0
        %7930 = vmatpush1.xpose.msra.mxu0 %v5594
        %7931 = vmatprep.subr.mxu0 0.0
        %7932 = vmatpush1.xpose.msra.mxu0 %v5596
        %7933 = vmatprep.subr.mxu0 0.0
        %7934 = vmatpush1.xpose.msra.mxu0 %v5598
        %7935 = vmatprep.subr.mxu0 0.0
        %7936 = vmatpush1.xpose.msra.mxu0 %v5600
        %7937 = vmatprep.subr.mxu0 0.0
        %7938 = vmatpush1.xpose.msra.mxu0 %v5602
        %7939 = vmatprep.subr.mxu0 0.0
        %7940 = vmatpush1.xpose.msra.mxu0 %v5604
        %7941 = vmatprep.subr.mxu0 0.0
        %7942 = vmatpush1.xpose.msra.mxu0 %v5606
        %7943 = vmatprep.subr.mxu0 0.0
        %7944 = vmatpush1.xpose.msra.mxu0 %v5608
        %7945 = vmatprep.subr.mxu0 0.0
        %7946 = vmatpush1.xpose.msra.mxu0 %v5610
        %7947 = vmatprep.subr.mxu0 0.0
        %7948 = vmatpush1.xpose.msra.mxu0 %v5612
        %7949 = vmatprep.subr.mxu0 0.0
        %7950 = vmatpush1.xpose.msra.mxu0 %v5614
        %7951 = vmatprep.subr.mxu0 0.0
        %7952 = vmatpush1.xpose.msra.mxu0 %v5616
        %7953 = vmatprep.subr.mxu0 0.0
        %7954 = vmatpush1.xpose.msra.mxu0 %v5618
        %7955 = vmatprep.subr.mxu0 0.0
        %7956 = vmatpush1.xpose.msra.mxu0 %v5620
        %7957 = vmatprep.subr.mxu0 0.0
        %7958 = vmatpush1.xpose.msra.mxu0 %v5622
        %7959 = vmatprep.subr.mxu0 0.0
        %7960 = vmatpush1.xpose.msra.mxu0 %v5624
        %7961 = vmatprep.subr.mxu0 0.0
        %7962 = vmatpush1.xpose.msra.mxu0 %v5626
        %7963 = vmatprep.subr.mxu0 0.0
        %7964 = vmatpush1.xpose.msra.mxu0 %v5628
        %7965 = vmatprep.subr.mxu0 0.0
        %7966 = vmatpush1.xpose.msra.mxu0 %v5630
        %7967 = vmatprep.subr.mxu0 0.0
        %7968 = vmatpush1.xpose.msra.mxu0 %v5632
        %7969 = vmatprep.subr.mxu0 0.0
        %7970 = vmatpush1.xpose.msra.mxu0 %v5634
        %7971 = vmatprep.subr.mxu0 0.0
        %7972 = vmatpush1.xpose.msra.mxu0 %v5636
        %7973 = vmatprep.subr.mxu0 0.0
        %7974 = vmatpush1.xpose.msra.mxu0 %v5638
        %7975 = vmatprep.subr.mxu0 0.0
        %7976 = vmatpush1.xpose.msra.mxu0 %v5640
        %7977 = vmatprep.subr.mxu0 0.0
        %7978 = vmatpush1.xpose.msra.mxu0 %v5642
        %7979 = vmatprep.subr.mxu0 0.0
        %7980 = vmatpush1.xpose.msra.mxu0 %v5644
        %7981 = vmatprep.subr.mxu0 0.0
        %7982 = vmatpush1.xpose.msra.mxu0 %v5646
        %7983 = vmatprep.subr.mxu0 0.0
        %7984 = vmatpush1.xpose.msra.mxu0 %v5648
        %7985 = vmatprep.subr.mxu0 0.0
        %7986 = vmatpush1.xpose.msra.mxu0 %v5650
        %7987 = vmatprep.subr.mxu0 0.0
        %7988 = vmatpush1.xpose.msra.mxu0 %v5652
        %7989 = vmatprep.mubr.f32.mxu0 0.0
        %7990 = vmatmul.mubr.f32.gmra.mrb[0].mxu0 %v7769
        %v7991 = vpop.f32.mrb[0].mxu0
        %v7992 = vadd.f32 0.0, %v7991
        %v7993 = vpop.f32.mrb[0].mxu0
        %v7994 = vadd.f32 0.0, %v7993
        %7995 = vdwg.mxu0
        %7996 = vmatprep.subr.mxu0 0.0
        %7997 = vmatpush1.xpose.msra.mxu0 %v5654
        %7998 = vmatprep.subr.mxu0 0.0
        %7999 = vmatpush1.xpose.msra.mxu0 %v5656
        %8000 = vmatprep.subr.mxu0 0.0
        %8001 = vmatpush1.xpose.msra.mxu0 %v5658
        %8002 = vmatprep.subr.mxu0 0.0
        %8003 = vmatpush1.xpose.msra.mxu0 %v5660
        %8004 = vmatprep.subr.mxu0 0.0
        %8005 = vmatpush1.xpose.msra.mxu0 %v5662
        %8006 = vmatprep.subr.mxu0 0.0
        %8007 = vmatpush1.xpose.msra.mxu0 %v5664
        %8008 = vmatprep.subr.mxu0 0.0
        %8009 = vmatpush1.xpose.msra.mxu0 %v5666
        %8010 = vmatprep.subr.mxu0 0.0
        %8011 = vmatpush1.xpose.msra.mxu0 %v5668
        %8012 = vmatprep.subr.mxu0 0.0
        %8013 = vmatpush1.xpose.msra.mxu0 %v5670
        %8014 = vmatprep.subr.mxu0 0.0
        %8015 = vmatpush1.xpose.msra.mxu0 %v5672
        %8016 = vmatprep.subr.mxu0 0.0
        %8017 = vmatpush1.xpose.msra.mxu0 %v5674
        %8018 = vmatprep.subr.mxu0 0.0
        %8019 = vmatpush1.xpose.msra.mxu0 %v5676
        %8020 = vmatprep.subr.mxu0 0.0
        %8021 = vmatpush1.xpose.msra.mxu0 %v5678
        %8022 = vmatprep.subr.mxu0 0.0
        %8023 = vmatpush1.xpose.msra.mxu0 %v5680
        %8024 = vmatprep.subr.mxu0 0.0
        %8025 = vmatpush1.xpose.msra.mxu0 %v5682
        %8026 = vmatprep.subr.mxu0 0.0
        %8027 = vmatpush1.xpose.msra.mxu0 %v5684
        %8028 = vmatprep.subr.mxu0 0.0
        %8029 = vmatpush1.xpose.msra.mxu0 %v5686
        %8030 = vmatprep.subr.mxu0 0.0
        %8031 = vmatpush1.xpose.msra.mxu0 %v5688
        %8032 = vmatprep.subr.mxu0 0.0
        %8033 = vmatpush1.xpose.msra.mxu0 %v5690
        %8034 = vmatprep.subr.mxu0 0.0
        %8035 = vmatpush1.xpose.msra.mxu0 %v5692
        %8036 = vmatprep.subr.mxu0 0.0
        %8037 = vmatpush1.xpose.msra.mxu0 %v5694
        %8038 = vmatprep.subr.mxu0 0.0
        %8039 = vmatpush1.xpose.msra.mxu0 %v5696
        %8040 = vmatprep.subr.mxu0 0.0
        %8041 = vmatpush1.xpose.msra.mxu0 %v5698
        %8042 = vmatprep.subr.mxu0 0.0
        %8043 = vmatpush1.xpose.msra.mxu0 %v5700
        %8044 = vmatprep.subr.mxu0 0.0
        %8045 = vmatpush1.xpose.msra.mxu0 %v6834
        %8046 = vmatprep.subr.mxu0 0.0
        %8047 = vmatpush1.xpose.msra.mxu0 %v6837
        %8048 = vmatprep.subr.mxu0 0.0
        %8049 = vmatpush1.xpose.msra.mxu0 %v6840
        %8050 = vmatprep.subr.mxu0 0.0
        %8051 = vmatpush1.xpose.msra.mxu0 %v6843
        %8052 = vmatprep.subr.mxu0 0.0
        %8053 = vmatpush1.xpose.msra.mxu0 %v7772
        %8054 = vmatprep.subr.mxu0 0.0
        %8055 = vmatpush1.xpose.msra.mxu0 %v7775
        %8056 = vmatprep.subr.mxu0 0.0
        %8057 = vmatpush1.xpose.msra.mxu0 %v7778
        %8058 = vmatprep.subr.mxu0 0.0
        %8059 = vmatpush1.xpose.msra.mxu0 %v7781
        %8060 = vmatprep.mubr.f32.mxu0 0.0
        %8061 = vmatmul.mubr.f32.gmra.mrb[0].mxu0 %v7769
        %v8062 = vpop.f32.mrb[0].mxu0
        %v8063 = vadd.f32 0.0, %v8062
        %v8064 = vpop.f32.mrb[0].mxu0
        %v8065 = vadd.f32 0.0, %v8064
        %8066 = vdwg.mxu0
        %v8067 = vadd.f32 %v7758, %v7850
        %v8068 = vadd.f32 %v7759, %v7852
        %v8069 = vadd.f32 %v7760, %v7921
        %v8070 = vadd.f32 %v7761, %v7923
        %v8071 = vadd.f32 %v7762, %v7992
        %v8072 = vadd.f32 %v7763, %v7994
        %v8073 = vadd.f32 %v7764, %v8063
        %v8074 = vadd.f32 %v7765, %v8065
        %v8076 = vrot.slane %v4443, 1
        %v8077 = vrot.slane %v4444, 1
        %v8078 = vsel %vm4609, %v8076, %v8077
        %v8079 = vrot.slane %v4445, 1
        %v8080 = vsel %vm4609, %v8077, %v8079
        %v8081 = vrot.slane %v4446, 1
        %v8082 = vsel %vm4609, %v8079, %v8081
        %v8083 = vrot.slane %v4447, 1
        %v8084 = vsel %vm4609, %v8081, %v8083
        %s8085 = scalar_lea.vmem %s1, 56
        %v8086 = vld [vmem:[%s8085] sm:$0xff]
        %v8088 = vsel %vm2825, %v8086, 0
        %v8090 = vsel %vm2825, %v8078, 0
        %v8092 = vsel %vm2825, %v8080, 0
        %v8094 = vsel %vm2825, %v8082, 0
        %v8096 = vsel %vm2825, %v8084, 0
        %8098 = vmatprep.subr.mxu0 0.0
        %8099 = vmatpush1.xpose.msra.mxu0 %v4919
        %8100 = vmatprep.subr.mxu0 0.0
        %8101 = vmatpush1.xpose.msra.mxu0 %v4921
        %8102 = vmatprep.subr.mxu0 0.0
        %8103 = vmatpush1.xpose.msra.mxu0 %v4923
        %8104 = vmatprep.subr.mxu0 0.0
        %8105 = vmatpush1.xpose.msra.mxu0 %v4925
        %8106 = vmatprep.subr.mxu0 0.0
        %8107 = vmatpush1.xpose.msra.mxu0 %v4927
        %8108 = vmatprep.subr.mxu0 0.0
        %8109 = vmatpush1.xpose.msra.mxu0 %v4929
        %8110 = vmatprep.subr.mxu0 0.0
        %8111 = vmatpush1.xpose.msra.mxu0 %v4931
        %8112 = vmatprep.subr.mxu0 0.0
        %8113 = vmatpush1.xpose.msra.mxu0 %v4933
        %8114 = vmatprep.subr.mxu0 0.0
        %8115 = vmatpush1.xpose.msra.mxu0 %v4935
        %8116 = vmatprep.subr.mxu0 0.0
        %8117 = vmatpush1.xpose.msra.mxu0 %v4937
        %8118 = vmatprep.subr.mxu0 0.0
        %8119 = vmatpush1.xpose.msra.mxu0 %v4939
        %8120 = vmatprep.subr.mxu0 0.0
        %8121 = vmatpush1.xpose.msra.mxu0 %v4941
        %8122 = vmatprep.subr.mxu0 0.0
        %8123 = vmatpush1.xpose.msra.mxu0 %v4943
        %8124 = vmatprep.subr.mxu0 0.0
        %8125 = vmatpush1.xpose.msra.mxu0 %v4945
        %8126 = vmatprep.subr.mxu0 0.0
        %8127 = vmatpush1.xpose.msra.mxu0 %v4947
        %8128 = vmatprep.subr.mxu0 0.0
        %8129 = vmatpush1.xpose.msra.mxu0 %v4949
        %8130 = vmatprep.subr.mxu0 0.0
        %8131 = vmatpush1.xpose.msra.mxu0 %v4951
        %8132 = vmatprep.subr.mxu0 0.0
        %8133 = vmatpush1.xpose.msra.mxu0 %v4953
        %8134 = vmatprep.subr.mxu0 0.0
        %8135 = vmatpush1.xpose.msra.mxu0 %v4955
        %8136 = vmatprep.subr.mxu0 0.0
        %8137 = vmatpush1.xpose.msra.mxu0 %v4957
        %8138 = vmatprep.subr.mxu0 0.0
        %8139 = vmatpush1.xpose.msra.mxu0 %v4959
        %8140 = vmatprep.subr.mxu0 0.0
        %8141 = vmatpush1.xpose.msra.mxu0 %v4961
        %8142 = vmatprep.subr.mxu0 0.0
        %8143 = vmatpush1.xpose.msra.mxu0 %v4963
        %8144 = vmatprep.subr.mxu0 0.0
        %8145 = vmatpush1.xpose.msra.mxu0 %v4965
        %8146 = vmatprep.subr.mxu0 0.0
        %8147 = vmatpush1.xpose.msra.mxu0 %v4967
        %8148 = vmatprep.subr.mxu0 0.0
        %8149 = vmatpush1.xpose.msra.mxu0 %v4969
        %8150 = vmatprep.subr.mxu0 0.0
        %8151 = vmatpush1.xpose.msra.mxu0 %v4971
        %8152 = vmatprep.subr.mxu0 0.0
        %8153 = vmatpush1.xpose.msra.mxu0 %v4973
        %8154 = vmatprep.subr.mxu0 0.0
        %8155 = vmatpush1.xpose.msra.mxu0 %v4975
        %8156 = vmatprep.subr.mxu0 0.0
        %8157 = vmatpush1.xpose.msra.mxu0 %v4977
        %8158 = vmatprep.subr.mxu0 0.0
        %8159 = vmatpush1.xpose.msra.mxu0 %v4979
        %8160 = vmatprep.subr.mxu0 0.0
        %8161 = vmatpush1.xpose.msra.mxu0 %v4981
        %8162 = vmatprep.mubr.f32.mxu0 0.0
        %8163 = vmatmul.mubr.f32.gmra.mrb[0].mxu0 %v8088
        %v8164 = vpop.f32.mrb[0].mxu0
        %v8165 = vadd.f32 0.0, %v8164
        %v8166 = vpop.f32.mrb[0].mxu0
        %v8167 = vadd.f32 0.0, %v8166
        %8168 = vdwg.mxu0
        %8169 = vmatprep.subr.mxu0 0.0
        %8170 = vmatpush1.xpose.msra.mxu0 %v4983
        %8171 = vmatprep.subr.mxu0 0.0
        %8172 = vmatpush1.xpose.msra.mxu0 %v4985
        %8173 = vmatprep.subr.mxu0 0.0
        %8174 = vmatpush1.xpose.msra.mxu0 %v4987
        %8175 = vmatprep.subr.mxu0 0.0
        %8176 = vmatpush1.xpose.msra.mxu0 %v4989
        %8177 = vmatprep.subr.mxu0 0.0
        %8178 = vmatpush1.xpose.msra.mxu0 %v4991
        %8179 = vmatprep.subr.mxu0 0.0
        %8180 = vmatpush1.xpose.msra.mxu0 %v4993
        %8181 = vmatprep.subr.mxu0 0.0
        %8182 = vmatpush1.xpose.msra.mxu0 %v4995
        %8183 = vmatprep.subr.mxu0 0.0
        %8184 = vmatpush1.xpose.msra.mxu0 %v4997
        %8185 = vmatprep.subr.mxu0 0.0
        %8186 = vmatpush1.xpose.msra.mxu0 %v4999
        %8187 = vmatprep.subr.mxu0 0.0
        %8188 = vmatpush1.xpose.msra.mxu0 %v5001
        %8189 = vmatprep.subr.mxu0 0.0
        %8190 = vmatpush1.xpose.msra.mxu0 %v5003
        %8191 = vmatprep.subr.mxu0 0.0
        %8192 = vmatpush1.xpose.msra.mxu0 %v5005
        %8193 = vmatprep.subr.mxu0 0.0
        %8194 = vmatpush1.xpose.msra.mxu0 %v5007
        %8195 = vmatprep.subr.mxu0 0.0
        %8196 = vmatpush1.xpose.msra.mxu0 %v5009
        %8197 = vmatprep.subr.mxu0 0.0
        %8198 = vmatpush1.xpose.msra.mxu0 %v5011
        %8199 = vmatprep.subr.mxu0 0.0
        %8200 = vmatpush1.xpose.msra.mxu0 %v5013
        %8201 = vmatprep.subr.mxu0 0.0
        %8202 = vmatpush1.xpose.msra.mxu0 %v5015
        %8203 = vmatprep.subr.mxu0 0.0
        %8204 = vmatpush1.xpose.msra.mxu0 %v5017
        %8205 = vmatprep.subr.mxu0 0.0
        %8206 = vmatpush1.xpose.msra.mxu0 %v5019
        %8207 = vmatprep.subr.mxu0 0.0
        %8208 = vmatpush1.xpose.msra.mxu0 %v5021
        %8209 = vmatprep.subr.mxu0 0.0
        %8210 = vmatpush1.xpose.msra.mxu0 %v5023
        %8211 = vmatprep.subr.mxu0 0.0
        %8212 = vmatpush1.xpose.msra.mxu0 %v5025
        %8213 = vmatprep.subr.mxu0 0.0
        %8214 = vmatpush1.xpose.msra.mxu0 %v5027
        %8215 = vmatprep.subr.mxu0 0.0
        %8216 = vmatpush1.xpose.msra.mxu0 %v5029
        %8217 = vmatprep.subr.mxu0 0.0
        %8218 = vmatpush1.xpose.msra.mxu0 %v5031
        %8219 = vmatprep.subr.mxu0 0.0
        %8220 = vmatpush1.xpose.msra.mxu0 %v5033
        %8221 = vmatprep.subr.mxu0 0.0
        %8222 = vmatpush1.xpose.msra.mxu0 %v5035
        %8223 = vmatprep.subr.mxu0 0.0
        %8224 = vmatpush1.xpose.msra.mxu0 %v5037
        %8225 = vmatprep.subr.mxu0 0.0
        %8226 = vmatpush1.xpose.msra.mxu0 %v5039
        %8227 = vmatprep.subr.mxu0 0.0
        %8228 = vmatpush1.xpose.msra.mxu0 %v5041
        %8229 = vmatprep.subr.mxu0 0.0
        %8230 = vmatpush1.xpose.msra.mxu0 %v5043
        %8231 = vmatprep.subr.mxu0 0.0
        %8232 = vmatpush1.xpose.msra.mxu0 %v5045
        %8233 = vmatprep.mubr.f32.mxu0 0.0
        %8234 = vmatmul.mubr.f32.gmra.mrb[0].mxu0 %v8088
        %v8235 = vpop.f32.mrb[0].mxu0
        %v8236 = vadd.f32 0.0, %v8235
        %v8237 = vpop.f32.mrb[0].mxu0
        %v8238 = vadd.f32 0.0, %v8237
        %8239 = vdwg.mxu0
        %8240 = vmatprep.subr.mxu0 0.0
        %8241 = vmatpush1.xpose.msra.mxu0 %v5047
        %8242 = vmatprep.subr.mxu0 0.0
        %8243 = vmatpush1.xpose.msra.mxu0 %v5049
        %8244 = vmatprep.subr.mxu0 0.0
        %8245 = vmatpush1.xpose.msra.mxu0 %v5051
        %8246 = vmatprep.subr.mxu0 0.0
        %8247 = vmatpush1.xpose.msra.mxu0 %v5053
        %8248 = vmatprep.subr.mxu0 0.0
        %8249 = vmatpush1.xpose.msra.mxu0 %v5055
        %8250 = vmatprep.subr.mxu0 0.0
        %8251 = vmatpush1.xpose.msra.mxu0 %v5057
        %8252 = vmatprep.subr.mxu0 0.0
        %8253 = vmatpush1.xpose.msra.mxu0 %v5059
        %8254 = vmatprep.subr.mxu0 0.0
        %8255 = vmatpush1.xpose.msra.mxu0 %v5061
        %8256 = vmatprep.subr.mxu0 0.0
        %8257 = vmatpush1.xpose.msra.mxu0 %v5063
        %8258 = vmatprep.subr.mxu0 0.0
        %8259 = vmatpush1.xpose.msra.mxu0 %v5065
        %8260 = vmatprep.subr.mxu0 0.0
        %8261 = vmatpush1.xpose.msra.mxu0 %v5067
        %8262 = vmatprep.subr.mxu0 0.0
        %8263 = vmatpush1.xpose.msra.mxu0 %v5069
        %8264 = vmatprep.subr.mxu0 0.0
        %8265 = vmatpush1.xpose.msra.mxu0 %v5071
        %8266 = vmatprep.subr.mxu0 0.0
        %8267 = vmatpush1.xpose.msra.mxu0 %v5073
        %8268 = vmatprep.subr.mxu0 0.0
        %8269 = vmatpush1.xpose.msra.mxu0 %v5075
        %8270 = vmatprep.subr.mxu0 0.0
        %8271 = vmatpush1.xpose.msra.mxu0 %v5077
        %8272 = vmatprep.subr.mxu0 0.0
        %8273 = vmatpush1.xpose.msra.mxu0 %v5079
        %8274 = vmatprep.subr.mxu0 0.0
        %8275 = vmatpush1.xpose.msra.mxu0 %v5081
        %8276 = vmatprep.subr.mxu0 0.0
        %8277 = vmatpush1.xpose.msra.mxu0 %v5083
        %8278 = vmatprep.subr.mxu0 0.0
        %8279 = vmatpush1.xpose.msra.mxu0 %v5085
        %8280 = vmatprep.subr.mxu0 0.0
        %8281 = vmatpush1.xpose.msra.mxu0 %v5087
        %8282 = vmatprep.subr.mxu0 0.0
        %8283 = vmatpush1.xpose.msra.mxu0 %v5089
        %8284 = vmatprep.subr.mxu0 0.0
        %8285 = vmatpush1.xpose.msra.mxu0 %v5091
        %8286 = vmatprep.subr.mxu0 0.0
        %8287 = vmatpush1.xpose.msra.mxu0 %v5093
        %8288 = vmatprep.subr.mxu0 0.0
        %8289 = vmatpush1.xpose.msra.mxu0 %v5095
        %8290 = vmatprep.subr.mxu0 0.0
        %8291 = vmatpush1.xpose.msra.mxu0 %v5097
        %8292 = vmatprep.subr.mxu0 0.0
        %8293 = vmatpush1.xpose.msra.mxu0 %v5099
        %8294 = vmatprep.subr.mxu0 0.0
        %8295 = vmatpush1.xpose.msra.mxu0 %v5101
        %8296 = vmatprep.subr.mxu0 0.0
        %8297 = vmatpush1.xpose.msra.mxu0 %v5103
        %8298 = vmatprep.subr.mxu0 0.0
        %8299 = vmatpush1.xpose.msra.mxu0 %v5105
        %8300 = vmatprep.subr.mxu0 0.0
        %8301 = vmatpush1.xpose.msra.mxu0 %v5107
        %8302 = vmatprep.subr.mxu0 0.0
        %8303 = vmatpush1.xpose.msra.mxu0 %v5109
        %8304 = vmatprep.mubr.f32.mxu0 0.0
        %8305 = vmatmul.mubr.f32.gmra.mrb[0].mxu0 %v8088
        %v8306 = vpop.f32.mrb[0].mxu0
        %v8307 = vadd.f32 0.0, %v8306
        %v8308 = vpop.f32.mrb[0].mxu0
        %v8309 = vadd.f32 0.0, %v8308
        %8310 = vdwg.mxu0
        %8311 = vmatprep.subr.mxu0 0.0
        %8312 = vmatpush1.xpose.msra.mxu0 %v5111
        %8313 = vmatprep.subr.mxu0 0.0
        %8314 = vmatpush1.xpose.msra.mxu0 %v5113
        %8315 = vmatprep.subr.mxu0 0.0
        %8316 = vmatpush1.xpose.msra.mxu0 %v5115
        %8317 = vmatprep.subr.mxu0 0.0
        %8318 = vmatpush1.xpose.msra.mxu0 %v5117
        %8319 = vmatprep.subr.mxu0 0.0
        %8320 = vmatpush1.xpose.msra.mxu0 %v5119
        %8321 = vmatprep.subr.mxu0 0.0
        %8322 = vmatpush1.xpose.msra.mxu0 %v5121
        %8323 = vmatprep.subr.mxu0 0.0
        %8324 = vmatpush1.xpose.msra.mxu0 %v5123
        %8325 = vmatprep.subr.mxu0 0.0
        %8326 = vmatpush1.xpose.msra.mxu0 %v5125
        %8327 = vmatprep.subr.mxu0 0.0
        %8328 = vmatpush1.xpose.msra.mxu0 %v5127
        %8329 = vmatprep.subr.mxu0 0.0
        %8330 = vmatpush1.xpose.msra.mxu0 %v5129
        %8331 = vmatprep.subr.mxu0 0.0
        %8332 = vmatpush1.xpose.msra.mxu0 %v5131
        %8333 = vmatprep.subr.mxu0 0.0
        %8334 = vmatpush1.xpose.msra.mxu0 %v5133
        %8335 = vmatprep.subr.mxu0 0.0
        %8336 = vmatpush1.xpose.msra.mxu0 %v5135
        %8337 = vmatprep.subr.mxu0 0.0
        %8338 = vmatpush1.xpose.msra.mxu0 %v5137
        %8339 = vmatprep.subr.mxu0 0.0
        %8340 = vmatpush1.xpose.msra.mxu0 %v5139
        %8341 = vmatprep.subr.mxu0 0.0
        %8342 = vmatpush1.xpose.msra.mxu0 %v5141
        %8343 = vmatprep.subr.mxu0 0.0
        %8344 = vmatpush1.xpose.msra.mxu0 %v5143
        %8345 = vmatprep.subr.mxu0 0.0
        %8346 = vmatpush1.xpose.msra.mxu0 %v5145
        %8347 = vmatprep.subr.mxu0 0.0
        %8348 = vmatpush1.xpose.msra.mxu0 %v5147
        %8349 = vmatprep.subr.mxu0 0.0
        %8350 = vmatpush1.xpose.msra.mxu0 %v5149
        %8351 = vmatprep.subr.mxu0 0.0
        %8352 = vmatpush1.xpose.msra.mxu0 %v5151
        %8353 = vmatprep.subr.mxu0 0.0
        %8354 = vmatpush1.xpose.msra.mxu0 %v5153
        %8355 = vmatprep.subr.mxu0 0.0
        %8356 = vmatpush1.xpose.msra.mxu0 %v5155
        %8357 = vmatprep.subr.mxu0 0.0
        %8358 = vmatpush1.xpose.msra.mxu0 %v5157
        %8359 = vmatprep.subr.mxu0 0.0
        %8360 = vmatpush1.xpose.msra.mxu0 %v7152
        %8361 = vmatprep.subr.mxu0 0.0
        %8362 = vmatpush1.xpose.msra.mxu0 %v7154
        %8363 = vmatprep.subr.mxu0 0.0
        %8364 = vmatpush1.xpose.msra.mxu0 %v7156
        %8365 = vmatprep.subr.mxu0 0.0
        %8366 = vmatpush1.xpose.msra.mxu0 %v7158
        %8367 = vmatprep.subr.mxu0 0.0
        %8368 = vmatpush1.xpose.msra.mxu0 %v8090
        %8369 = vmatprep.subr.mxu0 0.0
        %8370 = vmatpush1.xpose.msra.mxu0 %v8092
        %8371 = vmatprep.subr.mxu0 0.0
        %8372 = vmatpush1.xpose.msra.mxu0 %v8094
        %8373 = vmatprep.subr.mxu0 0.0
        %8374 = vmatpush1.xpose.msra.mxu0 %v8096
        %8375 = vmatprep.mubr.f32.mxu0 0.0
        %8376 = vmatmul.mubr.f32.gmra.mrb[0].mxu0 %v8088
        %v8377 = vpop.f32.mrb[0].mxu0
        %v8378 = vadd.f32 0.0, %v8377
        %v8379 = vpop.f32.mrb[0].mxu0
        %v8380 = vadd.f32 0.0, %v8379
        %8381 = vdwg.mxu0
        %v8382 = vadd.f32 %v8067, %v8165
        %v8383 = vadd.f32 %v8068, %v8167
        %v8384 = vadd.f32 %v8069, %v8236
        %v8385 = vadd.f32 %v8070, %v8238
        %v8386 = vadd.f32 %v8071, %v8307
        %v8387 = vadd.f32 %v8072, %v8309
        %v8388 = vadd.f32 %v8073, %v8378
        %v8389 = vadd.f32 %v8074, %v8380
        %v8390 = vrot.slane %v4443, 2
        %v8391 = vrot.slane %v4444, 2
        %v8392 = vsel %vm5986, %v8390, %v8391
        %v8393 = vrot.slane %v4445, 2
        %v8394 = vsel %vm5986, %v8391, %v8393
        %v8395 = vrot.slane %v4446, 2
        %v8396 = vsel %vm5986, %v8393, %v8395
        %v8397 = vrot.slane %v4447, 2
        %v8398 = vsel %vm5986, %v8395, %v8397
        %s8399 = scalar_lea.vmem %s1, 64
        %v8400 = vld [vmem:[%s8399] sm:$0xff]
        %v8402 = vsel %vm2825, %v8400, 0
        %v8404 = vsel %vm2825, %v8392, 0
        %v8406 = vsel %vm2825, %v8394, 0
        %v8408 = vsel %vm2825, %v8396, 0
        %v8410 = vsel %vm2825, %v8398, 0
        %8412 = vmatprep.subr.mxu0 0.0
        %8413 = vmatpush1.xpose.msra.mxu0 %v6296
        %8414 = vmatprep.subr.mxu0 0.0
        %8415 = vmatpush1.xpose.msra.mxu0 %v6298
        %8416 = vmatprep.subr.mxu0 0.0
        %8417 = vmatpush1.xpose.msra.mxu0 %v6300
        %8418 = vmatprep.subr.mxu0 0.0
        %8419 = vmatpush1.xpose.msra.mxu0 %v6302
        %8420 = vmatprep.subr.mxu0 0.0
        %8421 = vmatpush1.xpose.msra.mxu0 %v6304
        %8422 = vmatprep.subr.mxu0 0.0
        %8423 = vmatpush1.xpose.msra.mxu0 %v6306
        %8424 = vmatprep.subr.mxu0 0.0
        %8425 = vmatpush1.xpose.msra.mxu0 %v6308
        %8426 = vmatprep.subr.mxu0 0.0
        %8427 = vmatpush1.xpose.msra.mxu0 %v6310
        %8428 = vmatprep.subr.mxu0 0.0
        %8429 = vmatpush1.xpose.msra.mxu0 %v6312
        %8430 = vmatprep.subr.mxu0 0.0
        %8431 = vmatpush1.xpose.msra.mxu0 %v6314
        %8432 = vmatprep.subr.mxu0 0.0
        %8433 = vmatpush1.xpose.msra.mxu0 %v6316
        %8434 = vmatprep.subr.mxu0 0.0
        %8435 = vmatpush1.xpose.msra.mxu0 %v6318
        %8436 = vmatprep.subr.mxu0 0.0
        %8437 = vmatpush1.xpose.msra.mxu0 %v6320
        %8438 = vmatprep.subr.mxu0 0.0
        %8439 = vmatpush1.xpose.msra.mxu0 %v6322
        %8440 = vmatprep.subr.mxu0 0.0
        %8441 = vmatpush1.xpose.msra.mxu0 %v6324
        %8442 = vmatprep.subr.mxu0 0.0
        %8443 = vmatpush1.xpose.msra.mxu0 %v6326
        %8444 = vmatprep.subr.mxu0 0.0
        %8445 = vmatpush1.xpose.msra.mxu0 %v6328
        %8446 = vmatprep.subr.mxu0 0.0
        %8447 = vmatpush1.xpose.msra.mxu0 %v6330
        %8448 = vmatprep.subr.mxu0 0.0
        %8449 = vmatpush1.xpose.msra.mxu0 %v6332
        %8450 = vmatprep.subr.mxu0 0.0
        %8451 = vmatpush1.xpose.msra.mxu0 %v6334
        %8452 = vmatprep.subr.mxu0 0.0
        %8453 = vmatpush1.xpose.msra.mxu0 %v6336
        %8454 = vmatprep.subr.mxu0 0.0
        %8455 = vmatpush1.xpose.msra.mxu0 %v6338
        %8456 = vmatprep.subr.mxu0 0.0
        %8457 = vmatpush1.xpose.msra.mxu0 %v6340
        %8458 = vmatprep.subr.mxu0 0.0
        %8459 = vmatpush1.xpose.msra.mxu0 %v6342
        %8460 = vmatprep.subr.mxu0 0.0
        %8461 = vmatpush1.xpose.msra.mxu0 %v6344
        %8462 = vmatprep.subr.mxu0 0.0
        %8463 = vmatpush1.xpose.msra.mxu0 %v6346
        %8464 = vmatprep.subr.mxu0 0.0
        %8465 = vmatpush1.xpose.msra.mxu0 %v6348
        %8466 = vmatprep.subr.mxu0 0.0
        %8467 = vmatpush1.xpose.msra.mxu0 %v6350
        %8468 = vmatprep.subr.mxu0 0.0
        %8469 = vmatpush1.xpose.msra.mxu0 %v6352
        %8470 = vmatprep.subr.mxu0 0.0
        %8471 = vmatpush1.xpose.msra.mxu0 %v6354
        %8472 = vmatprep.subr.mxu0 0.0
        %8473 = vmatpush1.xpose.msra.mxu0 %v6356
        %8474 = vmatprep.subr.mxu0 0.0
        %8475 = vmatpush1.xpose.msra.mxu0 %v6358
        %8476 = vmatprep.mubr.f32.mxu0 0.0
        %8477 = vmatmul.mubr.f32.gmra.mrb[0].mxu0 %v8402
        %v8478 = vpop.f32.mrb[0].mxu0
        %v8479 = vadd.f32 0.0, %v8478
        %v8480 = vpop.f32.mrb[0].mxu0
        %v8481 = vadd.f32 0.0, %v8480
        %8482 = vdwg.mxu0
        %8483 = vmatprep.subr.mxu0 0.0
        %8484 = vmatpush1.xpose.msra.mxu0 %v6360
        %8485 = vmatprep.subr.mxu0 0.0
        %8486 = vmatpush1.xpose.msra.mxu0 %v6362
        %8487 = vmatprep.subr.mxu0 0.0
        %8488 = vmatpush1.xpose.msra.mxu0 %v6364
        %8489 = vmatprep.subr.mxu0 0.0
        %8490 = vmatpush1.xpose.msra.mxu0 %v6366
        %8491 = vmatprep.subr.mxu0 0.0
        %8492 = vmatpush1.xpose.msra.mxu0 %v6368
        %8493 = vmatprep.subr.mxu0 0.0
        %8494 = vmatpush1.xpose.msra.mxu0 %v6370
        %8495 = vmatprep.subr.mxu0 0.0
        %8496 = vmatpush1.xpose.msra.mxu0 %v6372
        %8497 = vmatprep.subr.mxu0 0.0
        %8498 = vmatpush1.xpose.msra.mxu0 %v6374
        %8499 = vmatprep.subr.mxu0 0.0
        %8500 = vmatpush1.xpose.msra.mxu0 %v6376
        %8501 = vmatprep.subr.mxu0 0.0
        %8502 = vmatpush1.xpose.msra.mxu0 %v6378
        %8503 = vmatprep.subr.mxu0 0.0
        %8504 = vmatpush1.xpose.msra.mxu0 %v6380
        %8505 = vmatprep.subr.mxu0 0.0
        %8506 = vmatpush1.xpose.msra.mxu0 %v6382
        %8507 = vmatprep.subr.mxu0 0.0
        %8508 = vmatpush1.xpose.msra.mxu0 %v6384
        %8509 = vmatprep.subr.mxu0 0.0
        %8510 = vmatpush1.xpose.msra.mxu0 %v6386
        %8511 = vmatprep.subr.mxu0 0.0
        %8512 = vmatpush1.xpose.msra.mxu0 %v6388
        %8513 = vmatprep.subr.mxu0 0.0
        %8514 = vmatpush1.xpose.msra.mxu0 %v6390
        %8515 = vmatprep.subr.mxu0 0.0
        %8516 = vmatpush1.xpose.msra.mxu0 %v6392
        %8517 = vmatprep.subr.mxu0 0.0
        %8518 = vmatpush1.xpose.msra.mxu0 %v6394
        %8519 = vmatprep.subr.mxu0 0.0
        %8520 = vmatpush1.xpose.msra.mxu0 %v6396
        %8521 = vmatprep.subr.mxu0 0.0
        %8522 = vmatpush1.xpose.msra.mxu0 %v6398
        %8523 = vmatprep.subr.mxu0 0.0
        %8524 = vmatpush1.xpose.msra.mxu0 %v6400
        %8525 = vmatprep.subr.mxu0 0.0
        %8526 = vmatpush1.xpose.msra.mxu0 %v6402
        %8527 = vmatprep.subr.mxu0 0.0
        %8528 = vmatpush1.xpose.msra.mxu0 %v6404
        %8529 = vmatprep.subr.mxu0 0.0
        %8530 = vmatpush1.xpose.msra.mxu0 %v6406
        %8531 = vmatprep.subr.mxu0 0.0
        %8532 = vmatpush1.xpose.msra.mxu0 %v6408
        %8533 = vmatprep.subr.mxu0 0.0
        %8534 = vmatpush1.xpose.msra.mxu0 %v6410
        %8535 = vmatprep.subr.mxu0 0.0
        %8536 = vmatpush1.xpose.msra.mxu0 %v6412
        %8537 = vmatprep.subr.mxu0 0.0
        %8538 = vmatpush1.xpose.msra.mxu0 %v6414
        %8539 = vmatprep.subr.mxu0 0.0
        %8540 = vmatpush1.xpose.msra.mxu0 %v6416
        %8541 = vmatprep.subr.mxu0 0.0
        %8542 = vmatpush1.xpose.msra.mxu0 %v6418
        %8543 = vmatprep.subr.mxu0 0.0
        %8544 = vmatpush1.xpose.msra.mxu0 %v6420
        %8545 = vmatprep.subr.mxu0 0.0
        %8546 = vmatpush1.xpose.msra.mxu0 %v6422
        %8547 = vmatprep.mubr.f32.mxu0 0.0
        %8548 = vmatmul.mubr.f32.gmra.mrb[0].mxu0 %v8402
        %v8549 = vpop.f32.mrb[0].mxu0
        %v8550 = vadd.f32 0.0, %v8549
        %v8551 = vpop.f32.mrb[0].mxu0
        %v8552 = vadd.f32 0.0, %v8551
        %8553 = vdwg.mxu0
        %8554 = vmatprep.subr.mxu0 0.0
        %8555 = vmatpush1.xpose.msra.mxu0 %v6424
        %8556 = vmatprep.subr.mxu0 0.0
        %8557 = vmatpush1.xpose.msra.mxu0 %v6426
        %8558 = vmatprep.subr.mxu0 0.0
        %8559 = vmatpush1.xpose.msra.mxu0 %v6428
        %8560 = vmatprep.subr.mxu0 0.0
        %8561 = vmatpush1.xpose.msra.mxu0 %v6430
        %8562 = vmatprep.subr.mxu0 0.0
        %8563 = vmatpush1.xpose.msra.mxu0 %v6432
        %8564 = vmatprep.subr.mxu0 0.0
        %8565 = vmatpush1.xpose.msra.mxu0 %v6434
        %8566 = vmatprep.subr.mxu0 0.0
        %8567 = vmatpush1.xpose.msra.mxu0 %v6436
        %8568 = vmatprep.subr.mxu0 0.0
        %8569 = vmatpush1.xpose.msra.mxu0 %v6438
        %8570 = vmatprep.subr.mxu0 0.0
        %8571 = vmatpush1.xpose.msra.mxu0 %v6440
        %8572 = vmatprep.subr.mxu0 0.0
        %8573 = vmatpush1.xpose.msra.mxu0 %v6442
        %8574 = vmatprep.subr.mxu0 0.0
        %8575 = vmatpush1.xpose.msra.mxu0 %v6444
        %8576 = vmatprep.subr.mxu0 0.0
        %8577 = vmatpush1.xpose.msra.mxu0 %v6446
        %8578 = vmatprep.subr.mxu0 0.0
        %8579 = vmatpush1.xpose.msra.mxu0 %v6448
        %8580 = vmatprep.subr.mxu0 0.0
        %8581 = vmatpush1.xpose.msra.mxu0 %v6450
        %8582 = vmatprep.subr.mxu0 0.0
        %8583 = vmatpush1.xpose.msra.mxu0 %v6452
        %8584 = vmatprep.subr.mxu0 0.0
        %8585 = vmatpush1.xpose.msra.mxu0 %v6454
        %8586 = vmatprep.subr.mxu0 0.0
        %8587 = vmatpush1.xpose.msra.mxu0 %v6456
        %8588 = vmatprep.subr.mxu0 0.0
        %8589 = vmatpush1.xpose.msra.mxu0 %v6458
        %8590 = vmatprep.subr.mxu0 0.0
        %8591 = vmatpush1.xpose.msra.mxu0 %v6460
        %8592 = vmatprep.subr.mxu0 0.0
        %8593 = vmatpush1.xpose.msra.mxu0 %v6462
        %8594 = vmatprep.subr.mxu0 0.0
        %8595 = vmatpush1.xpose.msra.mxu0 %v6464
        %8596 = vmatprep.subr.mxu0 0.0
        %8597 = vmatpush1.xpose.msra.mxu0 %v6466
        %8598 = vmatprep.subr.mxu0 0.0
        %8599 = vmatpush1.xpose.msra.mxu0 %v6468
        %8600 = vmatprep.subr.mxu0 0.0
        %8601 = vmatpush1.xpose.msra.mxu0 %v6470
        %8602 = vmatprep.subr.mxu0 0.0
        %8603 = vmatpush1.xpose.msra.mxu0 %v6472
        %8604 = vmatprep.subr.mxu0 0.0
        %8605 = vmatpush1.xpose.msra.mxu0 %v6474
        %8606 = vmatprep.subr.mxu0 0.0
        %8607 = vmatpush1.xpose.msra.mxu0 %v6476
        %8608 = vmatprep.subr.mxu0 0.0
        %8609 = vmatpush1.xpose.msra.mxu0 %v6478
        %8610 = vmatprep.subr.mxu0 0.0
        %8611 = vmatpush1.xpose.msra.mxu0 %v6480
        %8612 = vmatprep.subr.mxu0 0.0
        %8613 = vmatpush1.xpose.msra.mxu0 %v6482
        %8614 = vmatprep.subr.mxu0 0.0
        %8615 = vmatpush1.xpose.msra.mxu0 %v6484
        %8616 = vmatprep.subr.mxu0 0.0
        %8617 = vmatpush1.xpose.msra.mxu0 %v6486
        %8618 = vmatprep.mubr.f32.mxu0 0.0
        %8619 = vmatmul.mubr.f32.gmra.mrb[0].mxu0 %v8402
        %v8620 = vpop.f32.mrb[0].mxu0
        %v8621 = vadd.f32 0.0, %v8620
        %v8622 = vpop.f32.mrb[0].mxu0
        %v8623 = vadd.f32 0.0, %v8622
        %8624 = vdwg.mxu0
        %8625 = vmatprep.subr.mxu0 0.0
        %8626 = vmatpush1.xpose.msra.mxu0 %v6488
        %8627 = vmatprep.subr.mxu0 0.0
        %8628 = vmatpush1.xpose.msra.mxu0 %v6490
        %8629 = vmatprep.subr.mxu0 0.0
        %8630 = vmatpush1.xpose.msra.mxu0 %v6492
        %8631 = vmatprep.subr.mxu0 0.0
        %8632 = vmatpush1.xpose.msra.mxu0 %v6494
        %8633 = vmatprep.subr.mxu0 0.0
        %8634 = vmatpush1.xpose.msra.mxu0 %v6496
        %8635 = vmatprep.subr.mxu0 0.0
        %8636 = vmatpush1.xpose.msra.mxu0 %v6498
        %8637 = vmatprep.subr.mxu0 0.0
        %8638 = vmatpush1.xpose.msra.mxu0 %v6500
        %8639 = vmatprep.subr.mxu0 0.0
        %8640 = vmatpush1.xpose.msra.mxu0 %v6502
        %8641 = vmatprep.subr.mxu0 0.0
        %8642 = vmatpush1.xpose.msra.mxu0 %v6504
        %8643 = vmatprep.subr.mxu0 0.0
        %8644 = vmatpush1.xpose.msra.mxu0 %v6506
        %8645 = vmatprep.subr.mxu0 0.0
        %8646 = vmatpush1.xpose.msra.mxu0 %v6508
        %8647 = vmatprep.subr.mxu0 0.0
        %8648 = vmatpush1.xpose.msra.mxu0 %v6510
        %8649 = vmatprep.subr.mxu0 0.0
        %8650 = vmatpush1.xpose.msra.mxu0 %v6512
        %8651 = vmatprep.subr.mxu0 0.0
        %8652 = vmatpush1.xpose.msra.mxu0 %v6514
        %8653 = vmatprep.subr.mxu0 0.0
        %8654 = vmatpush1.xpose.msra.mxu0 %v6516
        %8655 = vmatprep.subr.mxu0 0.0
        %8656 = vmatpush1.xpose.msra.mxu0 %v6518
        %8657 = vmatprep.subr.mxu0 0.0
        %8658 = vmatpush1.xpose.msra.mxu0 %v6520
        %8659 = vmatprep.subr.mxu0 0.0
        %8660 = vmatpush1.xpose.msra.mxu0 %v6522
        %8661 = vmatprep.subr.mxu0 0.0
        %8662 = vmatpush1.xpose.msra.mxu0 %v6524
        %8663 = vmatprep.subr.mxu0 0.0
        %8664 = vmatpush1.xpose.msra.mxu0 %v6526
        %8665 = vmatprep.subr.mxu0 0.0
        %8666 = vmatpush1.xpose.msra.mxu0 %v6528
        %8667 = vmatprep.subr.mxu0 0.0
        %8668 = vmatpush1.xpose.msra.mxu0 %v6530
        %8669 = vmatprep.subr.mxu0 0.0
        %8670 = vmatpush1.xpose.msra.mxu0 %v6532
        %8671 = vmatprep.subr.mxu0 0.0
        %8672 = vmatpush1.xpose.msra.mxu0 %v6534
        %8673 = vmatprep.subr.mxu0 0.0
        %8674 = vmatpush1.xpose.msra.mxu0 %v7466
        %8675 = vmatprep.subr.mxu0 0.0
        %8676 = vmatpush1.xpose.msra.mxu0 %v7468
        %8677 = vmatprep.subr.mxu0 0.0
        %8678 = vmatpush1.xpose.msra.mxu0 %v7470
        %8679 = vmatprep.subr.mxu0 0.0
        %8680 = vmatpush1.xpose.msra.mxu0 %v7472
        %8681 = vmatprep.subr.mxu0 0.0
        %8682 = vmatpush1.xpose.msra.mxu0 %v8404
        %8683 = vmatprep.subr.mxu0 0.0
        %8684 = vmatpush1.xpose.msra.mxu0 %v8406
        %8685 = vmatprep.subr.mxu0 0.0
        %8686 = vmatpush1.xpose.msra.mxu0 %v8408
        %8687 = vmatprep.subr.mxu0 0.0
        %8688 = vmatpush1.xpose.msra.mxu0 %v8410
        %8689 = vmatprep.mubr.f32.mxu0 0.0
        %8690 = vmatmul.mubr.f32.gmra.mrb[0].mxu0 %v8402
        %v8691 = vpop.f32.mrb[0].mxu0
        %v8692 = vadd.f32 0.0, %v8691
        %v8693 = vpop.f32.mrb[0].mxu0
        %v8694 = vadd.f32 0.0, %v8693
        %8695 = vdwg.mxu0
        %v8696 = vadd.f32 %v8382, %v8479
        %v8697 = vadd.f32 %v8383, %v8481
        %v8698 = vadd.f32 %v8384, %v8550
        %v8699 = vadd.f32 %v8385, %v8552
        %v8700 = vadd.f32 %v8386, %v8621
        %v8701 = vadd.f32 %v8387, %v8623
        %v8702 = vadd.f32 %v8388, %v8692
        %v8703 = vadd.f32 %v8389, %v8694
        %v8704 = vld [vmem:[%s2] sm:$0xff]
        %8706 = vset.pattern.permute.xlu0 0
        %8707 = vperm.xlu0 %8706, %v8704
        %v8708 = vpop.permute.xlu0 %8707
        %v8710 = vadd.f32 %v8696, %v8708
        %v8711 = vadd.f32 %v8697, %v8708
        %v8712 = vadd.f32 %v8698, %v8708
        %v8713 = vadd.f32 %v8699, %v8708
        %v8714 = vadd.f32 %v8700, %v8708
        %v8715 = vadd.f32 %v8701, %v8708
        %v8716 = vadd.f32 %v8702, %v8708
        %v8717 = vadd.f32 %v8703, %v8708
        %8718 = vst [vmem:[%s163] sm:$0xff] %v8710
        %8719 = vst [vmem:[%s163 + $0x8] sm:$0xff] %v8711
        %8720 = vst [vmem:[%s163 + $0x10] sm:$0xff] %v8712
        %8721 = vst [vmem:[%s163 + $0x18] sm:$0xff] %v8713
        %8722 = vst [vmem:[%s163 + $0x20] sm:$0xff] %v8714
        %8723 = vst [vmem:[%s163 + $0x28] sm:$0xff] %v8715
        %8724 = vst [vmem:[%s163 + $0x30] sm:$0xff] %v8716
        %8725 = vst [vmem:[%s163 + $0x38] sm:$0xff] %v8717
        %s8726 = sand.u32 %s93, 1
        %s8727 = scalar_lea.sflag [#allocation4], %s8726
        %s8728 = sand.u32 %s93, 1
        %s8729 = smul.addr %s8728, 64
        %s8730 = scalar_lea.vmem [#allocation3], %s8729
        // Predicated region
        $region33: #{tpu_custom_call.1} parent=31 // pred_check
          %p8731 = pneg %p103
        $region34: #{tpu_custom_call.1} parent=31 // pred_check_branch
          %8733 = sbr.rel (%p8731) target = $region36
        $region35: #{tpu_custom_call.1} parent=31 // pred_region
          %s8735 = ssub.s32 1024, 1024
          %8736 = vsyncadd %s8727, %s8735
          %s8737 = smul.addr %s17, 8
          %s8738 = smul.addr %s8737, 128
          %s8739 = scalar_lea.hbm %s3, %s8738
          %s8741 = sshll.u32 %s8730, 4
          %s8742 = int_to_ptr.vmem [resolvable:$true] %s8741
          %8744 = dma.vmem_to_hbm [thread:$0]  %s8742, 1024, %s8739, %s8727
        $region36: #{tpu_custom_call.1} parent=31 // pred_fallthru
          _
      $region32: #{tpu_custom_call.1} parent=5 // pred_fallthru
        _
      %p8745 = scmp.le.s32.totalorder 2, %s12
      // Predicated region
      $region37: #{tpu_custom_call.1} parent=5 // pred_check
        %p8746 = pneg %p8745
      $region38: #{tpu_custom_call.1} parent=5 // pred_check_branch
        %8748 = sbr.rel (%p8746) target = $region40
      $region39: #{tpu_custom_call.1} parent=5 // pred_region
        %s8749 = ssub.s32 %s12, 2
        // Predicated region
        $region41: #{tpu_custom_call.1} parent=39 // pred_check
          %p8750 = pneg %p109
        $region42: #{tpu_custom_call.1} parent=39 // pred_check_branch
          %8752 = sbr.rel (%p8750) target = $region44
        $region43: #{tpu_custom_call.1} parent=39 // pred_region
          %s8753 = sand.u32 %s94, 1
          %s8754 = scalar_lea.sflag [#allocation4], %s8753
          %s8755 = sand.u32 %s94, 1
          %s8756 = smul.addr %s8755, 64
          %s8757 = scalar_lea.vmem [#allocation3], %s8756
          %8758 = dma.done %s8754, 1024
        $region44: #{tpu_custom_call.1} parent=39 // pred_fallthru
          _
      $region40: #{tpu_custom_call.1} parent=5 // pred_fallthru
        _
    $region6: #{tpu_custom_call.1} parent=1 // loop_footer
      %s16 = sadd.s32 1, %s12
    $region7: #{tpu_custom_call.1} parent=1 // loop_footer_branch
      %11 = sbr.rel target = $region3
    $region8: #{tpu_custom_call.1} parent=1 // loop_exit
      _
    %8759 = vsyncpa [#allocation4], 1
    %s8760 = scalar_lea.sflag [#allocation4], 1
    %8761 = vsyncpa %s8760, 1

</llo_original>
